<compile_context>
chip_gen: v7x
topology: tpu7x:2x2x1
jax: 0.10.0
libtpu: 0.0.40
codegen_flags: <defaults>
</compile_context>

<pallas_src>
import functools

import jax
import jax.numpy as jnp
from jax import lax
from jax.experimental import pallas as pl
from jax.experimental.pallas import tpu as pltpu


HALO = 128    # left/right zero halo (lanes) of the flattened conv buffers
CHUNK = 128   # spatial positions (lanes) processed per inner step


def _col_masks(cs, W, K, pad):
    """Per-dx lane masks (row-wrap guard) for a KxK conv at chunk start `cs`.

    Entry dx is None when that column offset never leaves the image row,
    otherwise a (1, CHUNK) bool mask, True where the tap stays in-row.  Masks
    depend only on dx, so K masks replace the K*K per-tap masks.
    """
    wcol = (lax.broadcasted_iota(jnp.int32, (1, CHUNK), 1) + cs) % W
    masks = []
    for dx in range(K):
        lo, hi = pad - dx, W + pad - dx
        masks.append(None if (lo <= 0 and hi >= W)
                     else jnp.logical_and(wcol >= lo, wcol < hi))
    return masks


# ---------------------------------------------------------------------------
# Fused InceptionA kernel (one grid step = one batch element)
# ---------------------------------------------------------------------------
def _inception_a_kernel(
    x_ref,                      # (1, Cin, HWp) f32        input, NC(HW) layout
    wh_ref, bh_ref,             # (176+pf, Cin) bf16, (176,1) f32  merged heads
    w5_ref, b5_ref,             # (5, 64, 5*48) bf16, (64,1) f32   branch5x5_2
    w3a_ref, b3a_ref,           # (3, 96, 3*64) bf16, (96,1) f32   branch3x3dbl_2
    w3b_ref, b3b_ref,           # (3, 96, 3*96) bf16, (96,1) f32   branch3x3dbl_3
    bp_ref,                     # (pf, 1) f32              branch_pool bias
    o_ref,                      # (1, 224+pf, HWp) f32     concatenated output
    buf5, buf3a, buf3b, bufp,   # f32 VMEM flat halo buffers
    *, W, HW, pf,
):
    f32 = jnp.float32
    bf16 = jnp.bfloat16
    HWp = x_ref.shape[2]               # padded flattened spatial (mult of 128)
    nchunks = HWp // CHUNK

    C1, C5, C3 = 64, 64, 96
    o5, o3, opool = C1, C1 + C5, C1 + C5 + C3
    n_head = C1 + 48 + 64              # 176 head rows that get bias + ReLU

    # ---- zero the buffer halos once (scratch persists across grid steps) ---
    @pl.when(pl.program_id(0) == 0)
    def _zero_halos():
        for buf in (buf5, buf3a, buf3b, bufp):
            nc = buf.shape[0]
            buf[:, :HALO] = jnp.zeros((nc, HALO), f32)
            buf[:, HALO + HWp:] = jnp.zeros((nc, HALO), f32)

    def valid_mask(cs):
        # (1, CHUNK) mask "flattened position < HW"; None if chunk is inside.
        if cs + CHUNK <= HW:
            return None
        pos = lax.broadcasted_iota(jnp.int32, (1, CHUNK), 1) + cs
        return pos < HW

    # ---- phase 1: merged 1x1 heads (b1x1 / b5x5_1 / b3x3dbl_1 / pool head) --
    wh = wh_ref[...]
    bh = bh_ref[...]
    for c in range(nchunks):
        cs = c * CHUNK
        xck = x_ref[0, :, cs:cs + CHUNK]                         # (Cin, CHUNK)
        heads = jnp.dot(wh, xck.astype(bf16),
                        preferred_element_type=f32)              # (176+pf, CHUNK)
        act = jnp.maximum(heads[0:n_head, :] + bh, 0.0)
        # branch1x1 -> output channels [0, 64)
        o_ref[0, 0:C1, cs:cs + CHUNK] = act[0:C1, :].astype(o_ref.dtype)
        a5 = act[C1:C1 + 48, :]
        a3 = act[C1 + 48:n_head, :]
        vm = valid_mask(cs)
        if vm is not None:                  # keep padded spatial tail at zero
            a5 = jnp.where(vm, a5, 0.0)
            a3 = jnp.where(vm, a3, 0.0)
        buf5[:, HALO + cs:HALO + cs + CHUNK] = a5
        buf3a[:, HALO + cs:HALO + cs + CHUNK] = a3
        # pool-branch head pre-activation (1x1 conv commuted through the
        # avg-pool): NO bias / ReLU here; padded tail is W_pool @ 0 == 0.
        bufp[:, HALO + cs:HALO + cs + CHUNK] = heads[n_head:n_head + pf, :]

    # ---- phase 2: branch_pool = 3x3 sum-pool(pre-act)/9 + bias, ReLU --------
    base1 = HALO - (W + 1)                                        # pad = 1
    bp = jnp.broadcast_to(bp_ref[...], (pf, CHUNK))
    for c in range(nchunks):
        cs = c * CHUNK
        masks = _col_masks(cs, W, 3, 1)
        pooled = jnp.zeros((pf, CHUNK), f32)
        for dx in range(3):
            s0 = base1 + dx + cs
            part = (bufp[:, s0:s0 + CHUNK]
                    + bufp[:, s0 + W:s0 + W + CHUNK]
                    + bufp[:, s0 + 2 * W:s0 + 2 * W + CHUNK])
            if masks[dx] is not None:
                part = jnp.where(masks[dx], part, 0.0)
            pooled = pooled + part
        outp = jnp.maximum(pooled * (1.0 / 9.0) + bp, 0.0)  # count_include_pad
        o_ref[0, opool:opool + pf, cs:cs + CHUNK] = outp.astype(o_ref.dtype)

    # ---- KxK conv on a flat halo buffer: one dy-stacked matmul per dx -------
    def conv_chunk(src_buf, w_ref, K, pad, cs, masks):
        Cout = w_ref.shape[1]
        base = HALO - pad * (W + 1)
        acc = jnp.zeros((Cout, CHUNK), f32)
        for dx in range(K):
            s0 = base + dx + cs
            patch = jnp.concatenate(
                [src_buf[:, s0 + dy * W:s0 + dy * W + CHUNK] for dy in range(K)],
                axis=0)                                    # (K*Cin, CHUNK)
            r = jnp.dot(w_ref[dx], patch.astype(bf16),
                        preferred_element_type=f32)        # (Cout, CHUNK)
            if masks[dx] is not None:
                r = jnp.where(masks[dx], r, 0.0)
            acc = acc + r
        return acc

    # ---- phase 3: branch5x5_2 (5x5, 48 -> 64) -------------------------------
    b5 = jnp.broadcast_to(b5_ref[...], (C5, CHUNK))
    for c in range(nchunks):
        cs = c * CHUNK
        acc = conv_chunk(buf5, w5_ref, 5, 2, cs, _col_masks(cs, W, 5, 2))
        o_ref[0, o5:o5 + C5, cs:cs + CHUNK] = (
            jnp.maximum(acc + b5, 0.0).astype(o_ref.dtype))

    # ---- phase 4: branch3x3dbl_2 (3x3, 64 -> 96) -> halo buffer -------------
    b3a = jnp.broadcast_to(b3a_ref[...], (C3, CHUNK))
    for c in range(nchunks):
        cs = c * CHUNK
        acc = conv_chunk(buf3a, w3a_ref, 3, 1, cs, _col_masks(cs, W, 3, 1))
        act = jnp.maximum(acc + b3a, 0.0)
        vm = valid_mask(cs)
        if vm is not None:
            act = jnp.where(vm, act, 0.0)
        buf3b[:, HALO + cs:HALO + cs + CHUNK] = act

    # ---- phase 5: branch3x3dbl_3 (3x3, 96 -> 96) ----------------------------
    b3b = jnp.broadcast_to(b3b_ref[...], (C3, CHUNK))
    for c in range(nchunks):
        cs = c * CHUNK
        acc = conv_chunk(buf3b, w3b_ref, 3, 1, cs, _col_masks(cs, W, 3, 1))
        o_ref[0, o3:o3 + C3, cs:cs + CHUNK] = (
            jnp.maximum(acc + b3b, 0.0).astype(o_ref.dtype))


# ---------------------------------------------------------------------------
# Parameter construction (deterministic, synthetic) and BN folding
# ---------------------------------------------------------------------------
def make_basic_conv_params(key, k, cin, cout):
    """Returns (weight HWIO, bn_scale, bn_shift) with BN stats folded (eps=1e-3)."""
    k_w, k_g, k_b, k_m, k_v = jax.random.split(key, 5)
    w = jax.random.normal(k_w, (k, k, cin, cout), jnp.float32) * 0.05
    gamma = 1.0 + 0.1 * jax.random.normal(k_g, (cout,), jnp.float32)
    beta = 0.1 * jax.random.normal(k_b, (cout,), jnp.float32)
    running_mean = 0.1 * jax.random.normal(k_m, (cout,), jnp.float32)
    running_var = jnp.abs(jax.random.normal(k_v, (cout,), jnp.float32)) + 0.5
    eps = 0.001
    scale = gamma / jnp.sqrt(running_var + eps)
    shift = beta - running_mean * scale
    return w, scale, shift


def make_inception_a_params(key, in_channels, pool_features):
    keys = jax.random.split(key, 7)
    return {
        "branch1x1":      make_basic_conv_params(keys[0], 1, in_channels, 64),
        "branch5x5_1":    make_basic_conv_params(keys[1], 1, in_channels, 48),
        "branch5x5_2":    make_basic_conv_params(keys[2], 5, 48, 64),
        "branch3x3dbl_1": make_basic_conv_params(keys[3], 1, in_channels, 64),
        "branch3x3dbl_2": make_basic_conv_params(keys[4], 3, 64, 96),
        "branch3x3dbl_3": make_basic_conv_params(keys[5], 3, 96, 96),
        "branch_pool":    make_basic_conv_params(keys[6], 1, in_channels, pool_features),
    }


def _params_to_kernel_layout(params):
    """Fold BN into weights, rearrange into channel-major bf16 kernel layouts."""
    def fold(name):
        w, s, b = params[name]
        return w * s, b                       # scale folded into W, shift = bias

    def head(name):
        wf, bias = fold(name)
        return wf[0, 0].T, bias               # (Cout, Cin), (Cout,)

    def dx_stacked(name):
        # (K,K,Cin,Cout) -> (K, Cout, K*Cin): per column-offset dx, the K
        # dy-taps stacked along the contraction dim, matching the in-kernel
        # jnp.concatenate([patch(dy)], axis=0).
        wf, bias = fold(name)
        K = wf.shape[0]
        w_dx = jnp.stack(
            [jnp.concatenate([wf[dy, dx].T for dy in range(K)], axis=1)
             for dx in range(K)], axis=0)
        return w_dx, bias

    w1, b1 = head("branch1x1")                # (64, Cin)
    w51, b51 = head("branch5x5_1")            # (48, Cin)
    w31, b31 = head("branch3x3dbl_1")         # (64, Cin)
    wp, bp = head("branch_pool")              # (pf, Cin)

    # branch_pool 1x1 is commuted through the avg-pool: its (bias-free) rows
    # join the merged head matmul, its bias is added after the pool.
    wh = jnp.concatenate([w1, w51, w31, wp], axis=0)           # (176+pf, Cin)
    bh = jnp.concatenate([b1, b51, b31], axis=0)[:, None]      # (176, 1)

    w5, b5 = dx_stacked("branch5x5_2")        # (5, 64, 240)
    w3a, b3a = dx_stacked("branch3x3dbl_2")   # (3, 96, 192)
    w3b, b3b = dx_stacked("branch3x3dbl_3")   # (3, 96, 288)

    bf16 = jnp.bfloat16
    return (wh.astype(bf16), bh,
            w5.astype(bf16), b5[:, None],
            w3a.astype(bf16), b3a[:, None],
            w3b.astype(bf16), b3b[:, None],
            bp[:, None])


# ---------------------------------------------------------------------------
# InceptionA forward (single fused Pallas call)
# ---------------------------------------------------------------------------
@jax.jit
def inception_a_forward(x_nchw, params):
    N, Cin, H, W = x_nchw.shape
    HW = H * W
    HWp = ((HW + CHUNK - 1) // CHUNK) * CHUNK     # lane-pad spatial to 128
    pf = params["branch_pool"][0].shape[-1]
    Ctot = 64 + 64 + 96 + pf
    assert 2 * W + 2 <= HALO, "image width too large for the fixed flat halo"

    (wh, bh, w5, b5, w3a, b3a, w3b, b3b, bp) = _params_to_kernel_layout(params)

    x2 = x_nchw.reshape(N, Cin, HW)               # NCHW -> NC(HW), free reshape
    if HWp != HW:
        x2 = jnp.pad(x2, ((0, 0), (0, 0), (0, HWp - HW)))

    kernel = functools.partial(_inception_a_kernel, W=W, HW=HW, pf=pf)

    def _const_spec(arr):
        nd = arr.ndim
        return pl.BlockSpec(arr.shape, lambda n, _nd=nd: (0,) * _nd)

    flops = N * (2 * HWp * ((176 + pf) * Cin
                            + 25 * 64 * 48 + 9 * 96 * 64 + 9 * 96 * 96)
                 + 9 * pf * HWp)
    bytes_accessed = (4 * (x2.size + N * Ctot * HWp)
                      + 2 * (wh.size + w5.size + w3a.size + w3b.size)
                      + 4 * (bh.size + b5.size + b3a.size + b3b.size + bp.size))

    out = pl.pallas_call(
        kernel,
        out_shape=jax.ShapeDtypeStruct((N, Ctot, HWp), jnp.float32),
        grid_spec=pltpu.PrefetchScalarGridSpec(
            num_scalar_prefetch=0,
            grid=(N,),
            in_specs=[
                pl.BlockSpec((1, Cin, HWp), lambda n: (n, 0, 0)),
                _const_spec(wh), _const_spec(bh),
                _const_spec(w5), _const_spec(b5),
                _const_spec(w3a), _const_spec(b3a),
                _const_spec(w3b), _const_spec(b3b),
                _const_spec(bp),
            ],
            out_specs=pl.BlockSpec((1, Ctot, HWp), lambda n: (n, 0, 0)),
            scratch_shapes=[
                pltpu.VMEM((48, HWp + 2 * HALO), jnp.float32),   # branch5x5_1
                pltpu.VMEM((64, HWp + 2 * HALO), jnp.float32),   # branch3x3dbl_1
                pltpu.VMEM((96, HWp + 2 * HALO), jnp.float32),   # branch3x3dbl_2
                pltpu.VMEM((pf, HWp + 2 * HALO), jnp.float32),   # pool pre-act
            ],
        ),
        compiler_params=pltpu.CompilerParams(
            dimension_semantics=("parallel",),
            vmem_limit_bytes=32 * 1024 * 1024,
        ),
        cost_estimate=pl.CostEstimate(
            flops=int(flops), transcendentals=0,
            bytes_accessed=int(bytes_accessed)),
    )(x2, wh, bh, w5, b5, w3a, b3a, w3b, b3b, bp)

    if HWp != HW:
        out = out[:, :, :HW]
    return out.reshape(N, Ctot, H, W)             # NC(HW) -> NCHW, free reshape


# ---------------------------------------------------------------------------
# Pure-JAX reference (XLA convs, f32; mirrors the PyTorch module exactly)
# ---------------------------------------------------------------------------
def _ref_cbr(x_nhwc, w_hwio, scale, shift, padding):
    y = lax.conv_general_dilated(
        x_nhwc, w_hwio, window_strides=(1, 1),
        padding=[(padding, padding), (padding, padding)],
        dimension_numbers=("NHWC", "HWIO", "NHWC"))
    return jnp.maximum(y * scale + shift, 0.0)


def inception_a_reference(x_nchw, params):
    x = jnp.transpose(x_nchw, (0, 2, 3, 1))    # NHWC
    w, s, b = params["branch1x1"];       b1 = _ref_cbr(x, w, s, b, 0)
    w, s, b = params["branch5x5_1"];     b5 = _ref_cbr(x, w, s, b, 0)
    w, s, b = params["branch5x5_2"];     b5 = _ref_cbr(b5, w, s, b, 2)
    w, s, b = params["branch3x3dbl_1"];  b3 = _ref_cbr(x, w, s, b, 0)
    w, s, b = params["branch3x3dbl_2"];  b3 = _ref_cbr(b3, w, s, b, 1)
    w, s, b = params["branch3x3dbl_3"];  b3 = _ref_cbr(b3, w, s, b, 1)
    pooled = lax.reduce_window(x, 0.0, lax.add, (1, 3, 3, 1), (1, 1, 1, 1),
                               [(0, 0), (1, 1), (1, 1), (0, 0)]) / 9.0
    w, s, b = params["branch_pool"];     bp = _ref_cbr(pooled, w, s, b, 0)
    out = jnp.concatenate([b1, b5, b3, bp], axis=-1)
    return jnp.transpose(out, (0, 3, 1, 2))


if __name__ == "__main__":
    key = jax.random.PRNGKey(0)
    k_x, k_p, k_x2, k_p2 = jax.random.split(key, 4)

    # --- primary test: HW = 256 already lane-dense ---------------------------
    N, Cin, H, W = 2, 4, 16, 16
    pool_features = 32
    x = jax.random.normal(k_x, (N, Cin, H, W), jnp.float32)   # NCHW, like PyTorch
    params = make_inception_a_params(k_p, Cin, pool_features)

    out = jax.block_until_ready(inception_a_forward(x, params))
    assert out.shape == (N, 64 + 64 + 96 + pool_features, H, W), out.shape
    ref = jax.block_until_ready(inception_a_reference(x, params))
    err = float(jnp.max(jnp.abs(out - ref)))
    # bf16 MXU operands (f32 accumulation) vs. the f32 XLA reference.
    assert err < 5e-2, err

    # --- padded-spatial test: HW = 144 -> padded to 256 lanes in the wrapper -
    N2, Cin2, H2, W2, pf2 = 1, 8, 12, 12, 16
    x_b = jax.random.normal(k_x2, (N2, Cin2, H2, W2), jnp.float32)
    params_b = make_inception_a_params(k_p2, Cin2, pf2)
    out_b = jax.block_until_ready(inception_a_forward(x_b, params_b))
    assert out_b.shape == (N2, 64 + 64 + 96 + pf2, H2, W2), out_b.shape
    ref_b = jax.block_until_ready(inception_a_reference(x_b, params_b))
    err_b = float(jnp.max(jnp.abs(out_b - ref_b)))
    assert err_b < 5e-2, err_b

    print("KERNEL_OK")
</pallas_src>

<mosaic_0001>
module attributes {stable_mosaic.version = 11 : i64} {
  func.func @_inception_a_kernel(%arg0: i32, %arg1: memref<1x4x256xf32, #tpu.memory_space<vmem>>, %arg2: memref<208x4xbf16, #tpu.memory_space<vmem>>, %arg3: memref<176x1xf32, #tpu.memory_space<vmem>>, %arg4: memref<5x64x240xbf16, #tpu.memory_space<vmem>>, %arg5: memref<64x1xf32, #tpu.memory_space<vmem>>, %arg6: memref<3x96x192xbf16, #tpu.memory_space<vmem>>, %arg7: memref<96x1xf32, #tpu.memory_space<vmem>>, %arg8: memref<3x96x288xbf16, #tpu.memory_space<vmem>>, %arg9: memref<96x1xf32, #tpu.memory_space<vmem>>, %arg10: memref<32x1xf32, #tpu.memory_space<vmem>>, %arg11: memref<1x256x256xf32, #tpu.memory_space<vmem>>, %arg12: memref<48x512xf32, #tpu.memory_space<vmem>>, %arg13: memref<64x512xf32, #tpu.memory_space<vmem>>, %arg14: memref<96x512xf32, #tpu.memory_space<vmem>>, %arg15: memref<32x512xf32, #tpu.memory_space<vmem>>) attributes {dimension_semantics = [#tpu.dimension_semantics<parallel>], iteration_bounds = array<i64: 2>, scalar_prefetch = 0 : i64, scratch_operands = 4 : i64, tpu.core_type = #tpu.core_type<tc>, window_params = [{transform_indices = @transform_0, window_bounds = array<i64: 1, 4, 256>}, {pipeline_mode = #tpu.pipeline_mode<synchronous>, transform_indices = @transform_1, window_bounds = array<i64: 208, 4>}, {pipeline_mode = #tpu.pipeline_mode<synchronous>, transform_indices = @transform_2, window_bounds = array<i64: 176, 1>}, {pipeline_mode = #tpu.pipeline_mode<synchronous>, transform_indices = @transform_3, window_bounds = array<i64: 5, 64, 240>}, {pipeline_mode = #tpu.pipeline_mode<synchronous>, transform_indices = @transform_4, window_bounds = array<i64: 64, 1>}, {pipeline_mode = #tpu.pipeline_mode<synchronous>, transform_indices = @transform_5, window_bounds = array<i64: 3, 96, 192>}, {pipeline_mode = #tpu.pipeline_mode<synchronous>, transform_indices = @transform_6, window_bounds = array<i64: 96, 1>}, {pipeline_mode = #tpu.pipeline_mode<synchronous>, transform_indices = @transform_7, window_bounds = array<i64: 3, 96, 288>}, {pipeline_mode = #tpu.pipeline_mode<synchronous>, transform_indices = @transform_8, window_bounds = array<i64: 96, 1>}, {pipeline_mode = #tpu.pipeline_mode<synchronous>, transform_indices = @transform_9, window_bounds = array<i64: 32, 1>}, {transform_indices = @transform_10, window_bounds = array<i64: 1, 256, 256>}]} {
    %c0_i32 = arith.constant 0 : i32
    %0 = arith.cmpi eq, %arg0, %c0_i32 : i32
    %1 = arith.extui %0 : i1 to i32
    %c0_i32_0 = arith.constant 0 : i32
    %2 = arith.cmpi ne, %1, %c0_i32_0 : i32
    scf.if %2 {
      %cst_426 = arith.constant 0.000000e+00 : f32
      %697 = vector.broadcast %cst_426 : f32 to vector<48x128xf32>
      %c0_427 = arith.constant 0 : index
      %c0_428 = arith.constant 0 : index
      %698 = vector.load %arg12[%c0_427, %c0_428] : memref<48x512xf32, #tpu.memory_space<vmem>>, vector<48x128xf32>
      tpu.vector_store %arg12[%c0_427, %c0_428], %697 {strides = array<i32>} : memref<48x512xf32, #tpu.memory_space<vmem>>, vector<48x128xf32>,
      %cst_429 = arith.constant 0.000000e+00 : f32
      %699 = vector.broadcast %cst_429 : f32 to vector<48x128xf32>
      %c0_430 = arith.constant 0 : index
      %c384 = arith.constant 384 : index
      %700 = vector.load %arg12[%c0_430, %c384] : memref<48x512xf32, #tpu.memory_space<vmem>>, vector<48x128xf32>
      tpu.vector_store %arg12[%c0_430, %c384], %699 {strides = array<i32>} : memref<48x512xf32, #tpu.memory_space<vmem>>, vector<48x128xf32>,
      %cst_431 = arith.constant 0.000000e+00 : f32
      %701 = vector.broadcast %cst_431 : f32 to vector<64x128xf32>
      %c0_432 = arith.constant 0 : index
      %c0_433 = arith.constant 0 : index
      %702 = vector.load %arg13[%c0_432, %c0_433] : memref<64x512xf32, #tpu.memory_space<vmem>>, vector<64x128xf32>
      tpu.vector_store %arg13[%c0_432, %c0_433], %701 {strides = array<i32>} : memref<64x512xf32, #tpu.memory_space<vmem>>, vector<64x128xf32>,
      %cst_434 = arith.constant 0.000000e+00 : f32
      %703 = vector.broadcast %cst_434 : f32 to vector<64x128xf32>
      %c0_435 = arith.constant 0 : index
      %c384_436 = arith.constant 384 : index
      %704 = vector.load %arg13[%c0_435, %c384_436] : memref<64x512xf32, #tpu.memory_space<vmem>>, vector<64x128xf32>
      tpu.vector_store %arg13[%c0_435, %c384_436], %703 {strides = array<i32>} : memref<64x512xf32, #tpu.memory_space<vmem>>, vector<64x128xf32>,
      %cst_437 = arith.constant 0.000000e+00 : f32
      %705 = vector.broadcast %cst_437 : f32 to vector<96x128xf32>
      %c0_438 = arith.constant 0 : index
      %c0_439 = arith.constant 0 : index
      %706 = vector.load %arg14[%c0_438, %c0_439] : memref<96x512xf32, #tpu.memory_space<vmem>>, vector<96x128xf32>
      tpu.vector_store %arg14[%c0_438, %c0_439], %705 {strides = array<i32>} : memref<96x512xf32, #tpu.memory_space<vmem>>, vector<96x128xf32>,
      %cst_440 = arith.constant 0.000000e+00 : f32
      %707 = vector.broadcast %cst_440 : f32 to vector<96x128xf32>
      %c0_441 = arith.constant 0 : index
      %c384_442 = arith.constant 384 : index
      %708 = vector.load %arg14[%c0_441, %c384_442] : memref<96x512xf32, #tpu.memory_space<vmem>>, vector<96x128xf32>
      tpu.vector_store %arg14[%c0_441, %c384_442], %707 {strides = array<i32>} : memref<96x512xf32, #tpu.memory_space<vmem>>, vector<96x128xf32>,
      %cst_443 = arith.constant 0.000000e+00 : f32
      %709 = vector.broadcast %cst_443 : f32 to vector<32x128xf32>
      %c0_444 = arith.constant 0 : index
      %c0_445 = arith.constant 0 : index
      %710 = vector.load %arg15[%c0_444, %c0_445] : memref<32x512xf32, #tpu.memory_space<vmem>>, vector<32x128xf32>
      tpu.vector_store %arg15[%c0_444, %c0_445], %709 {strides = array<i32>} : memref<32x512xf32, #tpu.memory_space<vmem>>, vector<32x128xf32>,
      %cst_446 = arith.constant 0.000000e+00 : f32
      %711 = vector.broadcast %cst_446 : f32 to vector<32x128xf32>
      %c0_447 = arith.constant 0 : index
      %c384_448 = arith.constant 384 : index
      %712 = vector.load %arg15[%c0_447, %c384_448] : memref<32x512xf32, #tpu.memory_space<vmem>>, vector<32x128xf32>
      tpu.vector_store %arg15[%c0_447, %c384_448], %711 {strides = array<i32>} : memref<32x512xf32, #tpu.memory_space<vmem>>, vector<32x128xf32>,
    } else {
    }
    %c0 = arith.constant 0 : index
    %c0_1 = arith.constant 0 : index
    %3 = vector.load %arg2[%c0, %c0_1] : memref<208x4xbf16, #tpu.memory_space<vmem>>, vector<208x4xbf16>
    %c0_2 = arith.constant 0 : index
    %c0_3 = arith.constant 0 : index
    %4 = vector.load %arg3[%c0_2, %c0_3] : memref<176x1xf32, #tpu.memory_space<vmem>>, vector<176x1xf32>
    %c0_4 = arith.constant 0 : index
    %c0_5 = arith.constant 0 : index
    %c0_6 = arith.constant 0 : index
    %5 = vector.load %arg1[%c0_4, %c0_5, %c0_6] : memref<1x4x256xf32, #tpu.memory_space<vmem>>, vector<1x4x128xf32>
    %6 = vector.shape_cast %5 : vector<1x4x128xf32> to vector<4x128xf32>
    %7 = arith.truncf %6 : vector<4x128xf32> to vector<4x128xbf16>
    %cst = arith.constant dense<0.000000e+00> : vector<208x128xf32>
    %8 = tpu.matmul %3, %7, %cst {dimension_numbers = #tpu.dot_dimension_numbers<[1], [0], [0], [1], [0, 0, 1, 1], [], []>} : vector<208x4xbf16>, vector<4x128xbf16>, vector<208x128xf32> -> vector<208x128xf32>
    %9 = vector.extract_strided_slice %8 {offsets = [0, 0], sizes = [176, 128], strides = [1, 1]} : vector<208x128xf32> to vector<176x128xf32>
    %10 = vector.broadcast %4 : vector<176x1xf32> to vector<176x128xf32>
    %11 = arith.addf %9, %10 : vector<176x128xf32>
    %cst_7 = arith.constant 0.000000e+00 : f32
    %12 = vector.broadcast %cst_7 : f32 to vector<176x128xf32>
    %13 = arith.maximumf %11, %12 : vector<176x128xf32>
    %14 = vector.extract_strided_slice %13 {offsets = [0, 0], sizes = [64, 128], strides = [1, 1]} : vector<176x128xf32> to vector<64x128xf32>
    %c0_8 = arith.constant 0 : index
    %c0_9 = arith.constant 0 : index
    %c0_10 = arith.constant 0 : index
    %15 = vector.load %arg11[%c0_8, %c0_9, %c0_10] : memref<1x256x256xf32, #tpu.memory_space<vmem>>, vector<1x64x128xf32>
    %16 = vector.shape_cast %15 : vector<1x64x128xf32> to vector<64x128xf32>
    %17 = vector.shape_cast %14 : vector<64x128xf32> to vector<1x64x128xf32>
    tpu.vector_store %arg11[%c0_8, %c0_9, %c0_10], %17 {strides = array<i32>} : memref<1x256x256xf32, #tpu.memory_space<vmem>>, vector<1x64x128xf32>,
    %18 = vector.extract_strided_slice %13 {offsets = [64, 0], sizes = [48, 128], strides = [1, 1]} : vector<176x128xf32> to vector<48x128xf32>
    %19 = vector.extract_strided_slice %13 {offsets = [112, 0], sizes = [64, 128], strides = [1, 1]} : vector<176x128xf32> to vector<64x128xf32>
    %c0_11 = arith.constant 0 : index
    %c128 = arith.constant 128 : index
    %20 = vector.load %arg12[%c0_11, %c128] : memref<48x512xf32, #tpu.memory_space<vmem>>, vector<48x128xf32>
    tpu.vector_store %arg12[%c0_11, %c128], %18 {strides = array<i32>} : memref<48x512xf32, #tpu.memory_space<vmem>>, vector<48x128xf32>,
    %c0_12 = arith.constant 0 : index
    %c128_13 = arith.constant 128 : index
    %21 = vector.load %arg13[%c0_12, %c128_13] : memref<64x512xf32, #tpu.memory_space<vmem>>, vector<64x128xf32>
    tpu.vector_store %arg13[%c0_12, %c128_13], %19 {strides = array<i32>} : memref<64x512xf32, #tpu.memory_space<vmem>>, vector<64x128xf32>,
    %22 = vector.extract_strided_slice %8 {offsets = [176, 0], sizes = [32, 128], strides = [1, 1]} : vector<208x128xf32> to vector<32x128xf32>
    %c0_14 = arith.constant 0 : index
    %c128_15 = arith.constant 128 : index
    %23 = vector.load %arg15[%c0_14, %c128_15] : memref<32x512xf32, #tpu.memory_space<vmem>>, vector<32x128xf32>
    tpu.vector_store %arg15[%c0_14, %c128_15], %22 {strides = array<i32>} : memref<32x512xf32, #tpu.memory_space<vmem>>, vector<32x128xf32>,
    %c0_16 = arith.constant 0 : index
    %c0_17 = arith.constant 0 : index
    %c128_18 = arith.constant 128 : index
    %24 = vector.load %arg1[%c0_16, %c0_17, %c128_18] : memref<1x4x256xf32, #tpu.memory_space<vmem>>, vector<1x4x128xf32>
    %25 = vector.shape_cast %24 : vector<1x4x128xf32> to vector<4x128xf32>
    %26 = arith.truncf %25 : vector<4x128xf32> to vector<4x128xbf16>
    %cst_19 = arith.constant dense<0.000000e+00> : vector<208x128xf32>
    %27 = tpu.matmul %3, %26, %cst_19 {dimension_numbers = #tpu.dot_dimension_numbers<[1], [0], [0], [1], [0, 0, 1, 1], [], []>} : vector<208x4xbf16>, vector<4x128xbf16>, vector<208x128xf32> -> vector<208x128xf32>
    %28 = vector.extract_strided_slice %27 {offsets = [0, 0], sizes = [176, 128], strides = [1, 1]} : vector<208x128xf32> to vector<176x128xf32>
    %29 = vector.broadcast %4 : vector<176x1xf32> to vector<176x128xf32>
    %30 = arith.addf %28, %29 : vector<176x128xf32>
    %cst_20 = arith.constant 0.000000e+00 : f32
    %31 = vector.broadcast %cst_20 : f32 to vector<176x128xf32>
    %32 = arith.maximumf %30, %31 : vector<176x128xf32>
    %33 = vector.extract_strided_slice %32 {offsets = [0, 0], sizes = [64, 128], strides = [1, 1]} : vector<176x128xf32> to vector<64x128xf32>
    %c0_21 = arith.constant 0 : index
    %c0_22 = arith.constant 0 : index
    %c128_23 = arith.constant 128 : index
    %34 = vector.load %arg11[%c0_21, %c0_22, %c128_23] : memref<1x256x256xf32, #tpu.memory_space<vmem>>, vector<1x64x128xf32>
    %35 = vector.shape_cast %34 : vector<1x64x128xf32> to vector<64x128xf32>
    %36 = vector.shape_cast %33 : vector<64x128xf32> to vector<1x64x128xf32>
    tpu.vector_store %arg11[%c0_21, %c0_22, %c128_23], %36 {strides = array<i32>} : memref<1x256x256xf32, #tpu.memory_space<vmem>>, vector<1x64x128xf32>,
    %37 = vector.extract_strided_slice %32 {offsets = [64, 0], sizes = [48, 128], strides = [1, 1]} : vector<176x128xf32> to vector<48x128xf32>
    %38 = vector.extract_strided_slice %32 {offsets = [112, 0], sizes = [64, 128], strides = [1, 1]} : vector<176x128xf32> to vector<64x128xf32>
    %c0_24 = arith.constant 0 : index
    %c256 = arith.constant 256 : index
    %39 = vector.load %arg12[%c0_24, %c256] : memref<48x512xf32, #tpu.memory_space<vmem>>, vector<48x128xf32>
    tpu.vector_store %arg12[%c0_24, %c256], %37 {strides = array<i32>} : memref<48x512xf32, #tpu.memory_space<vmem>>, vector<48x128xf32>,
    %c0_25 = arith.constant 0 : index
    %c256_26 = arith.constant 256 : index
    %40 = vector.load %arg13[%c0_25, %c256_26] : memref<64x512xf32, #tpu.memory_space<vmem>>, vector<64x128xf32>
    tpu.vector_store %arg13[%c0_25, %c256_26], %38 {strides = array<i32>} : memref<64x512xf32, #tpu.memory_space<vmem>>, vector<64x128xf32>,
    %41 = vector.extract_strided_slice %27 {offsets = [176, 0], sizes = [32, 128], strides = [1, 1]} : vector<208x128xf32> to vector<32x128xf32>
    %c0_27 = arith.constant 0 : index
    %c256_28 = arith.constant 256 : index
    %42 = vector.load %arg15[%c0_27, %c256_28] : memref<32x512xf32, #tpu.memory_space<vmem>>, vector<32x128xf32>
    tpu.vector_store %arg15[%c0_27, %c256_28], %41 {strides = array<i32>} : memref<32x512xf32, #tpu.memory_space<vmem>>, vector<32x128xf32>,
    %c0_29 = arith.constant 0 : index
    %c0_30 = arith.constant 0 : index
    %43 = vector.load %arg10[%c0_29, %c0_30] : memref<32x1xf32, #tpu.memory_space<vmem>>, vector<32x1xf32>
    %44 = vector.shape_cast %43 : vector<32x1xf32> to vector<32x1xf32>
    %45 = vector.broadcast %44 : vector<32x1xf32> to vector<32x128xf32>
    %46 = tpu.iota {dimensions = array<i32: 1>} : vector<1x128xi32>
    %c0_i32_31 = arith.constant 0 : i32
    %47 = vector.broadcast %c0_i32_31 : i32 to vector<1x128xi32>
    %48 = arith.addi %46, %47 : vector<1x128xi32>
    %c16_i32 = arith.constant 16 : i32
    %c0_i32_32 = arith.constant 0 : i32
    %49 = arith.cmpi eq, %c16_i32, %c0_i32_32 : i32
    %c1_i32 = arith.constant 1 : i32
    %50 = arith.select %49, %c1_i32, %c16_i32 : i32
    %51 = vector.broadcast %50 : i32 to vector<1x128xi32>
    %52 = arith.remsi %48, %51 : vector<1x128xi32>
    %c0_i32_33 = arith.constant 0 : i32
    %53 = vector.broadcast %c0_i32_33 : i32 to vector<1x128xi32>
    %54 = arith.cmpi ne, %52, %53 : vector<1x128xi32>
    %c0_i32_34 = arith.constant 0 : i32
    %55 = vector.broadcast %c0_i32_34 : i32 to vector<1x128xi32>
    %56 = arith.cmpi slt, %52, %55 : vector<1x128xi32>
    %c0_i32_35 = arith.constant 0 : i32
    %57 = arith.cmpi slt, %50, %c0_i32_35 : i32
    %58 = vector.broadcast %57 : i1 to vector<1x128xi1>
    %59 = vector.broadcast %58 : vector<1x128xi1> to vector<1x128xi1>
    %60 = arith.xori %56, %59 : vector<1x128xi1>
    %61 = arith.andi %60, %54 : vector<1x128xi1>
    %62 = vector.broadcast %50 : i32 to vector<1x128xi32>
    %63 = arith.addi %52, %62 : vector<1x128xi32>
    %64 = arith.select %61, %63, %52 : vector<1x128xi1>, vector<1x128xi32>
    %c1_i32_36 = arith.constant 1 : i32
    %65 = vector.broadcast %c1_i32_36 : i32 to vector<1x128xi32>
    %66 = arith.cmpi sge, %64, %65 : vector<1x128xi32>
    %c17_i32 = arith.constant 17 : i32
    %67 = vector.broadcast %c17_i32 : i32 to vector<1x128xi32>
    %68 = arith.cmpi slt, %64, %67 : vector<1x128xi32>
    %69 = arith.andi %66, %68 : vector<1x128xi1>
    %c-1_i32 = arith.constant -1 : i32
    %70 = vector.broadcast %c-1_i32 : i32 to vector<1x128xi32>
    %71 = arith.cmpi sge, %64, %70 : vector<1x128xi32>
    %c15_i32 = arith.constant 15 : i32
    %72 = vector.broadcast %c15_i32 : i32 to vector<1x128xi32>
    %73 = arith.cmpi slt, %64, %72 : vector<1x128xi32>
    %74 = arith.andi %71, %73 : vector<1x128xi1>
    %cst_37 = arith.constant 0.000000e+00 : f32
    %75 = vector.broadcast %cst_37 : f32 to vector<32x128xf32>
    %c0_38 = arith.constant 0 : index
    %c111 = arith.constant 111 : index
    %76 = vector.load %arg15[%c0_38, %c111] : memref<32x512xf32, #tpu.memory_space<vmem>>, vector<32x128xf32>
    %c0_39 = arith.constant 0 : index
    %c127 = arith.constant 127 : index
    %77 = vector.load %arg15[%c0_39, %c127] : memref<32x512xf32, #tpu.memory_space<vmem>>, vector<32x128xf32>
    %78 = arith.addf %76, %77 : vector<32x128xf32>
    %c0_40 = arith.constant 0 : index
    %c143 = arith.constant 143 : index
    %79 = vector.load %arg15[%c0_40, %c143] : memref<32x512xf32, #tpu.memory_space<vmem>>, vector<32x128xf32>
    %80 = arith.addf %78, %79 : vector<32x128xf32>
    %cst_41 = arith.constant 0.000000e+00 : f32
    %81 = vector.shape_cast %69 : vector<1x128xi1> to vector<1x128xi1>
    %82 = vector.broadcast %81 : vector<1x128xi1> to vector<32x128xi1>
    %83 = vector.broadcast %cst_41 : f32 to vector<32x128xf32>
    %84 = arith.select %82, %80, %83 : vector<32x128xi1>, vector<32x128xf32>
    %85 = arith.addf %75, %84 : vector<32x128xf32>
    %c0_42 = arith.constant 0 : index
    %c112 = arith.constant 112 : index
    %86 = vector.load %arg15[%c0_42, %c112] : memref<32x512xf32, #tpu.memory_space<vmem>>, vector<32x128xf32>
    %c0_43 = arith.constant 0 : index
    %c128_44 = arith.constant 128 : index
    %87 = vector.load %arg15[%c0_43, %c128_44] : memref<32x512xf32, #tpu.memory_space<vmem>>, vector<32x128xf32>
    %88 = arith.addf %86, %87 : vector<32x128xf32>
    %c0_45 = arith.constant 0 : index
    %c144 = arith.constant 144 : index
    %89 = vector.load %arg15[%c0_45, %c144] : memref<32x512xf32, #tpu.memory_space<vmem>>, vector<32x128xf32>
    %90 = arith.addf %88, %89 : vector<32x128xf32>
    %91 = arith.addf %85, %90 : vector<32x128xf32>
    %c0_46 = arith.constant 0 : index
    %c113 = arith.constant 113 : index
    %92 = vector.load %arg15[%c0_46, %c113] : memref<32x512xf32, #tpu.memory_space<vmem>>, vector<32x128xf32>
    %c0_47 = arith.constant 0 : index
    %c129 = arith.constant 129 : index
    %93 = vector.load %arg15[%c0_47, %c129] : memref<32x512xf32, #tpu.memory_space<vmem>>, vector<32x128xf32>
    %94 = arith.addf %92, %93 : vector<32x128xf32>
    %c0_48 = arith.constant 0 : index
    %c145 = arith.constant 145 : index
    %95 = vector.load %arg15[%c0_48, %c145] : memref<32x512xf32, #tpu.memory_space<vmem>>, vector<32x128xf32>
    %96 = arith.addf %94, %95 : vector<32x128xf32>
    %cst_49 = arith.constant 0.000000e+00 : f32
    %97 = vector.shape_cast %74 : vector<1x128xi1> to vector<1x128xi1>
    %98 = vector.broadcast %97 : vector<1x128xi1> to vector<32x128xi1>
    %99 = vector.broadcast %cst_49 : f32 to vector<32x128xf32>
    %100 = arith.select %98, %96, %99 : vector<32x128xi1>, vector<32x128xf32>
    %101 = arith.addf %91, %100 : vector<32x128xf32>
    %cst_50 = arith.constant 0.111111112 : f32
    %102 = vector.broadcast %cst_50 : f32 to vector<32x128xf32>
    %103 = arith.mulf %101, %102 : vector<32x128xf32>
    %104 = arith.addf %103, %45 : vector<32x128xf32>
    %cst_51 = arith.constant 0.000000e+00 : f32
    %105 = vector.broadcast %cst_51 : f32 to vector<32x128xf32>
    %106 = arith.maximumf %104, %105 : vector<32x128xf32>
    %c0_52 = arith.constant 0 : index
    %c224 = arith.constant 224 : index
    %c0_53 = arith.constant 0 : index
    %107 = vector.load %arg11[%c0_52, %c224, %c0_53] : memref<1x256x256xf32, #tpu.memory_space<vmem>>, vector<1x32x128xf32>
    %108 = vector.shape_cast %107 : vector<1x32x128xf32> to vector<32x128xf32>
    %109 = vector.shape_cast %106 : vector<32x128xf32> to vector<1x32x128xf32>
    tpu.vector_store %arg11[%c0_52, %c224, %c0_53], %109 {strides = array<i32>} : memref<1x256x256xf32, #tpu.memory_space<vmem>>, vector<1x32x128xf32>,
    %110 = tpu.iota {dimensions = array<i32: 1>} : vector<1x128xi32>
    %c128_i32 = arith.constant 128 : i32
    %111 = vector.broadcast %c128_i32 : i32 to vector<1x128xi32>
    %112 = arith.addi %110, %111 : vector<1x128xi32>
    %c16_i32_54 = arith.constant 16 : i32
    %c0_i32_55 = arith.constant 0 : i32
    %113 = arith.cmpi eq, %c16_i32_54, %c0_i32_55 : i32
    %c1_i32_56 = arith.constant 1 : i32
    %114 = arith.select %113, %c1_i32_56, %c16_i32_54 : i32
    %115 = vector.broadcast %114 : i32 to vector<1x128xi32>
    %116 = arith.remsi %112, %115 : vector<1x128xi32>
    %c0_i32_57 = arith.constant 0 : i32
    %117 = vector.broadcast %c0_i32_57 : i32 to vector<1x128xi32>
    %118 = arith.cmpi ne, %116, %117 : vector<1x128xi32>
    %c0_i32_58 = arith.constant 0 : i32
    %119 = vector.broadcast %c0_i32_58 : i32 to vector<1x128xi32>
    %120 = arith.cmpi slt, %116, %119 : vector<1x128xi32>
    %c0_i32_59 = arith.constant 0 : i32
    %121 = arith.cmpi slt, %114, %c0_i32_59 : i32
    %122 = vector.broadcast %121 : i1 to vector<1x128xi1>
    %123 = vector.broadcast %122 : vector<1x128xi1> to vector<1x128xi1>
    %124 = arith.xori %120, %123 : vector<1x128xi1>
    %125 = arith.andi %124, %118 : vector<1x128xi1>
    %126 = vector.broadcast %114 : i32 to vector<1x128xi32>
    %127 = arith.addi %116, %126 : vector<1x128xi32>
    %128 = arith.select %125, %127, %116 : vector<1x128xi1>, vector<1x128xi32>
    %c1_i32_60 = arith.constant 1 : i32
    %129 = vector.broadcast %c1_i32_60 : i32 to vector<1x128xi32>
    %130 = arith.cmpi sge, %128, %129 : vector<1x128xi32>
    %c17_i32_61 = arith.constant 17 : i32
    %131 = vector.broadcast %c17_i32_61 : i32 to vector<1x128xi32>
    %132 = arith.cmpi slt, %128, %131 : vector<1x128xi32>
    %133 = arith.andi %130, %132 : vector<1x128xi1>
    %c-1_i32_62 = arith.constant -1 : i32
    %134 = vector.broadcast %c-1_i32_62 : i32 to vector<1x128xi32>
    %135 = arith.cmpi sge, %128, %134 : vector<1x128xi32>
    %c15_i32_63 = arith.constant 15 : i32
    %136 = vector.broadcast %c15_i32_63 : i32 to vector<1x128xi32>
    %137 = arith.cmpi slt, %128, %136 : vector<1x128xi32>
    %138 = arith.andi %135, %137 : vector<1x128xi1>
    %cst_64 = arith.constant 0.000000e+00 : f32
    %139 = vector.broadcast %cst_64 : f32 to vector<32x128xf32>
    %c0_65 = arith.constant 0 : index
    %c239 = arith.constant 239 : index
    %140 = vector.load %arg15[%c0_65, %c239] : memref<32x512xf32, #tpu.memory_space<vmem>>, vector<32x128xf32>
    %c0_66 = arith.constant 0 : index
    %c255 = arith.constant 255 : index
    %141 = vector.load %arg15[%c0_66, %c255] : memref<32x512xf32, #tpu.memory_space<vmem>>, vector<32x128xf32>
    %142 = arith.addf %140, %141 : vector<32x128xf32>
    %c0_67 = arith.constant 0 : index
    %c271 = arith.constant 271 : index
    %143 = vector.load %arg15[%c0_67, %c271] : memref<32x512xf32, #tpu.memory_space<vmem>>, vector<32x128xf32>
    %144 = arith.addf %142, %143 : vector<32x128xf32>
    %cst_68 = arith.constant 0.000000e+00 : f32
    %145 = vector.shape_cast %133 : vector<1x128xi1> to vector<1x128xi1>
    %146 = vector.broadcast %145 : vector<1x128xi1> to vector<32x128xi1>
    %147 = vector.broadcast %cst_68 : f32 to vector<32x128xf32>
    %148 = arith.select %146, %144, %147 : vector<32x128xi1>, vector<32x128xf32>
    %149 = arith.addf %139, %148 : vector<32x128xf32>
    %c0_69 = arith.constant 0 : index
    %c240 = arith.constant 240 : index
    %150 = vector.load %arg15[%c0_69, %c240] : memref<32x512xf32, #tpu.memory_space<vmem>>, vector<32x128xf32>
    %c0_70 = arith.constant 0 : index
    %c256_71 = arith.constant 256 : index
    %151 = vector.load %arg15[%c0_70, %c256_71] : memref<32x512xf32, #tpu.memory_space<vmem>>, vector<32x128xf32>
    %152 = arith.addf %150, %151 : vector<32x128xf32>
    %c0_72 = arith.constant 0 : index
    %c272 = arith.constant 272 : index
    %153 = vector.load %arg15[%c0_72, %c272] : memref<32x512xf32, #tpu.memory_space<vmem>>, vector<32x128xf32>
    %154 = arith.addf %152, %153 : vector<32x128xf32>
    %155 = arith.addf %149, %154 : vector<32x128xf32>
    %c0_73 = arith.constant 0 : index
    %c241 = arith.constant 241 : index
    %156 = vector.load %arg15[%c0_73, %c241] : memref<32x512xf32, #tpu.memory_space<vmem>>, vector<32x128xf32>
    %c0_74 = arith.constant 0 : index
    %c257 = arith.constant 257 : index
    %157 = vector.load %arg15[%c0_74, %c257] : memref<32x512xf32, #tpu.memory_space<vmem>>, vector<32x128xf32>
    %158 = arith.addf %156, %157 : vector<32x128xf32>
    %c0_75 = arith.constant 0 : index
    %c273 = arith.constant 273 : index
    %159 = vector.load %arg15[%c0_75, %c273] : memref<32x512xf32, #tpu.memory_space<vmem>>, vector<32x128xf32>
    %160 = arith.addf %158, %159 : vector<32x128xf32>
    %cst_76 = arith.constant 0.000000e+00 : f32
    %161 = vector.shape_cast %138 : vector<1x128xi1> to vector<1x128xi1>
    %162 = vector.broadcast %161 : vector<1x128xi1> to vector<32x128xi1>
    %163 = vector.broadcast %cst_76 : f32 to vector<32x128xf32>
    %164 = arith.select %162, %160, %163 : vector<32x128xi1>, vector<32x128xf32>
    %165 = arith.addf %155, %164 : vector<32x128xf32>
    %cst_77 = arith.constant 0.111111112 : f32
    %166 = vector.broadcast %cst_77 : f32 to vector<32x128xf32>
    %167 = arith.mulf %165, %166 : vector<32x128xf32>
    %168 = arith.addf %167, %45 : vector<32x128xf32>
    %cst_78 = arith.constant 0.000000e+00 : f32
    %169 = vector.broadcast %cst_78 : f32 to vector<32x128xf32>
    %170 = arith.maximumf %168, %169 : vector<32x128xf32>
    %c0_79 = arith.constant 0 : index
    %c224_80 = arith.constant 224 : index
    %c128_81 = arith.constant 128 : index
    %171 = vector.load %arg11[%c0_79, %c224_80, %c128_81] : memref<1x256x256xf32, #tpu.memory_space<vmem>>, vector<1x32x128xf32>
    %172 = vector.shape_cast %171 : vector<1x32x128xf32> to vector<32x128xf32>
    %173 = vector.shape_cast %170 : vector<32x128xf32> to vector<1x32x128xf32>
    tpu.vector_store %arg11[%c0_79, %c224_80, %c128_81], %173 {strides = array<i32>} : memref<1x256x256xf32, #tpu.memory_space<vmem>>, vector<1x32x128xf32>,
    %c0_82 = arith.constant 0 : index
    %c0_83 = arith.constant 0 : index
    %174 = vector.load %arg5[%c0_82, %c0_83] : memref<64x1xf32, #tpu.memory_space<vmem>>, vector<64x1xf32>
    %175 = vector.shape_cast %174 : vector<64x1xf32> to vector<64x1xf32>
    %176 = vector.broadcast %175 : vector<64x1xf32> to vector<64x128xf32>
    %177 = tpu.iota {dimensions = array<i32: 1>} : vector<1x128xi32>
    %c0_i32_84 = arith.constant 0 : i32
    %178 = vector.broadcast %c0_i32_84 : i32 to vector<1x128xi32>
    %179 = arith.addi %177, %178 : vector<1x128xi32>
    %c16_i32_85 = arith.constant 16 : i32
    %c0_i32_86 = arith.constant 0 : i32
    %180 = arith.cmpi eq, %c16_i32_85, %c0_i32_86 : i32
    %c1_i32_87 = arith.constant 1 : i32
    %181 = arith.select %180, %c1_i32_87, %c16_i32_85 : i32
    %182 = vector.broadcast %181 : i32 to vector<1x128xi32>
    %183 = arith.remsi %179, %182 : vector<1x128xi32>
    %c0_i32_88 = arith.constant 0 : i32
    %184 = vector.broadcast %c0_i32_88 : i32 to vector<1x128xi32>
    %185 = arith.cmpi ne, %183, %184 : vector<1x128xi32>
    %c0_i32_89 = arith.constant 0 : i32
    %186 = vector.broadcast %c0_i32_89 : i32 to vector<1x128xi32>
    %187 = arith.cmpi slt, %183, %186 : vector<1x128xi32>
    %c0_i32_90 = arith.constant 0 : i32
    %188 = arith.cmpi slt, %181, %c0_i32_90 : i32
    %189 = vector.broadcast %188 : i1 to vector<1x128xi1>
    %190 = vector.broadcast %189 : vector<1x128xi1> to vector<1x128xi1>
    %191 = arith.xori %187, %190 : vector<1x128xi1>
    %192 = arith.andi %191, %185 : vector<1x128xi1>
    %193 = vector.broadcast %181 : i32 to vector<1x128xi32>
    %194 = arith.addi %183, %193 : vector<1x128xi32>
    %195 = arith.select %192, %194, %183 : vector<1x128xi1>, vector<1x128xi32>
    %c2_i32 = arith.constant 2 : i32
    %196 = vector.broadcast %c2_i32 : i32 to vector<1x128xi32>
    %197 = arith.cmpi sge, %195, %196 : vector<1x128xi32>
    %c18_i32 = arith.constant 18 : i32
    %198 = vector.broadcast %c18_i32 : i32 to vector<1x128xi32>
    %199 = arith.cmpi slt, %195, %198 : vector<1x128xi32>
    %200 = arith.andi %197, %199 : vector<1x128xi1>
    %c1_i32_91 = arith.constant 1 : i32
    %201 = vector.broadcast %c1_i32_91 : i32 to vector<1x128xi32>
    %202 = arith.cmpi sge, %195, %201 : vector<1x128xi32>
    %c17_i32_92 = arith.constant 17 : i32
    %203 = vector.broadcast %c17_i32_92 : i32 to vector<1x128xi32>
    %204 = arith.cmpi slt, %195, %203 : vector<1x128xi32>
    %205 = arith.andi %202, %204 : vector<1x128xi1>
    %c-1_i32_93 = arith.constant -1 : i32
    %206 = vector.broadcast %c-1_i32_93 : i32 to vector<1x128xi32>
    %207 = arith.cmpi sge, %195, %206 : vector<1x128xi32>
    %c15_i32_94 = arith.constant 15 : i32
    %208 = vector.broadcast %c15_i32_94 : i32 to vector<1x128xi32>
    %209 = arith.cmpi slt, %195, %208 : vector<1x128xi32>
    %210 = arith.andi %207, %209 : vector<1x128xi1>
    %c-2_i32 = arith.constant -2 : i32
    %211 = vector.broadcast %c-2_i32 : i32 to vector<1x128xi32>
    %212 = arith.cmpi sge, %195, %211 : vector<1x128xi32>
    %c14_i32 = arith.constant 14 : i32
    %213 = vector.broadcast %c14_i32 : i32 to vector<1x128xi32>
    %214 = arith.cmpi slt, %195, %213 : vector<1x128xi32>
    %215 = arith.andi %212, %214 : vector<1x128xi1>
    %cst_95 = arith.constant 0.000000e+00 : f32
    %216 = vector.broadcast %cst_95 : f32 to vector<64x128xf32>
    %c0_96 = arith.constant 0 : index
    %c94 = arith.constant 94 : index
    %217 = vector.load %arg12[%c0_96, %c94] : memref<48x512xf32, #tpu.memory_space<vmem>>, vector<48x128xf32>
    %c0_97 = arith.constant 0 : index
    %c110 = arith.constant 110 : index
    %218 = vector.load %arg12[%c0_97, %c110] : memref<48x512xf32, #tpu.memory_space<vmem>>, vector<48x128xf32>
    %c0_98 = arith.constant 0 : index
    %c126 = arith.constant 126 : index
    %219 = vector.load %arg12[%c0_98, %c126] : memref<48x512xf32, #tpu.memory_space<vmem>>, vector<48x128xf32>
    %c0_99 = arith.constant 0 : index
    %c142 = arith.constant 142 : index
    %220 = vector.load %arg12[%c0_99, %c142] : memref<48x512xf32, #tpu.memory_space<vmem>>, vector<48x128xf32>
    %c0_100 = arith.constant 0 : index
    %c158 = arith.constant 158 : index
    %221 = vector.load %arg12[%c0_100, %c158] : memref<48x512xf32, #tpu.memory_space<vmem>>, vector<48x128xf32>
    %222 = tpu.concatenate %217, %218, %219, %220, %221 in 0 : vector<48x128xf32>, vector<48x128xf32>, vector<48x128xf32>, vector<48x128xf32>, vector<48x128xf32> -> vector<240x128xf32>
    %c0_101 = arith.constant 0 : index
    %c0_102 = arith.constant 0 : index
    %c0_103 = arith.constant 0 : index
    %223 = vector.load %arg4[%c0_101, %c0_102, %c0_103] : memref<5x64x240xbf16, #tpu.memory_space<vmem>>, vector<1x64x240xbf16>
    %224 = vector.shape_cast %223 : vector<1x64x240xbf16> to vector<64x240xbf16>
    %225 = arith.truncf %222 : vector<240x128xf32> to vector<240x128xbf16>
    %cst_104 = arith.constant dense<0.000000e+00> : vector<64x128xf32>
    %226 = tpu.matmul %224, %225, %cst_104 {dimension_numbers = #tpu.dot_dimension_numbers<[1], [0], [0], [1], [0, 0, 1, 1], [], []>} : vector<64x240xbf16>, vector<240x128xbf16>, vector<64x128xf32> -> vector<64x128xf32>
    %cst_105 = arith.constant 0.000000e+00 : f32
    %227 = vector.shape_cast %200 : vector<1x128xi1> to vector<1x128xi1>
    %228 = vector.broadcast %227 : vector<1x128xi1> to vector<64x128xi1>
    %229 = vector.broadcast %cst_105 : f32 to vector<64x128xf32>
    %230 = arith.select %228, %226, %229 : vector<64x128xi1>, vector<64x128xf32>
    %231 = arith.addf %216, %230 : vector<64x128xf32>
    %c0_106 = arith.constant 0 : index
    %c95 = arith.constant 95 : index
    %232 = vector.load %arg12[%c0_106, %c95] : memref<48x512xf32, #tpu.memory_space<vmem>>, vector<48x128xf32>
    %c0_107 = arith.constant 0 : index
    %c111_108 = arith.constant 111 : index
    %233 = vector.load %arg12[%c0_107, %c111_108] : memref<48x512xf32, #tpu.memory_space<vmem>>, vector<48x128xf32>
    %c0_109 = arith.constant 0 : index
    %c127_110 = arith.constant 127 : index
    %234 = vector.load %arg12[%c0_109, %c127_110] : memref<48x512xf32, #tpu.memory_space<vmem>>, vector<48x128xf32>
    %c0_111 = arith.constant 0 : index
    %c143_112 = arith.constant 143 : index
    %235 = vector.load %arg12[%c0_111, %c143_112] : memref<48x512xf32, #tpu.memory_space<vmem>>, vector<48x128xf32>
    %c0_113 = arith.constant 0 : index
    %c159 = arith.constant 159 : index
    %236 = vector.load %arg12[%c0_113, %c159] : memref<48x512xf32, #tpu.memory_space<vmem>>, vector<48x128xf32>
    %237 = tpu.concatenate %232, %233, %234, %235, %236 in 0 : vector<48x128xf32>, vector<48x128xf32>, vector<48x128xf32>, vector<48x128xf32>, vector<48x128xf32> -> vector<240x128xf32>
    %c1 = arith.constant 1 : index
    %c0_114 = arith.constant 0 : index
    %c0_115 = arith.constant 0 : index
    %238 = vector.load %arg4[%c1, %c0_114, %c0_115] : memref<5x64x240xbf16, #tpu.memory_space<vmem>>, vector<1x64x240xbf16>
    %239 = vector.shape_cast %238 : vector<1x64x240xbf16> to vector<64x240xbf16>
    %240 = arith.truncf %237 : vector<240x128xf32> to vector<240x128xbf16>
    %cst_116 = arith.constant dense<0.000000e+00> : vector<64x128xf32>
    %241 = tpu.matmul %239, %240, %cst_116 {dimension_numbers = #tpu.dot_dimension_numbers<[1], [0], [0], [1], [0, 0, 1, 1], [], []>} : vector<64x240xbf16>, vector<240x128xbf16>, vector<64x128xf32> -> vector<64x128xf32>
    %cst_117 = arith.constant 0.000000e+00 : f32
    %242 = vector.shape_cast %205 : vector<1x128xi1> to vector<1x128xi1>
    %243 = vector.broadcast %242 : vector<1x128xi1> to vector<64x128xi1>
    %244 = vector.broadcast %cst_117 : f32 to vector<64x128xf32>
    %245 = arith.select %243, %241, %244 : vector<64x128xi1>, vector<64x128xf32>
    %246 = arith.addf %231, %245 : vector<64x128xf32>
    %c0_118 = arith.constant 0 : index
    %c96 = arith.constant 96 : index
    %247 = vector.load %arg12[%c0_118, %c96] : memref<48x512xf32, #tpu.memory_space<vmem>>, vector<48x128xf32>
    %c0_119 = arith.constant 0 : index
    %c112_120 = arith.constant 112 : index
    %248 = vector.load %arg12[%c0_119, %c112_120] : memref<48x512xf32, #tpu.memory_space<vmem>>, vector<48x128xf32>
    %c0_121 = arith.constant 0 : index
    %c128_122 = arith.constant 128 : index
    %249 = vector.load %arg12[%c0_121, %c128_122] : memref<48x512xf32, #tpu.memory_space<vmem>>, vector<48x128xf32>
    %c0_123 = arith.constant 0 : index
    %c144_124 = arith.constant 144 : index
    %250 = vector.load %arg12[%c0_123, %c144_124] : memref<48x512xf32, #tpu.memory_space<vmem>>, vector<48x128xf32>
    %c0_125 = arith.constant 0 : index
    %c160 = arith.constant 160 : index
    %251 = vector.load %arg12[%c0_125, %c160] : memref<48x512xf32, #tpu.memory_space<vmem>>, vector<48x128xf32>
    %252 = tpu.concatenate %247, %248, %249, %250, %251 in 0 : vector<48x128xf32>, vector<48x128xf32>, vector<48x128xf32>, vector<48x128xf32>, vector<48x128xf32> -> vector<240x128xf32>
    %c2 = arith.constant 2 : index
    %c0_126 = arith.constant 0 : index
    %c0_127 = arith.constant 0 : index
    %253 = vector.load %arg4[%c2, %c0_126, %c0_127] : memref<5x64x240xbf16, #tpu.memory_space<vmem>>, vector<1x64x240xbf16>
    %254 = vector.shape_cast %253 : vector<1x64x240xbf16> to vector<64x240xbf16>
    %255 = arith.truncf %252 : vector<240x128xf32> to vector<240x128xbf16>
    %cst_128 = arith.constant dense<0.000000e+00> : vector<64x128xf32>
    %256 = tpu.matmul %254, %255, %cst_128 {dimension_numbers = #tpu.dot_dimension_numbers<[1], [0], [0], [1], [0, 0, 1, 1], [], []>} : vector<64x240xbf16>, vector<240x128xbf16>, vector<64x128xf32> -> vector<64x128xf32>
    %257 = arith.addf %246, %256 : vector<64x128xf32>
    %c0_129 = arith.constant 0 : index
    %c97 = arith.constant 97 : index
    %258 = vector.load %arg12[%c0_129, %c97] : memref<48x512xf32, #tpu.memory_space<vmem>>, vector<48x128xf32>
    %c0_130 = arith.constant 0 : index
    %c113_131 = arith.constant 113 : index
    %259 = vector.load %arg12[%c0_130, %c113_131] : memref<48x512xf32, #tpu.memory_space<vmem>>, vector<48x128xf32>
    %c0_132 = arith.constant 0 : index
    %c129_133 = arith.constant 129 : index
    %260 = vector.load %arg12[%c0_132, %c129_133] : memref<48x512xf32, #tpu.memory_space<vmem>>, vector<48x128xf32>
    %c0_134 = arith.constant 0 : index
    %c145_135 = arith.constant 145 : index
    %261 = vector.load %arg12[%c0_134, %c145_135] : memref<48x512xf32, #tpu.memory_space<vmem>>, vector<48x128xf32>
    %c0_136 = arith.constant 0 : index
    %c161 = arith.constant 161 : index
    %262 = vector.load %arg12[%c0_136, %c161] : memref<48x512xf32, #tpu.memory_space<vmem>>, vector<48x128xf32>
    %263 = tpu.concatenate %258, %259, %260, %261, %262 in 0 : vector<48x128xf32>, vector<48x128xf32>, vector<48x128xf32>, vector<48x128xf32>, vector<48x128xf32> -> vector<240x128xf32>
    %c3 = arith.constant 3 : index
    %c0_137 = arith.constant 0 : index
    %c0_138 = arith.constant 0 : index
    %264 = vector.load %arg4[%c3, %c0_137, %c0_138] : memref<5x64x240xbf16, #tpu.memory_space<vmem>>, vector<1x64x240xbf16>
    %265 = vector.shape_cast %264 : vector<1x64x240xbf16> to vector<64x240xbf16>
    %266 = arith.truncf %263 : vector<240x128xf32> to vector<240x128xbf16>
    %cst_139 = arith.constant dense<0.000000e+00> : vector<64x128xf32>
    %267 = tpu.matmul %265, %266, %cst_139 {dimension_numbers = #tpu.dot_dimension_numbers<[1], [0], [0], [1], [0, 0, 1, 1], [], []>} : vector<64x240xbf16>, vector<240x128xbf16>, vector<64x128xf32> -> vector<64x128xf32>
    %cst_140 = arith.constant 0.000000e+00 : f32
    %268 = vector.shape_cast %210 : vector<1x128xi1> to vector<1x128xi1>
    %269 = vector.broadcast %268 : vector<1x128xi1> to vector<64x128xi1>
    %270 = vector.broadcast %cst_140 : f32 to vector<64x128xf32>
    %271 = arith.select %269, %267, %270 : vector<64x128xi1>, vector<64x128xf32>
    %272 = arith.addf %257, %271 : vector<64x128xf32>
    %c0_141 = arith.constant 0 : index
    %c98 = arith.constant 98 : index
    %273 = vector.load %arg12[%c0_141, %c98] : memref<48x512xf32, #tpu.memory_space<vmem>>, vector<48x128xf32>
    %c0_142 = arith.constant 0 : index
    %c114 = arith.constant 114 : index
    %274 = vector.load %arg12[%c0_142, %c114] : memref<48x512xf32, #tpu.memory_space<vmem>>, vector<48x128xf32>
    %c0_143 = arith.constant 0 : index
    %c130 = arith.constant 130 : index
    %275 = vector.load %arg12[%c0_143, %c130] : memref<48x512xf32, #tpu.memory_space<vmem>>, vector<48x128xf32>
    %c0_144 = arith.constant 0 : index
    %c146 = arith.constant 146 : index
    %276 = vector.load %arg12[%c0_144, %c146] : memref<48x512xf32, #tpu.memory_space<vmem>>, vector<48x128xf32>
    %c0_145 = arith.constant 0 : index
    %c162 = arith.constant 162 : index
    %277 = vector.load %arg12[%c0_145, %c162] : memref<48x512xf32, #tpu.memory_space<vmem>>, vector<48x128xf32>
    %278 = tpu.concatenate %273, %274, %275, %276, %277 in 0 : vector<48x128xf32>, vector<48x128xf32>, vector<48x128xf32>, vector<48x128xf32>, vector<48x128xf32> -> vector<240x128xf32>
    %c4 = arith.constant 4 : index
    %c0_146 = arith.constant 0 : index
    %c0_147 = arith.constant 0 : index
    %279 = vector.load %arg4[%c4, %c0_146, %c0_147] : memref<5x64x240xbf16, #tpu.memory_space<vmem>>, vector<1x64x240xbf16>
    %280 = vector.shape_cast %279 : vector<1x64x240xbf16> to vector<64x240xbf16>
    %281 = arith.truncf %278 : vector<240x128xf32> to vector<240x128xbf16>
    %cst_148 = arith.constant dense<0.000000e+00> : vector<64x128xf32>
    %282 = tpu.matmul %280, %281, %cst_148 {dimension_numbers = #tpu.dot_dimension_numbers<[1], [0], [0], [1], [0, 0, 1, 1], [], []>} : vector<64x240xbf16>, vector<240x128xbf16>, vector<64x128xf32> -> vector<64x128xf32>
    %cst_149 = arith.constant 0.000000e+00 : f32
    %283 = vector.shape_cast %215 : vector<1x128xi1> to vector<1x128xi1>
    %284 = vector.broadcast %283 : vector<1x128xi1> to vector<64x128xi1>
    %285 = vector.broadcast %cst_149 : f32 to vector<64x128xf32>
    %286 = arith.select %284, %282, %285 : vector<64x128xi1>, vector<64x128xf32>
    %287 = arith.addf %272, %286 : vector<64x128xf32>
    %288 = arith.addf %287, %176 : vector<64x128xf32>
    %cst_150 = arith.constant 0.000000e+00 : f32
    %289 = vector.broadcast %cst_150 : f32 to vector<64x128xf32>
    %290 = arith.maximumf %288, %289 : vector<64x128xf32>
    %c0_151 = arith.constant 0 : index
    %c64 = arith.constant 64 : index
    %c0_152 = arith.constant 0 : index
    %291 = vector.load %arg11[%c0_151, %c64, %c0_152] : memref<1x256x256xf32, #tpu.memory_space<vmem>>, vector<1x64x128xf32>
    %292 = vector.shape_cast %291 : vector<1x64x128xf32> to vector<64x128xf32>
    %293 = vector.shape_cast %290 : vector<64x128xf32> to vector<1x64x128xf32>
    tpu.vector_store %arg11[%c0_151, %c64, %c0_152], %293 {strides = array<i32>} : memref<1x256x256xf32, #tpu.memory_space<vmem>>, vector<1x64x128xf32>,
    %294 = tpu.iota {dimensions = array<i32: 1>} : vector<1x128xi32>
    %c128_i32_153 = arith.constant 128 : i32
    %295 = vector.broadcast %c128_i32_153 : i32 to vector<1x128xi32>
    %296 = arith.addi %294, %295 : vector<1x128xi32>
    %c16_i32_154 = arith.constant 16 : i32
    %c0_i32_155 = arith.constant 0 : i32
    %297 = arith.cmpi eq, %c16_i32_154, %c0_i32_155 : i32
    %c1_i32_156 = arith.constant 1 : i32
    %298 = arith.select %297, %c1_i32_156, %c16_i32_154 : i32
    %299 = vector.broadcast %298 : i32 to vector<1x128xi32>
    %300 = arith.remsi %296, %299 : vector<1x128xi32>
    %c0_i32_157 = arith.constant 0 : i32
    %301 = vector.broadcast %c0_i32_157 : i32 to vector<1x128xi32>
    %302 = arith.cmpi ne, %300, %301 : vector<1x128xi32>
    %c0_i32_158 = arith.constant 0 : i32
    %303 = vector.broadcast %c0_i32_158 : i32 to vector<1x128xi32>
    %304 = arith.cmpi slt, %300, %303 : vector<1x128xi32>
    %c0_i32_159 = arith.constant 0 : i32
    %305 = arith.cmpi slt, %298, %c0_i32_159 : i32
    %306 = vector.broadcast %305 : i1 to vector<1x128xi1>
    %307 = vector.broadcast %306 : vector<1x128xi1> to vector<1x128xi1>
    %308 = arith.xori %304, %307 : vector<1x128xi1>
    %309 = arith.andi %308, %302 : vector<1x128xi1>
    %310 = vector.broadcast %298 : i32 to vector<1x128xi32>
    %311 = arith.addi %300, %310 : vector<1x128xi32>
    %312 = arith.select %309, %311, %300 : vector<1x128xi1>, vector<1x128xi32>
    %c2_i32_160 = arith.constant 2 : i32
    %313 = vector.broadcast %c2_i32_160 : i32 to vector<1x128xi32>
    %314 = arith.cmpi sge, %312, %313 : vector<1x128xi32>
    %c18_i32_161 = arith.constant 18 : i32
    %315 = vector.broadcast %c18_i32_161 : i32 to vector<1x128xi32>
    %316 = arith.cmpi slt, %312, %315 : vector<1x128xi32>
    %317 = arith.andi %314, %316 : vector<1x128xi1>
    %c1_i32_162 = arith.constant 1 : i32
    %318 = vector.broadcast %c1_i32_162 : i32 to vector<1x128xi32>
    %319 = arith.cmpi sge, %312, %318 : vector<1x128xi32>
    %c17_i32_163 = arith.constant 17 : i32
    %320 = vector.broadcast %c17_i32_163 : i32 to vector<1x128xi32>
    %321 = arith.cmpi slt, %312, %320 : vector<1x128xi32>
    %322 = arith.andi %319, %321 : vector<1x128xi1>
    %c-1_i32_164 = arith.constant -1 : i32
    %323 = vector.broadcast %c-1_i32_164 : i32 to vector<1x128xi32>
    %324 = arith.cmpi sge, %312, %323 : vector<1x128xi32>
    %c15_i32_165 = arith.constant 15 : i32
    %325 = vector.broadcast %c15_i32_165 : i32 to vector<1x128xi32>
    %326 = arith.cmpi slt, %312, %325 : vector<1x128xi32>
    %327 = arith.andi %324, %326 : vector<1x128xi1>
    %c-2_i32_166 = arith.constant -2 : i32
    %328 = vector.broadcast %c-2_i32_166 : i32 to vector<1x128xi32>
    %329 = arith.cmpi sge, %312, %328 : vector<1x128xi32>
    %c14_i32_167 = arith.constant 14 : i32
    %330 = vector.broadcast %c14_i32_167 : i32 to vector<1x128xi32>
    %331 = arith.cmpi slt, %312, %330 : vector<1x128xi32>
    %332 = arith.andi %329, %331 : vector<1x128xi1>
    %cst_168 = arith.constant 0.000000e+00 : f32
    %333 = vector.broadcast %cst_168 : f32 to vector<64x128xf32>
    %c0_169 = arith.constant 0 : index
    %c222 = arith.constant 222 : index
    %334 = vector.load %arg12[%c0_169, %c222] : memref<48x512xf32, #tpu.memory_space<vmem>>, vector<48x128xf32>
    %c0_170 = arith.constant 0 : index
    %c238 = arith.constant 238 : index
    %335 = vector.load %arg12[%c0_170, %c238] : memref<48x512xf32, #tpu.memory_space<vmem>>, vector<48x128xf32>
    %c0_171 = arith.constant 0 : index
    %c254 = arith.constant 254 : index
    %336 = vector.load %arg12[%c0_171, %c254] : memref<48x512xf32, #tpu.memory_space<vmem>>, vector<48x128xf32>
    %c0_172 = arith.constant 0 : index
    %c270 = arith.constant 270 : index
    %337 = vector.load %arg12[%c0_172, %c270] : memref<48x512xf32, #tpu.memory_space<vmem>>, vector<48x128xf32>
    %c0_173 = arith.constant 0 : index
    %c286 = arith.constant 286 : index
    %338 = vector.load %arg12[%c0_173, %c286] : memref<48x512xf32, #tpu.memory_space<vmem>>, vector<48x128xf32>
    %339 = tpu.concatenate %334, %335, %336, %337, %338 in 0 : vector<48x128xf32>, vector<48x128xf32>, vector<48x128xf32>, vector<48x128xf32>, vector<48x128xf32> -> vector<240x128xf32>
    %c0_174 = arith.constant 0 : index
    %c0_175 = arith.constant 0 : index
    %c0_176 = arith.constant 0 : index
    %340 = vector.load %arg4[%c0_174, %c0_175, %c0_176] : memref<5x64x240xbf16, #tpu.memory_space<vmem>>, vector<1x64x240xbf16>
    %341 = vector.shape_cast %340 : vector<1x64x240xbf16> to vector<64x240xbf16>
    %342 = arith.truncf %339 : vector<240x128xf32> to vector<240x128xbf16>
    %cst_177 = arith.constant dense<0.000000e+00> : vector<64x128xf32>
    %343 = tpu.matmul %341, %342, %cst_177 {dimension_numbers = #tpu.dot_dimension_numbers<[1], [0], [0], [1], [0, 0, 1, 1], [], []>} : vector<64x240xbf16>, vector<240x128xbf16>, vector<64x128xf32> -> vector<64x128xf32>
    %cst_178 = arith.constant 0.000000e+00 : f32
    %344 = vector.shape_cast %317 : vector<1x128xi1> to vector<1x128xi1>
    %345 = vector.broadcast %344 : vector<1x128xi1> to vector<64x128xi1>
    %346 = vector.broadcast %cst_178 : f32 to vector<64x128xf32>
    %347 = arith.select %345, %343, %346 : vector<64x128xi1>, vector<64x128xf32>
    %348 = arith.addf %333, %347 : vector<64x128xf32>
    %c0_179 = arith.constant 0 : index
    %c223 = arith.constant 223 : index
    %349 = vector.load %arg12[%c0_179, %c223] : memref<48x512xf32, #tpu.memory_space<vmem>>, vector<48x128xf32>
    %c0_180 = arith.constant 0 : index
    %c239_181 = arith.constant 239 : index
    %350 = vector.load %arg12[%c0_180, %c239_181] : memref<48x512xf32, #tpu.memory_space<vmem>>, vector<48x128xf32>
    %c0_182 = arith.constant 0 : index
    %c255_183 = arith.constant 255 : index
    %351 = vector.load %arg12[%c0_182, %c255_183] : memref<48x512xf32, #tpu.memory_space<vmem>>, vector<48x128xf32>
    %c0_184 = arith.constant 0 : index
    %c271_185 = arith.constant 271 : index
    %352 = vector.load %arg12[%c0_184, %c271_185] : memref<48x512xf32, #tpu.memory_space<vmem>>, vector<48x128xf32>
    %c0_186 = arith.constant 0 : index
    %c287 = arith.constant 287 : index
    %353 = vector.load %arg12[%c0_186, %c287] : memref<48x512xf32, #tpu.memory_space<vmem>>, vector<48x128xf32>
    %354 = tpu.concatenate %349, %350, %351, %352, %353 in 0 : vector<48x128xf32>, vector<48x128xf32>, vector<48x128xf32>, vector<48x128xf32>, vector<48x128xf32> -> vector<240x128xf32>
    %c1_187 = arith.constant 1 : index
    %c0_188 = arith.constant 0 : index
    %c0_189 = arith.constant 0 : index
    %355 = vector.load %arg4[%c1_187, %c0_188, %c0_189] : memref<5x64x240xbf16, #tpu.memory_space<vmem>>, vector<1x64x240xbf16>
    %356 = vector.shape_cast %355 : vector<1x64x240xbf16> to vector<64x240xbf16>
    %357 = arith.truncf %354 : vector<240x128xf32> to vector<240x128xbf16>
    %cst_190 = arith.constant dense<0.000000e+00> : vector<64x128xf32>
    %358 = tpu.matmul %356, %357, %cst_190 {dimension_numbers = #tpu.dot_dimension_numbers<[1], [0], [0], [1], [0, 0, 1, 1], [], []>} : vector<64x240xbf16>, vector<240x128xbf16>, vector<64x128xf32> -> vector<64x128xf32>
    %cst_191 = arith.constant 0.000000e+00 : f32
    %359 = vector.shape_cast %322 : vector<1x128xi1> to vector<1x128xi1>
    %360 = vector.broadcast %359 : vector<1x128xi1> to vector<64x128xi1>
    %361 = vector.broadcast %cst_191 : f32 to vector<64x128xf32>
    %362 = arith.select %360, %358, %361 : vector<64x128xi1>, vector<64x128xf32>
    %363 = arith.addf %348, %362 : vector<64x128xf32>
    %c0_192 = arith.constant 0 : index
    %c224_193 = arith.constant 224 : index
    %364 = vector.load %arg12[%c0_192, %c224_193] : memref<48x512xf32, #tpu.memory_space<vmem>>, vector<48x128xf32>
    %c0_194 = arith.constant 0 : index
    %c240_195 = arith.constant 240 : index
    %365 = vector.load %arg12[%c0_194, %c240_195] : memref<48x512xf32, #tpu.memory_space<vmem>>, vector<48x128xf32>
    %c0_196 = arith.constant 0 : index
    %c256_197 = arith.constant 256 : index
    %366 = vector.load %arg12[%c0_196, %c256_197] : memref<48x512xf32, #tpu.memory_space<vmem>>, vector<48x128xf32>
    %c0_198 = arith.constant 0 : index
    %c272_199 = arith.constant 272 : index
    %367 = vector.load %arg12[%c0_198, %c272_199] : memref<48x512xf32, #tpu.memory_space<vmem>>, vector<48x128xf32>
    %c0_200 = arith.constant 0 : index
    %c288 = arith.constant 288 : index
    %368 = vector.load %arg12[%c0_200, %c288] : memref<48x512xf32, #tpu.memory_space<vmem>>, vector<48x128xf32>
    %369 = tpu.concatenate %364, %365, %366, %367, %368 in 0 : vector<48x128xf32>, vector<48x128xf32>, vector<48x128xf32>, vector<48x128xf32>, vector<48x128xf32> -> vector<240x128xf32>
    %c2_201 = arith.constant 2 : index
    %c0_202 = arith.constant 0 : index
    %c0_203 = arith.constant 0 : index
    %370 = vector.load %arg4[%c2_201, %c0_202, %c0_203] : memref<5x64x240xbf16, #tpu.memory_space<vmem>>, vector<1x64x240xbf16>
    %371 = vector.shape_cast %370 : vector<1x64x240xbf16> to vector<64x240xbf16>
    %372 = arith.truncf %369 : vector<240x128xf32> to vector<240x128xbf16>
    %cst_204 = arith.constant dense<0.000000e+00> : vector<64x128xf32>
    %373 = tpu.matmul %371, %372, %cst_204 {dimension_numbers = #tpu.dot_dimension_numbers<[1], [0], [0], [1], [0, 0, 1, 1], [], []>} : vector<64x240xbf16>, vector<240x128xbf16>, vector<64x128xf32> -> vector<64x128xf32>
    %374 = arith.addf %363, %373 : vector<64x128xf32>
    %c0_205 = arith.constant 0 : index
    %c225 = arith.constant 225 : index
    %375 = vector.load %arg12[%c0_205, %c225] : memref<48x512xf32, #tpu.memory_space<vmem>>, vector<48x128xf32>
    %c0_206 = arith.constant 0 : index
    %c241_207 = arith.constant 241 : index
    %376 = vector.load %arg12[%c0_206, %c241_207] : memref<48x512xf32, #tpu.memory_space<vmem>>, vector<48x128xf32>
    %c0_208 = arith.constant 0 : index
    %c257_209 = arith.constant 257 : index
    %377 = vector.load %arg12[%c0_208, %c257_209] : memref<48x512xf32, #tpu.memory_space<vmem>>, vector<48x128xf32>
    %c0_210 = arith.constant 0 : index
    %c273_211 = arith.constant 273 : index
    %378 = vector.load %arg12[%c0_210, %c273_211] : memref<48x512xf32, #tpu.memory_space<vmem>>, vector<48x128xf32>
    %c0_212 = arith.constant 0 : index
    %c289 = arith.constant 289 : index
    %379 = vector.load %arg12[%c0_212, %c289] : memref<48x512xf32, #tpu.memory_space<vmem>>, vector<48x128xf32>
    %380 = tpu.concatenate %375, %376, %377, %378, %379 in 0 : vector<48x128xf32>, vector<48x128xf32>, vector<48x128xf32>, vector<48x128xf32>, vector<48x128xf32> -> vector<240x128xf32>
    %c3_213 = arith.constant 3 : index
    %c0_214 = arith.constant 0 : index
    %c0_215 = arith.constant 0 : index
    %381 = vector.load %arg4[%c3_213, %c0_214, %c0_215] : memref<5x64x240xbf16, #tpu.memory_space<vmem>>, vector<1x64x240xbf16>
    %382 = vector.shape_cast %381 : vector<1x64x240xbf16> to vector<64x240xbf16>
    %383 = arith.truncf %380 : vector<240x128xf32> to vector<240x128xbf16>
    %cst_216 = arith.constant dense<0.000000e+00> : vector<64x128xf32>
    %384 = tpu.matmul %382, %383, %cst_216 {dimension_numbers = #tpu.dot_dimension_numbers<[1], [0], [0], [1], [0, 0, 1, 1], [], []>} : vector<64x240xbf16>, vector<240x128xbf16>, vector<64x128xf32> -> vector<64x128xf32>
    %cst_217 = arith.constant 0.000000e+00 : f32
    %385 = vector.shape_cast %327 : vector<1x128xi1> to vector<1x128xi1>
    %386 = vector.broadcast %385 : vector<1x128xi1> to vector<64x128xi1>
    %387 = vector.broadcast %cst_217 : f32 to vector<64x128xf32>
    %388 = arith.select %386, %384, %387 : vector<64x128xi1>, vector<64x128xf32>
    %389 = arith.addf %374, %388 : vector<64x128xf32>
    %c0_218 = arith.constant 0 : index
    %c226 = arith.constant 226 : index
    %390 = vector.load %arg12[%c0_218, %c226] : memref<48x512xf32, #tpu.memory_space<vmem>>, vector<48x128xf32>
    %c0_219 = arith.constant 0 : index
    %c242 = arith.constant 242 : index
    %391 = vector.load %arg12[%c0_219, %c242] : memref<48x512xf32, #tpu.memory_space<vmem>>, vector<48x128xf32>
    %c0_220 = arith.constant 0 : index
    %c258 = arith.constant 258 : index
    %392 = vector.load %arg12[%c0_220, %c258] : memref<48x512xf32, #tpu.memory_space<vmem>>, vector<48x128xf32>
    %c0_221 = arith.constant 0 : index
    %c274 = arith.constant 274 : index
    %393 = vector.load %arg12[%c0_221, %c274] : memref<48x512xf32, #tpu.memory_space<vmem>>, vector<48x128xf32>
    %c0_222 = arith.constant 0 : index
    %c290 = arith.constant 290 : index
    %394 = vector.load %arg12[%c0_222, %c290] : memref<48x512xf32, #tpu.memory_space<vmem>>, vector<48x128xf32>
    %395 = tpu.concatenate %390, %391, %392, %393, %394 in 0 : vector<48x128xf32>, vector<48x128xf32>, vector<48x128xf32>, vector<48x128xf32>, vector<48x128xf32> -> vector<240x128xf32>
    %c4_223 = arith.constant 4 : index
    %c0_224 = arith.constant 0 : index
    %c0_225 = arith.constant 0 : index
    %396 = vector.load %arg4[%c4_223, %c0_224, %c0_225] : memref<5x64x240xbf16, #tpu.memory_space<vmem>>, vector<1x64x240xbf16>
    %397 = vector.shape_cast %396 : vector<1x64x240xbf16> to vector<64x240xbf16>
    %398 = arith.truncf %395 : vector<240x128xf32> to vector<240x128xbf16>
    %cst_226 = arith.constant dense<0.000000e+00> : vector<64x128xf32>
    %399 = tpu.matmul %397, %398, %cst_226 {dimension_numbers = #tpu.dot_dimension_numbers<[1], [0], [0], [1], [0, 0, 1, 1], [], []>} : vector<64x240xbf16>, vector<240x128xbf16>, vector<64x128xf32> -> vector<64x128xf32>
    %cst_227 = arith.constant 0.000000e+00 : f32
    %400 = vector.shape_cast %332 : vector<1x128xi1> to vector<1x128xi1>
    %401 = vector.broadcast %400 : vector<1x128xi1> to vector<64x128xi1>
    %402 = vector.broadcast %cst_227 : f32 to vector<64x128xf32>
    %403 = arith.select %401, %399, %402 : vector<64x128xi1>, vector<64x128xf32>
    %404 = arith.addf %389, %403 : vector<64x128xf32>
    %405 = arith.addf %404, %176 : vector<64x128xf32>
    %cst_228 = arith.constant 0.000000e+00 : f32
    %406 = vector.broadcast %cst_228 : f32 to vector<64x128xf32>
    %407 = arith.maximumf %405, %406 : vector<64x128xf32>
    %c0_229 = arith.constant 0 : index
    %c64_230 = arith.constant 64 : index
    %c128_231 = arith.constant 128 : index
    %408 = vector.load %arg11[%c0_229, %c64_230, %c128_231] : memref<1x256x256xf32, #tpu.memory_space<vmem>>, vector<1x64x128xf32>
    %409 = vector.shape_cast %408 : vector<1x64x128xf32> to vector<64x128xf32>
    %410 = vector.shape_cast %407 : vector<64x128xf32> to vector<1x64x128xf32>
    tpu.vector_store %arg11[%c0_229, %c64_230, %c128_231], %410 {strides = array<i32>} : memref<1x256x256xf32, #tpu.memory_space<vmem>>, vector<1x64x128xf32>,
    %c0_232 = arith.constant 0 : index
    %c0_233 = arith.constant 0 : index
    %411 = vector.load %arg7[%c0_232, %c0_233] : memref<96x1xf32, #tpu.memory_space<vmem>>, vector<96x1xf32>
    %412 = vector.shape_cast %411 : vector<96x1xf32> to vector<96x1xf32>
    %413 = vector.broadcast %412 : vector<96x1xf32> to vector<96x128xf32>
    %414 = tpu.iota {dimensions = array<i32: 1>} : vector<1x128xi32>
    %c0_i32_234 = arith.constant 0 : i32
    %415 = vector.broadcast %c0_i32_234 : i32 to vector<1x128xi32>
    %416 = arith.addi %414, %415 : vector<1x128xi32>
    %c16_i32_235 = arith.constant 16 : i32
    %c0_i32_236 = arith.constant 0 : i32
    %417 = arith.cmpi eq, %c16_i32_235, %c0_i32_236 : i32
    %c1_i32_237 = arith.constant 1 : i32
    %418 = arith.select %417, %c1_i32_237, %c16_i32_235 : i32
    %419 = vector.broadcast %418 : i32 to vector<1x128xi32>
    %420 = arith.remsi %416, %419 : vector<1x128xi32>
    %c0_i32_238 = arith.constant 0 : i32
    %421 = vector.broadcast %c0_i32_238 : i32 to vector<1x128xi32>
    %422 = arith.cmpi ne, %420, %421 : vector<1x128xi32>
    %c0_i32_239 = arith.constant 0 : i32
    %423 = vector.broadcast %c0_i32_239 : i32 to vector<1x128xi32>
    %424 = arith.cmpi slt, %420, %423 : vector<1x128xi32>
    %c0_i32_240 = arith.constant 0 : i32
    %425 = arith.cmpi slt, %418, %c0_i32_240 : i32
    %426 = vector.broadcast %425 : i1 to vector<1x128xi1>
    %427 = vector.broadcast %426 : vector<1x128xi1> to vector<1x128xi1>
    %428 = arith.xori %424, %427 : vector<1x128xi1>
    %429 = arith.andi %428, %422 : vector<1x128xi1>
    %430 = vector.broadcast %418 : i32 to vector<1x128xi32>
    %431 = arith.addi %420, %430 : vector<1x128xi32>
    %432 = arith.select %429, %431, %420 : vector<1x128xi1>, vector<1x128xi32>
    %c1_i32_241 = arith.constant 1 : i32
    %433 = vector.broadcast %c1_i32_241 : i32 to vector<1x128xi32>
    %434 = arith.cmpi sge, %432, %433 : vector<1x128xi32>
    %c17_i32_242 = arith.constant 17 : i32
    %435 = vector.broadcast %c17_i32_242 : i32 to vector<1x128xi32>
    %436 = arith.cmpi slt, %432, %435 : vector<1x128xi32>
    %437 = arith.andi %434, %436 : vector<1x128xi1>
    %c-1_i32_243 = arith.constant -1 : i32
    %438 = vector.broadcast %c-1_i32_243 : i32 to vector<1x128xi32>
    %439 = arith.cmpi sge, %432, %438 : vector<1x128xi32>
    %c15_i32_244 = arith.constant 15 : i32
    %440 = vector.broadcast %c15_i32_244 : i32 to vector<1x128xi32>
    %441 = arith.cmpi slt, %432, %440 : vector<1x128xi32>
    %442 = arith.andi %439, %441 : vector<1x128xi1>
    %cst_245 = arith.constant 0.000000e+00 : f32
    %443 = vector.broadcast %cst_245 : f32 to vector<96x128xf32>
    %c0_246 = arith.constant 0 : index
    %c111_247 = arith.constant 111 : index
    %444 = vector.load %arg13[%c0_246, %c111_247] : memref<64x512xf32, #tpu.memory_space<vmem>>, vector<64x128xf32>
    %c0_248 = arith.constant 0 : index
    %c127_249 = arith.constant 127 : index
    %445 = vector.load %arg13[%c0_248, %c127_249] : memref<64x512xf32, #tpu.memory_space<vmem>>, vector<64x128xf32>
    %c0_250 = arith.constant 0 : index
    %c143_251 = arith.constant 143 : index
    %446 = vector.load %arg13[%c0_250, %c143_251] : memref<64x512xf32, #tpu.memory_space<vmem>>, vector<64x128xf32>
    %447 = tpu.concatenate %444, %445, %446 in 0 : vector<64x128xf32>, vector<64x128xf32>, vector<64x128xf32> -> vector<192x128xf32>
    %c0_252 = arith.constant 0 : index
    %c0_253 = arith.constant 0 : index
    %c0_254 = arith.constant 0 : index
    %448 = vector.load %arg6[%c0_252, %c0_253, %c0_254] : memref<3x96x192xbf16, #tpu.memory_space<vmem>>, vector<1x96x192xbf16>
    %449 = vector.shape_cast %448 : vector<1x96x192xbf16> to vector<96x192xbf16>
    %450 = arith.truncf %447 : vector<192x128xf32> to vector<192x128xbf16>
    %cst_255 = arith.constant dense<0.000000e+00> : vector<96x128xf32>
    %451 = tpu.matmul %449, %450, %cst_255 {dimension_numbers = #tpu.dot_dimension_numbers<[1], [0], [0], [1], [0, 0, 1, 1], [], []>} : vector<96x192xbf16>, vector<192x128xbf16>, vector<96x128xf32> -> vector<96x128xf32>
    %cst_256 = arith.constant 0.000000e+00 : f32
    %452 = vector.shape_cast %437 : vector<1x128xi1> to vector<1x128xi1>
    %453 = vector.broadcast %452 : vector<1x128xi1> to vector<96x128xi1>
    %454 = vector.broadcast %cst_256 : f32 to vector<96x128xf32>
    %455 = arith.select %453, %451, %454 : vector<96x128xi1>, vector<96x128xf32>
    %456 = arith.addf %443, %455 : vector<96x128xf32>
    %c0_257 = arith.constant 0 : index
    %c112_258 = arith.constant 112 : index
    %457 = vector.load %arg13[%c0_257, %c112_258] : memref<64x512xf32, #tpu.memory_space<vmem>>, vector<64x128xf32>
    %c0_259 = arith.constant 0 : index
    %c128_260 = arith.constant 128 : index
    %458 = vector.load %arg13[%c0_259, %c128_260] : memref<64x512xf32, #tpu.memory_space<vmem>>, vector<64x128xf32>
    %c0_261 = arith.constant 0 : index
    %c144_262 = arith.constant 144 : index
    %459 = vector.load %arg13[%c0_261, %c144_262] : memref<64x512xf32, #tpu.memory_space<vmem>>, vector<64x128xf32>
    %460 = tpu.concatenate %457, %458, %459 in 0 : vector<64x128xf32>, vector<64x128xf32>, vector<64x128xf32> -> vector<192x128xf32>
    %c1_263 = arith.constant 1 : index
    %c0_264 = arith.constant 0 : index
    %c0_265 = arith.constant 0 : index
    %461 = vector.load %arg6[%c1_263, %c0_264, %c0_265] : memref<3x96x192xbf16, #tpu.memory_space<vmem>>, vector<1x96x192xbf16>
    %462 = vector.shape_cast %461 : vector<1x96x192xbf16> to vector<96x192xbf16>
    %463 = arith.truncf %460 : vector<192x128xf32> to vector<192x128xbf16>
    %cst_266 = arith.constant dense<0.000000e+00> : vector<96x128xf32>
    %464 = tpu.matmul %462, %463, %cst_266 {dimension_numbers = #tpu.dot_dimension_numbers<[1], [0], [0], [1], [0, 0, 1, 1], [], []>} : vector<96x192xbf16>, vector<192x128xbf16>, vector<96x128xf32> -> vector<96x128xf32>
    %465 = arith.addf %456, %464 : vector<96x128xf32>
    %c0_267 = arith.constant 0 : index
    %c113_268 = arith.constant 113 : index
    %466 = vector.load %arg13[%c0_267, %c113_268] : memref<64x512xf32, #tpu.memory_space<vmem>>, vector<64x128xf32>
    %c0_269 = arith.constant 0 : index
    %c129_270 = arith.constant 129 : index
    %467 = vector.load %arg13[%c0_269, %c129_270] : memref<64x512xf32, #tpu.memory_space<vmem>>, vector<64x128xf32>
    %c0_271 = arith.constant 0 : index
    %c145_272 = arith.constant 145 : index
    %468 = vector.load %arg13[%c0_271, %c145_272] : memref<64x512xf32, #tpu.memory_space<vmem>>, vector<64x128xf32>
    %469 = tpu.concatenate %466, %467, %468 in 0 : vector<64x128xf32>, vector<64x128xf32>, vector<64x128xf32> -> vector<192x128xf32>
    %c2_273 = arith.constant 2 : index
    %c0_274 = arith.constant 0 : index
    %c0_275 = arith.constant 0 : index
    %470 = vector.load %arg6[%c2_273, %c0_274, %c0_275] : memref<3x96x192xbf16, #tpu.memory_space<vmem>>, vector<1x96x192xbf16>
    %471 = vector.shape_cast %470 : vector<1x96x192xbf16> to vector<96x192xbf16>
    %472 = arith.truncf %469 : vector<192x128xf32> to vector<192x128xbf16>
    %cst_276 = arith.constant dense<0.000000e+00> : vector<96x128xf32>
    %473 = tpu.matmul %471, %472, %cst_276 {dimension_numbers = #tpu.dot_dimension_numbers<[1], [0], [0], [1], [0, 0, 1, 1], [], []>} : vector<96x192xbf16>, vector<192x128xbf16>, vector<96x128xf32> -> vector<96x128xf32>
    %cst_277 = arith.constant 0.000000e+00 : f32
    %474 = vector.shape_cast %442 : vector<1x128xi1> to vector<1x128xi1>
    %475 = vector.broadcast %474 : vector<1x128xi1> to vector<96x128xi1>
    %476 = vector.broadcast %cst_277 : f32 to vector<96x128xf32>
    %477 = arith.select %475, %473, %476 : vector<96x128xi1>, vector<96x128xf32>
    %478 = arith.addf %465, %477 : vector<96x128xf32>
    %479 = arith.addf %478, %413 : vector<96x128xf32>
    %cst_278 = arith.constant 0.000000e+00 : f32
    %480 = vector.broadcast %cst_278 : f32 to vector<96x128xf32>
    %481 = arith.maximumf %479, %480 : vector<96x128xf32>
    %c0_279 = arith.constant 0 : index
    %c128_280 = arith.constant 128 : index
    %482 = vector.load %arg14[%c0_279, %c128_280] : memref<96x512xf32, #tpu.memory_space<vmem>>, vector<96x128xf32>
    tpu.vector_store %arg14[%c0_279, %c128_280], %481 {strides = array<i32>} : memref<96x512xf32, #tpu.memory_space<vmem>>, vector<96x128xf32>,
    %483 = tpu.iota {dimensions = array<i32: 1>} : vector<1x128xi32>
    %c128_i32_281 = arith.constant 128 : i32
    %484 = vector.broadcast %c128_i32_281 : i32 to vector<1x128xi32>
    %485 = arith.addi %483, %484 : vector<1x128xi32>
    %c16_i32_282 = arith.constant 16 : i32
    %c0_i32_283 = arith.constant 0 : i32
    %486 = arith.cmpi eq, %c16_i32_282, %c0_i32_283 : i32
    %c1_i32_284 = arith.constant 1 : i32
    %487 = arith.select %486, %c1_i32_284, %c16_i32_282 : i32
    %488 = vector.broadcast %487 : i32 to vector<1x128xi32>
    %489 = arith.remsi %485, %488 : vector<1x128xi32>
    %c0_i32_285 = arith.constant 0 : i32
    %490 = vector.broadcast %c0_i32_285 : i32 to vector<1x128xi32>
    %491 = arith.cmpi ne, %489, %490 : vector<1x128xi32>
    %c0_i32_286 = arith.constant 0 : i32
    %492 = vector.broadcast %c0_i32_286 : i32 to vector<1x128xi32>
    %493 = arith.cmpi slt, %489, %492 : vector<1x128xi32>
    %c0_i32_287 = arith.constant 0 : i32
    %494 = arith.cmpi slt, %487, %c0_i32_287 : i32
    %495 = vector.broadcast %494 : i1 to vector<1x128xi1>
    %496 = vector.broadcast %495 : vector<1x128xi1> to vector<1x128xi1>
    %497 = arith.xori %493, %496 : vector<1x128xi1>
    %498 = arith.andi %497, %491 : vector<1x128xi1>
    %499 = vector.broadcast %487 : i32 to vector<1x128xi32>
    %500 = arith.addi %489, %499 : vector<1x128xi32>
    %501 = arith.select %498, %500, %489 : vector<1x128xi1>, vector<1x128xi32>
    %c1_i32_288 = arith.constant 1 : i32
    %502 = vector.broadcast %c1_i32_288 : i32 to vector<1x128xi32>
    %503 = arith.cmpi sge, %501, %502 : vector<1x128xi32>
    %c17_i32_289 = arith.constant 17 : i32
    %504 = vector.broadcast %c17_i32_289 : i32 to vector<1x128xi32>
    %505 = arith.cmpi slt, %501, %504 : vector<1x128xi32>
    %506 = arith.andi %503, %505 : vector<1x128xi1>
    %c-1_i32_290 = arith.constant -1 : i32
    %507 = vector.broadcast %c-1_i32_290 : i32 to vector<1x128xi32>
    %508 = arith.cmpi sge, %501, %507 : vector<1x128xi32>
    %c15_i32_291 = arith.constant 15 : i32
    %509 = vector.broadcast %c15_i32_291 : i32 to vector<1x128xi32>
    %510 = arith.cmpi slt, %501, %509 : vector<1x128xi32>
    %511 = arith.andi %508, %510 : vector<1x128xi1>
    %cst_292 = arith.constant 0.000000e+00 : f32
    %512 = vector.broadcast %cst_292 : f32 to vector<96x128xf32>
    %c0_293 = arith.constant 0 : index
    %c239_294 = arith.constant 239 : index
    %513 = vector.load %arg13[%c0_293, %c239_294] : memref<64x512xf32, #tpu.memory_space<vmem>>, vector<64x128xf32>
    %c0_295 = arith.constant 0 : index
    %c255_296 = arith.constant 255 : index
    %514 = vector.load %arg13[%c0_295, %c255_296] : memref<64x512xf32, #tpu.memory_space<vmem>>, vector<64x128xf32>
    %c0_297 = arith.constant 0 : index
    %c271_298 = arith.constant 271 : index
    %515 = vector.load %arg13[%c0_297, %c271_298] : memref<64x512xf32, #tpu.memory_space<vmem>>, vector<64x128xf32>
    %516 = tpu.concatenate %513, %514, %515 in 0 : vector<64x128xf32>, vector<64x128xf32>, vector<64x128xf32> -> vector<192x128xf32>
    %c0_299 = arith.constant 0 : index
    %c0_300 = arith.constant 0 : index
    %c0_301 = arith.constant 0 : index
    %517 = vector.load %arg6[%c0_299, %c0_300, %c0_301] : memref<3x96x192xbf16, #tpu.memory_space<vmem>>, vector<1x96x192xbf16>
    %518 = vector.shape_cast %517 : vector<1x96x192xbf16> to vector<96x192xbf16>
    %519 = arith.truncf %516 : vector<192x128xf32> to vector<192x128xbf16>
    %cst_302 = arith.constant dense<0.000000e+00> : vector<96x128xf32>
    %520 = tpu.matmul %518, %519, %cst_302 {dimension_numbers = #tpu.dot_dimension_numbers<[1], [0], [0], [1], [0, 0, 1, 1], [], []>} : vector<96x192xbf16>, vector<192x128xbf16>, vector<96x128xf32> -> vector<96x128xf32>
    %cst_303 = arith.constant 0.000000e+00 : f32
    %521 = vector.shape_cast %506 : vector<1x128xi1> to vector<1x128xi1>
    %522 = vector.broadcast %521 : vector<1x128xi1> to vector<96x128xi1>
    %523 = vector.broadcast %cst_303 : f32 to vector<96x128xf32>
    %524 = arith.select %522, %520, %523 : vector<96x128xi1>, vector<96x128xf32>
    %525 = arith.addf %512, %524 : vector<96x128xf32>
    %c0_304 = arith.constant 0 : index
    %c240_305 = arith.constant 240 : index
    %526 = vector.load %arg13[%c0_304, %c240_305] : memref<64x512xf32, #tpu.memory_space<vmem>>, vector<64x128xf32>
    %c0_306 = arith.constant 0 : index
    %c256_307 = arith.constant 256 : index
    %527 = vector.load %arg13[%c0_306, %c256_307] : memref<64x512xf32, #tpu.memory_space<vmem>>, vector<64x128xf32>
    %c0_308 = arith.constant 0 : index
    %c272_309 = arith.constant 272 : index
    %528 = vector.load %arg13[%c0_308, %c272_309] : memref<64x512xf32, #tpu.memory_space<vmem>>, vector<64x128xf32>
    %529 = tpu.concatenate %526, %527, %528 in 0 : vector<64x128xf32>, vector<64x128xf32>, vector<64x128xf32> -> vector<192x128xf32>
    %c1_310 = arith.constant 1 : index
    %c0_311 = arith.constant 0 : index
    %c0_312 = arith.constant 0 : index
    %530 = vector.load %arg6[%c1_310, %c0_311, %c0_312] : memref<3x96x192xbf16, #tpu.memory_space<vmem>>, vector<1x96x192xbf16>
    %531 = vector.shape_cast %530 : vector<1x96x192xbf16> to vector<96x192xbf16>
    %532 = arith.truncf %529 : vector<192x128xf32> to vector<192x128xbf16>
    %cst_313 = arith.constant dense<0.000000e+00> : vector<96x128xf32>
    %533 = tpu.matmul %531, %532, %cst_313 {dimension_numbers = #tpu.dot_dimension_numbers<[1], [0], [0], [1], [0, 0, 1, 1], [], []>} : vector<96x192xbf16>, vector<192x128xbf16>, vector<96x128xf32> -> vector<96x128xf32>
    %534 = arith.addf %525, %533 : vector<96x128xf32>
    %c0_314 = arith.constant 0 : index
    %c241_315 = arith.constant 241 : index
    %535 = vector.load %arg13[%c0_314, %c241_315] : memref<64x512xf32, #tpu.memory_space<vmem>>, vector<64x128xf32>
    %c0_316 = arith.constant 0 : index
    %c257_317 = arith.constant 257 : index
    %536 = vector.load %arg13[%c0_316, %c257_317] : memref<64x512xf32, #tpu.memory_space<vmem>>, vector<64x128xf32>
    %c0_318 = arith.constant 0 : index
    %c273_319 = arith.constant 273 : index
    %537 = vector.load %arg13[%c0_318, %c273_319] : memref<64x512xf32, #tpu.memory_space<vmem>>, vector<64x128xf32>
    %538 = tpu.concatenate %535, %536, %537 in 0 : vector<64x128xf32>, vector<64x128xf32>, vector<64x128xf32> -> vector<192x128xf32>
    %c2_320 = arith.constant 2 : index
    %c0_321 = arith.constant 0 : index
    %c0_322 = arith.constant 0 : index
    %539 = vector.load %arg6[%c2_320, %c0_321, %c0_322] : memref<3x96x192xbf16, #tpu.memory_space<vmem>>, vector<1x96x192xbf16>
    %540 = vector.shape_cast %539 : vector<1x96x192xbf16> to vector<96x192xbf16>
    %541 = arith.truncf %538 : vector<192x128xf32> to vector<192x128xbf16>
    %cst_323 = arith.constant dense<0.000000e+00> : vector<96x128xf32>
    %542 = tpu.matmul %540, %541, %cst_323 {dimension_numbers = #tpu.dot_dimension_numbers<[1], [0], [0], [1], [0, 0, 1, 1], [], []>} : vector<96x192xbf16>, vector<192x128xbf16>, vector<96x128xf32> -> vector<96x128xf32>
    %cst_324 = arith.constant 0.000000e+00 : f32
    %543 = vector.shape_cast %511 : vector<1x128xi1> to vector<1x128xi1>
    %544 = vector.broadcast %543 : vector<1x128xi1> to vector<96x128xi1>
    %545 = vector.broadcast %cst_324 : f32 to vector<96x128xf32>
    %546 = arith.select %544, %542, %545 : vector<96x128xi1>, vector<96x128xf32>
    %547 = arith.addf %534, %546 : vector<96x128xf32>
    %548 = arith.addf %547, %413 : vector<96x128xf32>
    %cst_325 = arith.constant 0.000000e+00 : f32
    %549 = vector.broadcast %cst_325 : f32 to vector<96x128xf32>
    %550 = arith.maximumf %548, %549 : vector<96x128xf32>
    %c0_326 = arith.constant 0 : index
    %c256_327 = arith.constant 256 : index
    %551 = vector.load %arg14[%c0_326, %c256_327] : memref<96x512xf32, #tpu.memory_space<vmem>>, vector<96x128xf32>
    tpu.vector_store %arg14[%c0_326, %c256_327], %550 {strides = array<i32>} : memref<96x512xf32, #tpu.memory_space<vmem>>, vector<96x128xf32>,
    %c0_328 = arith.constant 0 : index
    %c0_329 = arith.constant 0 : index
    %552 = vector.load %arg9[%c0_328, %c0_329] : memref<96x1xf32, #tpu.memory_space<vmem>>, vector<96x1xf32>
    %553 = vector.shape_cast %552 : vector<96x1xf32> to vector<96x1xf32>
    %554 = vector.broadcast %553 : vector<96x1xf32> to vector<96x128xf32>
    %555 = tpu.iota {dimensions = array<i32: 1>} : vector<1x128xi32>
    %c0_i32_330 = arith.constant 0 : i32
    %556 = vector.broadcast %c0_i32_330 : i32 to vector<1x128xi32>
    %557 = arith.addi %555, %556 : vector<1x128xi32>
    %c16_i32_331 = arith.constant 16 : i32
    %c0_i32_332 = arith.constant 0 : i32
    %558 = arith.cmpi eq, %c16_i32_331, %c0_i32_332 : i32
    %c1_i32_333 = arith.constant 1 : i32
    %559 = arith.select %558, %c1_i32_333, %c16_i32_331 : i32
    %560 = vector.broadcast %559 : i32 to vector<1x128xi32>
    %561 = arith.remsi %557, %560 : vector<1x128xi32>
    %c0_i32_334 = arith.constant 0 : i32
    %562 = vector.broadcast %c0_i32_334 : i32 to vector<1x128xi32>
    %563 = arith.cmpi ne, %561, %562 : vector<1x128xi32>
    %c0_i32_335 = arith.constant 0 : i32
    %564 = vector.broadcast %c0_i32_335 : i32 to vector<1x128xi32>
    %565 = arith.cmpi slt, %561, %564 : vector<1x128xi32>
    %c0_i32_336 = arith.constant 0 : i32
    %566 = arith.cmpi slt, %559, %c0_i32_336 : i32
    %567 = vector.broadcast %566 : i1 to vector<1x128xi1>
    %568 = vector.broadcast %567 : vector<1x128xi1> to vector<1x128xi1>
    %569 = arith.xori %565, %568 : vector<1x128xi1>
    %570 = arith.andi %569, %563 : vector<1x128xi1>
    %571 = vector.broadcast %559 : i32 to vector<1x128xi32>
    %572 = arith.addi %561, %571 : vector<1x128xi32>
    %573 = arith.select %570, %572, %561 : vector<1x128xi1>, vector<1x128xi32>
    %c1_i32_337 = arith.constant 1 : i32
    %574 = vector.broadcast %c1_i32_337 : i32 to vector<1x128xi32>
    %575 = arith.cmpi sge, %573, %574 : vector<1x128xi32>
    %c17_i32_338 = arith.constant 17 : i32
    %576 = vector.broadcast %c17_i32_338 : i32 to vector<1x128xi32>
    %577 = arith.cmpi slt, %573, %576 : vector<1x128xi32>
    %578 = arith.andi %575, %577 : vector<1x128xi1>
    %c-1_i32_339 = arith.constant -1 : i32
    %579 = vector.broadcast %c-1_i32_339 : i32 to vector<1x128xi32>
    %580 = arith.cmpi sge, %573, %579 : vector<1x128xi32>
    %c15_i32_340 = arith.constant 15 : i32
    %581 = vector.broadcast %c15_i32_340 : i32 to vector<1x128xi32>
    %582 = arith.cmpi slt, %573, %581 : vector<1x128xi32>
    %583 = arith.andi %580, %582 : vector<1x128xi1>
    %cst_341 = arith.constant 0.000000e+00 : f32
    %584 = vector.broadcast %cst_341 : f32 to vector<96x128xf32>
    %c0_342 = arith.constant 0 : index
    %c111_343 = arith.constant 111 : index
    %585 = vector.load %arg14[%c0_342, %c111_343] : memref<96x512xf32, #tpu.memory_space<vmem>>, vector<96x128xf32>
    %c0_344 = arith.constant 0 : index
    %c127_345 = arith.constant 127 : index
    %586 = vector.load %arg14[%c0_344, %c127_345] : memref<96x512xf32, #tpu.memory_space<vmem>>, vector<96x128xf32>
    %c0_346 = arith.constant 0 : index
    %c143_347 = arith.constant 143 : index
    %587 = vector.load %arg14[%c0_346, %c143_347] : memref<96x512xf32, #tpu.memory_space<vmem>>, vector<96x128xf32>
    %588 = tpu.concatenate %585, %586, %587 in 0 : vector<96x128xf32>, vector<96x128xf32>, vector<96x128xf32> -> vector<288x128xf32>
    %c0_348 = arith.constant 0 : index
    %c0_349 = arith.constant 0 : index
    %c0_350 = arith.constant 0 : index
    %589 = vector.load %arg8[%c0_348, %c0_349, %c0_350] : memref<3x96x288xbf16, #tpu.memory_space<vmem>>, vector<1x96x288xbf16>
    %590 = vector.shape_cast %589 : vector<1x96x288xbf16> to vector<96x288xbf16>
    %591 = arith.truncf %588 : vector<288x128xf32> to vector<288x128xbf16>
    %cst_351 = arith.constant dense<0.000000e+00> : vector<96x128xf32>
    %592 = tpu.matmul %590, %591, %cst_351 {dimension_numbers = #tpu.dot_dimension_numbers<[1], [0], [0], [1], [0, 0, 1, 1], [], []>} : vector<96x288xbf16>, vector<288x128xbf16>, vector<96x128xf32> -> vector<96x128xf32>
    %cst_352 = arith.constant 0.000000e+00 : f32
    %593 = vector.shape_cast %578 : vector<1x128xi1> to vector<1x128xi1>
    %594 = vector.broadcast %593 : vector<1x128xi1> to vector<96x128xi1>
    %595 = vector.broadcast %cst_352 : f32 to vector<96x128xf32>
    %596 = arith.select %594, %592, %595 : vector<96x128xi1>, vector<96x128xf32>
    %597 = arith.addf %584, %596 : vector<96x128xf32>
    %c0_353 = arith.constant 0 : index
    %c112_354 = arith.constant 112 : index
    %598 = vector.load %arg14[%c0_353, %c112_354] : memref<96x512xf32, #tpu.memory_space<vmem>>, vector<96x128xf32>
    %c0_355 = arith.constant 0 : index
    %c128_356 = arith.constant 128 : index
    %599 = vector.load %arg14[%c0_355, %c128_356] : memref<96x512xf32, #tpu.memory_space<vmem>>, vector<96x128xf32>
    %c0_357 = arith.constant 0 : index
    %c144_358 = arith.constant 144 : index
    %600 = vector.load %arg14[%c0_357, %c144_358] : memref<96x512xf32, #tpu.memory_space<vmem>>, vector<96x128xf32>
    %601 = tpu.concatenate %598, %599, %600 in 0 : vector<96x128xf32>, vector<96x128xf32>, vector<96x128xf32> -> vector<288x128xf32>
    %c1_359 = arith.constant 1 : index
    %c0_360 = arith.constant 0 : index
    %c0_361 = arith.constant 0 : index
    %602 = vector.load %arg8[%c1_359, %c0_360, %c0_361] : memref<3x96x288xbf16, #tpu.memory_space<vmem>>, vector<1x96x288xbf16>
    %603 = vector.shape_cast %602 : vector<1x96x288xbf16> to vector<96x288xbf16>
    %604 = arith.truncf %601 : vector<288x128xf32> to vector<288x128xbf16>
    %cst_362 = arith.constant dense<0.000000e+00> : vector<96x128xf32>
    %605 = tpu.matmul %603, %604, %cst_362 {dimension_numbers = #tpu.dot_dimension_numbers<[1], [0], [0], [1], [0, 0, 1, 1], [], []>} : vector<96x288xbf16>, vector<288x128xbf16>, vector<96x128xf32> -> vector<96x128xf32>
    %606 = arith.addf %597, %605 : vector<96x128xf32>
    %c0_363 = arith.constant 0 : index
    %c113_364 = arith.constant 113 : index
    %607 = vector.load %arg14[%c0_363, %c113_364] : memref<96x512xf32, #tpu.memory_space<vmem>>, vector<96x128xf32>
    %c0_365 = arith.constant 0 : index
    %c129_366 = arith.constant 129 : index
    %608 = vector.load %arg14[%c0_365, %c129_366] : memref<96x512xf32, #tpu.memory_space<vmem>>, vector<96x128xf32>
    %c0_367 = arith.constant 0 : index
    %c145_368 = arith.constant 145 : index
    %609 = vector.load %arg14[%c0_367, %c145_368] : memref<96x512xf32, #tpu.memory_space<vmem>>, vector<96x128xf32>
    %610 = tpu.concatenate %607, %608, %609 in 0 : vector<96x128xf32>, vector<96x128xf32>, vector<96x128xf32> -> vector<288x128xf32>
    %c2_369 = arith.constant 2 : index
    %c0_370 = arith.constant 0 : index
    %c0_371 = arith.constant 0 : index
    %611 = vector.load %arg8[%c2_369, %c0_370, %c0_371] : memref<3x96x288xbf16, #tpu.memory_space<vmem>>, vector<1x96x288xbf16>
    %612 = vector.shape_cast %611 : vector<1x96x288xbf16> to vector<96x288xbf16>
    %613 = arith.truncf %610 : vector<288x128xf32> to vector<288x128xbf16>
    %cst_372 = arith.constant dense<0.000000e+00> : vector<96x128xf32>
    %614 = tpu.matmul %612, %613, %cst_372 {dimension_numbers = #tpu.dot_dimension_numbers<[1], [0], [0], [1], [0, 0, 1, 1], [], []>} : vector<96x288xbf16>, vector<288x128xbf16>, vector<96x128xf32> -> vector<96x128xf32>
    %cst_373 = arith.constant 0.000000e+00 : f32
    %615 = vector.shape_cast %583 : vector<1x128xi1> to vector<1x128xi1>
    %616 = vector.broadcast %615 : vector<1x128xi1> to vector<96x128xi1>
    %617 = vector.broadcast %cst_373 : f32 to vector<96x128xf32>
    %618 = arith.select %616, %614, %617 : vector<96x128xi1>, vector<96x128xf32>
    %619 = arith.addf %606, %618 : vector<96x128xf32>
    %620 = arith.addf %619, %554 : vector<96x128xf32>
    %cst_374 = arith.constant 0.000000e+00 : f32
    %621 = vector.broadcast %cst_374 : f32 to vector<96x128xf32>
    %622 = arith.maximumf %620, %621 : vector<96x128xf32>
    %c0_375 = arith.constant 0 : index
    %c128_376 = arith.constant 128 : index
    %c0_377 = arith.constant 0 : index
    %623 = vector.load %arg11[%c0_375, %c128_376, %c0_377] : memref<1x256x256xf32, #tpu.memory_space<vmem>>, vector<1x96x128xf32>
    %624 = vector.shape_cast %623 : vector<1x96x128xf32> to vector<96x128xf32>
    %625 = vector.shape_cast %622 : vector<96x128xf32> to vector<1x96x128xf32>
    tpu.vector_store %arg11[%c0_375, %c128_376, %c0_377], %625 {strides = array<i32>} : memref<1x256x256xf32, #tpu.memory_space<vmem>>, vector<1x96x128xf32>,
    %626 = tpu.iota {dimensions = array<i32: 1>} : vector<1x128xi32>
    %c128_i32_378 = arith.constant 128 : i32
    %627 = vector.broadcast %c128_i32_378 : i32 to vector<1x128xi32>
    %628 = arith.addi %626, %627 : vector<1x128xi32>
    %c16_i32_379 = arith.constant 16 : i32
    %c0_i32_380 = arith.constant 0 : i32
    %629 = arith.cmpi eq, %c16_i32_379, %c0_i32_380 : i32
    %c1_i32_381 = arith.constant 1 : i32
    %630 = arith.select %629, %c1_i32_381, %c16_i32_379 : i32
    %631 = vector.broadcast %630 : i32 to vector<1x128xi32>
    %632 = arith.remsi %628, %631 : vector<1x128xi32>
    %c0_i32_382 = arith.constant 0 : i32
    %633 = vector.broadcast %c0_i32_382 : i32 to vector<1x128xi32>
    %634 = arith.cmpi ne, %632, %633 : vector<1x128xi32>
    %c0_i32_383 = arith.constant 0 : i32
    %635 = vector.broadcast %c0_i32_383 : i32 to vector<1x128xi32>
    %636 = arith.cmpi slt, %632, %635 : vector<1x128xi32>
    %c0_i32_384 = arith.constant 0 : i32
    %637 = arith.cmpi slt, %630, %c0_i32_384 : i32
    %638 = vector.broadcast %637 : i1 to vector<1x128xi1>
    %639 = vector.broadcast %638 : vector<1x128xi1> to vector<1x128xi1>
    %640 = arith.xori %636, %639 : vector<1x128xi1>
    %641 = arith.andi %640, %634 : vector<1x128xi1>
    %642 = vector.broadcast %630 : i32 to vector<1x128xi32>
    %643 = arith.addi %632, %642 : vector<1x128xi32>
    %644 = arith.select %641, %643, %632 : vector<1x128xi1>, vector<1x128xi32>
    %c1_i32_385 = arith.constant 1 : i32
    %645 = vector.broadcast %c1_i32_385 : i32 to vector<1x128xi32>
    %646 = arith.cmpi sge, %644, %645 : vector<1x128xi32>
    %c17_i32_386 = arith.constant 17 : i32
    %647 = vector.broadcast %c17_i32_386 : i32 to vector<1x128xi32>
    %648 = arith.cmpi slt, %644, %647 : vector<1x128xi32>
    %649 = arith.andi %646, %648 : vector<1x128xi1>
    %c-1_i32_387 = arith.constant -1 : i32
    %650 = vector.broadcast %c-1_i32_387 : i32 to vector<1x128xi32>
    %651 = arith.cmpi sge, %644, %650 : vector<1x128xi32>
    %c15_i32_388 = arith.constant 15 : i32
    %652 = vector.broadcast %c15_i32_388 : i32 to vector<1x128xi32>
    %653 = arith.cmpi slt, %644, %652 : vector<1x128xi32>
    %654 = arith.andi %651, %653 : vector<1x128xi1>
    %cst_389 = arith.constant 0.000000e+00 : f32
    %655 = vector.broadcast %cst_389 : f32 to vector<96x128xf32>
    %c0_390 = arith.constant 0 : index
    %c239_391 = arith.constant 239 : index
    %656 = vector.load %arg14[%c0_390, %c239_391] : memref<96x512xf32, #tpu.memory_space<vmem>>, vector<96x128xf32>
    %c0_392 = arith.constant 0 : index
    %c255_393 = arith.constant 255 : index
    %657 = vector.load %arg14[%c0_392, %c255_393] : memref<96x512xf32, #tpu.memory_space<vmem>>, vector<96x128xf32>
    %c0_394 = arith.constant 0 : index
    %c271_395 = arith.constant 271 : index
    %658 = vector.load %arg14[%c0_394, %c271_395] : memref<96x512xf32, #tpu.memory_space<vmem>>, vector<96x128xf32>
    %659 = tpu.concatenate %656, %657, %658 in 0 : vector<96x128xf32>, vector<96x128xf32>, vector<96x128xf32> -> vector<288x128xf32>
    %c0_396 = arith.constant 0 : index
    %c0_397 = arith.constant 0 : index
    %c0_398 = arith.constant 0 : index
    %660 = vector.load %arg8[%c0_396, %c0_397, %c0_398] : memref<3x96x288xbf16, #tpu.memory_space<vmem>>, vector<1x96x288xbf16>
    %661 = vector.shape_cast %660 : vector<1x96x288xbf16> to vector<96x288xbf16>
    %662 = arith.truncf %659 : vector<288x128xf32> to vector<288x128xbf16>
    %cst_399 = arith.constant dense<0.000000e+00> : vector<96x128xf32>
    %663 = tpu.matmul %661, %662, %cst_399 {dimension_numbers = #tpu.dot_dimension_numbers<[1], [0], [0], [1], [0, 0, 1, 1], [], []>} : vector<96x288xbf16>, vector<288x128xbf16>, vector<96x128xf32> -> vector<96x128xf32>
    %cst_400 = arith.constant 0.000000e+00 : f32
    %664 = vector.shape_cast %649 : vector<1x128xi1> to vector<1x128xi1>
    %665 = vector.broadcast %664 : vector<1x128xi1> to vector<96x128xi1>
    %666 = vector.broadcast %cst_400 : f32 to vector<96x128xf32>
    %667 = arith.select %665, %663, %666 : vector<96x128xi1>, vector<96x128xf32>
    %668 = arith.addf %655, %667 : vector<96x128xf32>
    %c0_401 = arith.constant 0 : index
    %c240_402 = arith.constant 240 : index
    %669 = vector.load %arg14[%c0_401, %c240_402] : memref<96x512xf32, #tpu.memory_space<vmem>>, vector<96x128xf32>
    %c0_403 = arith.constant 0 : index
    %c256_404 = arith.constant 256 : index
    %670 = vector.load %arg14[%c0_403, %c256_404] : memref<96x512xf32, #tpu.memory_space<vmem>>, vector<96x128xf32>
    %c0_405 = arith.constant 0 : index
    %c272_406 = arith.constant 272 : index
    %671 = vector.load %arg14[%c0_405, %c272_406] : memref<96x512xf32, #tpu.memory_space<vmem>>, vector<96x128xf32>
    %672 = tpu.concatenate %669, %670, %671 in 0 : vector<96x128xf32>, vector<96x128xf32>, vector<96x128xf32> -> vector<288x128xf32>
    %c1_407 = arith.constant 1 : index
    %c0_408 = arith.constant 0 : index
    %c0_409 = arith.constant 0 : index
    %673 = vector.load %arg8[%c1_407, %c0_408, %c0_409] : memref<3x96x288xbf16, #tpu.memory_space<vmem>>, vector<1x96x288xbf16>
    %674 = vector.shape_cast %673 : vector<1x96x288xbf16> to vector<96x288xbf16>
    %675 = arith.truncf %672 : vector<288x128xf32> to vector<288x128xbf16>
    %cst_410 = arith.constant dense<0.000000e+00> : vector<96x128xf32>
    %676 = tpu.matmul %674, %675, %cst_410 {dimension_numbers = #tpu.dot_dimension_numbers<[1], [0], [0], [1], [0, 0, 1, 1], [], []>} : vector<96x288xbf16>, vector<288x128xbf16>, vector<96x128xf32> -> vector<96x128xf32>
    %677 = arith.addf %668, %676 : vector<96x128xf32>
    %c0_411 = arith.constant 0 : index
    %c241_412 = arith.constant 241 : index
    %678 = vector.load %arg14[%c0_411, %c241_412] : memref<96x512xf32, #tpu.memory_space<vmem>>, vector<96x128xf32>
    %c0_413 = arith.constant 0 : index
    %c257_414 = arith.constant 257 : index
    %679 = vector.load %arg14[%c0_413, %c257_414] : memref<96x512xf32, #tpu.memory_space<vmem>>, vector<96x128xf32>
    %c0_415 = arith.constant 0 : index
    %c273_416 = arith.constant 273 : index
    %680 = vector.load %arg14[%c0_415, %c273_416] : memref<96x512xf32, #tpu.memory_space<vmem>>, vector<96x128xf32>
    %681 = tpu.concatenate %678, %679, %680 in 0 : vector<96x128xf32>, vector<96x128xf32>, vector<96x128xf32> -> vector<288x128xf32>
    %c2_417 = arith.constant 2 : index
    %c0_418 = arith.constant 0 : index
    %c0_419 = arith.constant 0 : index
    %682 = vector.load %arg8[%c2_417, %c0_418, %c0_419] : memref<3x96x288xbf16, #tpu.memory_space<vmem>>, vector<1x96x288xbf16>
    %683 = vector.shape_cast %682 : vector<1x96x288xbf16> to vector<96x288xbf16>
    %684 = arith.truncf %681 : vector<288x128xf32> to vector<288x128xbf16>
    %cst_420 = arith.constant dense<0.000000e+00> : vector<96x128xf32>
    %685 = tpu.matmul %683, %684, %cst_420 {dimension_numbers = #tpu.dot_dimension_numbers<[1], [0], [0], [1], [0, 0, 1, 1], [], []>} : vector<96x288xbf16>, vector<288x128xbf16>, vector<96x128xf32> -> vector<96x128xf32>
    %cst_421 = arith.constant 0.000000e+00 : f32
    %686 = vector.shape_cast %654 : vector<1x128xi1> to vector<1x128xi1>
    %687 = vector.broadcast %686 : vector<1x128xi1> to vector<96x128xi1>
    %688 = vector.broadcast %cst_421 : f32 to vector<96x128xf32>
    %689 = arith.select %687, %685, %688 : vector<96x128xi1>, vector<96x128xf32>
    %690 = arith.addf %677, %689 : vector<96x128xf32>
    %691 = arith.addf %690, %554 : vector<96x128xf32>
    %cst_422 = arith.constant 0.000000e+00 : f32
    %692 = vector.broadcast %cst_422 : f32 to vector<96x128xf32>
    %693 = arith.maximumf %691, %692 : vector<96x128xf32>
    %c0_423 = arith.constant 0 : index
    %c128_424 = arith.constant 128 : index
    %c128_425 = arith.constant 128 : index
    %694 = vector.load %arg11[%c0_423, %c128_424, %c128_425] : memref<1x256x256xf32, #tpu.memory_space<vmem>>, vector<1x96x128xf32>
    %695 = vector.shape_cast %694 : vector<1x96x128xf32> to vector<96x128xf32>
    %696 = vector.shape_cast %693 : vector<96x128xf32> to vector<1x96x128xf32>
    tpu.vector_store %arg11[%c0_423, %c128_424, %c128_425], %696 {strides = array<i32>} : memref<1x256x256xf32, #tpu.memory_space<vmem>>, vector<1x96x128xf32>,
    return
  }
  func.func @transform_0(%arg0: i32) -> (i32, i32, i32) {
    %c0_i32 = arith.constant 0 : i32
    %c0_i32_0 = arith.constant 0 : i32
    %c0_i32_1 = arith.constant 0 : i32
    return %arg0, %c0_i32, %c0_i32_0 : i32, i32, i32
  }
  func.func @transform_1(%arg0: i32) -> (i32, i32) {
    %c0_i32 = arith.constant 0 : i32
    %c0_i32_0 = arith.constant 0 : i32
    %c0_i32_1 = arith.constant 0 : i32
    return %c0_i32, %c0_i32_0 : i32, i32
  }
  func.func @transform_2(%arg0: i32) -> (i32, i32) {
    %c0_i32 = arith.constant 0 : i32
    %c0_i32_0 = arith.constant 0 : i32
    %c0_i32_1 = arith.constant 0 : i32
    return %c0_i32, %c0_i32_0 : i32, i32
  }
  func.func @transform_3(%arg0: i32) -> (i32, i32, i32) {
    %c0_i32 = arith.constant 0 : i32
    %c0_i32_0 = arith.constant 0 : i32
    %c0_i32_1 = arith.constant 0 : i32
    %c0_i32_2 = arith.constant 0 : i32
    return %c0_i32, %c0_i32_0, %c0_i32_1 : i32, i32, i32
  }
  func.func @transform_4(%arg0: i32) -> (i32, i32) {
    %c0_i32 = arith.constant 0 : i32
    %c0_i32_0 = arith.constant 0 : i32
    %c0_i32_1 = arith.constant 0 : i32
    return %c0_i32, %c0_i32_0 : i32, i32
  }
  func.func @transform_5(%arg0: i32) -> (i32, i32, i32) {
    %c0_i32 = arith.constant 0 : i32
    %c0_i32_0 = arith.constant 0 : i32
    %c0_i32_1 = arith.constant 0 : i32
    %c0_i32_2 = arith.constant 0 : i32
    return %c0_i32, %c0_i32_0, %c0_i32_1 : i32, i32, i32
  }
  func.func @transform_6(%arg0: i32) -> (i32, i32) {
    %c0_i32 = arith.constant 0 : i32
    %c0_i32_0 = arith.constant 0 : i32
    %c0_i32_1 = arith.constant 0 : i32
    return %c0_i32, %c0_i32_0 : i32, i32
  }
  func.func @transform_7(%arg0: i32) -> (i32, i32, i32) {
    %c0_i32 = arith.constant 0 : i32
    %c0_i32_0 = arith.constant 0 : i32
    %c0_i32_1 = arith.constant 0 : i32
    %c0_i32_2 = arith.constant 0 : i32
    return %c0_i32, %c0_i32_0, %c0_i32_1 : i32, i32, i32
  }
  func.func @transform_8(%arg0: i32) -> (i32, i32) {
    %c0_i32 = arith.constant 0 : i32
    %c0_i32_0 = arith.constant 0 : i32
    %c0_i32_1 = arith.constant 0 : i32
    return %c0_i32, %c0_i32_0 : i32, i32
  }
  func.func @transform_9(%arg0: i32) -> (i32, i32) {
    %c0_i32 = arith.constant 0 : i32
    %c0_i32_0 = arith.constant 0 : i32
    %c0_i32_1 = arith.constant 0 : i32
    return %c0_i32, %c0_i32_0 : i32, i32
  }
  func.func @transform_10(%arg0: i32) -> (i32, i32, i32) {
    %c0_i32 = arith.constant 0 : i32
    %c0_i32_0 = arith.constant 0 : i32
    %c0_i32_1 = arith.constant 0 : i32
    return %arg0, %c0_i32, %c0_i32_0 : i32, i32, i32
  }
}

</mosaic_0001>

<llo_original>
// kernel: inception_a_forward.1
$region0: #{inception_a_forward.1}
  #allocation0 [shape = 'u32[]', space=smem, size = 0x4, offset = 0x4, fixed_abs, tag = 'smem constant byte address 0x4 - core index']
  #allocation1 [shape = 'u32[144,128]{1,0:T(1,128)}', space=vmem, size = 0x12000, scoped, tag = 'internal scratch']
  #allocation2 [shape = 'f32[48,512]{1,0:T(8,128)}', space=vmem, size = 0x18000, scoped, tag = 'scratch operand']
  #allocation3 [shape = 'f32[64,512]{1,0:T(8,128)}', space=vmem, size = 0x20000, scoped, tag = 'scratch operand']
  #allocation4 [shape = 'f32[96,512]{1,0:T(8,128)}', space=vmem, size = 0x30000, scoped, tag = 'scratch operand']
  #allocation5 [shape = 'f32[32,512]{1,0:T(8,128)}', space=vmem, size = 0x10000, scoped, tag = 'scratch operand']
  %s0 = inlined_call_operand.vmem [shape: f32[2,4,256], index: 0, kind: input, shape index: {}]
  %s1 = inlined_call_operand.vmem [shape: bf16[208,4], index: 1, kind: input, shape index: {}]
  %s2 = inlined_call_operand.vmem [shape: f32[176,1], index: 2, kind: input, shape index: {}]
  %s3 = inlined_call_operand.vmem [shape: bf16[5,64,240], index: 3, kind: input, shape index: {}]
  %s4 = inlined_call_operand.vmem [shape: f32[64,1], index: 4, kind: input, shape index: {}]
  %s5 = inlined_call_operand.vmem [shape: bf16[3,96,192], index: 5, kind: input, shape index: {}]
  %s6 = inlined_call_operand.vmem [shape: f32[96,1], index: 6, kind: input, shape index: {}]
  %s7 = inlined_call_operand.vmem [shape: bf16[3,96,288], index: 7, kind: input, shape index: {}]
  %s8 = inlined_call_operand.vmem [shape: f32[96,1], index: 8, kind: input, shape index: {}]
  %s9 = inlined_call_operand.vmem [shape: f32[32,1], index: 9, kind: input, shape index: {}]
  %s10 = inlined_call_operand.vmem [shape: f32[2,256,256], index: 10, kind: output, shape index: {}]
  %s11 = sld [smem:[#allocation0]]
  $region77: #{inception_a_forward.1} parent=0
    _
  %s13 = ssub.s32 1, %s11
  %s14 = scalar_select 0, %s13, %s11
  loop: start=0, step=1, limit=4
  $region2: #{inception_a_forward.1} parent=0 // loop_pre_header
    _
  $region3: #{inception_a_forward.1} parent=0 // loop_header
    %s16 = sphi 0, %s20
    %p17 = scmp.ge.s32.totalorder %s16, 4
    %s26 = sphi 0, %s28
    %s29 = sphi 0, %s26
    %s30 = sphi 0, %s29
    %s46 = sphi 0, %s30
    %s50 = sphi 0, %s50
    %s52 = sphi 0, %s50
    %s53 = sphi 0, %s52
    %s67 = sphi 0, %s53
    %s71 = sphi 0, %s71
    %s73 = sphi 0, %s71
    %s74 = sphi 0, %s73
    %s88 = sphi 0, %s74
    %s92 = sphi 0, %s92
    %s94 = sphi 0, %s92
    %s95 = sphi 0, %s94
    %s109 = sphi 0, %s95
    %s113 = sphi 0, %s113
    %s115 = sphi 0, %s113
    %s116 = sphi 0, %s115
    %s130 = sphi 0, %s116
    %s134 = sphi 0, %s134
    %s136 = sphi 0, %s134
    %s137 = sphi 0, %s136
    %s151 = sphi 0, %s137
    %s155 = sphi 0, %s155
    %s157 = sphi 0, %s155
    %s158 = sphi 0, %s157
    %s172 = sphi 0, %s158
    %s176 = sphi 0, %s176
    %s178 = sphi 0, %s176
    %s179 = sphi 0, %s178
    %s193 = sphi 0, %s179
    %s197 = sphi 0, %s197
    %s199 = sphi 0, %s197
    %s200 = sphi 0, %s199
    %s214 = sphi 0, %s200
    %s218 = sphi 0, %s218
    %s220 = sphi 0, %s218
    %s221 = sphi 0, %s220
    %s235 = sphi 0, %s221
    %s241 = sphi 0, %s243
    %s244 = sphi 0, %s241
    %s245 = sphi 0, %s244
    %s261 = sphi 0, %s245
  $region4: #{inception_a_forward.1} parent=0 // loop_header_branch
    %19 = sbr.rel (%p17) target = $region8
  $region5: #{inception_a_forward.1} parent=0 // loop_body
    %s21 = ssub.s32 %s16, 1
    %s22 = ssub.s32 %s16, 2
    %s23 = sadd.s32 %s16, 1
    %s24 = ssub.s32 %s16, %s23
    %p25 = scmp.eq.s32.totalorder %s24, 0
    %s27 = sadd.s32 %s26, 1
    %s28 = scalar_select %p25, %s26, %s27
    %p31 = pneg %p25
    %p32 = scmp.eq.s32.totalorder %s16, 1
    %p33 = por %p31, %p32
    %p34 = scmp.ne.s32.totalorder %s26, %s29
    %p35 = scmp.eq.s32.totalorder %s16, 0
    %p36 = por %p34, %p35
    %p37 = scmp.ne.s32.totalorder %s26, %s29
    %p38 = scmp.eq.s32.totalorder %s21, 1
    %p39 = por %p37, %p38
    %p40 = scmp.ne.s32.totalorder %s29, %s30
    %p41 = scmp.eq.s32.totalorder %s21, 0
    %p42 = por %p40, %p41
    %p43 = scmp.ne.s32.totalorder %s29, %s30
    %p44 = scmp.eq.s32.totalorder %s22, 1
    %p45 = por %p43, %p44
    %p47 = scmp.ne.s32.totalorder %s30, %s46
    %p48 = scmp.eq.s32.totalorder %s22, 0
    %p49 = por %p47, %p48
    %s51 = sadd.s32 %s50, 1
    %p54 = scmp.eq.s32.totalorder %s16, 1
    %p55 = scmp.ne.s32.totalorder %s50, %s52
    %p56 = scmp.eq.s32.totalorder %s16, 0
    %p57 = por %p55, %p56
    %p58 = scmp.ne.s32.totalorder %s50, %s52
    %p59 = scmp.eq.s32.totalorder %s21, 1
    %p60 = por %p58, %p59
    %p61 = scmp.ne.s32.totalorder %s52, %s53
    %p62 = scmp.eq.s32.totalorder %s21, 0
    %p63 = por %p61, %p62
    %p64 = scmp.ne.s32.totalorder %s52, %s53
    %p65 = scmp.eq.s32.totalorder %s22, 1
    %p66 = por %p64, %p65
    %p68 = scmp.ne.s32.totalorder %s53, %s67
    %p69 = scmp.eq.s32.totalorder %s22, 0
    %p70 = por %p68, %p69
    %s72 = sadd.s32 %s71, 1
    %p75 = scmp.eq.s32.totalorder %s16, 1
    %p76 = scmp.ne.s32.totalorder %s71, %s73
    %p77 = scmp.eq.s32.totalorder %s16, 0
    %p78 = por %p76, %p77
    %p79 = scmp.ne.s32.totalorder %s71, %s73
    %p80 = scmp.eq.s32.totalorder %s21, 1
    %p81 = por %p79, %p80
    %p82 = scmp.ne.s32.totalorder %s73, %s74
    %p83 = scmp.eq.s32.totalorder %s21, 0
    %p84 = por %p82, %p83
    %p85 = scmp.ne.s32.totalorder %s73, %s74
    %p86 = scmp.eq.s32.totalorder %s22, 1
    %p87 = por %p85, %p86
    %p89 = scmp.ne.s32.totalorder %s74, %s88
    %p90 = scmp.eq.s32.totalorder %s22, 0
    %p91 = por %p89, %p90
    %s93 = sadd.s32 %s92, 1
    %p96 = scmp.eq.s32.totalorder %s16, 1
    %p97 = scmp.ne.s32.totalorder %s92, %s94
    %p98 = scmp.eq.s32.totalorder %s16, 0
    %p99 = por %p97, %p98
    %p100 = scmp.ne.s32.totalorder %s92, %s94
    %p101 = scmp.eq.s32.totalorder %s21, 1
    %p102 = por %p100, %p101
    %p103 = scmp.ne.s32.totalorder %s94, %s95
    %p104 = scmp.eq.s32.totalorder %s21, 0
    %p105 = por %p103, %p104
    %p106 = scmp.ne.s32.totalorder %s94, %s95
    %p107 = scmp.eq.s32.totalorder %s22, 1
    %p108 = por %p106, %p107
    %p110 = scmp.ne.s32.totalorder %s95, %s109
    %p111 = scmp.eq.s32.totalorder %s22, 0
    %p112 = por %p110, %p111
    %s114 = sadd.s32 %s113, 1
    %p117 = scmp.eq.s32.totalorder %s16, 1
    %p118 = scmp.ne.s32.totalorder %s113, %s115
    %p119 = scmp.eq.s32.totalorder %s16, 0
    %p120 = por %p118, %p119
    %p121 = scmp.ne.s32.totalorder %s113, %s115
    %p122 = scmp.eq.s32.totalorder %s21, 1
    %p123 = por %p121, %p122
    %p124 = scmp.ne.s32.totalorder %s115, %s116
    %p125 = scmp.eq.s32.totalorder %s21, 0
    %p126 = por %p124, %p125
    %p127 = scmp.ne.s32.totalorder %s115, %s116
    %p128 = scmp.eq.s32.totalorder %s22, 1
    %p129 = por %p127, %p128
    %p131 = scmp.ne.s32.totalorder %s116, %s130
    %p132 = scmp.eq.s32.totalorder %s22, 0
    %p133 = por %p131, %p132
    %s135 = sadd.s32 %s134, 1
    %p138 = scmp.eq.s32.totalorder %s16, 1
    %p139 = scmp.ne.s32.totalorder %s134, %s136
    %p140 = scmp.eq.s32.totalorder %s16, 0
    %p141 = por %p139, %p140
    %p142 = scmp.ne.s32.totalorder %s134, %s136
    %p143 = scmp.eq.s32.totalorder %s21, 1
    %p144 = por %p142, %p143
    %p145 = scmp.ne.s32.totalorder %s136, %s137
    %p146 = scmp.eq.s32.totalorder %s21, 0
    %p147 = por %p145, %p146
    %p148 = scmp.ne.s32.totalorder %s136, %s137
    %p149 = scmp.eq.s32.totalorder %s22, 1
    %p150 = por %p148, %p149
    %p152 = scmp.ne.s32.totalorder %s137, %s151
    %p153 = scmp.eq.s32.totalorder %s22, 0
    %p154 = por %p152, %p153
    %s156 = sadd.s32 %s155, 1
    %p159 = scmp.eq.s32.totalorder %s16, 1
    %p160 = scmp.ne.s32.totalorder %s155, %s157
    %p161 = scmp.eq.s32.totalorder %s16, 0
    %p162 = por %p160, %p161
    %p163 = scmp.ne.s32.totalorder %s155, %s157
    %p164 = scmp.eq.s32.totalorder %s21, 1
    %p165 = por %p163, %p164
    %p166 = scmp.ne.s32.totalorder %s157, %s158
    %p167 = scmp.eq.s32.totalorder %s21, 0
    %p168 = por %p166, %p167
    %p169 = scmp.ne.s32.totalorder %s157, %s158
    %p170 = scmp.eq.s32.totalorder %s22, 1
    %p171 = por %p169, %p170
    %p173 = scmp.ne.s32.totalorder %s158, %s172
    %p174 = scmp.eq.s32.totalorder %s22, 0
    %p175 = por %p173, %p174
    %s177 = sadd.s32 %s176, 1
    %p180 = scmp.eq.s32.totalorder %s16, 1
    %p181 = scmp.ne.s32.totalorder %s176, %s178
    %p182 = scmp.eq.s32.totalorder %s16, 0
    %p183 = por %p181, %p182
    %p184 = scmp.ne.s32.totalorder %s176, %s178
    %p185 = scmp.eq.s32.totalorder %s21, 1
    %p186 = por %p184, %p185
    %p187 = scmp.ne.s32.totalorder %s178, %s179
    %p188 = scmp.eq.s32.totalorder %s21, 0
    %p189 = por %p187, %p188
    %p190 = scmp.ne.s32.totalorder %s178, %s179
    %p191 = scmp.eq.s32.totalorder %s22, 1
    %p192 = por %p190, %p191
    %p194 = scmp.ne.s32.totalorder %s179, %s193
    %p195 = scmp.eq.s32.totalorder %s22, 0
    %p196 = por %p194, %p195
    %s198 = sadd.s32 %s197, 1
    %p201 = scmp.eq.s32.totalorder %s16, 1
    %p202 = scmp.ne.s32.totalorder %s197, %s199
    %p203 = scmp.eq.s32.totalorder %s16, 0
    %p204 = por %p202, %p203
    %p205 = scmp.ne.s32.totalorder %s197, %s199
    %p206 = scmp.eq.s32.totalorder %s21, 1
    %p207 = por %p205, %p206
    %p208 = scmp.ne.s32.totalorder %s199, %s200
    %p209 = scmp.eq.s32.totalorder %s21, 0
    %p210 = por %p208, %p209
    %p211 = scmp.ne.s32.totalorder %s199, %s200
    %p212 = scmp.eq.s32.totalorder %s22, 1
    %p213 = por %p211, %p212
    %p215 = scmp.ne.s32.totalorder %s200, %s214
    %p216 = scmp.eq.s32.totalorder %s22, 0
    %p217 = por %p215, %p216
    %s219 = sadd.s32 %s218, 1
    %p222 = scmp.eq.s32.totalorder %s16, 1
    %p223 = scmp.ne.s32.totalorder %s218, %s220
    %p224 = scmp.eq.s32.totalorder %s16, 0
    %p225 = por %p223, %p224
    %p226 = scmp.ne.s32.totalorder %s218, %s220
    %p227 = scmp.eq.s32.totalorder %s21, 1
    %p228 = por %p226, %p227
    %p229 = scmp.ne.s32.totalorder %s220, %s221
    %p230 = scmp.eq.s32.totalorder %s21, 0
    %p231 = por %p229, %p230
    %p232 = scmp.ne.s32.totalorder %s220, %s221
    %p233 = scmp.eq.s32.totalorder %s22, 1
    %p234 = por %p232, %p233
    %p236 = scmp.ne.s32.totalorder %s221, %s235
    %p237 = scmp.eq.s32.totalorder %s22, 0
    %p238 = por %p236, %p237
    %s239 = ssub.s32 %s16, %s23
    %p240 = scmp.eq.s32.totalorder %s239, 0
    %s242 = sadd.s32 %s241, 1
    %s243 = scalar_select %p240, %s241, %s242
    %p246 = pneg %p240
    %p247 = scmp.eq.s32.totalorder %s16, 1
    %p248 = por %p246, %p247
    %p249 = scmp.ne.s32.totalorder %s241, %s244
    %p250 = scmp.eq.s32.totalorder %s16, 0
    %p251 = por %p249, %p250
    %p252 = scmp.ne.s32.totalorder %s241, %s244
    %p253 = scmp.eq.s32.totalorder %s21, 1
    %p254 = por %p252, %p253
    %p255 = scmp.ne.s32.totalorder %s244, %s245
    %p256 = scmp.eq.s32.totalorder %s21, 0
    %p257 = por %p255, %p256
    %p258 = scmp.ne.s32.totalorder %s244, %s245
    %p259 = scmp.eq.s32.totalorder %s22, 1
    %p260 = por %p258, %p259
    %p262 = scmp.ne.s32.totalorder %s245, %s261
    %p263 = scmp.eq.s32.totalorder %s22, 0
    %p264 = por %p262, %p263
    %p265 = scmp.le.s32.totalorder 1, %s16
    %p266 = scmp.lt.s32.totalorder %s16, 3
    %p267 = pnand %p265, %p266
    %p268 = pneg %p267
    // Predicated region
    $region9: #{inception_a_forward.1} parent=5 // pred_check
      _
    $region10: #{inception_a_forward.1} parent=5 // pred_check_branch
      %270 = sbr.rel (%p267) target = $region12
    $region11: #{inception_a_forward.1} parent=5 // pred_region
      %s271 = ssub.s32 %s16, 1
      // Predicated region
      $region13: #{inception_a_forward.1} parent=11 // pred_check
        %p272 = pneg %p63
      $region14: #{inception_a_forward.1} parent=11 // pred_check_branch
        %274 = sbr.rel (%p272) target = $region16
      $region15: #{inception_a_forward.1} parent=11 // pred_region
        _
      $region16: #{inception_a_forward.1} parent=11 // pred_fallthru
        _
      // Predicated region
      $region17: #{inception_a_forward.1} parent=11 // pred_check
        %p275 = pneg %p84
      $region18: #{inception_a_forward.1} parent=11 // pred_check_branch
        %277 = sbr.rel (%p275) target = $region20
      $region19: #{inception_a_forward.1} parent=11 // pred_region
        _
      $region20: #{inception_a_forward.1} parent=11 // pred_fallthru
        _
      // Predicated region
      $region21: #{inception_a_forward.1} parent=11 // pred_check
        %p278 = pneg %p105
      $region22: #{inception_a_forward.1} parent=11 // pred_check_branch
        %280 = sbr.rel (%p278) target = $region24
      $region23: #{inception_a_forward.1} parent=11 // pred_region
        _
      $region24: #{inception_a_forward.1} parent=11 // pred_fallthru
        _
      // Predicated region
      $region25: #{inception_a_forward.1} parent=11 // pred_check
        %p281 = pneg %p126
      $region26: #{inception_a_forward.1} parent=11 // pred_check_branch
        %283 = sbr.rel (%p281) target = $region28
      $region27: #{inception_a_forward.1} parent=11 // pred_region
        _
      $region28: #{inception_a_forward.1} parent=11 // pred_fallthru
        _
      // Predicated region
      $region29: #{inception_a_forward.1} parent=11 // pred_check
        %p284 = pneg %p147
      $region30: #{inception_a_forward.1} parent=11 // pred_check_branch
        %286 = sbr.rel (%p284) target = $region32
      $region31: #{inception_a_forward.1} parent=11 // pred_region
        _
      $region32: #{inception_a_forward.1} parent=11 // pred_fallthru
        _
      // Predicated region
      $region33: #{inception_a_forward.1} parent=11 // pred_check
        %p287 = pneg %p168
      $region34: #{inception_a_forward.1} parent=11 // pred_check_branch
        %289 = sbr.rel (%p287) target = $region36
      $region35: #{inception_a_forward.1} parent=11 // pred_region
        _
      $region36: #{inception_a_forward.1} parent=11 // pred_fallthru
        _
      // Predicated region
      $region37: #{inception_a_forward.1} parent=11 // pred_check
        %p290 = pneg %p189
      $region38: #{inception_a_forward.1} parent=11 // pred_check_branch
        %292 = sbr.rel (%p290) target = $region40
      $region39: #{inception_a_forward.1} parent=11 // pred_region
        _
      $region40: #{inception_a_forward.1} parent=11 // pred_fallthru
        _
      // Predicated region
      $region41: #{inception_a_forward.1} parent=11 // pred_check
        %p293 = pneg %p210
      $region42: #{inception_a_forward.1} parent=11 // pred_check_branch
        %295 = sbr.rel (%p293) target = $region44
      $region43: #{inception_a_forward.1} parent=11 // pred_region
        _
      $region44: #{inception_a_forward.1} parent=11 // pred_fallthru
        _
      // Predicated region
      $region45: #{inception_a_forward.1} parent=11 // pred_check
        %p296 = pneg %p231
      $region46: #{inception_a_forward.1} parent=11 // pred_check_branch
        %298 = sbr.rel (%p296) target = $region48
      $region47: #{inception_a_forward.1} parent=11 // pred_region
        _
      $region48: #{inception_a_forward.1} parent=11 // pred_fallthru
        _
    $region12: #{inception_a_forward.1} parent=5 // pred_fallthru
      _
    %p299 = scmp.lt.s32.totalorder %s16, 2
    // Predicated region
    $region49: #{inception_a_forward.1} parent=5 // pred_check
      %p300 = pneg %p299
    $region50: #{inception_a_forward.1} parent=5 // pred_check_branch
      %302 = sbr.rel (%p300) target = $region52
    $region51: #{inception_a_forward.1} parent=5 // pred_region
      // Predicated region
      $region53: #{inception_a_forward.1} parent=51 // pred_check
        %p303 = pneg %p36
      $region54: #{inception_a_forward.1} parent=51 // pred_check_branch
        %305 = sbr.rel (%p303) target = $region56
      $region55: #{inception_a_forward.1} parent=51 // pred_region
        %p306 = scmp.lt.s32.totalorder %s16, 1
        %s307 = scalar_select %p306, %s16, 1
        %s308 = smul.addr %s307, 2
        %s309 = smul.addr %s308, 4
        %s310 = scalar_lea.vmem %s0, %s309
      $region56: #{inception_a_forward.1} parent=51 // pred_fallthru
        _
    $region52: #{inception_a_forward.1} parent=5 // pred_fallthru
      _
    %p311 = scmp.le.s32.totalorder 1, %s16
    %p312 = scmp.lt.s32.totalorder %s16, 3
    %p313 = pnand %p311, %p312
    %p314 = pneg %p313
    // Predicated region
    $region57: #{inception_a_forward.1} parent=5 // pred_check
      _
    $region58: #{inception_a_forward.1} parent=5 // pred_check_branch
      %316 = sbr.rel (%p313) target = $region60
    $region59: #{inception_a_forward.1} parent=5 // pred_region
      %s317 = ssub.s32 %s16, 1
      %p318 = scmp.lt.s32.totalorder %s21, 1
      %s319 = scalar_select %p318, %s21, 1
      %s320 = smul.addr %s319, 2
      %s321 = smul.addr %s320, 4
      %s322 = scalar_lea.vmem %s0, %s321
      %p323 = pneg %p42
      %p324 = pneg %p39
      %p325 = pneg %p63
      %p326 = pneg %p60
      %p327 = pneg %p84
      %p328 = pneg %p81
      %p329 = pneg %p105
      %p330 = pneg %p102
      %p331 = pneg %p126
      %p332 = pneg %p123
      %p333 = pneg %p147
      %p334 = pneg %p144
      %p335 = pneg %p168
      %p336 = pneg %p165
      %p337 = pneg %p189
      %p338 = pneg %p186
      %p339 = pneg %p210
      %p340 = pneg %p207
      %p341 = pneg %p231
      %p342 = pneg %p228
      %p343 = pneg %p257
      %p344 = pneg %p254
      %p345 = scmp.lt.s32.totalorder %s21, 1
      %s346 = scalar_select %p345, %s21, 1
      %s347 = smul.addr %s346, 64
      %s348 = smul.addr %s347, 8
      %s349 = scalar_lea.vmem %s10, %s348
      %p350 = scmp.lt.s32.totalorder %s21, 1
      %s351 = scalar_select %p350, %s21, 1
      %s352 = smul.addr %s351, 2
      %s353 = smul.addr %s352, 4
      %s354 = scalar_lea.vmem %s0, %s353
      %p355 = scmp.lt.s32.totalorder %s21, 1
      %s356 = scalar_select %p355, %s21, 1
      %s357 = smul.addr %s356, 64
      %s358 = smul.addr %s357, 8
      %s359 = scalar_lea.vmem %s10, %s358
      %p361 = scmp.eq.s32.totalorder %s21, 0
      // Predicated region
      $region61: #{inception_a_forward.1} parent=59 // pred_check
        %p362 = pneg %p361
      $region62: #{inception_a_forward.1} parent=59 // pred_check_branch
        %364 = sbr.rel (%p362) target = $region64
      $region63: #{inception_a_forward.1} parent=59 // pred_region
        %365 = vst [vmem:[#allocation2] sm:$0xff] 0.0
        %366 = vst [vmem:[#allocation2 + $0x20] sm:$0xff] 0.0
        %367 = vst [vmem:[#allocation2 + $0x40] sm:$0xff] 0.0
        %368 = vst [vmem:[#allocation2 + $0x60] sm:$0xff] 0.0
        %369 = vst [vmem:[#allocation2 + $0x80] sm:$0xff] 0.0
        %370 = vst [vmem:[#allocation2 + $0xa0] sm:$0xff] 0.0
        %371 = vst [vmem:[#allocation2 + $0x18] sm:$0xff] 0.0
        %372 = vst [vmem:[#allocation2 + $0x38] sm:$0xff] 0.0
        %373 = vst [vmem:[#allocation2 + $0x58] sm:$0xff] 0.0
        %374 = vst [vmem:[#allocation2 + $0x78] sm:$0xff] 0.0
        %375 = vst [vmem:[#allocation2 + $0x98] sm:$0xff] 0.0
        %376 = vst [vmem:[#allocation2 + $0xb8] sm:$0xff] 0.0
        %377 = vst [vmem:[#allocation3] sm:$0xff] 0.0
        %378 = vst [vmem:[#allocation3 + $0x20] sm:$0xff] 0.0
        %379 = vst [vmem:[#allocation3 + $0x40] sm:$0xff] 0.0
        %380 = vst [vmem:[#allocation3 + $0x60] sm:$0xff] 0.0
        %381 = vst [vmem:[#allocation3 + $0x80] sm:$0xff] 0.0
        %382 = vst [vmem:[#allocation3 + $0xa0] sm:$0xff] 0.0
        %383 = vst [vmem:[#allocation3 + $0xc0] sm:$0xff] 0.0
        %384 = vst [vmem:[#allocation3 + $0xe0] sm:$0xff] 0.0
        %385 = vst [vmem:[#allocation3 + $0x18] sm:$0xff] 0.0
        %386 = vst [vmem:[#allocation3 + $0x38] sm:$0xff] 0.0
        %387 = vst [vmem:[#allocation3 + $0x58] sm:$0xff] 0.0
        %388 = vst [vmem:[#allocation3 + $0x78] sm:$0xff] 0.0
        %389 = vst [vmem:[#allocation3 + $0x98] sm:$0xff] 0.0
        %390 = vst [vmem:[#allocation3 + $0xb8] sm:$0xff] 0.0
        %391 = vst [vmem:[#allocation3 + $0xd8] sm:$0xff] 0.0
        %392 = vst [vmem:[#allocation3 + $0xf8] sm:$0xff] 0.0
        %393 = vst [vmem:[#allocation4] sm:$0xff] 0.0
        %394 = vst [vmem:[#allocation4 + $0x20] sm:$0xff] 0.0
        %395 = vst [vmem:[#allocation4 + $0x40] sm:$0xff] 0.0
        %396 = vst [vmem:[#allocation4 + $0x60] sm:$0xff] 0.0
        %397 = vst [vmem:[#allocation4 + $0x80] sm:$0xff] 0.0
        %398 = vst [vmem:[#allocation4 + $0xa0] sm:$0xff] 0.0
        %399 = vst [vmem:[#allocation4 + $0xc0] sm:$0xff] 0.0
        %400 = vst [vmem:[#allocation4 + $0xe0] sm:$0xff] 0.0
        %401 = vst [vmem:[#allocation4 + $0x100] sm:$0xff] 0.0
        %402 = vst [vmem:[#allocation4 + $0x120] sm:$0xff] 0.0
        %403 = vst [vmem:[#allocation4 + $0x140] sm:$0xff] 0.0
        %404 = vst [vmem:[#allocation4 + $0x160] sm:$0xff] 0.0
        %405 = vst [vmem:[#allocation4 + $0x18] sm:$0xff] 0.0
        %406 = vst [vmem:[#allocation4 + $0x38] sm:$0xff] 0.0
        %407 = vst [vmem:[#allocation4 + $0x58] sm:$0xff] 0.0
        %408 = vst [vmem:[#allocation4 + $0x78] sm:$0xff] 0.0
        %409 = vst [vmem:[#allocation4 + $0x98] sm:$0xff] 0.0
        %410 = vst [vmem:[#allocation4 + $0xb8] sm:$0xff] 0.0
        %411 = vst [vmem:[#allocation4 + $0xd8] sm:$0xff] 0.0
        %412 = vst [vmem:[#allocation4 + $0xf8] sm:$0xff] 0.0
        %413 = vst [vmem:[#allocation4 + $0x118] sm:$0xff] 0.0
        %414 = vst [vmem:[#allocation4 + $0x138] sm:$0xff] 0.0
        %415 = vst [vmem:[#allocation4 + $0x158] sm:$0xff] 0.0
        %416 = vst [vmem:[#allocation4 + $0x178] sm:$0xff] 0.0
        %417 = vst [vmem:[#allocation5] sm:$0xff] 0.0
        %418 = vst [vmem:[#allocation5 + $0x20] sm:$0xff] 0.0
        %419 = vst [vmem:[#allocation5 + $0x40] sm:$0xff] 0.0
        %420 = vst [vmem:[#allocation5 + $0x60] sm:$0xff] 0.0
        %421 = vst [vmem:[#allocation5 + $0x18] sm:$0xff] 0.0
        %422 = vst [vmem:[#allocation5 + $0x38] sm:$0xff] 0.0
        %423 = vst [vmem:[#allocation5 + $0x58] sm:$0xff] 0.0
        %424 = vst [vmem:[#allocation5 + $0x78] sm:$0xff] 0.0
      $region64: #{inception_a_forward.1} parent=59 // pred_fallthru
        _
      %v425 = vld [vmem:[%s1] sm:$0xf]
      %v426 = vld [vmem:[%s1 + $0x4] sm:$0xf]
      %v427 = vld [vmem:[%s1 + $0x8] sm:$0xf]
      %v428 = vld [vmem:[%s1 + $0xc] sm:$0xf]
      %v429 = vld [vmem:[%s1 + $0x10] sm:$0xf]
      %v430 = vld [vmem:[%s1 + $0x14] sm:$0xf]
      %v431 = vld [vmem:[%s1 + $0x18] sm:$0xf]
      %v432 = vld [vmem:[%s1 + $0x1c] sm:$0xf]
      %v433 = vld [vmem:[%s1 + $0x20] sm:$0xf]
      %v434 = vld [vmem:[%s1 + $0x24] sm:$0xf]
      %v435 = vld [vmem:[%s1 + $0x28] sm:$0xf]
      %v436 = vld [vmem:[%s1 + $0x2c] sm:$0xf]
      %v437 = vld [vmem:[%s1 + $0x30] sm:$0xf]
      %v438 = vld [vmem:[%s1 + $0x34] sm:$0xf]
      %v439 = vld [vmem:[%s1 + $0x38] sm:$0xf]
      %v440 = vld [vmem:[%s1 + $0x3c] sm:$0xf]
      %v441 = vld [vmem:[%s1 + $0x40] sm:$0xf]
      %v442 = vld [vmem:[%s1 + $0x44] sm:$0xf]
      %v443 = vld [vmem:[%s1 + $0x48] sm:$0xf]
      %v444 = vld [vmem:[%s1 + $0x4c] sm:$0xf]
      %v445 = vld [vmem:[%s1 + $0x50] sm:$0xf]
      %v446 = vld [vmem:[%s1 + $0x54] sm:$0xf]
      %v447 = vld [vmem:[%s1 + $0x58] sm:$0xf]
      %v448 = vld [vmem:[%s1 + $0x5c] sm:$0xf]
      %v449 = vld [vmem:[%s1 + $0x60] sm:$0xf]
      %v450 = vld [vmem:[%s1 + $0x64] sm:$0xf]
      %v451 = vld [vmem:[%s2] sm:$0xff]
      %v452 = vld [vmem:[%s2 + $0x8] sm:$0xff]
      %v453 = vld [vmem:[%s2 + $0x10] sm:$0xff]
      %v454 = vld [vmem:[%s2 + $0x18] sm:$0xff]
      %v455 = vld [vmem:[%s2 + $0x20] sm:$0xff]
      %v456 = vld [vmem:[%s2 + $0x28] sm:$0xff]
      %v457 = vld [vmem:[%s2 + $0x30] sm:$0xff]
      %v458 = vld [vmem:[%s2 + $0x38] sm:$0xff]
      %v459 = vld [vmem:[%s2 + $0x40] sm:$0xff]
      %v460 = vld [vmem:[%s2 + $0x48] sm:$0xff]
      %v461 = vld [vmem:[%s2 + $0x50] sm:$0xff]
      %v462 = vld [vmem:[%s2 + $0x58] sm:$0xff]
      %v463 = vld [vmem:[%s2 + $0x60] sm:$0xff]
      %v464 = vld [vmem:[%s2 + $0x68] sm:$0xff]
      %v465 = vld [vmem:[%s2 + $0x70] sm:$0xff]
      %v466 = vld [vmem:[%s2 + $0x78] sm:$0xff]
      %v467 = vld [vmem:[%s2 + $0x80] sm:$0xff]
      %v468 = vld [vmem:[%s2 + $0x88] sm:$0xff]
      %v469 = vld [vmem:[%s2 + $0x90] sm:$0xff]
      %v470 = vld [vmem:[%s2 + $0x98] sm:$0xff]
      %v471 = vld [vmem:[%s2 + $0xa0] sm:$0xff]
      %v472 = vld [vmem:[%s2 + $0xa8] sm:$0xff]
      %v473 = vld [vmem:[%s354] sm:$0xf]
      %v474 = vpack.c.bf16 %v473, %v473
      %v501 = vunpack.c.l.b16 %v425
      %v502 = vunpack.c.l.b16 %v426
      %v503 = vunpack.c.l.b16 %v427
      %v504 = vunpack.c.l.b16 %v428
      %v505 = vunpack.c.l.b16 %v429
      %v506 = vunpack.c.l.b16 %v430
      %v507 = vunpack.c.l.b16 %v431
      %v508 = vunpack.c.l.b16 %v432
      %v509 = vunpack.c.l.b16 %v433
      %v510 = vunpack.c.l.b16 %v434
      %v511 = vunpack.c.l.b16 %v435
      %v512 = vunpack.c.l.b16 %v436
      %v513 = vunpack.c.l.b16 %v437
      %v514 = vunpack.c.l.b16 %v438
      %v515 = vunpack.c.l.b16 %v439
      %v516 = vunpack.c.l.b16 %v440
      %v517 = vunpack.c.l.b16 %v441
      %v518 = vunpack.c.l.b16 %v442
      %v519 = vunpack.c.l.b16 %v443
      %v520 = vunpack.c.l.b16 %v444
      %v521 = vunpack.c.l.b16 %v445
      %v522 = vunpack.c.l.b16 %v446
      %v523 = vunpack.c.l.b16 %v447
      %v524 = vunpack.c.l.b16 %v448
      %v525 = vunpack.c.l.b16 %v449
      %v526 = vunpack.c.l.b16 %v450
      %v527 = vpack.c.b16 %v502, %v501
      %v528 = vpack.c.b16 %v504, %v503
      %v529 = vpack.c.b16 %v506, %v505
      %v530 = vpack.c.b16 %v508, %v507
      %v531 = vpack.c.b16 %v510, %v509
      %v532 = vpack.c.b16 %v512, %v511
      %v533 = vpack.c.b16 %v514, %v513
      %v534 = vpack.c.b16 %v516, %v515
      %v535 = vpack.c.b16 %v518, %v517
      %v536 = vpack.c.b16 %v520, %v519
      %v537 = vpack.c.b16 %v522, %v521
      %v538 = vpack.c.b16 %v524, %v523
      %v539 = vpack.c.b16 %v526, %v525
      %vm540 = vcmask 31744
      %v542 = vsel %vm540, %v527, 0
      %v545 = vsel %vm540, %v528, 0
      %v548 = vsel %vm540, %v529, 0
      %v551 = vsel %vm540, %v530, 0
      %v554 = vsel %vm540, %v531, 0
      %v557 = vsel %vm540, %v532, 0
      %v560 = vsel %vm540, %v533, 0
      %v563 = vsel %vm540, %v534, 0
      %v566 = vsel %vm540, %v535, 0
      %v569 = vsel %vm540, %v536, 0
      %v572 = vsel %vm540, %v537, 0
      %v575 = vsel %vm540, %v538, 0
      %v578 = vsel %vm540, %v539, 0
      %vm580 = vcmask 1041408
      %v582 = vsel %vm580, %v474, 0
      %584 = vmatprep.subr.bf16.mxu0 0
      %585 = vmatpush1.bf16.msra.mxu0 %v582
      %586 = vmatprep.subr.bf16.mxu0 0
      %587 = vmatpush1.bf16.msra.mxu0 0
      %588 = vmatprep.subr.bf16.mxu0 0
      %589 = vmatpush1.bf16.msra.mxu0 0
      %590 = vmatprep.subr.bf16.mxu0 0
      %591 = vmatpush1.bf16.msra.mxu0 0
      %592 = vmatprep.subr.bf16.mxu0 0
      %593 = vmatpush1.bf16.msra.mxu0 0
      %594 = vmatprep.subr.bf16.mxu0 0
      %595 = vmatpush1.bf16.msra.mxu0 0
      %596 = vmatprep.subr.bf16.mxu0 0
      %597 = vmatpush1.bf16.msra.mxu0 0
      %598 = vmatprep.subr.bf16.mxu0 0
      %599 = vmatpush1.bf16.msra.mxu0 0
      %600 = vmatprep.subr.bf16.mxu0 0
      %601 = vmatpush1.bf16.msra.mxu0 0
      %602 = vmatprep.subr.bf16.mxu0 0
      %603 = vmatpush1.bf16.msra.mxu0 0
      %604 = vmatprep.subr.bf16.mxu0 0
      %605 = vmatpush1.bf16.msra.mxu0 0
      %606 = vmatprep.subr.bf16.mxu0 0
      %607 = vmatpush1.bf16.msra.mxu0 0
      %608 = vmatprep.subr.bf16.mxu0 0
      %609 = vmatpush1.bf16.msra.mxu0 0
      %610 = vmatprep.subr.bf16.mxu0 0
      %611 = vmatpush1.bf16.msra.mxu0 0
      %612 = vmatprep.subr.bf16.mxu0 0
      %613 = vmatpush1.bf16.msra.mxu0 0
      %614 = vmatprep.subr.bf16.mxu0 0
      %615 = vmatpush1.bf16.msra.mxu0 0
      %616 = vmatprep.mubr.bf16.mxu0 0
      %617 = vmatmul.mubr.bf16.gmra.mrb[0].mxu0 %v542
      %v618 = vpop.f32.mrb[0].mxu0
      %v619 = vadd.f32 0.0, %v618
      %v620 = vpop.f32.mrb[0].mxu0
      %v621 = vpop.f32.mrb[0].mxu0
      %v622 = vadd.f32 0.0, %v621
      %v623 = vpop.f32.mrb[0].mxu0
      %624 = vmatprep.mubr.bf16.mxu0 0
      %625 = vmatmul.mubr.bf16.gmra.mrb[0].mxu0 %v545
      %v626 = vpop.f32.mrb[0].mxu0
      %v627 = vadd.f32 0.0, %v626
      %v628 = vpop.f32.mrb[0].mxu0
      %v629 = vpop.f32.mrb[0].mxu0
      %v630 = vadd.f32 0.0, %v629
      %v631 = vpop.f32.mrb[0].mxu0
      %632 = vmatprep.mubr.bf16.mxu0 0
      %633 = vmatmul.mubr.bf16.gmra.mrb[0].mxu0 %v548
      %v634 = vpop.f32.mrb[0].mxu0
      %v635 = vadd.f32 0.0, %v634
      %v636 = vpop.f32.mrb[0].mxu0
      %v637 = vpop.f32.mrb[0].mxu0
      %v638 = vadd.f32 0.0, %v637
      %v639 = vpop.f32.mrb[0].mxu0
      %640 = vmatprep.mubr.bf16.mxu0 0
      %641 = vmatmul.mubr.bf16.gmra.mrb[0].mxu0 %v551
      %v642 = vpop.f32.mrb[0].mxu0
      %v643 = vadd.f32 0.0, %v642
      %v644 = vpop.f32.mrb[0].mxu0
      %v645 = vpop.f32.mrb[0].mxu0
      %v646 = vadd.f32 0.0, %v645
      %v647 = vpop.f32.mrb[0].mxu0
      %648 = vmatprep.mubr.bf16.mxu0 0
      %649 = vmatmul.mubr.bf16.gmra.mrb[0].mxu0 %v554
      %v650 = vpop.f32.mrb[0].mxu0
      %v651 = vadd.f32 0.0, %v650
      %v652 = vpop.f32.mrb[0].mxu0
      %v653 = vpop.f32.mrb[0].mxu0
      %v654 = vadd.f32 0.0, %v653
      %v655 = vpop.f32.mrb[0].mxu0
      %656 = vmatprep.mubr.bf16.mxu0 0
      %657 = vmatmul.mubr.bf16.gmra.mrb[0].mxu0 %v557
      %v658 = vpop.f32.mrb[0].mxu0
      %v659 = vadd.f32 0.0, %v658
      %v660 = vpop.f32.mrb[0].mxu0
      %v661 = vpop.f32.mrb[0].mxu0
      %v662 = vadd.f32 0.0, %v661
      %v663 = vpop.f32.mrb[0].mxu0
      %664 = vmatprep.mubr.bf16.mxu0 0
      %665 = vmatmul.mubr.bf16.gmra.mrb[0].mxu0 %v560
      %v666 = vpop.f32.mrb[0].mxu0
      %v667 = vadd.f32 0.0, %v666
      %v668 = vpop.f32.mrb[0].mxu0
      %v669 = vpop.f32.mrb[0].mxu0
      %v670 = vadd.f32 0.0, %v669
      %v671 = vpop.f32.mrb[0].mxu0
      %672 = vmatprep.mubr.bf16.mxu0 0
      %673 = vmatmul.mubr.bf16.gmra.mrb[0].mxu0 %v563
      %v674 = vpop.f32.mrb[0].mxu0
      %v675 = vadd.f32 0.0, %v674
      %v676 = vpop.f32.mrb[0].mxu0
      %v677 = vpop.f32.mrb[0].mxu0
      %v678 = vadd.f32 0.0, %v677
      %v679 = vpop.f32.mrb[0].mxu0
      %680 = vmatprep.mubr.bf16.mxu0 0
      %681 = vmatmul.mubr.bf16.gmra.mrb[0].mxu0 %v566
      %v682 = vpop.f32.mrb[0].mxu0
      %v683 = vadd.f32 0.0, %v682
      %v684 = vpop.f32.mrb[0].mxu0
      %v685 = vpop.f32.mrb[0].mxu0
      %v686 = vadd.f32 0.0, %v685
      %v687 = vpop.f32.mrb[0].mxu0
      %688 = vmatprep.mubr.bf16.mxu0 0
      %689 = vmatmul.mubr.bf16.gmra.mrb[0].mxu0 %v569
      %v690 = vpop.f32.mrb[0].mxu0
      %v691 = vadd.f32 0.0, %v690
      %v692 = vpop.f32.mrb[0].mxu0
      %v693 = vpop.f32.mrb[0].mxu0
      %v694 = vadd.f32 0.0, %v693
      %v695 = vpop.f32.mrb[0].mxu0
      %696 = vmatprep.mubr.bf16.mxu0 0
      %697 = vmatmul.mubr.bf16.gmra.mrb[0].mxu0 %v572
      %v698 = vpop.f32.mrb[0].mxu0
      %v699 = vadd.f32 0.0, %v698
      %v700 = vpop.f32.mrb[0].mxu0
      %v701 = vpop.f32.mrb[0].mxu0
      %v702 = vadd.f32 0.0, %v701
      %v703 = vpop.f32.mrb[0].mxu0
      %704 = vmatprep.mubr.bf16.mxu0 0
      %705 = vmatmul.mubr.bf16.gmra.mrb[0].mxu0 %v575
      %v706 = vpop.f32.mrb[0].mxu0
      %v707 = vadd.f32 0.0, %v706
      %v708 = vpop.f32.mrb[0].mxu0
      %v709 = vpop.f32.mrb[0].mxu0
      %v710 = vadd.f32 0.0, %v709
      %v711 = vpop.f32.mrb[0].mxu0
      %712 = vmatprep.mubr.bf16.mxu0 0
      %713 = vmatmul.mubr.bf16.gmra.mrb[0].mxu0 %v578
      %v714 = vpop.f32.mrb[0].mxu0
      %v715 = vadd.f32 0.0, %v714
      %v716 = vpop.f32.mrb[0].mxu0
      %v717 = vpop.f32.mrb[0].mxu0
      %v718 = vadd.f32 0.0, %v717
      %v719 = vpop.f32.mrb[0].mxu0
      %720 = vdwg.mxu0
      %722 = vset.pattern.permute.xlu0 0
      %723 = vperm.xlu0 %722, %v451
      %v724 = vpop.permute.xlu0 %723
      %727 = vset.pattern.permute.xlu0 0
      %728 = vperm.xlu0 %727, %v452
      %v729 = vpop.permute.xlu0 %728
      %732 = vset.pattern.permute.xlu0 0
      %733 = vperm.xlu0 %732, %v453
      %v734 = vpop.permute.xlu0 %733
      %737 = vset.pattern.permute.xlu0 0
      %738 = vperm.xlu0 %737, %v454
      %v739 = vpop.permute.xlu0 %738
      %742 = vset.pattern.permute.xlu0 0
      %743 = vperm.xlu0 %742, %v455
      %v744 = vpop.permute.xlu0 %743
      %747 = vset.pattern.permute.xlu0 0
      %748 = vperm.xlu0 %747, %v456
      %v749 = vpop.permute.xlu0 %748
      %752 = vset.pattern.permute.xlu0 0
      %753 = vperm.xlu0 %752, %v457
      %v754 = vpop.permute.xlu0 %753
      %757 = vset.pattern.permute.xlu0 0
      %758 = vperm.xlu0 %757, %v458
      %v759 = vpop.permute.xlu0 %758
      %762 = vset.pattern.permute.xlu0 0
      %763 = vperm.xlu0 %762, %v459
      %v764 = vpop.permute.xlu0 %763
      %767 = vset.pattern.permute.xlu0 0
      %768 = vperm.xlu0 %767, %v460
      %v769 = vpop.permute.xlu0 %768
      %772 = vset.pattern.permute.xlu0 0
      %773 = vperm.xlu0 %772, %v461
      %v774 = vpop.permute.xlu0 %773
      %777 = vset.pattern.permute.xlu0 0
      %778 = vperm.xlu0 %777, %v462
      %v779 = vpop.permute.xlu0 %778
      %782 = vset.pattern.permute.xlu0 0
      %783 = vperm.xlu0 %782, %v463
      %v784 = vpop.permute.xlu0 %783
      %787 = vset.pattern.permute.xlu0 0
      %788 = vperm.xlu0 %787, %v464
      %v789 = vpop.permute.xlu0 %788
      %792 = vset.pattern.permute.xlu0 0
      %793 = vperm.xlu0 %792, %v465
      %v794 = vpop.permute.xlu0 %793
      %797 = vset.pattern.permute.xlu0 0
      %798 = vperm.xlu0 %797, %v466
      %v799 = vpop.permute.xlu0 %798
      %802 = vset.pattern.permute.xlu0 0
      %803 = vperm.xlu0 %802, %v467
      %v804 = vpop.permute.xlu0 %803
      %807 = vset.pattern.permute.xlu0 0
      %808 = vperm.xlu0 %807, %v468
      %v809 = vpop.permute.xlu0 %808
      %812 = vset.pattern.permute.xlu0 0
      %813 = vperm.xlu0 %812, %v469
      %v814 = vpop.permute.xlu0 %813
      %817 = vset.pattern.permute.xlu0 0
      %818 = vperm.xlu0 %817, %v470
      %v819 = vpop.permute.xlu0 %818
      %822 = vset.pattern.permute.xlu0 0
      %823 = vperm.xlu0 %822, %v471
      %v824 = vpop.permute.xlu0 %823
      %827 = vset.pattern.permute.xlu0 0
      %828 = vperm.xlu0 %827, %v472
      %v829 = vpop.permute.xlu0 %828
      %v831 = vadd.f32 %v619, %v724
      %v832 = vadd.f32 %v622, %v729
      %v833 = vadd.f32 %v627, %v734
      %v834 = vadd.f32 %v630, %v739
      %v835 = vadd.f32 %v635, %v744
      %v836 = vadd.f32 %v638, %v749
      %v837 = vadd.f32 %v643, %v754
      %v838 = vadd.f32 %v646, %v759
      %v839 = vadd.f32 %v651, %v764
      %v840 = vadd.f32 %v654, %v769
      %v841 = vadd.f32 %v659, %v774
      %v842 = vadd.f32 %v662, %v779
      %v843 = vadd.f32 %v667, %v784
      %v844 = vadd.f32 %v670, %v789
      %v845 = vadd.f32 %v675, %v794
      %v846 = vadd.f32 %v678, %v799
      %v847 = vadd.f32 %v683, %v804
      %v848 = vadd.f32 %v686, %v809
      %v849 = vadd.f32 %v691, %v814
      %v850 = vadd.f32 %v694, %v819
      %v851 = vadd.f32 %v699, %v824
      %v852 = vadd.f32 %v702, %v829
      %v853 = vmax.f32 %v831, 0.0
      %v854 = vmax.f32 %v832, 0.0
      %v855 = vmax.f32 %v833, 0.0
      %v856 = vmax.f32 %v834, 0.0
      %v857 = vmax.f32 %v835, 0.0
      %v858 = vmax.f32 %v836, 0.0
      %v859 = vmax.f32 %v837, 0.0
      %v860 = vmax.f32 %v838, 0.0
      %v861 = vmax.f32 %v839, 0.0
      %v862 = vmax.f32 %v840, 0.0
      %v863 = vmax.f32 %v841, 0.0
      %v864 = vmax.f32 %v842, 0.0
      %v865 = vmax.f32 %v843, 0.0
      %v866 = vmax.f32 %v844, 0.0
      %v867 = vmax.f32 %v845, 0.0
      %v868 = vmax.f32 %v846, 0.0
      %v869 = vmax.f32 %v847, 0.0
      %v870 = vmax.f32 %v848, 0.0
      %v871 = vmax.f32 %v849, 0.0
      %v872 = vmax.f32 %v850, 0.0
      %v873 = vmax.f32 %v851, 0.0
      %v874 = vmax.f32 %v852, 0.0
      %875 = vst [vmem:[%s359] sm:$0xff] %v853
      %876 = vst [vmem:[%s359 + $0x10] sm:$0xff] %v854
      %877 = vst [vmem:[%s359 + $0x20] sm:$0xff] %v855
      %878 = vst [vmem:[%s359 + $0x30] sm:$0xff] %v856
      %879 = vst [vmem:[%s359 + $0x40] sm:$0xff] %v857
      %880 = vst [vmem:[%s359 + $0x50] sm:$0xff] %v858
      %881 = vst [vmem:[%s359 + $0x60] sm:$0xff] %v859
      %882 = vst [vmem:[%s359 + $0x70] sm:$0xff] %v860
      %883 = vst [vmem:[#allocation2 + $0x8] sm:$0xff] %v861
      %884 = vst [vmem:[#allocation2 + $0x28] sm:$0xff] %v862
      %885 = vst [vmem:[#allocation2 + $0x48] sm:$0xff] %v863
      %886 = vst [vmem:[#allocation2 + $0x68] sm:$0xff] %v864
      %887 = vst [vmem:[#allocation2 + $0x88] sm:$0xff] %v865
      %888 = vst [vmem:[#allocation2 + $0xa8] sm:$0xff] %v866
      %889 = vst [vmem:[#allocation3 + $0x8] sm:$0xff] %v867
      %890 = vst [vmem:[#allocation3 + $0x28] sm:$0xff] %v868
      %891 = vst [vmem:[#allocation3 + $0x48] sm:$0xff] %v869
      %892 = vst [vmem:[#allocation3 + $0x68] sm:$0xff] %v870
      %893 = vst [vmem:[#allocation3 + $0x88] sm:$0xff] %v871
      %894 = vst [vmem:[#allocation3 + $0xa8] sm:$0xff] %v872
      %895 = vst [vmem:[#allocation3 + $0xc8] sm:$0xff] %v873
      %896 = vst [vmem:[#allocation3 + $0xe8] sm:$0xff] %v874
      %897 = vst [vmem:[#allocation5 + $0x8] sm:$0xff] %v707
      %898 = vst [vmem:[#allocation5 + $0x28] sm:$0xff] %v710
      %899 = vst [vmem:[#allocation5 + $0x48] sm:$0xff] %v715
      %900 = vst [vmem:[#allocation5 + $0x68] sm:$0xff] %v718
      %v901 = vld [vmem:[%s354 + $0x4] sm:$0xf]
      %v902 = vpack.c.bf16 %v901, %v901
      %v904 = vsel %vm580, %v902, 0
      %906 = vmatprep.subr.bf16.mxu0 0
      %907 = vmatpush1.bf16.msra.mxu0 %v904
      %908 = vmatprep.subr.bf16.mxu0 0
      %909 = vmatpush1.bf16.msra.mxu0 0
      %910 = vmatprep.subr.bf16.mxu0 0
      %911 = vmatpush1.bf16.msra.mxu0 0
      %912 = vmatprep.subr.bf16.mxu0 0
      %913 = vmatpush1.bf16.msra.mxu0 0
      %914 = vmatprep.subr.bf16.mxu0 0
      %915 = vmatpush1.bf16.msra.mxu0 0
      %916 = vmatprep.subr.bf16.mxu0 0
      %917 = vmatpush1.bf16.msra.mxu0 0
      %918 = vmatprep.subr.bf16.mxu0 0
      %919 = vmatpush1.bf16.msra.mxu0 0
      %920 = vmatprep.subr.bf16.mxu0 0
      %921 = vmatpush1.bf16.msra.mxu0 0
      %922 = vmatprep.subr.bf16.mxu0 0
      %923 = vmatpush1.bf16.msra.mxu0 0
      %924 = vmatprep.subr.bf16.mxu0 0
      %925 = vmatpush1.bf16.msra.mxu0 0
      %926 = vmatprep.subr.bf16.mxu0 0
      %927 = vmatpush1.bf16.msra.mxu0 0
      %928 = vmatprep.subr.bf16.mxu0 0
      %929 = vmatpush1.bf16.msra.mxu0 0
      %930 = vmatprep.subr.bf16.mxu0 0
      %931 = vmatpush1.bf16.msra.mxu0 0
      %932 = vmatprep.subr.bf16.mxu0 0
      %933 = vmatpush1.bf16.msra.mxu0 0
      %934 = vmatprep.subr.bf16.mxu0 0
      %935 = vmatpush1.bf16.msra.mxu0 0
      %936 = vmatprep.subr.bf16.mxu0 0
      %937 = vmatpush1.bf16.msra.mxu0 0
      %938 = vmatprep.mubr.bf16.mxu0 0
      %939 = vmatmul.mubr.bf16.gmra.mrb[0].mxu0 %v542
      %v940 = vpop.f32.mrb[0].mxu0
      %v941 = vadd.f32 0.0, %v940
      %v942 = vpop.f32.mrb[0].mxu0
      %v943 = vpop.f32.mrb[0].mxu0
      %v944 = vadd.f32 0.0, %v943
      %v945 = vpop.f32.mrb[0].mxu0
      %946 = vmatprep.mubr.bf16.mxu0 0
      %947 = vmatmul.mubr.bf16.gmra.mrb[0].mxu0 %v545
      %v948 = vpop.f32.mrb[0].mxu0
      %v949 = vadd.f32 0.0, %v948
      %v950 = vpop.f32.mrb[0].mxu0
      %v951 = vpop.f32.mrb[0].mxu0
      %v952 = vadd.f32 0.0, %v951
      %v953 = vpop.f32.mrb[0].mxu0
      %954 = vmatprep.mubr.bf16.mxu0 0
      %955 = vmatmul.mubr.bf16.gmra.mrb[0].mxu0 %v548
      %v956 = vpop.f32.mrb[0].mxu0
      %v957 = vadd.f32 0.0, %v956
      %v958 = vpop.f32.mrb[0].mxu0
      %v959 = vpop.f32.mrb[0].mxu0
      %v960 = vadd.f32 0.0, %v959
      %v961 = vpop.f32.mrb[0].mxu0
      %962 = vmatprep.mubr.bf16.mxu0 0
      %963 = vmatmul.mubr.bf16.gmra.mrb[0].mxu0 %v551
      %v964 = vpop.f32.mrb[0].mxu0
      %v965 = vadd.f32 0.0, %v964
      %v966 = vpop.f32.mrb[0].mxu0
      %v967 = vpop.f32.mrb[0].mxu0
      %v968 = vadd.f32 0.0, %v967
      %v969 = vpop.f32.mrb[0].mxu0
      %970 = vmatprep.mubr.bf16.mxu0 0
      %971 = vmatmul.mubr.bf16.gmra.mrb[0].mxu0 %v554
      %v972 = vpop.f32.mrb[0].mxu0
      %v973 = vadd.f32 0.0, %v972
      %v974 = vpop.f32.mrb[0].mxu0
      %v975 = vpop.f32.mrb[0].mxu0
      %v976 = vadd.f32 0.0, %v975
      %v977 = vpop.f32.mrb[0].mxu0
      %978 = vmatprep.mubr.bf16.mxu0 0
      %979 = vmatmul.mubr.bf16.gmra.mrb[0].mxu0 %v557
      %v980 = vpop.f32.mrb[0].mxu0
      %v981 = vadd.f32 0.0, %v980
      %v982 = vpop.f32.mrb[0].mxu0
      %v983 = vpop.f32.mrb[0].mxu0
      %v984 = vadd.f32 0.0, %v983
      %v985 = vpop.f32.mrb[0].mxu0
      %986 = vmatprep.mubr.bf16.mxu0 0
      %987 = vmatmul.mubr.bf16.gmra.mrb[0].mxu0 %v560
      %v988 = vpop.f32.mrb[0].mxu0
      %v989 = vadd.f32 0.0, %v988
      %v990 = vpop.f32.mrb[0].mxu0
      %v991 = vpop.f32.mrb[0].mxu0
      %v992 = vadd.f32 0.0, %v991
      %v993 = vpop.f32.mrb[0].mxu0
      %994 = vmatprep.mubr.bf16.mxu0 0
      %995 = vmatmul.mubr.bf16.gmra.mrb[0].mxu0 %v563
      %v996 = vpop.f32.mrb[0].mxu0
      %v997 = vadd.f32 0.0, %v996
      %v998 = vpop.f32.mrb[0].mxu0
      %v999 = vpop.f32.mrb[0].mxu0
      %v1000 = vadd.f32 0.0, %v999
      %v1001 = vpop.f32.mrb[0].mxu0
      %1002 = vmatprep.mubr.bf16.mxu0 0
      %1003 = vmatmul.mubr.bf16.gmra.mrb[0].mxu0 %v566
      %v1004 = vpop.f32.mrb[0].mxu0
      %v1005 = vadd.f32 0.0, %v1004
      %v1006 = vpop.f32.mrb[0].mxu0
      %v1007 = vpop.f32.mrb[0].mxu0
      %v1008 = vadd.f32 0.0, %v1007
      %v1009 = vpop.f32.mrb[0].mxu0
      %1010 = vmatprep.mubr.bf16.mxu0 0
      %1011 = vmatmul.mubr.bf16.gmra.mrb[0].mxu0 %v569
      %v1012 = vpop.f32.mrb[0].mxu0
      %v1013 = vadd.f32 0.0, %v1012
      %v1014 = vpop.f32.mrb[0].mxu0
      %v1015 = vpop.f32.mrb[0].mxu0
      %v1016 = vadd.f32 0.0, %v1015
      %v1017 = vpop.f32.mrb[0].mxu0
      %1018 = vmatprep.mubr.bf16.mxu0 0
      %1019 = vmatmul.mubr.bf16.gmra.mrb[0].mxu0 %v572
      %v1020 = vpop.f32.mrb[0].mxu0
      %v1021 = vadd.f32 0.0, %v1020
      %v1022 = vpop.f32.mrb[0].mxu0
      %v1023 = vpop.f32.mrb[0].mxu0
      %v1024 = vadd.f32 0.0, %v1023
      %v1025 = vpop.f32.mrb[0].mxu0
      %1026 = vmatprep.mubr.bf16.mxu0 0
      %1027 = vmatmul.mubr.bf16.gmra.mrb[0].mxu0 %v575
      %v1028 = vpop.f32.mrb[0].mxu0
      %v1029 = vadd.f32 0.0, %v1028
      %v1030 = vpop.f32.mrb[0].mxu0
      %v1031 = vpop.f32.mrb[0].mxu0
      %v1032 = vadd.f32 0.0, %v1031
      %v1033 = vpop.f32.mrb[0].mxu0
      %1034 = vmatprep.mubr.bf16.mxu0 0
      %1035 = vmatmul.mubr.bf16.gmra.mrb[0].mxu0 %v578
      %v1036 = vpop.f32.mrb[0].mxu0
      %v1037 = vadd.f32 0.0, %v1036
      %v1038 = vpop.f32.mrb[0].mxu0
      %v1039 = vpop.f32.mrb[0].mxu0
      %v1040 = vadd.f32 0.0, %v1039
      %v1041 = vpop.f32.mrb[0].mxu0
      %1042 = vdwg.mxu0
      %v1043 = vadd.f32 %v941, %v724
      %v1044 = vadd.f32 %v944, %v729
      %v1045 = vadd.f32 %v949, %v734
      %v1046 = vadd.f32 %v952, %v739
      %v1047 = vadd.f32 %v957, %v744
      %v1048 = vadd.f32 %v960, %v749
      %v1049 = vadd.f32 %v965, %v754
      %v1050 = vadd.f32 %v968, %v759
      %v1051 = vadd.f32 %v973, %v764
      %v1052 = vadd.f32 %v976, %v769
      %v1053 = vadd.f32 %v981, %v774
      %v1054 = vadd.f32 %v984, %v779
      %v1055 = vadd.f32 %v989, %v784
      %v1056 = vadd.f32 %v992, %v789
      %v1057 = vadd.f32 %v997, %v794
      %v1058 = vadd.f32 %v1000, %v799
      %v1059 = vadd.f32 %v1005, %v804
      %v1060 = vadd.f32 %v1008, %v809
      %v1061 = vadd.f32 %v1013, %v814
      %v1062 = vadd.f32 %v1016, %v819
      %v1063 = vadd.f32 %v1021, %v824
      %v1064 = vadd.f32 %v1024, %v829
      %v1065 = vmax.f32 %v1043, 0.0
      %v1066 = vmax.f32 %v1044, 0.0
      %v1067 = vmax.f32 %v1045, 0.0
      %v1068 = vmax.f32 %v1046, 0.0
      %v1069 = vmax.f32 %v1047, 0.0
      %v1070 = vmax.f32 %v1048, 0.0
      %v1071 = vmax.f32 %v1049, 0.0
      %v1072 = vmax.f32 %v1050, 0.0
      %v1073 = vmax.f32 %v1051, 0.0
      %v1074 = vmax.f32 %v1052, 0.0
      %v1075 = vmax.f32 %v1053, 0.0
      %v1076 = vmax.f32 %v1054, 0.0
      %v1077 = vmax.f32 %v1055, 0.0
      %v1078 = vmax.f32 %v1056, 0.0
      %v1079 = vmax.f32 %v1057, 0.0
      %v1080 = vmax.f32 %v1058, 0.0
      %v1081 = vmax.f32 %v1059, 0.0
      %v1082 = vmax.f32 %v1060, 0.0
      %v1083 = vmax.f32 %v1061, 0.0
      %v1084 = vmax.f32 %v1062, 0.0
      %v1085 = vmax.f32 %v1063, 0.0
      %v1086 = vmax.f32 %v1064, 0.0
      %1087 = vst [vmem:[%s359 + $0x8] sm:$0xff] %v1065
      %1088 = vst [vmem:[%s359 + $0x18] sm:$0xff] %v1066
      %1089 = vst [vmem:[%s359 + $0x28] sm:$0xff] %v1067
      %1090 = vst [vmem:[%s359 + $0x38] sm:$0xff] %v1068
      %1091 = vst [vmem:[%s359 + $0x48] sm:$0xff] %v1069
      %1092 = vst [vmem:[%s359 + $0x58] sm:$0xff] %v1070
      %1093 = vst [vmem:[%s359 + $0x68] sm:$0xff] %v1071
      %1094 = vst [vmem:[%s359 + $0x78] sm:$0xff] %v1072
      %1095 = vst [vmem:[#allocation2 + $0x10] sm:$0xff] %v1073
      %1096 = vst [vmem:[#allocation2 + $0x30] sm:$0xff] %v1074
      %1097 = vst [vmem:[#allocation2 + $0x50] sm:$0xff] %v1075
      %1098 = vst [vmem:[#allocation2 + $0x70] sm:$0xff] %v1076
      %1099 = vst [vmem:[#allocation2 + $0x90] sm:$0xff] %v1077
      %1100 = vst [vmem:[#allocation2 + $0xb0] sm:$0xff] %v1078
      %1101 = vst [vmem:[#allocation3 + $0x10] sm:$0xff] %v1079
      %1102 = vst [vmem:[#allocation3 + $0x30] sm:$0xff] %v1080
      %1103 = vst [vmem:[#allocation3 + $0x50] sm:$0xff] %v1081
      %1104 = vst [vmem:[#allocation3 + $0x70] sm:$0xff] %v1082
      %1105 = vst [vmem:[#allocation3 + $0x90] sm:$0xff] %v1083
      %1106 = vst [vmem:[#allocation3 + $0xb0] sm:$0xff] %v1084
      %1107 = vst [vmem:[#allocation3 + $0xd0] sm:$0xff] %v1085
      %1108 = vst [vmem:[#allocation3 + $0xf0] sm:$0xff] %v1086
      %1109 = vst [vmem:[#allocation5 + $0x10] sm:$0xff] %v1029
      %1110 = vst [vmem:[#allocation5 + $0x30] sm:$0xff] %v1032
      %1111 = vst [vmem:[#allocation5 + $0x50] sm:$0xff] %v1037
      %1112 = vst [vmem:[#allocation5 + $0x70] sm:$0xff] %v1040
      %v1113 = vld [vmem:[%s9] sm:$0xff]
      %v1114 = vld [vmem:[%s9 + $0x8] sm:$0xff]
      %v1115 = vld [vmem:[%s9 + $0x10] sm:$0xff]
      %v1116 = vld [vmem:[%s9 + $0x18] sm:$0xff]
      %1118 = vset.pattern.permute.xlu0 0
      %1119 = vperm.xlu0 %1118, %v1113
      %v1120 = vpop.permute.xlu0 %1119
      %1123 = vset.pattern.permute.xlu0 0
      %1124 = vperm.xlu0 %1123, %v1114
      %v1125 = vpop.permute.xlu0 %1124
      %1128 = vset.pattern.permute.xlu0 0
      %1129 = vperm.xlu0 %1128, %v1115
      %v1130 = vpop.permute.xlu0 %1129
      %1133 = vset.pattern.permute.xlu0 0
      %1134 = vperm.xlu0 %1133, %v1116
      %v1135 = vpop.permute.xlu0 %1134
      %v1137 = vlaneseq
      %v1138 = vand.u32 %v1137, 127
      %vm1139 = vcmp.lt.s32.totalorder %v1138, 0
      %v1140 = vsub.s32 0, %v1138
      %v1141 = vsel %vm1139, %v1140, %v1138
      %v1142 = vshrl.u32 %v1141, 4
      %v1143 = vand.u32 %v1141, 15
      %v1144 = vsub.s32 0, %v1143
      %v1145 = vsel %vm1139, %v1144, %v1143
      %vm1146 = vcmp.ne.s32.totalorder %v1145, 0
      %vm1147 = vcmp.lt.s32.totalorder %v1145, 0
      %vm1148 = vmand %vm1147, %vm1146
      %v1149 = vadd.s32 %v1145, 16
      %v1150 = vsel %vm1148, %v1149, %v1145
      %vm1151 = vcmp.ge.s32.totalorder %v1150, 1
      %vm1152 = vcmp.lt.s32.totalorder %v1150, 17
      %vm1153 = vmand %vm1151, %vm1152
      %vm1154 = vcmp.ge.s32.totalorder %v1150, 4294967295
      %vm1155 = vcmp.lt.s32.totalorder %v1150, 15
      %vm1156 = vmand %vm1154, %vm1155
      %v1157 = vld [vmem:[#allocation5] sm:$0xff]
      %v1158 = vld [vmem:[#allocation5 + $0x8] sm:$0xff]
      %v1159 = vld [vmem:[#allocation5 + $0x20] sm:$0xff]
      %v1160 = vld [vmem:[#allocation5 + $0x28] sm:$0xff]
      %v1161 = vld [vmem:[#allocation5 + $0x40] sm:$0xff]
      %v1162 = vld [vmem:[#allocation5 + $0x48] sm:$0xff]
      %v1163 = vld [vmem:[#allocation5 + $0x60] sm:$0xff]
      %v1164 = vld [vmem:[#allocation5 + $0x68] sm:$0xff]
      %1173 = vrot.lane.b32.xlu0 %v1157, 112
      %v1174 = vpop.permute.xlu0 %1173
      %1175 = vrot.lane.b32.xlu0 %v1158, 112
      %v1176 = vpop.permute.xlu0 %1175
      %1177 = vrot.lane.b32.xlu0 %v1159, 112
      %v1178 = vpop.permute.xlu0 %1177
      %1179 = vrot.lane.b32.xlu0 %v1160, 112
      %v1180 = vpop.permute.xlu0 %1179
      %1181 = vrot.lane.b32.xlu0 %v1161, 112
      %v1182 = vpop.permute.xlu0 %1181
      %1183 = vrot.lane.b32.xlu0 %v1162, 112
      %v1184 = vpop.permute.xlu0 %1183
      %1185 = vrot.lane.b32.xlu0 %v1163, 112
      %v1186 = vpop.permute.xlu0 %1185
      %1187 = vrot.lane.b32.xlu0 %v1164, 112
      %v1188 = vpop.permute.xlu0 %1187
      %vm1189 = vcmask 916480
      %v1190 = vsel %vm1189, %v1174, %v1176
      %v1191 = vsel %vm1189, %v1178, %v1180
      %v1192 = vsel %vm1189, %v1182, %v1184
      %v1193 = vsel %vm1189, %v1186, %v1188
      %v1202 = vadd.f32 %v1157, %v1190
      %v1203 = vadd.f32 %v1158, %v1176
      %v1204 = vadd.f32 %v1159, %v1191
      %v1205 = vadd.f32 %v1160, %v1180
      %v1206 = vadd.f32 %v1161, %v1192
      %v1207 = vadd.f32 %v1162, %v1184
      %v1208 = vadd.f32 %v1163, %v1193
      %v1209 = vadd.f32 %v1164, %v1188
      %v1210 = vld [vmem:[#allocation5 + $0x10] sm:$0xff]
      %v1211 = vld [vmem:[#allocation5 + $0x30] sm:$0xff]
      %v1212 = vld [vmem:[#allocation5 + $0x50] sm:$0xff]
      %v1213 = vld [vmem:[#allocation5 + $0x70] sm:$0xff]
      %1218 = vrot.lane.b32.xlu0 %v1158, 96
      %v1219 = vpop.permute.xlu0 %1218
      %1220 = vrot.lane.b32.xlu0 %v1210, 96
      %v1221 = vpop.permute.xlu0 %1220
      %1222 = vrot.lane.b32.xlu0 %v1160, 96
      %v1223 = vpop.permute.xlu0 %1222
      %1224 = vrot.lane.b32.xlu0 %v1211, 96
      %v1225 = vpop.permute.xlu0 %1224
      %1226 = vrot.lane.b32.xlu0 %v1162, 96
      %v1227 = vpop.permute.xlu0 %1226
      %1228 = vrot.lane.b32.xlu0 %v1212, 96
      %v1229 = vpop.permute.xlu0 %1228
      %1230 = vrot.lane.b32.xlu0 %v1164, 96
      %v1231 = vpop.permute.xlu0 %1230
      %1232 = vrot.lane.b32.xlu0 %v1213, 96
      %v1233 = vpop.permute.xlu0 %1232
      %vm1234 = vcmask 785408
      %v1235 = vsel %vm1234, %v1219, %v1221
      %v1236 = vsel %vm1234, %v1223, %v1225
      %v1237 = vsel %vm1234, %v1227, %v1229
      %v1238 = vsel %vm1234, %v1231, %v1233
      %v1247 = vadd.f32 %v1202, %v1219
      %v1248 = vadd.f32 %v1203, %v1235
      %v1249 = vadd.f32 %v1204, %v1223
      %v1250 = vadd.f32 %v1205, %v1236
      %v1251 = vadd.f32 %v1206, %v1227
      %v1252 = vadd.f32 %v1207, %v1237
      %v1253 = vadd.f32 %v1208, %v1231
      %v1254 = vadd.f32 %v1209, %v1238
      %v1255 = vsel %vm1153, 1, 0
      %vm1256 = vcmp.eq.s32.totalorder %v1255, 1
      %1265 = vrot.lane.b32.xlu0 %v1247, 17
      %v1266 = vpop.permute.xlu0 %1265
      %1267 = vrot.lane.b32.xlu0 %v1248, 17
      %v1268 = vpop.permute.xlu0 %1267
      %1269 = vrot.lane.b32.xlu0 %v1249, 17
      %v1270 = vpop.permute.xlu0 %1269
      %1271 = vrot.lane.b32.xlu0 %v1250, 17
      %v1272 = vpop.permute.xlu0 %1271
      %1273 = vrot.lane.b32.xlu0 %v1251, 17
      %v1274 = vpop.permute.xlu0 %1273
      %1275 = vrot.lane.b32.xlu0 %v1252, 17
      %v1276 = vpop.permute.xlu0 %1275
      %1277 = vrot.lane.b32.xlu0 %v1253, 17
      %v1278 = vpop.permute.xlu0 %1277
      %1279 = vrot.lane.b32.xlu0 %v1254, 17
      %v1280 = vpop.permute.xlu0 %1279
      %vm1281 = vcmask 138240
      %v1282 = vsel %vm1281, %v1266, %v1268
      %v1283 = vsel %vm1281, %v1270, %v1272
      %v1284 = vsel %vm1281, %v1274, %v1276
      %v1285 = vsel %vm1281, %v1278, %v1280
      %v1290 = vsel %vm1256, %v1282, 0.0
      %v1291 = vsel %vm1256, %v1283, 0.0
      %v1292 = vsel %vm1256, %v1284, 0.0
      %v1293 = vsel %vm1256, %v1285, 0.0
      %v1294 = vadd.f32 %v1290, 0.0
      %v1295 = vadd.f32 %v1291, 0.0
      %v1296 = vadd.f32 %v1292, 0.0
      %v1297 = vadd.f32 %v1293, 0.0
      %v1298 = vadd.f32 %v1157, %v1176
      %v1299 = vadd.f32 %v1159, %v1180
      %v1300 = vadd.f32 %v1161, %v1184
      %v1301 = vadd.f32 %v1163, %v1188
      %v1302 = vadd.f32 %v1298, %v1219
      %v1303 = vadd.f32 %v1299, %v1223
      %v1304 = vadd.f32 %v1300, %v1227
      %v1305 = vadd.f32 %v1301, %v1231
      %1310 = vrot.lane.b32.xlu0 %v1302, 16
      %v1311 = vpop.permute.xlu0 %1310
      %1312 = vrot.lane.b32.xlu0 %v1248, 16
      %v1313 = vpop.permute.xlu0 %1312
      %1314 = vrot.lane.b32.xlu0 %v1303, 16
      %v1315 = vpop.permute.xlu0 %1314
      %1316 = vrot.lane.b32.xlu0 %v1250, 16
      %v1317 = vpop.permute.xlu0 %1316
      %1318 = vrot.lane.b32.xlu0 %v1304, 16
      %v1319 = vpop.permute.xlu0 %1318
      %1320 = vrot.lane.b32.xlu0 %v1252, 16
      %v1321 = vpop.permute.xlu0 %1320
      %1322 = vrot.lane.b32.xlu0 %v1305, 16
      %v1323 = vpop.permute.xlu0 %1322
      %1324 = vrot.lane.b32.xlu0 %v1254, 16
      %v1325 = vpop.permute.xlu0 %1324
      %vm1326 = vcmask 130048
      %v1327 = vsel %vm1326, %v1311, %v1313
      %v1328 = vsel %vm1326, %v1315, %v1317
      %v1329 = vsel %vm1326, %v1319, %v1321
      %v1330 = vsel %vm1326, %v1323, %v1325
      %v1335 = vadd.f32 %v1294, %v1327
      %v1336 = vadd.f32 %v1295, %v1328
      %v1337 = vadd.f32 %v1296, %v1329
      %v1338 = vadd.f32 %v1297, %v1330
      %1339 = vrot.lane.b32.xlu0 %v1210, 112
      %v1340 = vpop.permute.xlu0 %1339
      %1341 = vrot.lane.b32.xlu0 %v1211, 112
      %v1342 = vpop.permute.xlu0 %1341
      %1343 = vrot.lane.b32.xlu0 %v1212, 112
      %v1344 = vpop.permute.xlu0 %1343
      %1345 = vrot.lane.b32.xlu0 %v1213, 112
      %v1346 = vpop.permute.xlu0 %1345
      %v1347 = vsel %vm1189, %v1176, %v1340
      %v1348 = vsel %vm1189, %v1180, %v1342
      %v1349 = vsel %vm1189, %v1184, %v1344
      %v1350 = vsel %vm1189, %v1188, %v1346
      %v1355 = vadd.f32 %v1158, %v1347
      %v1356 = vadd.f32 %v1160, %v1348
      %v1357 = vadd.f32 %v1162, %v1349
      %v1358 = vadd.f32 %v1164, %v1350
      %v1359 = vadd.f32 %v1355, %v1235
      %v1360 = vadd.f32 %v1356, %v1236
      %v1361 = vadd.f32 %v1357, %v1237
      %v1362 = vadd.f32 %v1358, %v1238
      %v1363 = vsel %vm1156, 1, 0
      %vm1364 = vcmp.eq.s32.totalorder %v1363, 1
      %1369 = vrot.lane.b32.xlu0 %v1302, 15
      %v1370 = vpop.permute.xlu0 %1369
      %1371 = vrot.lane.b32.xlu0 %v1359, 15
      %v1372 = vpop.permute.xlu0 %1371
      %1373 = vrot.lane.b32.xlu0 %v1303, 15
      %v1374 = vpop.permute.xlu0 %1373
      %1375 = vrot.lane.b32.xlu0 %v1360, 15
      %v1376 = vpop.permute.xlu0 %1375
      %1377 = vrot.lane.b32.xlu0 %v1304, 15
      %v1378 = vpop.permute.xlu0 %1377
      %1379 = vrot.lane.b32.xlu0 %v1361, 15
      %v1380 = vpop.permute.xlu0 %1379
      %1381 = vrot.lane.b32.xlu0 %v1305, 15
      %v1382 = vpop.permute.xlu0 %1381
      %1383 = vrot.lane.b32.xlu0 %v1362, 15
      %v1384 = vpop.permute.xlu0 %1383
      %vm1385 = vcmask 121856
      %v1386 = vsel %vm1385, %v1370, %v1372
      %v1387 = vsel %vm1385, %v1374, %v1376
      %v1388 = vsel %vm1385, %v1378, %v1380
      %v1389 = vsel %vm1385, %v1382, %v1384
      %v1394 = vsel %vm1364, %v1386, 0.0
      %v1395 = vsel %vm1364, %v1387, 0.0
      %v1396 = vsel %vm1364, %v1388, 0.0
      %v1397 = vsel %vm1364, %v1389, 0.0
      %v1398 = vadd.f32 %v1335, %v1394
      %v1399 = vadd.f32 %v1336, %v1395
      %v1400 = vadd.f32 %v1337, %v1396
      %v1401 = vadd.f32 %v1338, %v1397
      %v1402 = vmul.f32 %v1398, 0.11111111
      %v1403 = vmul.f32 %v1399, 0.11111111
      %v1404 = vmul.f32 %v1400, 0.11111111
      %v1405 = vmul.f32 %v1401, 0.11111111
      %v1406 = vadd.f32 %v1402, %v1120
      %v1407 = vadd.f32 %v1403, %v1125
      %v1408 = vadd.f32 %v1404, %v1130
      %v1409 = vadd.f32 %v1405, %v1135
      %v1410 = vmax.f32 %v1406, 0.0
      %v1411 = vmax.f32 %v1407, 0.0
      %v1412 = vmax.f32 %v1408, 0.0
      %v1413 = vmax.f32 %v1409, 0.0
      %1414 = vst [vmem:[%s359 + $0x1c0] sm:$0xff] %v1410
      %1415 = vst [vmem:[%s359 + $0x1d0] sm:$0xff] %v1411
      %1416 = vst [vmem:[%s359 + $0x1e0] sm:$0xff] %v1412
      %1417 = vst [vmem:[%s359 + $0x1f0] sm:$0xff] %v1413
      %v1418 = vadd.s32 %v1138, 128
      %vm1419 = vcmp.lt.s32.totalorder %v1418, 0
      %v1420 = vsub.s32 0, %v1418
      %v1421 = vsel %vm1419, %v1420, %v1418
      %v1422 = vshrl.u32 %v1421, 4
      %v1423 = vand.u32 %v1421, 15
      %v1424 = vsub.s32 0, %v1423
      %v1425 = vsel %vm1419, %v1424, %v1423
      %vm1426 = vcmp.ne.s32.totalorder %v1425, 0
      %vm1427 = vcmp.lt.s32.totalorder %v1425, 0
      %vm1428 = vmand %vm1427, %vm1426
      %v1429 = vadd.s32 %v1425, 16
      %v1430 = vsel %vm1428, %v1429, %v1425
      %vm1431 = vcmp.ge.s32.totalorder %v1430, 1
      %vm1432 = vcmp.lt.s32.totalorder %v1430, 17
      %vm1433 = vmand %vm1431, %vm1432
      %vm1434 = vcmp.ge.s32.totalorder %v1430, 4294967295
      %vm1435 = vcmp.lt.s32.totalorder %v1430, 15
      %vm1436 = vmand %vm1434, %vm1435
      %v1437 = vld [vmem:[#allocation5 + $0x8] sm:$0xff]
      %v1438 = vld [vmem:[#allocation5 + $0x10] sm:$0xff]
      %v1439 = vld [vmem:[#allocation5 + $0x28] sm:$0xff]
      %v1440 = vld [vmem:[#allocation5 + $0x30] sm:$0xff]
      %v1441 = vld [vmem:[#allocation5 + $0x48] sm:$0xff]
      %v1442 = vld [vmem:[#allocation5 + $0x50] sm:$0xff]
      %v1443 = vld [vmem:[#allocation5 + $0x68] sm:$0xff]
      %v1444 = vld [vmem:[#allocation5 + $0x70] sm:$0xff]
      %1453 = vrot.lane.b32.xlu0 %v1437, 112
      %v1454 = vpop.permute.xlu0 %1453
      %1455 = vrot.lane.b32.xlu0 %v1438, 112
      %v1456 = vpop.permute.xlu0 %1455
      %1457 = vrot.lane.b32.xlu0 %v1439, 112
      %v1458 = vpop.permute.xlu0 %1457
      %1459 = vrot.lane.b32.xlu0 %v1440, 112
      %v1460 = vpop.permute.xlu0 %1459
      %1461 = vrot.lane.b32.xlu0 %v1441, 112
      %v1462 = vpop.permute.xlu0 %1461
      %1463 = vrot.lane.b32.xlu0 %v1442, 112
      %v1464 = vpop.permute.xlu0 %1463
      %1465 = vrot.lane.b32.xlu0 %v1443, 112
      %v1466 = vpop.permute.xlu0 %1465
      %1467 = vrot.lane.b32.xlu0 %v1444, 112
      %v1468 = vpop.permute.xlu0 %1467
      %v1469 = vsel %vm1189, %v1454, %v1456
      %v1470 = vsel %vm1189, %v1458, %v1460
      %v1471 = vsel %vm1189, %v1462, %v1464
      %v1472 = vsel %vm1189, %v1466, %v1468
      %v1481 = vadd.f32 %v1437, %v1469
      %v1482 = vadd.f32 %v1438, %v1456
      %v1483 = vadd.f32 %v1439, %v1470
      %v1484 = vadd.f32 %v1440, %v1460
      %v1485 = vadd.f32 %v1441, %v1471
      %v1486 = vadd.f32 %v1442, %v1464
      %v1487 = vadd.f32 %v1443, %v1472
      %v1488 = vadd.f32 %v1444, %v1468
      %v1489 = vld [vmem:[#allocation5 + $0x10] sm:$0xff]
      %v1490 = vld [vmem:[#allocation5 + $0x18] sm:$0xff]
      %v1491 = vld [vmem:[#allocation5 + $0x30] sm:$0xff]
      %v1492 = vld [vmem:[#allocation5 + $0x38] sm:$0xff]
      %v1493 = vld [vmem:[#allocation5 + $0x50] sm:$0xff]
      %v1494 = vld [vmem:[#allocation5 + $0x58] sm:$0xff]
      %v1495 = vld [vmem:[#allocation5 + $0x70] sm:$0xff]
      %v1496 = vld [vmem:[#allocation5 + $0x78] sm:$0xff]
      %1505 = vrot.lane.b32.xlu0 %v1489, 96
      %v1506 = vpop.permute.xlu0 %1505
      %1507 = vrot.lane.b32.xlu0 %v1490, 96
      %v1508 = vpop.permute.xlu0 %1507
      %1509 = vrot.lane.b32.xlu0 %v1491, 96
      %v1510 = vpop.permute.xlu0 %1509
      %1511 = vrot.lane.b32.xlu0 %v1492, 96
      %v1512 = vpop.permute.xlu0 %1511
      %1513 = vrot.lane.b32.xlu0 %v1493, 96
      %v1514 = vpop.permute.xlu0 %1513
      %1515 = vrot.lane.b32.xlu0 %v1494, 96
      %v1516 = vpop.permute.xlu0 %1515
      %1517 = vrot.lane.b32.xlu0 %v1495, 96
      %v1518 = vpop.permute.xlu0 %1517
      %1519 = vrot.lane.b32.xlu0 %v1496, 96
      %v1520 = vpop.permute.xlu0 %1519
      %v1521 = vsel %vm1234, %v1506, %v1508
      %v1522 = vsel %vm1234, %v1510, %v1512
      %v1523 = vsel %vm1234, %v1514, %v1516
      %v1524 = vsel %vm1234, %v1518, %v1520
      %v1533 = vadd.f32 %v1481, %v1506
      %v1534 = vadd.f32 %v1482, %v1521
      %v1535 = vadd.f32 %v1483, %v1510
      %v1536 = vadd.f32 %v1484, %v1522
      %v1537 = vadd.f32 %v1485, %v1514
      %v1538 = vadd.f32 %v1486, %v1523
      %v1539 = vadd.f32 %v1487, %v1518
      %v1540 = vadd.f32 %v1488, %v1524
      %v1541 = vsel %vm1433, 1, 0
      %vm1542 = vcmp.eq.s32.totalorder %v1541, 1
      %1551 = vrot.lane.b32.xlu0 %v1533, 17
      %v1552 = vpop.permute.xlu0 %1551
      %1553 = vrot.lane.b32.xlu0 %v1534, 17
      %v1554 = vpop.permute.xlu0 %1553
      %1555 = vrot.lane.b32.xlu0 %v1535, 17
      %v1556 = vpop.permute.xlu0 %1555
      %1557 = vrot.lane.b32.xlu0 %v1536, 17
      %v1558 = vpop.permute.xlu0 %1557
      %1559 = vrot.lane.b32.xlu0 %v1537, 17
      %v1560 = vpop.permute.xlu0 %1559
      %1561 = vrot.lane.b32.xlu0 %v1538, 17
      %v1562 = vpop.permute.xlu0 %1561
      %1563 = vrot.lane.b32.xlu0 %v1539, 17
      %v1564 = vpop.permute.xlu0 %1563
      %1565 = vrot.lane.b32.xlu0 %v1540, 17
      %v1566 = vpop.permute.xlu0 %1565
      %v1567 = vsel %vm1281, %v1552, %v1554
      %v1568 = vsel %vm1281, %v1556, %v1558
      %v1569 = vsel %vm1281, %v1560, %v1562
      %v1570 = vsel %vm1281, %v1564, %v1566
      %v1575 = vsel %vm1542, %v1567, 0.0
      %v1576 = vsel %vm1542, %v1568, 0.0
      %v1577 = vsel %vm1542, %v1569, 0.0
      %v1578 = vsel %vm1542, %v1570, 0.0
      %v1579 = vadd.f32 %v1575, 0.0
      %v1580 = vadd.f32 %v1576, 0.0
      %v1581 = vadd.f32 %v1577, 0.0
      %v1582 = vadd.f32 %v1578, 0.0
      %v1583 = vadd.f32 %v1437, %v1456
      %v1584 = vadd.f32 %v1439, %v1460
      %v1585 = vadd.f32 %v1441, %v1464
      %v1586 = vadd.f32 %v1443, %v1468
      %v1587 = vadd.f32 %v1583, %v1506
      %v1588 = vadd.f32 %v1584, %v1510
      %v1589 = vadd.f32 %v1585, %v1514
      %v1590 = vadd.f32 %v1586, %v1518
      %1595 = vrot.lane.b32.xlu0 %v1587, 16
      %v1596 = vpop.permute.xlu0 %1595
      %1597 = vrot.lane.b32.xlu0 %v1534, 16
      %v1598 = vpop.permute.xlu0 %1597
      %1599 = vrot.lane.b32.xlu0 %v1588, 16
      %v1600 = vpop.permute.xlu0 %1599
      %1601 = vrot.lane.b32.xlu0 %v1536, 16
      %v1602 = vpop.permute.xlu0 %1601
      %1603 = vrot.lane.b32.xlu0 %v1589, 16
      %v1604 = vpop.permute.xlu0 %1603
      %1605 = vrot.lane.b32.xlu0 %v1538, 16
      %v1606 = vpop.permute.xlu0 %1605
      %1607 = vrot.lane.b32.xlu0 %v1590, 16
      %v1608 = vpop.permute.xlu0 %1607
      %1609 = vrot.lane.b32.xlu0 %v1540, 16
      %v1610 = vpop.permute.xlu0 %1609
      %v1611 = vsel %vm1326, %v1596, %v1598
      %v1612 = vsel %vm1326, %v1600, %v1602
      %v1613 = vsel %vm1326, %v1604, %v1606
      %v1614 = vsel %vm1326, %v1608, %v1610
      %v1619 = vadd.f32 %v1579, %v1611
      %v1620 = vadd.f32 %v1580, %v1612
      %v1621 = vadd.f32 %v1581, %v1613
      %v1622 = vadd.f32 %v1582, %v1614
      %1623 = vrot.lane.b32.xlu0 %v1489, 112
      %v1624 = vpop.permute.xlu0 %1623
      %1625 = vrot.lane.b32.xlu0 %v1490, 112
      %v1626 = vpop.permute.xlu0 %1625
      %1627 = vrot.lane.b32.xlu0 %v1491, 112
      %v1628 = vpop.permute.xlu0 %1627
      %1629 = vrot.lane.b32.xlu0 %v1492, 112
      %v1630 = vpop.permute.xlu0 %1629
      %1631 = vrot.lane.b32.xlu0 %v1493, 112
      %v1632 = vpop.permute.xlu0 %1631
      %1633 = vrot.lane.b32.xlu0 %v1494, 112
      %v1634 = vpop.permute.xlu0 %1633
      %1635 = vrot.lane.b32.xlu0 %v1495, 112
      %v1636 = vpop.permute.xlu0 %1635
      %1637 = vrot.lane.b32.xlu0 %v1496, 112
      %v1638 = vpop.permute.xlu0 %1637
      %v1639 = vsel %vm1189, %v1624, %v1626
      %v1640 = vsel %vm1189, %v1628, %v1630
      %v1641 = vsel %vm1189, %v1632, %v1634
      %v1642 = vsel %vm1189, %v1636, %v1638
      %v1651 = vadd.f32 %v1437, %v1624
      %v1652 = vadd.f32 %v1438, %v1639
      %v1653 = vadd.f32 %v1439, %v1628
      %v1654 = vadd.f32 %v1440, %v1640
      %v1655 = vadd.f32 %v1441, %v1632
      %v1656 = vadd.f32 %v1442, %v1641
      %v1657 = vadd.f32 %v1443, %v1636
      %v1658 = vadd.f32 %v1444, %v1642
      %v1659 = vadd.f32 %v1651, %v1506
      %v1660 = vadd.f32 %v1652, %v1521
      %v1661 = vadd.f32 %v1653, %v1510
      %v1662 = vadd.f32 %v1654, %v1522
      %v1663 = vadd.f32 %v1655, %v1514
      %v1664 = vadd.f32 %v1656, %v1523
      %v1665 = vadd.f32 %v1657, %v1518
      %v1666 = vadd.f32 %v1658, %v1524
      %v1667 = vsel %vm1436, 1, 0
      %vm1668 = vcmp.eq.s32.totalorder %v1667, 1
      %1677 = vrot.lane.b32.xlu0 %v1659, 15
      %v1678 = vpop.permute.xlu0 %1677
      %1679 = vrot.lane.b32.xlu0 %v1660, 15
      %v1680 = vpop.permute.xlu0 %1679
      %1681 = vrot.lane.b32.xlu0 %v1661, 15
      %v1682 = vpop.permute.xlu0 %1681
      %1683 = vrot.lane.b32.xlu0 %v1662, 15
      %v1684 = vpop.permute.xlu0 %1683
      %1685 = vrot.lane.b32.xlu0 %v1663, 15
      %v1686 = vpop.permute.xlu0 %1685
      %1687 = vrot.lane.b32.xlu0 %v1664, 15
      %v1688 = vpop.permute.xlu0 %1687
      %1689 = vrot.lane.b32.xlu0 %v1665, 15
      %v1690 = vpop.permute.xlu0 %1689
      %1691 = vrot.lane.b32.xlu0 %v1666, 15
      %v1692 = vpop.permute.xlu0 %1691
      %v1693 = vsel %vm1385, %v1678, %v1680
      %v1694 = vsel %vm1385, %v1682, %v1684
      %v1695 = vsel %vm1385, %v1686, %v1688
      %v1696 = vsel %vm1385, %v1690, %v1692
      %v1701 = vsel %vm1668, %v1693, 0.0
      %v1702 = vsel %vm1668, %v1694, 0.0
      %v1703 = vsel %vm1668, %v1695, 0.0
      %v1704 = vsel %vm1668, %v1696, 0.0
      %v1705 = vadd.f32 %v1619, %v1701
      %v1706 = vadd.f32 %v1620, %v1702
      %v1707 = vadd.f32 %v1621, %v1703
      %v1708 = vadd.f32 %v1622, %v1704
      %v1709 = vmul.f32 %v1705, 0.11111111
      %v1710 = vmul.f32 %v1706, 0.11111111
      %v1711 = vmul.f32 %v1707, 0.11111111
      %v1712 = vmul.f32 %v1708, 0.11111111
      %v1713 = vadd.f32 %v1709, %v1120
      %v1714 = vadd.f32 %v1710, %v1125
      %v1715 = vadd.f32 %v1711, %v1130
      %v1716 = vadd.f32 %v1712, %v1135
      %v1717 = vmax.f32 %v1713, 0.0
      %v1718 = vmax.f32 %v1714, 0.0
      %v1719 = vmax.f32 %v1715, 0.0
      %v1720 = vmax.f32 %v1716, 0.0
      %1721 = vst [vmem:[%s359 + $0x1c8] sm:$0xff] %v1717
      %1722 = vst [vmem:[%s359 + $0x1d8] sm:$0xff] %v1718
      %1723 = vst [vmem:[%s359 + $0x1e8] sm:$0xff] %v1719
      %1724 = vst [vmem:[%s359 + $0x1f8] sm:$0xff] %v1720
      %v1725 = vld [vmem:[%s4] sm:$0xff]
      %v1726 = vld [vmem:[%s4 + $0x8] sm:$0xff]
      %v1727 = vld [vmem:[%s4 + $0x10] sm:$0xff]
      %v1728 = vld [vmem:[%s4 + $0x18] sm:$0xff]
      %v1729 = vld [vmem:[%s4 + $0x20] sm:$0xff]
      %v1730 = vld [vmem:[%s4 + $0x28] sm:$0xff]
      %v1731 = vld [vmem:[%s4 + $0x30] sm:$0xff]
      %v1732 = vld [vmem:[%s4 + $0x38] sm:$0xff]
      %1734 = vset.pattern.permute.xlu0 0
      %1735 = vperm.xlu0 %1734, %v1725
      %v1736 = vpop.permute.xlu0 %1735
      %1739 = vset.pattern.permute.xlu0 0
      %1740 = vperm.xlu0 %1739, %v1726
      %v1741 = vpop.permute.xlu0 %1740
      %1744 = vset.pattern.permute.xlu0 0
      %1745 = vperm.xlu0 %1744, %v1727
      %v1746 = vpop.permute.xlu0 %1745
      %1749 = vset.pattern.permute.xlu0 0
      %1750 = vperm.xlu0 %1749, %v1728
      %v1751 = vpop.permute.xlu0 %1750
      %1754 = vset.pattern.permute.xlu0 0
      %1755 = vperm.xlu0 %1754, %v1729
      %v1756 = vpop.permute.xlu0 %1755
      %1759 = vset.pattern.permute.xlu0 0
      %1760 = vperm.xlu0 %1759, %v1730
      %v1761 = vpop.permute.xlu0 %1760
      %1764 = vset.pattern.permute.xlu0 0
      %1765 = vperm.xlu0 %1764, %v1731
      %v1766 = vpop.permute.xlu0 %1765
      %1769 = vset.pattern.permute.xlu0 0
      %1770 = vperm.xlu0 %1769, %v1732
      %v1771 = vpop.permute.xlu0 %1770
      %vm1773 = vcmp.ge.s32.totalorder %v1150, 2
      %vm1774 = vcmp.lt.s32.totalorder %v1150, 18
      %vm1775 = vmand %vm1773, %vm1774
      %vm1776 = vcmp.ge.s32.totalorder %v1150, 4294967294
      %vm1777 = vcmp.lt.s32.totalorder %v1150, 14
      %vm1778 = vmand %vm1776, %vm1777
      %v1779 = vld [vmem:[#allocation2] sm:$0xff]
      %v1780 = vld [vmem:[#allocation2 + $0x8] sm:$0xff]
      %v1781 = vld [vmem:[#allocation2 + $0x20] sm:$0xff]
      %v1782 = vld [vmem:[#allocation2 + $0x28] sm:$0xff]
      %v1783 = vld [vmem:[#allocation2 + $0x40] sm:$0xff]
      %v1784 = vld [vmem:[#allocation2 + $0x48] sm:$0xff]
      %v1785 = vld [vmem:[#allocation2 + $0x60] sm:$0xff]
      %v1786 = vld [vmem:[#allocation2 + $0x68] sm:$0xff]
      %v1787 = vld [vmem:[#allocation2 + $0x80] sm:$0xff]
      %v1788 = vld [vmem:[#allocation2 + $0x88] sm:$0xff]
      %v1789 = vld [vmem:[#allocation2 + $0xa0] sm:$0xff]
      %v1790 = vld [vmem:[#allocation2 + $0xa8] sm:$0xff]
      %v1791 = vld [vmem:[#allocation2 + $0x10] sm:$0xff]
      %v1792 = vld [vmem:[#allocation2 + $0x30] sm:$0xff]
      %v1793 = vld [vmem:[#allocation2 + $0x50] sm:$0xff]
      %v1794 = vld [vmem:[#allocation2 + $0x70] sm:$0xff]
      %v1795 = vld [vmem:[#allocation2 + $0x90] sm:$0xff]
      %v1796 = vld [vmem:[#allocation2 + $0xb0] sm:$0xff]
      %1809 = vrot.lane.b32.xlu0 %v1779, 112
      %v1810 = vpop.permute.xlu0 %1809
      %1811 = vrot.lane.b32.xlu0 %v1780, 112
      %v1812 = vpop.permute.xlu0 %1811
      %1813 = vrot.lane.b32.xlu0 %v1781, 112
      %v1814 = vpop.permute.xlu0 %1813
      %1815 = vrot.lane.b32.xlu0 %v1782, 112
      %v1816 = vpop.permute.xlu0 %1815
      %1817 = vrot.lane.b32.xlu0 %v1783, 112
      %v1818 = vpop.permute.xlu0 %1817
      %1819 = vrot.lane.b32.xlu0 %v1784, 112
      %v1820 = vpop.permute.xlu0 %1819
      %1821 = vrot.lane.b32.xlu0 %v1785, 112
      %v1822 = vpop.permute.xlu0 %1821
      %1823 = vrot.lane.b32.xlu0 %v1786, 112
      %v1824 = vpop.permute.xlu0 %1823
      %1825 = vrot.lane.b32.xlu0 %v1787, 112
      %v1826 = vpop.permute.xlu0 %1825
      %1827 = vrot.lane.b32.xlu0 %v1788, 112
      %v1828 = vpop.permute.xlu0 %1827
      %1829 = vrot.lane.b32.xlu0 %v1789, 112
      %v1830 = vpop.permute.xlu0 %1829
      %1831 = vrot.lane.b32.xlu0 %v1790, 112
      %v1832 = vpop.permute.xlu0 %1831
      %v1833 = vsel %vm1189, %v1810, %v1812
      %v1834 = vsel %vm1189, %v1814, %v1816
      %v1835 = vsel %vm1189, %v1818, %v1820
      %v1836 = vsel %vm1189, %v1822, %v1824
      %v1837 = vsel %vm1189, %v1826, %v1828
      %v1838 = vsel %vm1189, %v1830, %v1832
      %1851 = vrot.lane.b32.xlu0 %v1779, 96
      %v1852 = vpop.permute.xlu0 %1851
      %1853 = vrot.lane.b32.xlu0 %v1780, 96
      %v1854 = vpop.permute.xlu0 %1853
      %1855 = vrot.lane.b32.xlu0 %v1781, 96
      %v1856 = vpop.permute.xlu0 %1855
      %1857 = vrot.lane.b32.xlu0 %v1782, 96
      %v1858 = vpop.permute.xlu0 %1857
      %1859 = vrot.lane.b32.xlu0 %v1783, 96
      %v1860 = vpop.permute.xlu0 %1859
      %1861 = vrot.lane.b32.xlu0 %v1784, 96
      %v1862 = vpop.permute.xlu0 %1861
      %1863 = vrot.lane.b32.xlu0 %v1785, 96
      %v1864 = vpop.permute.xlu0 %1863
      %1865 = vrot.lane.b32.xlu0 %v1786, 96
      %v1866 = vpop.permute.xlu0 %1865
      %1867 = vrot.lane.b32.xlu0 %v1787, 96
      %v1868 = vpop.permute.xlu0 %1867
      %1869 = vrot.lane.b32.xlu0 %v1788, 96
      %v1870 = vpop.permute.xlu0 %1869
      %1871 = vrot.lane.b32.xlu0 %v1789, 96
      %v1872 = vpop.permute.xlu0 %1871
      %1873 = vrot.lane.b32.xlu0 %v1790, 96
      %v1874 = vpop.permute.xlu0 %1873
      %v1875 = vsel %vm1234, %v1852, %v1854
      %v1876 = vsel %vm1234, %v1856, %v1858
      %v1877 = vsel %vm1234, %v1860, %v1862
      %v1878 = vsel %vm1234, %v1864, %v1866
      %v1879 = vsel %vm1234, %v1868, %v1870
      %v1880 = vsel %vm1234, %v1872, %v1874
      %1899 = vrot.lane.b32.xlu0 %v1780, 80
      %v1900 = vpop.permute.xlu0 %1899
      %1901 = vrot.lane.b32.xlu0 %v1791, 80
      %v1902 = vpop.permute.xlu0 %1901
      %1903 = vrot.lane.b32.xlu0 %v1782, 80
      %v1904 = vpop.permute.xlu0 %1903
      %1905 = vrot.lane.b32.xlu0 %v1792, 80
      %v1906 = vpop.permute.xlu0 %1905
      %1907 = vrot.lane.b32.xlu0 %v1784, 80
      %v1908 = vpop.permute.xlu0 %1907
      %1909 = vrot.lane.b32.xlu0 %v1793, 80
      %v1910 = vpop.permute.xlu0 %1909
      %1911 = vrot.lane.b32.xlu0 %v1786, 80
      %v1912 = vpop.permute.xlu0 %1911
      %1913 = vrot.lane.b32.xlu0 %v1794, 80
      %v1914 = vpop.permute.xlu0 %1913
      %1915 = vrot.lane.b32.xlu0 %v1788, 80
      %v1916 = vpop.permute.xlu0 %1915
      %1917 = vrot.lane.b32.xlu0 %v1795, 80
      %v1918 = vpop.permute.xlu0 %1917
      %1919 = vrot.lane.b32.xlu0 %v1790, 80
      %v1920 = vpop.permute.xlu0 %1919
      %1921 = vrot.lane.b32.xlu0 %v1796, 80
      %v1922 = vpop.permute.xlu0 %1921
      %vm1923 = vcmask 654336
      %v1924 = vsel %vm1923, %v1900, %v1902
      %v1925 = vsel %vm1923, %v1904, %v1906
      %v1926 = vsel %vm1923, %v1908, %v1910
      %v1927 = vsel %vm1923, %v1912, %v1914
      %v1928 = vsel %vm1923, %v1916, %v1918
      %v1929 = vsel %vm1923, %v1920, %v1922
      %1942 = vrot.lane.b32.xlu0 %v1780, 64
      %v1943 = vpop.permute.xlu0 %1942
      %1944 = vrot.lane.b32.xlu0 %v1791, 64
      %v1945 = vpop.permute.xlu0 %1944
      %1946 = vrot.lane.b32.xlu0 %v1782, 64
      %v1947 = vpop.permute.xlu0 %1946
      %1948 = vrot.lane.b32.xlu0 %v1792, 64
      %v1949 = vpop.permute.xlu0 %1948
      %1950 = vrot.lane.b32.xlu0 %v1784, 64
      %v1951 = vpop.permute.xlu0 %1950
      %1952 = vrot.lane.b32.xlu0 %v1793, 64
      %v1953 = vpop.permute.xlu0 %1952
      %1954 = vrot.lane.b32.xlu0 %v1786, 64
      %v1955 = vpop.permute.xlu0 %1954
      %1956 = vrot.lane.b32.xlu0 %v1794, 64
      %v1957 = vpop.permute.xlu0 %1956
      %1958 = vrot.lane.b32.xlu0 %v1788, 64
      %v1959 = vpop.permute.xlu0 %1958
      %1960 = vrot.lane.b32.xlu0 %v1795, 64
      %v1961 = vpop.permute.xlu0 %1960
      %1962 = vrot.lane.b32.xlu0 %v1790, 64
      %v1963 = vpop.permute.xlu0 %1962
      %1964 = vrot.lane.b32.xlu0 %v1796, 64
      %v1965 = vpop.permute.xlu0 %1964
      %vm1966 = vcmask 523264
      %v1967 = vsel %vm1966, %v1943, %v1945
      %v1968 = vsel %vm1966, %v1947, %v1949
      %v1969 = vsel %vm1966, %v1951, %v1953
      %v1970 = vsel %vm1966, %v1955, %v1957
      %v1971 = vsel %vm1966, %v1959, %v1961
      %v1972 = vsel %vm1966, %v1963, %v1965
      %v1985 = vld [vmem:[%s3] sm:$0xff]
      %v1986 = vld [vmem:[%s3 + $0x8] sm:$0xff]
      %v1987 = vld [vmem:[%s3 + $0x10] sm:$0xff]
      %v1988 = vld [vmem:[%s3 + $0x18] sm:$0xff]
      %v1989 = vld [vmem:[%s3 + $0x20] sm:$0xff]
      %v1990 = vld [vmem:[%s3 + $0x28] sm:$0xff]
      %v1991 = vld [vmem:[%s3 + $0x30] sm:$0xff]
      %v1992 = vld [vmem:[%s3 + $0x38] sm:$0xff]
      %v1993 = vpack.c.bf16 %v1781, %v1779
      %v1994 = vpack.c.bf16 %v1782, %v1780
      %v1995 = vpack.c.bf16 %v1785, %v1783
      %v1996 = vpack.c.bf16 %v1786, %v1784
      %v1997 = vpack.c.bf16 %v1789, %v1787
      %v1998 = vpack.c.bf16 %v1790, %v1788
      %v1999 = vpack.c.bf16 %v1834, %v1833
      %v2000 = vpack.c.bf16 %v1816, %v1812
      %v2001 = vpack.c.bf16 %v1836, %v1835
      %v2002 = vpack.c.bf16 %v1824, %v1820
      %v2003 = vpack.c.bf16 %v1838, %v1837
      %v2004 = vpack.c.bf16 %v1832, %v1828
      %v2005 = vpack.c.bf16 %v1876, %v1875
      %v2006 = vpack.c.bf16 %v1858, %v1854
      %v2007 = vpack.c.bf16 %v1878, %v1877
      %v2008 = vpack.c.bf16 %v1866, %v1862
      %v2009 = vpack.c.bf16 %v1880, %v1879
      %v2010 = vpack.c.bf16 %v1874, %v1870
      %v2011 = vpack.c.bf16 %v1904, %v1900
      %v2012 = vpack.c.bf16 %v1925, %v1924
      %v2013 = vpack.c.bf16 %v1912, %v1908
      %v2014 = vpack.c.bf16 %v1927, %v1926
      %v2015 = vpack.c.bf16 %v1920, %v1916
      %v2016 = vpack.c.bf16 %v1929, %v1928
      %v2017 = vpack.c.bf16 %v1947, %v1943
      %v2018 = vpack.c.bf16 %v1968, %v1967
      %v2019 = vpack.c.bf16 %v1955, %v1951
      %v2020 = vpack.c.bf16 %v1970, %v1969
      %v2021 = vpack.c.bf16 %v1963, %v1959
      %v2022 = vpack.c.bf16 %v1972, %v1971
      %v2031 = vunpack.c.l.b16 %v1985
      %v2032 = vunpack.c.h.b16 %v1985
      %v2033 = vunpack.c.l.b16 %v1986
      %v2034 = vunpack.c.h.b16 %v1986
      %v2035 = vunpack.c.l.b16 %v1987
      %v2036 = vunpack.c.h.b16 %v1987
      %v2037 = vunpack.c.l.b16 %v1988
      %v2038 = vunpack.c.h.b16 %v1988
      %v2039 = vunpack.c.l.b16 %v1989
      %v2040 = vunpack.c.h.b16 %v1989
      %v2041 = vunpack.c.l.b16 %v1990
      %v2042 = vunpack.c.h.b16 %v1990
      %v2043 = vunpack.c.l.b16 %v1991
      %v2044 = vunpack.c.h.b16 %v1991
      %v2045 = vunpack.c.l.b16 %v1992
      %v2046 = vunpack.c.h.b16 %v1992
      %v2047 = vpack.c.b16 %v2033, %v2031
      %v2048 = vpack.c.b16 %v2034, %v2032
      %v2049 = vpack.c.b16 %v2037, %v2035
      %v2050 = vpack.c.b16 %v2038, %v2036
      %v2051 = vpack.c.b16 %v2041, %v2039
      %v2052 = vpack.c.b16 %v2042, %v2040
      %v2053 = vpack.c.b16 %v2045, %v2043
      %v2054 = vpack.c.b16 %v2046, %v2044
      %2089 = vrot.lane.b32.xlu0 %v1993, 34
      %v2090 = vpop.permute.xlu0 %2089
      %2091 = vrot.lane.b32.xlu0 %v1994, 34
      %v2092 = vpop.permute.xlu0 %2091
      %2093 = vrot.lane.b32.xlu0 %v1995, 34
      %v2094 = vpop.permute.xlu0 %2093
      %2095 = vrot.lane.b32.xlu0 %v1996, 34
      %v2096 = vpop.permute.xlu0 %2095
      %2097 = vrot.lane.b32.xlu0 %v1997, 34
      %v2098 = vpop.permute.xlu0 %2097
      %2099 = vrot.lane.b32.xlu0 %v1998, 34
      %v2100 = vpop.permute.xlu0 %2099
      %2101 = vrot.lane.b32.xlu0 %v1999, 34
      %v2102 = vpop.permute.xlu0 %2101
      %2103 = vrot.lane.b32.xlu0 %v2000, 34
      %v2104 = vpop.permute.xlu0 %2103
      %2105 = vrot.lane.b32.xlu0 %v2001, 34
      %v2106 = vpop.permute.xlu0 %2105
      %2107 = vrot.lane.b32.xlu0 %v2002, 34
      %v2108 = vpop.permute.xlu0 %2107
      %2109 = vrot.lane.b32.xlu0 %v2003, 34
      %v2110 = vpop.permute.xlu0 %2109
      %2111 = vrot.lane.b32.xlu0 %v2004, 34
      %v2112 = vpop.permute.xlu0 %2111
      %2113 = vrot.lane.b32.xlu0 %v2005, 34
      %v2114 = vpop.permute.xlu0 %2113
      %2115 = vrot.lane.b32.xlu0 %v2006, 34
      %v2116 = vpop.permute.xlu0 %2115
      %2117 = vrot.lane.b32.xlu0 %v2007, 34
      %v2118 = vpop.permute.xlu0 %2117
      %2119 = vrot.lane.b32.xlu0 %v2008, 34
      %v2120 = vpop.permute.xlu0 %2119
      %2121 = vrot.lane.b32.xlu0 %v2009, 34
      %v2122 = vpop.permute.xlu0 %2121
      %2123 = vrot.lane.b32.xlu0 %v2010, 34
      %v2124 = vpop.permute.xlu0 %2123
      %2125 = vrot.lane.b32.xlu0 %v2011, 34
      %v2126 = vpop.permute.xlu0 %2125
      %2127 = vrot.lane.b32.xlu0 %v2012, 34
      %v2128 = vpop.permute.xlu0 %2127
      %2129 = vrot.lane.b32.xlu0 %v2013, 34
      %v2130 = vpop.permute.xlu0 %2129
      %2131 = vrot.lane.b32.xlu0 %v2014, 34
      %v2132 = vpop.permute.xlu0 %2131
      %2133 = vrot.lane.b32.xlu0 %v2015, 34
      %v2134 = vpop.permute.xlu0 %2133
      %2135 = vrot.lane.b32.xlu0 %v2016, 34
      %v2136 = vpop.permute.xlu0 %2135
      %2137 = vrot.lane.b32.xlu0 %v2017, 34
      %v2138 = vpop.permute.xlu0 %2137
      %2139 = vrot.lane.b32.xlu0 %v2018, 34
      %v2140 = vpop.permute.xlu0 %2139
      %2141 = vrot.lane.b32.xlu0 %v2019, 34
      %v2142 = vpop.permute.xlu0 %2141
      %2143 = vrot.lane.b32.xlu0 %v2020, 34
      %v2144 = vpop.permute.xlu0 %2143
      %2145 = vrot.lane.b32.xlu0 %v2021, 34
      %v2146 = vpop.permute.xlu0 %2145
      %2147 = vrot.lane.b32.xlu0 %v2022, 34
      %v2148 = vpop.permute.xlu0 %2147
      %vm2149 = vcmask 277504
      %v2150 = vsel %vm2149, %v2090, %v2092
      %v2151 = vsel %vm2149, %v2094, %v2096
      %v2152 = vsel %vm2149, %v2098, %v2100
      %v2153 = vsel %vm2149, %v2102, %v2104
      %v2154 = vsel %vm2149, %v2106, %v2108
      %v2155 = vsel %vm2149, %v2110, %v2112
      %v2156 = vsel %vm2149, %v2114, %v2116
      %v2157 = vsel %vm2149, %v2118, %v2120
      %v2158 = vsel %vm2149, %v2122, %v2124
      %v2159 = vsel %vm2149, %v2126, %v2128
      %v2160 = vsel %vm2149, %v2130, %v2132
      %v2161 = vsel %vm2149, %v2134, %v2136
      %v2162 = vsel %vm2149, %v2138, %v2140
      %v2163 = vsel %vm2149, %v2142, %v2144
      %v2164 = vsel %vm2149, %v2146, %v2148
      %v2181 = vsel %vm1189, %v2048, 0
      %v2184 = vsel %vm1189, %v2050, 0
      %v2187 = vsel %vm1189, %v2052, 0
      %v2190 = vsel %vm1189, %v2054, 0
      %2192 = vmatprep.subr.bf16.mxu0 0
      %2193 = vmatpush1.bf16.msra.mxu0 %v2150
      %2194 = vmatprep.subr.bf16.mxu0 0
      %2195 = vmatpush1.bf16.msra.mxu0 %v2151
      %2196 = vmatprep.subr.bf16.mxu0 0
      %2197 = vmatpush1.bf16.msra.mxu0 %v2152
      %2198 = vmatprep.subr.bf16.mxu0 0
      %2199 = vmatpush1.bf16.msra.mxu0 %v2153
      %2200 = vmatprep.subr.bf16.mxu0 0
      %2201 = vmatpush1.bf16.msra.mxu0 %v2154
      %2202 = vmatprep.subr.bf16.mxu0 0
      %2203 = vmatpush1.bf16.msra.mxu0 %v2155
      %2204 = vmatprep.subr.bf16.mxu0 0
      %2205 = vmatpush1.bf16.msra.mxu0 %v2156
      %2206 = vmatprep.subr.bf16.mxu0 0
      %2207 = vmatpush1.bf16.msra.mxu0 %v2157
      %2208 = vmatprep.subr.bf16.mxu0 0
      %2209 = vmatpush1.bf16.msra.mxu0 %v2158
      %2210 = vmatprep.subr.bf16.mxu0 0
      %2211 = vmatpush1.bf16.msra.mxu0 %v2159
      %2212 = vmatprep.subr.bf16.mxu0 0
      %2213 = vmatpush1.bf16.msra.mxu0 %v2160
      %2214 = vmatprep.subr.bf16.mxu0 0
      %2215 = vmatpush1.bf16.msra.mxu0 %v2161
      %2216 = vmatprep.subr.bf16.mxu0 0
      %2217 = vmatpush1.bf16.msra.mxu0 %v2162
      %2218 = vmatprep.subr.bf16.mxu0 0
      %2219 = vmatpush1.bf16.msra.mxu0 %v2163
      %2220 = vmatprep.subr.bf16.mxu0 0
      %2221 = vmatpush1.bf16.msra.mxu0 %v2164
      %2222 = vmatprep.subr.bf16.mxu0 0
      %2223 = vmatpush1.bf16.msra.mxu0 0
      %2224 = vmatprep.mubr.bf16.mxu0 %v2181
      %2225 = vmatmul.mubr.bf16.gmra.mrb[0].mxu0 %v2047
      %v2226 = vpop.f32.mrb[0].mxu0
      %v2227 = vadd.f32 0.0, %v2226
      %v2228 = vpop.f32.mrb[0].mxu0
      %v2229 = vpop.f32.mrb[0].mxu0
      %v2230 = vadd.f32 0.0, %v2229
      %v2231 = vpop.f32.mrb[0].mxu0
      %2232 = vmatprep.mubr.bf16.mxu0 %v2184
      %2233 = vmatmul.mubr.bf16.gmra.mrb[0].mxu0 %v2049
      %v2234 = vpop.f32.mrb[0].mxu0
      %v2235 = vadd.f32 0.0, %v2234
      %v2236 = vpop.f32.mrb[0].mxu0
      %v2237 = vpop.f32.mrb[0].mxu0
      %v2238 = vadd.f32 0.0, %v2237
      %v2239 = vpop.f32.mrb[0].mxu0
      %2240 = vmatprep.mubr.bf16.mxu0 %v2187
      %2241 = vmatmul.mubr.bf16.gmra.mrb[0].mxu0 %v2051
      %v2242 = vpop.f32.mrb[0].mxu0
      %v2243 = vadd.f32 0.0, %v2242
      %v2244 = vpop.f32.mrb[0].mxu0
      %v2245 = vpop.f32.mrb[0].mxu0
      %v2246 = vadd.f32 0.0, %v2245
      %v2247 = vpop.f32.mrb[0].mxu0
      %2248 = vmatprep.mubr.bf16.mxu0 %v2190
      %2249 = vmatmul.mubr.bf16.gmra.mrb[0].mxu0 %v2053
      %v2250 = vpop.f32.mrb[0].mxu0
      %v2251 = vadd.f32 0.0, %v2250
      %v2252 = vpop.f32.mrb[0].mxu0
      %v2253 = vpop.f32.mrb[0].mxu0
      %v2254 = vadd.f32 0.0, %v2253
      %v2255 = vpop.f32.mrb[0].mxu0
      %2256 = vdwg.mxu0
      %v2257 = vsel %vm1775, 1, 0
      %vm2258 = vcmp.eq.s32.totalorder %v2257, 1
      %v2259 = vsel %vm2258, %v2227, 0.0
      %v2260 = vsel %vm2258, %v2230, 0.0
      %v2261 = vsel %vm2258, %v2235, 0.0
      %v2262 = vsel %vm2258, %v2238, 0.0
      %v2263 = vsel %vm2258, %v2243, 0.0
      %v2264 = vsel %vm2258, %v2246, 0.0
      %v2265 = vsel %vm2258, %v2251, 0.0
      %v2266 = vsel %vm2258, %v2254, 0.0
      %v2267 = vadd.f32 %v2259, 0.0
      %v2268 = vadd.f32 %v2260, 0.0
      %v2269 = vadd.f32 %v2261, 0.0
      %v2270 = vadd.f32 %v2262, 0.0
      %v2271 = vadd.f32 %v2263, 0.0
      %v2272 = vadd.f32 %v2264, 0.0
      %v2273 = vadd.f32 %v2265, 0.0
      %v2274 = vadd.f32 %v2266, 0.0
      %s2275 = scalar_lea.vmem %s3, 64
      %v2276 = vld [vmem:[%s2275] sm:$0xff]
      %v2277 = vld [vmem:[%s2275 + $0x8] sm:$0xff]
      %v2278 = vld [vmem:[%s2275 + $0x10] sm:$0xff]
      %v2279 = vld [vmem:[%s2275 + $0x18] sm:$0xff]
      %v2280 = vld [vmem:[%s2275 + $0x20] sm:$0xff]
      %v2281 = vld [vmem:[%s2275 + $0x28] sm:$0xff]
      %v2282 = vld [vmem:[%s2275 + $0x30] sm:$0xff]
      %v2283 = vld [vmem:[%s2275 + $0x38] sm:$0xff]
      %v2292 = vunpack.c.l.b16 %v2276
      %v2293 = vunpack.c.h.b16 %v2276
      %v2294 = vunpack.c.l.b16 %v2277
      %v2295 = vunpack.c.h.b16 %v2277
      %v2296 = vunpack.c.l.b16 %v2278
      %v2297 = vunpack.c.h.b16 %v2278
      %v2298 = vunpack.c.l.b16 %v2279
      %v2299 = vunpack.c.h.b16 %v2279
      %v2300 = vunpack.c.l.b16 %v2280
      %v2301 = vunpack.c.h.b16 %v2280
      %v2302 = vunpack.c.l.b16 %v2281
      %v2303 = vunpack.c.h.b16 %v2281
      %v2304 = vunpack.c.l.b16 %v2282
      %v2305 = vunpack.c.h.b16 %v2282
      %v2306 = vunpack.c.l.b16 %v2283
      %v2307 = vunpack.c.h.b16 %v2283
      %v2308 = vpack.c.b16 %v2294, %v2292
      %v2309 = vpack.c.b16 %v2295, %v2293
      %v2310 = vpack.c.b16 %v2298, %v2296
      %v2311 = vpack.c.b16 %v2299, %v2297
      %v2312 = vpack.c.b16 %v2302, %v2300
      %v2313 = vpack.c.b16 %v2303, %v2301
      %v2314 = vpack.c.b16 %v2306, %v2304
      %v2315 = vpack.c.b16 %v2307, %v2305
      %2320 = vrot.lane.b32.xlu0 %v1993, 33
      %v2321 = vpop.permute.xlu0 %2320
      %2322 = vrot.lane.b32.xlu0 %v1994, 33
      %v2323 = vpop.permute.xlu0 %2322
      %2324 = vrot.lane.b32.xlu0 %v1995, 33
      %v2325 = vpop.permute.xlu0 %2324
      %2326 = vrot.lane.b32.xlu0 %v1996, 33
      %v2327 = vpop.permute.xlu0 %2326
      %2328 = vrot.lane.b32.xlu0 %v1997, 33
      %v2329 = vpop.permute.xlu0 %2328
      %2330 = vrot.lane.b32.xlu0 %v1998, 33
      %v2331 = vpop.permute.xlu0 %2330
      %2332 = vrot.lane.b32.xlu0 %v1999, 33
      %v2333 = vpop.permute.xlu0 %2332
      %2334 = vrot.lane.b32.xlu0 %v2000, 33
      %v2335 = vpop.permute.xlu0 %2334
      %2336 = vrot.lane.b32.xlu0 %v2001, 33
      %v2337 = vpop.permute.xlu0 %2336
      %2338 = vrot.lane.b32.xlu0 %v2002, 33
      %v2339 = vpop.permute.xlu0 %2338
      %2340 = vrot.lane.b32.xlu0 %v2003, 33
      %v2341 = vpop.permute.xlu0 %2340
      %2342 = vrot.lane.b32.xlu0 %v2004, 33
      %v2343 = vpop.permute.xlu0 %2342
      %2344 = vrot.lane.b32.xlu0 %v2005, 33
      %v2345 = vpop.permute.xlu0 %2344
      %2346 = vrot.lane.b32.xlu0 %v2006, 33
      %v2347 = vpop.permute.xlu0 %2346
      %2348 = vrot.lane.b32.xlu0 %v2007, 33
      %v2349 = vpop.permute.xlu0 %2348
      %2350 = vrot.lane.b32.xlu0 %v2008, 33
      %v2351 = vpop.permute.xlu0 %2350
      %2352 = vrot.lane.b32.xlu0 %v2009, 33
      %v2353 = vpop.permute.xlu0 %2352
      %2354 = vrot.lane.b32.xlu0 %v2010, 33
      %v2355 = vpop.permute.xlu0 %2354
      %2356 = vrot.lane.b32.xlu0 %v2011, 33
      %v2357 = vpop.permute.xlu0 %2356
      %2358 = vrot.lane.b32.xlu0 %v2012, 33
      %v2359 = vpop.permute.xlu0 %2358
      %2360 = vrot.lane.b32.xlu0 %v2013, 33
      %v2361 = vpop.permute.xlu0 %2360
      %2362 = vrot.lane.b32.xlu0 %v2014, 33
      %v2363 = vpop.permute.xlu0 %2362
      %2364 = vrot.lane.b32.xlu0 %v2015, 33
      %v2365 = vpop.permute.xlu0 %2364
      %2366 = vrot.lane.b32.xlu0 %v2016, 33
      %v2367 = vpop.permute.xlu0 %2366
      %2368 = vrot.lane.b32.xlu0 %v2017, 33
      %v2369 = vpop.permute.xlu0 %2368
      %2370 = vrot.lane.b32.xlu0 %v2018, 33
      %v2371 = vpop.permute.xlu0 %2370
      %2372 = vrot.lane.b32.xlu0 %v2019, 33
      %v2373 = vpop.permute.xlu0 %2372
      %2374 = vrot.lane.b32.xlu0 %v2020, 33
      %v2375 = vpop.permute.xlu0 %2374
      %2376 = vrot.lane.b32.xlu0 %v2021, 33
      %v2377 = vpop.permute.xlu0 %2376
      %2378 = vrot.lane.b32.xlu0 %v2022, 33
      %v2379 = vpop.permute.xlu0 %2378
      %vm2380 = vcmask 269312
      %v2381 = vsel %vm2380, %v2321, %v2323
      %v2382 = vsel %vm2380, %v2325, %v2327
      %v2383 = vsel %vm2380, %v2329, %v2331
      %v2384 = vsel %vm2380, %v2333, %v2335
      %v2385 = vsel %vm2380, %v2337, %v2339
      %v2386 = vsel %vm2380, %v2341, %v2343
      %v2387 = vsel %vm2380, %v2345, %v2347
      %v2388 = vsel %vm2380, %v2349, %v2351
      %v2389 = vsel %vm2380, %v2353, %v2355
      %v2390 = vsel %vm2380, %v2357, %v2359
      %v2391 = vsel %vm2380, %v2361, %v2363
      %v2392 = vsel %vm2380, %v2365, %v2367
      %v2393 = vsel %vm2380, %v2369, %v2371
      %v2394 = vsel %vm2380, %v2373, %v2375
      %v2395 = vsel %vm2380, %v2377, %v2379
      %v2412 = vsel %vm1189, %v2309, 0
      %v2415 = vsel %vm1189, %v2311, 0
      %v2418 = vsel %vm1189, %v2313, 0
      %v2421 = vsel %vm1189, %v2315, 0
      %2423 = vmatprep.subr.bf16.mxu0 0
      %2424 = vmatpush1.bf16.msra.mxu0 %v2381
      %2425 = vmatprep.subr.bf16.mxu0 0
      %2426 = vmatpush1.bf16.msra.mxu0 %v2382
      %2427 = vmatprep.subr.bf16.mxu0 0
      %2428 = vmatpush1.bf16.msra.mxu0 %v2383
      %2429 = vmatprep.subr.bf16.mxu0 0
      %2430 = vmatpush1.bf16.msra.mxu0 %v2384
      %2431 = vmatprep.subr.bf16.mxu0 0
      %2432 = vmatpush1.bf16.msra.mxu0 %v2385
      %2433 = vmatprep.subr.bf16.mxu0 0
      %2434 = vmatpush1.bf16.msra.mxu0 %v2386
      %2435 = vmatprep.subr.bf16.mxu0 0
      %2436 = vmatpush1.bf16.msra.mxu0 %v2387
      %2437 = vmatprep.subr.bf16.mxu0 0
      %2438 = vmatpush1.bf16.msra.mxu0 %v2388
      %2439 = vmatprep.subr.bf16.mxu0 0
      %2440 = vmatpush1.bf16.msra.mxu0 %v2389
      %2441 = vmatprep.subr.bf16.mxu0 0
      %2442 = vmatpush1.bf16.msra.mxu0 %v2390
      %2443 = vmatprep.subr.bf16.mxu0 0
      %2444 = vmatpush1.bf16.msra.mxu0 %v2391
      %2445 = vmatprep.subr.bf16.mxu0 0
      %2446 = vmatpush1.bf16.msra.mxu0 %v2392
      %2447 = vmatprep.subr.bf16.mxu0 0
      %2448 = vmatpush1.bf16.msra.mxu0 %v2393
      %2449 = vmatprep.subr.bf16.mxu0 0
      %2450 = vmatpush1.bf16.msra.mxu0 %v2394
      %2451 = vmatprep.subr.bf16.mxu0 0
      %2452 = vmatpush1.bf16.msra.mxu0 %v2395
      %2453 = vmatprep.subr.bf16.mxu0 0
      %2454 = vmatpush1.bf16.msra.mxu0 0
      %2455 = vmatprep.mubr.bf16.mxu0 %v2412
      %2456 = vmatmul.mubr.bf16.gmra.mrb[0].mxu0 %v2308
      %v2457 = vpop.f32.mrb[0].mxu0
      %v2458 = vadd.f32 0.0, %v2457
      %v2459 = vpop.f32.mrb[0].mxu0
      %v2460 = vpop.f32.mrb[0].mxu0
      %v2461 = vadd.f32 0.0, %v2460
      %v2462 = vpop.f32.mrb[0].mxu0
      %2463 = vmatprep.mubr.bf16.mxu0 %v2415
      %2464 = vmatmul.mubr.bf16.gmra.mrb[0].mxu0 %v2310
      %v2465 = vpop.f32.mrb[0].mxu0
      %v2466 = vadd.f32 0.0, %v2465
      %v2467 = vpop.f32.mrb[0].mxu0
      %v2468 = vpop.f32.mrb[0].mxu0
      %v2469 = vadd.f32 0.0, %v2468
      %v2470 = vpop.f32.mrb[0].mxu0
      %2471 = vmatprep.mubr.bf16.mxu0 %v2418
      %2472 = vmatmul.mubr.bf16.gmra.mrb[0].mxu0 %v2312
      %v2473 = vpop.f32.mrb[0].mxu0
      %v2474 = vadd.f32 0.0, %v2473
      %v2475 = vpop.f32.mrb[0].mxu0
      %v2476 = vpop.f32.mrb[0].mxu0
      %v2477 = vadd.f32 0.0, %v2476
      %v2478 = vpop.f32.mrb[0].mxu0
      %2479 = vmatprep.mubr.bf16.mxu0 %v2421
      %2480 = vmatmul.mubr.bf16.gmra.mrb[0].mxu0 %v2314
      %v2481 = vpop.f32.mrb[0].mxu0
      %v2482 = vadd.f32 0.0, %v2481
      %v2483 = vpop.f32.mrb[0].mxu0
      %v2484 = vpop.f32.mrb[0].mxu0
      %v2485 = vadd.f32 0.0, %v2484
      %v2486 = vpop.f32.mrb[0].mxu0
      %2487 = vdwg.mxu0
      %v2488 = vsel %vm1256, %v2458, 0.0
      %v2489 = vsel %vm1256, %v2461, 0.0
      %v2490 = vsel %vm1256, %v2466, 0.0
      %v2491 = vsel %vm1256, %v2469, 0.0
      %v2492 = vsel %vm1256, %v2474, 0.0
      %v2493 = vsel %vm1256, %v2477, 0.0
      %v2494 = vsel %vm1256, %v2482, 0.0
      %v2495 = vsel %vm1256, %v2485, 0.0
      %v2496 = vadd.f32 %v2267, %v2488
      %v2497 = vadd.f32 %v2268, %v2489
      %v2498 = vadd.f32 %v2269, %v2490
      %v2499 = vadd.f32 %v2270, %v2491
      %v2500 = vadd.f32 %v2271, %v2492
      %v2501 = vadd.f32 %v2272, %v2493
      %v2502 = vadd.f32 %v2273, %v2494
      %v2503 = vadd.f32 %v2274, %v2495
      %s2504 = scalar_lea.vmem %s3, 128
      %v2505 = vld [vmem:[%s2504] sm:$0xff]
      %v2506 = vld [vmem:[%s2504 + $0x8] sm:$0xff]
      %v2507 = vld [vmem:[%s2504 + $0x10] sm:$0xff]
      %v2508 = vld [vmem:[%s2504 + $0x18] sm:$0xff]
      %v2509 = vld [vmem:[%s2504 + $0x20] sm:$0xff]
      %v2510 = vld [vmem:[%s2504 + $0x28] sm:$0xff]
      %v2511 = vld [vmem:[%s2504 + $0x30] sm:$0xff]
      %v2512 = vld [vmem:[%s2504 + $0x38] sm:$0xff]
      %v2521 = vunpack.c.l.b16 %v2505
      %v2522 = vunpack.c.h.b16 %v2505
      %v2523 = vunpack.c.l.b16 %v2506
      %v2524 = vunpack.c.h.b16 %v2506
      %v2525 = vunpack.c.l.b16 %v2507
      %v2526 = vunpack.c.h.b16 %v2507
      %v2527 = vunpack.c.l.b16 %v2508
      %v2528 = vunpack.c.h.b16 %v2508
      %v2529 = vunpack.c.l.b16 %v2509
      %v2530 = vunpack.c.h.b16 %v2509
      %v2531 = vunpack.c.l.b16 %v2510
      %v2532 = vunpack.c.h.b16 %v2510
      %v2533 = vunpack.c.l.b16 %v2511
      %v2534 = vunpack.c.h.b16 %v2511
      %v2535 = vunpack.c.l.b16 %v2512
      %v2536 = vunpack.c.h.b16 %v2512
      %v2537 = vpack.c.b16 %v2523, %v2521
      %v2538 = vpack.c.b16 %v2524, %v2522
      %v2539 = vpack.c.b16 %v2527, %v2525
      %v2540 = vpack.c.b16 %v2528, %v2526
      %v2541 = vpack.c.b16 %v2531, %v2529
      %v2542 = vpack.c.b16 %v2532, %v2530
      %v2543 = vpack.c.b16 %v2535, %v2533
      %v2544 = vpack.c.b16 %v2536, %v2534
      %2549 = vrot.lane.b32.xlu0 %v1993, 32
      %v2550 = vpop.permute.xlu0 %2549
      %2551 = vrot.lane.b32.xlu0 %v1994, 32
      %v2552 = vpop.permute.xlu0 %2551
      %2553 = vrot.lane.b32.xlu0 %v1995, 32
      %v2554 = vpop.permute.xlu0 %2553
      %2555 = vrot.lane.b32.xlu0 %v1996, 32
      %v2556 = vpop.permute.xlu0 %2555
      %2557 = vrot.lane.b32.xlu0 %v1997, 32
      %v2558 = vpop.permute.xlu0 %2557
      %2559 = vrot.lane.b32.xlu0 %v1998, 32
      %v2560 = vpop.permute.xlu0 %2559
      %2561 = vrot.lane.b32.xlu0 %v1999, 32
      %v2562 = vpop.permute.xlu0 %2561
      %2563 = vrot.lane.b32.xlu0 %v2000, 32
      %v2564 = vpop.permute.xlu0 %2563
      %2565 = vrot.lane.b32.xlu0 %v2001, 32
      %v2566 = vpop.permute.xlu0 %2565
      %2567 = vrot.lane.b32.xlu0 %v2002, 32
      %v2568 = vpop.permute.xlu0 %2567
      %2569 = vrot.lane.b32.xlu0 %v2003, 32
      %v2570 = vpop.permute.xlu0 %2569
      %2571 = vrot.lane.b32.xlu0 %v2004, 32
      %v2572 = vpop.permute.xlu0 %2571
      %2573 = vrot.lane.b32.xlu0 %v2006, 32
      %v2574 = vpop.permute.xlu0 %2573
      %2575 = vrot.lane.b32.xlu0 %v2008, 32
      %v2576 = vpop.permute.xlu0 %2575
      %2577 = vrot.lane.b32.xlu0 %v2010, 32
      %v2578 = vpop.permute.xlu0 %2577
      %2579 = vrot.lane.b32.xlu0 %v2011, 32
      %v2580 = vpop.permute.xlu0 %2579
      %2581 = vrot.lane.b32.xlu0 %v2012, 32
      %v2582 = vpop.permute.xlu0 %2581
      %2583 = vrot.lane.b32.xlu0 %v2013, 32
      %v2584 = vpop.permute.xlu0 %2583
      %2585 = vrot.lane.b32.xlu0 %v2014, 32
      %v2586 = vpop.permute.xlu0 %2585
      %2587 = vrot.lane.b32.xlu0 %v2015, 32
      %v2588 = vpop.permute.xlu0 %2587
      %2589 = vrot.lane.b32.xlu0 %v2016, 32
      %v2590 = vpop.permute.xlu0 %2589
      %2591 = vrot.lane.b32.xlu0 %v2017, 32
      %v2592 = vpop.permute.xlu0 %2591
      %2593 = vrot.lane.b32.xlu0 %v2018, 32
      %v2594 = vpop.permute.xlu0 %2593
      %2595 = vrot.lane.b32.xlu0 %v2019, 32
      %v2596 = vpop.permute.xlu0 %2595
      %2597 = vrot.lane.b32.xlu0 %v2020, 32
      %v2598 = vpop.permute.xlu0 %2597
      %2599 = vrot.lane.b32.xlu0 %v2021, 32
      %v2600 = vpop.permute.xlu0 %2599
      %2601 = vrot.lane.b32.xlu0 %v2022, 32
      %v2602 = vpop.permute.xlu0 %2601
      %vm2603 = vcmask 261120
      %v2604 = vsel %vm2603, %v2550, %v2552
      %v2605 = vsel %vm2603, %v2554, %v2556
      %v2606 = vsel %vm2603, %v2558, %v2560
      %v2607 = vsel %vm2603, %v2562, %v2564
      %v2608 = vsel %vm2603, %v2566, %v2568
      %v2609 = vsel %vm2603, %v2570, %v2572
      %v2610 = vsel %vm2603, %v2580, %v2582
      %v2611 = vsel %vm2603, %v2584, %v2586
      %v2612 = vsel %vm2603, %v2588, %v2590
      %v2613 = vsel %vm2603, %v2592, %v2594
      %v2614 = vsel %vm2603, %v2596, %v2598
      %v2615 = vsel %vm2603, %v2600, %v2602
      %v2632 = vsel %vm1189, %v2538, 0
      %v2635 = vsel %vm1189, %v2540, 0
      %v2638 = vsel %vm1189, %v2542, 0
      %v2641 = vsel %vm1189, %v2544, 0
      %2643 = vmatprep.subr.bf16.mxu0 0
      %2644 = vmatpush1.bf16.msra.mxu0 %v2604
      %2645 = vmatprep.subr.bf16.mxu0 0
      %2646 = vmatpush1.bf16.msra.mxu0 %v2605
      %2647 = vmatprep.subr.bf16.mxu0 0
      %2648 = vmatpush1.bf16.msra.mxu0 %v2606
      %2649 = vmatprep.subr.bf16.mxu0 0
      %2650 = vmatpush1.bf16.msra.mxu0 %v2607
      %2651 = vmatprep.subr.bf16.mxu0 0
      %2652 = vmatpush1.bf16.msra.mxu0 %v2608
      %2653 = vmatprep.subr.bf16.mxu0 0
      %2654 = vmatpush1.bf16.msra.mxu0 %v2609
      %2655 = vmatprep.subr.bf16.mxu0 0
      %2656 = vmatpush1.bf16.msra.mxu0 %v2574
      %2657 = vmatprep.subr.bf16.mxu0 0
      %2658 = vmatpush1.bf16.msra.mxu0 %v2576
      %2659 = vmatprep.subr.bf16.mxu0 0
      %2660 = vmatpush1.bf16.msra.mxu0 %v2578
      %2661 = vmatprep.subr.bf16.mxu0 0
      %2662 = vmatpush1.bf16.msra.mxu0 %v2610
      %2663 = vmatprep.subr.bf16.mxu0 0
      %2664 = vmatpush1.bf16.msra.mxu0 %v2611
      %2665 = vmatprep.subr.bf16.mxu0 0
      %2666 = vmatpush1.bf16.msra.mxu0 %v2612
      %2667 = vmatprep.subr.bf16.mxu0 0
      %2668 = vmatpush1.bf16.msra.mxu0 %v2613
      %2669 = vmatprep.subr.bf16.mxu0 0
      %2670 = vmatpush1.bf16.msra.mxu0 %v2614
      %2671 = vmatprep.subr.bf16.mxu0 0
      %2672 = vmatpush1.bf16.msra.mxu0 %v2615
      %2673 = vmatprep.subr.bf16.mxu0 0
      %2674 = vmatpush1.bf16.msra.mxu0 0
      %2675 = vmatprep.mubr.bf16.mxu0 %v2632
      %2676 = vmatmul.mubr.bf16.gmra.mrb[0].mxu0 %v2537
      %v2677 = vpop.f32.mrb[0].mxu0
      %v2678 = vadd.f32 0.0, %v2677
      %v2679 = vpop.f32.mrb[0].mxu0
      %v2680 = vpop.f32.mrb[0].mxu0
      %v2681 = vadd.f32 0.0, %v2680
      %v2682 = vpop.f32.mrb[0].mxu0
      %2683 = vmatprep.mubr.bf16.mxu0 %v2635
      %2684 = vmatmul.mubr.bf16.gmra.mrb[0].mxu0 %v2539
      %v2685 = vpop.f32.mrb[0].mxu0
      %v2686 = vadd.f32 0.0, %v2685
      %v2687 = vpop.f32.mrb[0].mxu0
      %v2688 = vpop.f32.mrb[0].mxu0
      %v2689 = vadd.f32 0.0, %v2688
      %v2690 = vpop.f32.mrb[0].mxu0
      %2691 = vmatprep.mubr.bf16.mxu0 %v2638
      %2692 = vmatmul.mubr.bf16.gmra.mrb[0].mxu0 %v2541
      %v2693 = vpop.f32.mrb[0].mxu0
      %v2694 = vadd.f32 0.0, %v2693
      %v2695 = vpop.f32.mrb[0].mxu0
      %v2696 = vpop.f32.mrb[0].mxu0
      %v2697 = vadd.f32 0.0, %v2696
      %v2698 = vpop.f32.mrb[0].mxu0
      %2699 = vmatprep.mubr.bf16.mxu0 %v2641
      %2700 = vmatmul.mubr.bf16.gmra.mrb[0].mxu0 %v2543
      %v2701 = vpop.f32.mrb[0].mxu0
      %v2702 = vadd.f32 0.0, %v2701
      %v2703 = vpop.f32.mrb[0].mxu0
      %v2704 = vpop.f32.mrb[0].mxu0
      %v2705 = vadd.f32 0.0, %v2704
      %v2706 = vpop.f32.mrb[0].mxu0
      %2707 = vdwg.mxu0
      %v2708 = vadd.f32 %v2496, %v2678
      %v2709 = vadd.f32 %v2497, %v2681
      %v2710 = vadd.f32 %v2498, %v2686
      %v2711 = vadd.f32 %v2499, %v2689
      %v2712 = vadd.f32 %v2500, %v2694
      %v2713 = vadd.f32 %v2501, %v2697
      %v2714 = vadd.f32 %v2502, %v2702
      %v2715 = vadd.f32 %v2503, %v2705
      %2716 = vrot.lane.b32.xlu0 %v1791, 96
      %v2717 = vpop.permute.xlu0 %2716
      %2718 = vrot.lane.b32.xlu0 %v1792, 96
      %v2719 = vpop.permute.xlu0 %2718
      %2720 = vrot.lane.b32.xlu0 %v1793, 96
      %v2721 = vpop.permute.xlu0 %2720
      %2722 = vrot.lane.b32.xlu0 %v1794, 96
      %v2723 = vpop.permute.xlu0 %2722
      %2724 = vrot.lane.b32.xlu0 %v1795, 96
      %v2725 = vpop.permute.xlu0 %2724
      %2726 = vrot.lane.b32.xlu0 %v1796, 96
      %v2727 = vpop.permute.xlu0 %2726
      %v2728 = vsel %vm1234, %v1854, %v2717
      %v2729 = vsel %vm1234, %v1858, %v2719
      %v2730 = vsel %vm1234, %v1862, %v2721
      %v2731 = vsel %vm1234, %v1866, %v2723
      %v2732 = vsel %vm1234, %v1870, %v2725
      %v2733 = vsel %vm1234, %v1874, %v2727
      %s2740 = scalar_lea.vmem %s3, 192
      %v2741 = vld [vmem:[%s2740] sm:$0xff]
      %v2742 = vld [vmem:[%s2740 + $0x8] sm:$0xff]
      %v2743 = vld [vmem:[%s2740 + $0x10] sm:$0xff]
      %v2744 = vld [vmem:[%s2740 + $0x18] sm:$0xff]
      %v2745 = vld [vmem:[%s2740 + $0x20] sm:$0xff]
      %v2746 = vld [vmem:[%s2740 + $0x28] sm:$0xff]
      %v2747 = vld [vmem:[%s2740 + $0x30] sm:$0xff]
      %v2748 = vld [vmem:[%s2740 + $0x38] sm:$0xff]
      %v2749 = vpack.c.bf16 %v2729, %v2728
      %v2750 = vpack.c.bf16 %v2731, %v2730
      %v2751 = vpack.c.bf16 %v2733, %v2732
      %v2760 = vunpack.c.l.b16 %v2741
      %v2761 = vunpack.c.h.b16 %v2741
      %v2762 = vunpack.c.l.b16 %v2742
      %v2763 = vunpack.c.h.b16 %v2742
      %v2764 = vunpack.c.l.b16 %v2743
      %v2765 = vunpack.c.h.b16 %v2743
      %v2766 = vunpack.c.l.b16 %v2744
      %v2767 = vunpack.c.h.b16 %v2744
      %v2768 = vunpack.c.l.b16 %v2745
      %v2769 = vunpack.c.h.b16 %v2745
      %v2770 = vunpack.c.l.b16 %v2746
      %v2771 = vunpack.c.h.b16 %v2746
      %v2772 = vunpack.c.l.b16 %v2747
      %v2773 = vunpack.c.h.b16 %v2747
      %v2774 = vunpack.c.l.b16 %v2748
      %v2775 = vunpack.c.h.b16 %v2748
      %v2776 = vpack.c.b16 %v2762, %v2760
      %v2777 = vpack.c.b16 %v2763, %v2761
      %v2778 = vpack.c.b16 %v2766, %v2764
      %v2779 = vpack.c.b16 %v2767, %v2765
      %v2780 = vpack.c.b16 %v2770, %v2768
      %v2781 = vpack.c.b16 %v2771, %v2769
      %v2782 = vpack.c.b16 %v2774, %v2772
      %v2783 = vpack.c.b16 %v2775, %v2773
      %2791 = vrot.lane.b32.xlu0 %v1993, 31
      %v2792 = vpop.permute.xlu0 %2791
      %2793 = vrot.lane.b32.xlu0 %v1994, 31
      %v2794 = vpop.permute.xlu0 %2793
      %2795 = vrot.lane.b32.xlu0 %v1995, 31
      %v2796 = vpop.permute.xlu0 %2795
      %2797 = vrot.lane.b32.xlu0 %v1996, 31
      %v2798 = vpop.permute.xlu0 %2797
      %2799 = vrot.lane.b32.xlu0 %v1997, 31
      %v2800 = vpop.permute.xlu0 %2799
      %2801 = vrot.lane.b32.xlu0 %v1998, 31
      %v2802 = vpop.permute.xlu0 %2801
      %2803 = vrot.lane.b32.xlu0 %v1999, 31
      %v2804 = vpop.permute.xlu0 %2803
      %2805 = vrot.lane.b32.xlu0 %v2000, 31
      %v2806 = vpop.permute.xlu0 %2805
      %2807 = vrot.lane.b32.xlu0 %v2001, 31
      %v2808 = vpop.permute.xlu0 %2807
      %2809 = vrot.lane.b32.xlu0 %v2002, 31
      %v2810 = vpop.permute.xlu0 %2809
      %2811 = vrot.lane.b32.xlu0 %v2003, 31
      %v2812 = vpop.permute.xlu0 %2811
      %2813 = vrot.lane.b32.xlu0 %v2004, 31
      %v2814 = vpop.permute.xlu0 %2813
      %2815 = vrot.lane.b32.xlu0 %v2006, 31
      %v2816 = vpop.permute.xlu0 %2815
      %2817 = vrot.lane.b32.xlu0 %v2749, 31
      %v2818 = vpop.permute.xlu0 %2817
      %2819 = vrot.lane.b32.xlu0 %v2008, 31
      %v2820 = vpop.permute.xlu0 %2819
      %2821 = vrot.lane.b32.xlu0 %v2750, 31
      %v2822 = vpop.permute.xlu0 %2821
      %2823 = vrot.lane.b32.xlu0 %v2010, 31
      %v2824 = vpop.permute.xlu0 %2823
      %2825 = vrot.lane.b32.xlu0 %v2751, 31
      %v2826 = vpop.permute.xlu0 %2825
      %2827 = vrot.lane.b32.xlu0 %v2011, 31
      %v2828 = vpop.permute.xlu0 %2827
      %2829 = vrot.lane.b32.xlu0 %v2012, 31
      %v2830 = vpop.permute.xlu0 %2829
      %2831 = vrot.lane.b32.xlu0 %v2013, 31
      %v2832 = vpop.permute.xlu0 %2831
      %2833 = vrot.lane.b32.xlu0 %v2014, 31
      %v2834 = vpop.permute.xlu0 %2833
      %2835 = vrot.lane.b32.xlu0 %v2015, 31
      %v2836 = vpop.permute.xlu0 %2835
      %2837 = vrot.lane.b32.xlu0 %v2016, 31
      %v2838 = vpop.permute.xlu0 %2837
      %2839 = vrot.lane.b32.xlu0 %v2017, 31
      %v2840 = vpop.permute.xlu0 %2839
      %2841 = vrot.lane.b32.xlu0 %v2018, 31
      %v2842 = vpop.permute.xlu0 %2841
      %2843 = vrot.lane.b32.xlu0 %v2019, 31
      %v2844 = vpop.permute.xlu0 %2843
      %2845 = vrot.lane.b32.xlu0 %v2020, 31
      %v2846 = vpop.permute.xlu0 %2845
      %2847 = vrot.lane.b32.xlu0 %v2021, 31
      %v2848 = vpop.permute.xlu0 %2847
      %2849 = vrot.lane.b32.xlu0 %v2022, 31
      %v2850 = vpop.permute.xlu0 %2849
      %vm2851 = vcmask 252928
      %v2852 = vsel %vm2851, %v2792, %v2794
      %v2853 = vsel %vm2851, %v2796, %v2798
      %v2854 = vsel %vm2851, %v2800, %v2802
      %v2855 = vsel %vm2851, %v2804, %v2806
      %v2856 = vsel %vm2851, %v2808, %v2810
      %v2857 = vsel %vm2851, %v2812, %v2814
      %v2858 = vsel %vm2851, %v2816, %v2818
      %v2859 = vsel %vm2851, %v2820, %v2822
      %v2860 = vsel %vm2851, %v2824, %v2826
      %v2861 = vsel %vm2851, %v2828, %v2830
      %v2862 = vsel %vm2851, %v2832, %v2834
      %v2863 = vsel %vm2851, %v2836, %v2838
      %v2864 = vsel %vm2851, %v2840, %v2842
      %v2865 = vsel %vm2851, %v2844, %v2846
      %v2866 = vsel %vm2851, %v2848, %v2850
      %v2883 = vsel %vm1189, %v2777, 0
      %v2886 = vsel %vm1189, %v2779, 0
      %v2889 = vsel %vm1189, %v2781, 0
      %v2892 = vsel %vm1189, %v2783, 0
      %2894 = vmatprep.subr.bf16.mxu0 0
      %2895 = vmatpush1.bf16.msra.mxu0 %v2852
      %2896 = vmatprep.subr.bf16.mxu0 0
      %2897 = vmatpush1.bf16.msra.mxu0 %v2853
      %2898 = vmatprep.subr.bf16.mxu0 0
      %2899 = vmatpush1.bf16.msra.mxu0 %v2854
      %2900 = vmatprep.subr.bf16.mxu0 0
      %2901 = vmatpush1.bf16.msra.mxu0 %v2855
      %2902 = vmatprep.subr.bf16.mxu0 0
      %2903 = vmatpush1.bf16.msra.mxu0 %v2856
      %2904 = vmatprep.subr.bf16.mxu0 0
      %2905 = vmatpush1.bf16.msra.mxu0 %v2857
      %2906 = vmatprep.subr.bf16.mxu0 0
      %2907 = vmatpush1.bf16.msra.mxu0 %v2858
      %2908 = vmatprep.subr.bf16.mxu0 0
      %2909 = vmatpush1.bf16.msra.mxu0 %v2859
      %2910 = vmatprep.subr.bf16.mxu0 0
      %2911 = vmatpush1.bf16.msra.mxu0 %v2860
      %2912 = vmatprep.subr.bf16.mxu0 0
      %2913 = vmatpush1.bf16.msra.mxu0 %v2861
      %2914 = vmatprep.subr.bf16.mxu0 0
      %2915 = vmatpush1.bf16.msra.mxu0 %v2862
      %2916 = vmatprep.subr.bf16.mxu0 0
      %2917 = vmatpush1.bf16.msra.mxu0 %v2863
      %2918 = vmatprep.subr.bf16.mxu0 0
      %2919 = vmatpush1.bf16.msra.mxu0 %v2864
      %2920 = vmatprep.subr.bf16.mxu0 0
      %2921 = vmatpush1.bf16.msra.mxu0 %v2865
      %2922 = vmatprep.subr.bf16.mxu0 0
      %2923 = vmatpush1.bf16.msra.mxu0 %v2866
      %2924 = vmatprep.subr.bf16.mxu0 0
      %2925 = vmatpush1.bf16.msra.mxu0 0
      %2926 = vmatprep.mubr.bf16.mxu0 %v2883
      %2927 = vmatmul.mubr.bf16.gmra.mrb[0].mxu0 %v2776
      %v2928 = vpop.f32.mrb[0].mxu0
      %v2929 = vadd.f32 0.0, %v2928
      %v2930 = vpop.f32.mrb[0].mxu0
      %v2931 = vpop.f32.mrb[0].mxu0
      %v2932 = vadd.f32 0.0, %v2931
      %v2933 = vpop.f32.mrb[0].mxu0
      %2934 = vmatprep.mubr.bf16.mxu0 %v2886
      %2935 = vmatmul.mubr.bf16.gmra.mrb[0].mxu0 %v2778
      %v2936 = vpop.f32.mrb[0].mxu0
      %v2937 = vadd.f32 0.0, %v2936
      %v2938 = vpop.f32.mrb[0].mxu0
      %v2939 = vpop.f32.mrb[0].mxu0
      %v2940 = vadd.f32 0.0, %v2939
      %v2941 = vpop.f32.mrb[0].mxu0
      %2942 = vmatprep.mubr.bf16.mxu0 %v2889
      %2943 = vmatmul.mubr.bf16.gmra.mrb[0].mxu0 %v2780
      %v2944 = vpop.f32.mrb[0].mxu0
      %v2945 = vadd.f32 0.0, %v2944
      %v2946 = vpop.f32.mrb[0].mxu0
      %v2947 = vpop.f32.mrb[0].mxu0
      %v2948 = vadd.f32 0.0, %v2947
      %v2949 = vpop.f32.mrb[0].mxu0
      %2950 = vmatprep.mubr.bf16.mxu0 %v2892
      %2951 = vmatmul.mubr.bf16.gmra.mrb[0].mxu0 %v2782
      %v2952 = vpop.f32.mrb[0].mxu0
      %v2953 = vadd.f32 0.0, %v2952
      %v2954 = vpop.f32.mrb[0].mxu0
      %v2955 = vpop.f32.mrb[0].mxu0
      %v2956 = vadd.f32 0.0, %v2955
      %v2957 = vpop.f32.mrb[0].mxu0
      %2958 = vdwg.mxu0
      %v2959 = vsel %vm1364, %v2929, 0.0
      %v2960 = vsel %vm1364, %v2932, 0.0
      %v2961 = vsel %vm1364, %v2937, 0.0
      %v2962 = vsel %vm1364, %v2940, 0.0
      %v2963 = vsel %vm1364, %v2945, 0.0
      %v2964 = vsel %vm1364, %v2948, 0.0
      %v2965 = vsel %vm1364, %v2953, 0.0
      %v2966 = vsel %vm1364, %v2956, 0.0
      %v2967 = vadd.f32 %v2708, %v2959
      %v2968 = vadd.f32 %v2709, %v2960
      %v2969 = vadd.f32 %v2710, %v2961
      %v2970 = vadd.f32 %v2711, %v2962
      %v2971 = vadd.f32 %v2712, %v2963
      %v2972 = vadd.f32 %v2713, %v2964
      %v2973 = vadd.f32 %v2714, %v2965
      %v2974 = vadd.f32 %v2715, %v2966
      %s2975 = scalar_lea.vmem %s3, 256
      %v2976 = vld [vmem:[%s2975] sm:$0xff]
      %v2977 = vld [vmem:[%s2975 + $0x8] sm:$0xff]
      %v2978 = vld [vmem:[%s2975 + $0x10] sm:$0xff]
      %v2979 = vld [vmem:[%s2975 + $0x18] sm:$0xff]
      %v2980 = vld [vmem:[%s2975 + $0x20] sm:$0xff]
      %v2981 = vld [vmem:[%s2975 + $0x28] sm:$0xff]
      %v2982 = vld [vmem:[%s2975 + $0x30] sm:$0xff]
      %v2983 = vld [vmem:[%s2975 + $0x38] sm:$0xff]
      %v2992 = vunpack.c.l.b16 %v2976
      %v2993 = vunpack.c.h.b16 %v2976
      %v2994 = vunpack.c.l.b16 %v2977
      %v2995 = vunpack.c.h.b16 %v2977
      %v2996 = vunpack.c.l.b16 %v2978
      %v2997 = vunpack.c.h.b16 %v2978
      %v2998 = vunpack.c.l.b16 %v2979
      %v2999 = vunpack.c.h.b16 %v2979
      %v3000 = vunpack.c.l.b16 %v2980
      %v3001 = vunpack.c.h.b16 %v2980
      %v3002 = vunpack.c.l.b16 %v2981
      %v3003 = vunpack.c.h.b16 %v2981
      %v3004 = vunpack.c.l.b16 %v2982
      %v3005 = vunpack.c.h.b16 %v2982
      %v3006 = vunpack.c.l.b16 %v2983
      %v3007 = vunpack.c.h.b16 %v2983
      %v3008 = vpack.c.b16 %v2994, %v2992
      %v3009 = vpack.c.b16 %v2995, %v2993
      %v3010 = vpack.c.b16 %v2998, %v2996
      %v3011 = vpack.c.b16 %v2999, %v2997
      %v3012 = vpack.c.b16 %v3002, %v3000
      %v3013 = vpack.c.b16 %v3003, %v3001
      %v3014 = vpack.c.b16 %v3006, %v3004
      %v3015 = vpack.c.b16 %v3007, %v3005
      %3020 = vrot.lane.b32.xlu0 %v1993, 30
      %v3021 = vpop.permute.xlu0 %3020
      %3022 = vrot.lane.b32.xlu0 %v1994, 30
      %v3023 = vpop.permute.xlu0 %3022
      %3024 = vrot.lane.b32.xlu0 %v1995, 30
      %v3025 = vpop.permute.xlu0 %3024
      %3026 = vrot.lane.b32.xlu0 %v1996, 30
      %v3027 = vpop.permute.xlu0 %3026
      %3028 = vrot.lane.b32.xlu0 %v1997, 30
      %v3029 = vpop.permute.xlu0 %3028
      %3030 = vrot.lane.b32.xlu0 %v1998, 30
      %v3031 = vpop.permute.xlu0 %3030
      %3032 = vrot.lane.b32.xlu0 %v1999, 30
      %v3033 = vpop.permute.xlu0 %3032
      %3034 = vrot.lane.b32.xlu0 %v2000, 30
      %v3035 = vpop.permute.xlu0 %3034
      %3036 = vrot.lane.b32.xlu0 %v2001, 30
      %v3037 = vpop.permute.xlu0 %3036
      %3038 = vrot.lane.b32.xlu0 %v2002, 30
      %v3039 = vpop.permute.xlu0 %3038
      %3040 = vrot.lane.b32.xlu0 %v2003, 30
      %v3041 = vpop.permute.xlu0 %3040
      %3042 = vrot.lane.b32.xlu0 %v2004, 30
      %v3043 = vpop.permute.xlu0 %3042
      %3044 = vrot.lane.b32.xlu0 %v2006, 30
      %v3045 = vpop.permute.xlu0 %3044
      %3046 = vrot.lane.b32.xlu0 %v2749, 30
      %v3047 = vpop.permute.xlu0 %3046
      %3048 = vrot.lane.b32.xlu0 %v2008, 30
      %v3049 = vpop.permute.xlu0 %3048
      %3050 = vrot.lane.b32.xlu0 %v2750, 30
      %v3051 = vpop.permute.xlu0 %3050
      %3052 = vrot.lane.b32.xlu0 %v2010, 30
      %v3053 = vpop.permute.xlu0 %3052
      %3054 = vrot.lane.b32.xlu0 %v2751, 30
      %v3055 = vpop.permute.xlu0 %3054
      %3056 = vrot.lane.b32.xlu0 %v2011, 30
      %v3057 = vpop.permute.xlu0 %3056
      %3058 = vrot.lane.b32.xlu0 %v2012, 30
      %v3059 = vpop.permute.xlu0 %3058
      %3060 = vrot.lane.b32.xlu0 %v2013, 30
      %v3061 = vpop.permute.xlu0 %3060
      %3062 = vrot.lane.b32.xlu0 %v2014, 30
      %v3063 = vpop.permute.xlu0 %3062
      %3064 = vrot.lane.b32.xlu0 %v2015, 30
      %v3065 = vpop.permute.xlu0 %3064
      %3066 = vrot.lane.b32.xlu0 %v2016, 30
      %v3067 = vpop.permute.xlu0 %3066
      %3068 = vrot.lane.b32.xlu0 %v2017, 30
      %v3069 = vpop.permute.xlu0 %3068
      %3070 = vrot.lane.b32.xlu0 %v2018, 30
      %v3071 = vpop.permute.xlu0 %3070
      %3072 = vrot.lane.b32.xlu0 %v2019, 30
      %v3073 = vpop.permute.xlu0 %3072
      %3074 = vrot.lane.b32.xlu0 %v2020, 30
      %v3075 = vpop.permute.xlu0 %3074
      %3076 = vrot.lane.b32.xlu0 %v2021, 30
      %v3077 = vpop.permute.xlu0 %3076
      %3078 = vrot.lane.b32.xlu0 %v2022, 30
      %v3079 = vpop.permute.xlu0 %3078
      %vm3080 = vcmask 244736
      %v3081 = vsel %vm3080, %v3021, %v3023
      %v3082 = vsel %vm3080, %v3025, %v3027
      %v3083 = vsel %vm3080, %v3029, %v3031
      %v3084 = vsel %vm3080, %v3033, %v3035
      %v3085 = vsel %vm3080, %v3037, %v3039
      %v3086 = vsel %vm3080, %v3041, %v3043
      %v3087 = vsel %vm3080, %v3045, %v3047
      %v3088 = vsel %vm3080, %v3049, %v3051
      %v3089 = vsel %vm3080, %v3053, %v3055
      %v3090 = vsel %vm3080, %v3057, %v3059
      %v3091 = vsel %vm3080, %v3061, %v3063
      %v3092 = vsel %vm3080, %v3065, %v3067
      %v3093 = vsel %vm3080, %v3069, %v3071
      %v3094 = vsel %vm3080, %v3073, %v3075
      %v3095 = vsel %vm3080, %v3077, %v3079
      %v3112 = vsel %vm1189, %v3009, 0
      %v3115 = vsel %vm1189, %v3011, 0
      %v3118 = vsel %vm1189, %v3013, 0
      %v3121 = vsel %vm1189, %v3015, 0
      %3123 = vmatprep.subr.bf16.mxu0 0
      %3124 = vmatpush1.bf16.msra.mxu0 %v3081
      %3125 = vmatprep.subr.bf16.mxu0 0
      %3126 = vmatpush1.bf16.msra.mxu0 %v3082
      %3127 = vmatprep.subr.bf16.mxu0 0
      %3128 = vmatpush1.bf16.msra.mxu0 %v3083
      %3129 = vmatprep.subr.bf16.mxu0 0
      %3130 = vmatpush1.bf16.msra.mxu0 %v3084
      %3131 = vmatprep.subr.bf16.mxu0 0
      %3132 = vmatpush1.bf16.msra.mxu0 %v3085
      %3133 = vmatprep.subr.bf16.mxu0 0
      %3134 = vmatpush1.bf16.msra.mxu0 %v3086
      %3135 = vmatprep.subr.bf16.mxu0 0
      %3136 = vmatpush1.bf16.msra.mxu0 %v3087
      %3137 = vmatprep.subr.bf16.mxu0 0
      %3138 = vmatpush1.bf16.msra.mxu0 %v3088
      %3139 = vmatprep.subr.bf16.mxu0 0
      %3140 = vmatpush1.bf16.msra.mxu0 %v3089
      %3141 = vmatprep.subr.bf16.mxu0 0
      %3142 = vmatpush1.bf16.msra.mxu0 %v3090
      %3143 = vmatprep.subr.bf16.mxu0 0
      %3144 = vmatpush1.bf16.msra.mxu0 %v3091
      %3145 = vmatprep.subr.bf16.mxu0 0
      %3146 = vmatpush1.bf16.msra.mxu0 %v3092
      %3147 = vmatprep.subr.bf16.mxu0 0
      %3148 = vmatpush1.bf16.msra.mxu0 %v3093
      %3149 = vmatprep.subr.bf16.mxu0 0
      %3150 = vmatpush1.bf16.msra.mxu0 %v3094
      %3151 = vmatprep.subr.bf16.mxu0 0
      %3152 = vmatpush1.bf16.msra.mxu0 %v3095
      %3153 = vmatprep.subr.bf16.mxu0 0
      %3154 = vmatpush1.bf16.msra.mxu0 0
      %3155 = vmatprep.mubr.bf16.mxu0 %v3112
      %3156 = vmatmul.mubr.bf16.gmra.mrb[0].mxu0 %v3008
      %v3157 = vpop.f32.mrb[0].mxu0
      %v3158 = vadd.f32 0.0, %v3157
      %v3159 = vpop.f32.mrb[0].mxu0
      %v3160 = vpop.f32.mrb[0].mxu0
      %v3161 = vadd.f32 0.0, %v3160
      %v3162 = vpop.f32.mrb[0].mxu0
      %3163 = vmatprep.mubr.bf16.mxu0 %v3115
      %3164 = vmatmul.mubr.bf16.gmra.mrb[0].mxu0 %v3010
      %v3165 = vpop.f32.mrb[0].mxu0
      %v3166 = vadd.f32 0.0, %v3165
      %v3167 = vpop.f32.mrb[0].mxu0
      %v3168 = vpop.f32.mrb[0].mxu0
      %v3169 = vadd.f32 0.0, %v3168
      %v3170 = vpop.f32.mrb[0].mxu0
      %3171 = vmatprep.mubr.bf16.mxu0 %v3118
      %3172 = vmatmul.mubr.bf16.gmra.mrb[0].mxu0 %v3012
      %v3173 = vpop.f32.mrb[0].mxu0
      %v3174 = vadd.f32 0.0, %v3173
      %v3175 = vpop.f32.mrb[0].mxu0
      %v3176 = vpop.f32.mrb[0].mxu0
      %v3177 = vadd.f32 0.0, %v3176
      %v3178 = vpop.f32.mrb[0].mxu0
      %3179 = vmatprep.mubr.bf16.mxu0 %v3121
      %3180 = vmatmul.mubr.bf16.gmra.mrb[0].mxu0 %v3014
      %v3181 = vpop.f32.mrb[0].mxu0
      %v3182 = vadd.f32 0.0, %v3181
      %v3183 = vpop.f32.mrb[0].mxu0
      %v3184 = vpop.f32.mrb[0].mxu0
      %v3185 = vadd.f32 0.0, %v3184
      %v3186 = vpop.f32.mrb[0].mxu0
      %3187 = vdwg.mxu0
      %v3188 = vsel %vm1778, 1, 0
      %vm3189 = vcmp.eq.s32.totalorder %v3188, 1
      %v3190 = vsel %vm3189, %v3158, 0.0
      %v3191 = vsel %vm3189, %v3161, 0.0
      %v3192 = vsel %vm3189, %v3166, 0.0
      %v3193 = vsel %vm3189, %v3169, 0.0
      %v3194 = vsel %vm3189, %v3174, 0.0
      %v3195 = vsel %vm3189, %v3177, 0.0
      %v3196 = vsel %vm3189, %v3182, 0.0
      %v3197 = vsel %vm3189, %v3185, 0.0
      %v3198 = vadd.f32 %v2967, %v3190
      %v3199 = vadd.f32 %v2968, %v3191
      %v3200 = vadd.f32 %v2969, %v3192
      %v3201 = vadd.f32 %v2970, %v3193
      %v3202 = vadd.f32 %v2971, %v3194
      %v3203 = vadd.f32 %v2972, %v3195
      %v3204 = vadd.f32 %v2973, %v3196
      %v3205 = vadd.f32 %v2974, %v3197
      %v3206 = vadd.f32 %v3198, %v1736
      %v3207 = vadd.f32 %v3199, %v1741
      %v3208 = vadd.f32 %v3200, %v1746
      %v3209 = vadd.f32 %v3201, %v1751
      %v3210 = vadd.f32 %v3202, %v1756
      %v3211 = vadd.f32 %v3203, %v1761
      %v3212 = vadd.f32 %v3204, %v1766
      %v3213 = vadd.f32 %v3205, %v1771
      %v3214 = vmax.f32 %v3206, 0.0
      %v3215 = vmax.f32 %v3207, 0.0
      %v3216 = vmax.f32 %v3208, 0.0
      %v3217 = vmax.f32 %v3209, 0.0
      %v3218 = vmax.f32 %v3210, 0.0
      %v3219 = vmax.f32 %v3211, 0.0
      %v3220 = vmax.f32 %v3212, 0.0
      %v3221 = vmax.f32 %v3213, 0.0
      %3222 = vst [vmem:[%s359 + $0x80] sm:$0xff] %v3214
      %3223 = vst [vmem:[%s359 + $0x90] sm:$0xff] %v3215
      %3224 = vst [vmem:[%s359 + $0xa0] sm:$0xff] %v3216
      %3225 = vst [vmem:[%s359 + $0xb0] sm:$0xff] %v3217
      %3226 = vst [vmem:[%s359 + $0xc0] sm:$0xff] %v3218
      %3227 = vst [vmem:[%s359 + $0xd0] sm:$0xff] %v3219
      %3228 = vst [vmem:[%s359 + $0xe0] sm:$0xff] %v3220
      %3229 = vst [vmem:[%s359 + $0xf0] sm:$0xff] %v3221
      %vm3230 = vcmp.ge.s32.totalorder %v1430, 2
      %vm3231 = vcmp.lt.s32.totalorder %v1430, 18
      %vm3232 = vmand %vm3230, %vm3231
      %vm3233 = vcmp.ge.s32.totalorder %v1430, 4294967294
      %vm3234 = vcmp.lt.s32.totalorder %v1430, 14
      %vm3235 = vmand %vm3233, %vm3234
      %v3236 = vld [vmem:[#allocation2 + $0x8] sm:$0xff]
      %v3237 = vld [vmem:[#allocation2 + $0x10] sm:$0xff]
      %v3238 = vld [vmem:[#allocation2 + $0x28] sm:$0xff]
      %v3239 = vld [vmem:[#allocation2 + $0x30] sm:$0xff]
      %v3240 = vld [vmem:[#allocation2 + $0x48] sm:$0xff]
      %v3241 = vld [vmem:[#allocation2 + $0x50] sm:$0xff]
      %v3242 = vld [vmem:[#allocation2 + $0x68] sm:$0xff]
      %v3243 = vld [vmem:[#allocation2 + $0x70] sm:$0xff]
      %v3244 = vld [vmem:[#allocation2 + $0x88] sm:$0xff]
      %v3245 = vld [vmem:[#allocation2 + $0x90] sm:$0xff]
      %v3246 = vld [vmem:[#allocation2 + $0xa8] sm:$0xff]
      %v3247 = vld [vmem:[#allocation2 + $0xb0] sm:$0xff]
      %v3248 = vld [vmem:[#allocation2 + $0x10] sm:$0xff]
      %v3249 = vld [vmem:[#allocation2 + $0x18] sm:$0xff]
      %v3250 = vld [vmem:[#allocation2 + $0x30] sm:$0xff]
      %v3251 = vld [vmem:[#allocation2 + $0x38] sm:$0xff]
      %v3252 = vld [vmem:[#allocation2 + $0x50] sm:$0xff]
      %v3253 = vld [vmem:[#allocation2 + $0x58] sm:$0xff]
      %v3254 = vld [vmem:[#allocation2 + $0x70] sm:$0xff]
      %v3255 = vld [vmem:[#allocation2 + $0x78] sm:$0xff]
      %v3256 = vld [vmem:[#allocation2 + $0x90] sm:$0xff]
      %v3257 = vld [vmem:[#allocation2 + $0x98] sm:$0xff]
      %v3258 = vld [vmem:[#allocation2 + $0xb0] sm:$0xff]
      %v3259 = vld [vmem:[#allocation2 + $0xb8] sm:$0xff]
      %3272 = vrot.lane.b32.xlu0 %v3236, 112
      %v3273 = vpop.permute.xlu0 %3272
      %3274 = vrot.lane.b32.xlu0 %v3237, 112
      %v3275 = vpop.permute.xlu0 %3274
      %3276 = vrot.lane.b32.xlu0 %v3238, 112
      %v3277 = vpop.permute.xlu0 %3276
      %3278 = vrot.lane.b32.xlu0 %v3239, 112
      %v3279 = vpop.permute.xlu0 %3278
      %3280 = vrot.lane.b32.xlu0 %v3240, 112
      %v3281 = vpop.permute.xlu0 %3280
      %3282 = vrot.lane.b32.xlu0 %v3241, 112
      %v3283 = vpop.permute.xlu0 %3282
      %3284 = vrot.lane.b32.xlu0 %v3242, 112
      %v3285 = vpop.permute.xlu0 %3284
      %3286 = vrot.lane.b32.xlu0 %v3243, 112
      %v3287 = vpop.permute.xlu0 %3286
      %3288 = vrot.lane.b32.xlu0 %v3244, 112
      %v3289 = vpop.permute.xlu0 %3288
      %3290 = vrot.lane.b32.xlu0 %v3245, 112
      %v3291 = vpop.permute.xlu0 %3290
      %3292 = vrot.lane.b32.xlu0 %v3246, 112
      %v3293 = vpop.permute.xlu0 %3292
      %3294 = vrot.lane.b32.xlu0 %v3247, 112
      %v3295 = vpop.permute.xlu0 %3294
      %v3296 = vsel %vm1189, %v3273, %v3275
      %v3297 = vsel %vm1189, %v3277, %v3279
      %v3298 = vsel %vm1189, %v3281, %v3283
      %v3299 = vsel %vm1189, %v3285, %v3287
      %v3300 = vsel %vm1189, %v3289, %v3291
      %v3301 = vsel %vm1189, %v3293, %v3295
      %3314 = vrot.lane.b32.xlu0 %v3236, 96
      %v3315 = vpop.permute.xlu0 %3314
      %3316 = vrot.lane.b32.xlu0 %v3237, 96
      %v3317 = vpop.permute.xlu0 %3316
      %3318 = vrot.lane.b32.xlu0 %v3238, 96
      %v3319 = vpop.permute.xlu0 %3318
      %3320 = vrot.lane.b32.xlu0 %v3239, 96
      %v3321 = vpop.permute.xlu0 %3320
      %3322 = vrot.lane.b32.xlu0 %v3240, 96
      %v3323 = vpop.permute.xlu0 %3322
      %3324 = vrot.lane.b32.xlu0 %v3241, 96
      %v3325 = vpop.permute.xlu0 %3324
      %3326 = vrot.lane.b32.xlu0 %v3242, 96
      %v3327 = vpop.permute.xlu0 %3326
      %3328 = vrot.lane.b32.xlu0 %v3243, 96
      %v3329 = vpop.permute.xlu0 %3328
      %3330 = vrot.lane.b32.xlu0 %v3244, 96
      %v3331 = vpop.permute.xlu0 %3330
      %3332 = vrot.lane.b32.xlu0 %v3245, 96
      %v3333 = vpop.permute.xlu0 %3332
      %3334 = vrot.lane.b32.xlu0 %v3246, 96
      %v3335 = vpop.permute.xlu0 %3334
      %3336 = vrot.lane.b32.xlu0 %v3247, 96
      %v3337 = vpop.permute.xlu0 %3336
      %v3338 = vsel %vm1234, %v3315, %v3317
      %v3339 = vsel %vm1234, %v3319, %v3321
      %v3340 = vsel %vm1234, %v3323, %v3325
      %v3341 = vsel %vm1234, %v3327, %v3329
      %v3342 = vsel %vm1234, %v3331, %v3333
      %v3343 = vsel %vm1234, %v3335, %v3337
      %3368 = vrot.lane.b32.xlu0 %v3248, 80
      %v3369 = vpop.permute.xlu0 %3368
      %3370 = vrot.lane.b32.xlu0 %v3249, 80
      %v3371 = vpop.permute.xlu0 %3370
      %3372 = vrot.lane.b32.xlu0 %v3250, 80
      %v3373 = vpop.permute.xlu0 %3372
      %3374 = vrot.lane.b32.xlu0 %v3251, 80
      %v3375 = vpop.permute.xlu0 %3374
      %3376 = vrot.lane.b32.xlu0 %v3252, 80
      %v3377 = vpop.permute.xlu0 %3376
      %3378 = vrot.lane.b32.xlu0 %v3253, 80
      %v3379 = vpop.permute.xlu0 %3378
      %3380 = vrot.lane.b32.xlu0 %v3254, 80
      %v3381 = vpop.permute.xlu0 %3380
      %3382 = vrot.lane.b32.xlu0 %v3255, 80
      %v3383 = vpop.permute.xlu0 %3382
      %3384 = vrot.lane.b32.xlu0 %v3256, 80
      %v3385 = vpop.permute.xlu0 %3384
      %3386 = vrot.lane.b32.xlu0 %v3257, 80
      %v3387 = vpop.permute.xlu0 %3386
      %3388 = vrot.lane.b32.xlu0 %v3258, 80
      %v3389 = vpop.permute.xlu0 %3388
      %3390 = vrot.lane.b32.xlu0 %v3259, 80
      %v3391 = vpop.permute.xlu0 %3390
      %v3392 = vsel %vm1923, %v3369, %v3371
      %v3393 = vsel %vm1923, %v3373, %v3375
      %v3394 = vsel %vm1923, %v3377, %v3379
      %v3395 = vsel %vm1923, %v3381, %v3383
      %v3396 = vsel %vm1923, %v3385, %v3387
      %v3397 = vsel %vm1923, %v3389, %v3391
      %3410 = vrot.lane.b32.xlu0 %v3248, 64
      %v3411 = vpop.permute.xlu0 %3410
      %3412 = vrot.lane.b32.xlu0 %v3249, 64
      %v3413 = vpop.permute.xlu0 %3412
      %3414 = vrot.lane.b32.xlu0 %v3250, 64
      %v3415 = vpop.permute.xlu0 %3414
      %3416 = vrot.lane.b32.xlu0 %v3251, 64
      %v3417 = vpop.permute.xlu0 %3416
      %3418 = vrot.lane.b32.xlu0 %v3252, 64
      %v3419 = vpop.permute.xlu0 %3418
      %3420 = vrot.lane.b32.xlu0 %v3253, 64
      %v3421 = vpop.permute.xlu0 %3420
      %3422 = vrot.lane.b32.xlu0 %v3254, 64
      %v3423 = vpop.permute.xlu0 %3422
      %3424 = vrot.lane.b32.xlu0 %v3255, 64
      %v3425 = vpop.permute.xlu0 %3424
      %3426 = vrot.lane.b32.xlu0 %v3256, 64
      %v3427 = vpop.permute.xlu0 %3426
      %3428 = vrot.lane.b32.xlu0 %v3257, 64
      %v3429 = vpop.permute.xlu0 %3428
      %3430 = vrot.lane.b32.xlu0 %v3258, 64
      %v3431 = vpop.permute.xlu0 %3430
      %3432 = vrot.lane.b32.xlu0 %v3259, 64
      %v3433 = vpop.permute.xlu0 %3432
      %v3434 = vsel %vm1966, %v3411, %v3413
      %v3435 = vsel %vm1966, %v3415, %v3417
      %v3436 = vsel %vm1966, %v3419, %v3421
      %v3437 = vsel %vm1966, %v3423, %v3425
      %v3438 = vsel %vm1966, %v3427, %v3429
      %v3439 = vsel %vm1966, %v3431, %v3433
      %v3452 = vld [vmem:[%s3] sm:$0xff]
      %v3453 = vld [vmem:[%s3 + $0x8] sm:$0xff]
      %v3454 = vld [vmem:[%s3 + $0x10] sm:$0xff]
      %v3455 = vld [vmem:[%s3 + $0x18] sm:$0xff]
      %v3456 = vld [vmem:[%s3 + $0x20] sm:$0xff]
      %v3457 = vld [vmem:[%s3 + $0x28] sm:$0xff]
      %v3458 = vld [vmem:[%s3 + $0x30] sm:$0xff]
      %v3459 = vld [vmem:[%s3 + $0x38] sm:$0xff]
      %v3460 = vpack.c.bf16 %v3238, %v3236
      %v3461 = vpack.c.bf16 %v3239, %v3237
      %v3462 = vpack.c.bf16 %v3242, %v3240
      %v3463 = vpack.c.bf16 %v3243, %v3241
      %v3464 = vpack.c.bf16 %v3246, %v3244
      %v3465 = vpack.c.bf16 %v3247, %v3245
      %v3466 = vpack.c.bf16 %v3297, %v3296
      %v3467 = vpack.c.bf16 %v3279, %v3275
      %v3468 = vpack.c.bf16 %v3299, %v3298
      %v3469 = vpack.c.bf16 %v3287, %v3283
      %v3470 = vpack.c.bf16 %v3301, %v3300
      %v3471 = vpack.c.bf16 %v3295, %v3291
      %v3472 = vpack.c.bf16 %v3339, %v3338
      %v3473 = vpack.c.bf16 %v3321, %v3317
      %v3474 = vpack.c.bf16 %v3341, %v3340
      %v3475 = vpack.c.bf16 %v3329, %v3325
      %v3476 = vpack.c.bf16 %v3343, %v3342
      %v3477 = vpack.c.bf16 %v3337, %v3333
      %v3478 = vpack.c.bf16 %v3373, %v3369
      %v3479 = vpack.c.bf16 %v3393, %v3392
      %v3480 = vpack.c.bf16 %v3381, %v3377
      %v3481 = vpack.c.bf16 %v3395, %v3394
      %v3482 = vpack.c.bf16 %v3389, %v3385
      %v3483 = vpack.c.bf16 %v3397, %v3396
      %v3484 = vpack.c.bf16 %v3415, %v3411
      %v3485 = vpack.c.bf16 %v3435, %v3434
      %v3486 = vpack.c.bf16 %v3423, %v3419
      %v3487 = vpack.c.bf16 %v3437, %v3436
      %v3488 = vpack.c.bf16 %v3431, %v3427
      %v3489 = vpack.c.bf16 %v3439, %v3438
      %v3498 = vunpack.c.l.b16 %v3452
      %v3499 = vunpack.c.h.b16 %v3452
      %v3500 = vunpack.c.l.b16 %v3453
      %v3501 = vunpack.c.h.b16 %v3453
      %v3502 = vunpack.c.l.b16 %v3454
      %v3503 = vunpack.c.h.b16 %v3454
      %v3504 = vunpack.c.l.b16 %v3455
      %v3505 = vunpack.c.h.b16 %v3455
      %v3506 = vunpack.c.l.b16 %v3456
      %v3507 = vunpack.c.h.b16 %v3456
      %v3508 = vunpack.c.l.b16 %v3457
      %v3509 = vunpack.c.h.b16 %v3457
      %v3510 = vunpack.c.l.b16 %v3458
      %v3511 = vunpack.c.h.b16 %v3458
      %v3512 = vunpack.c.l.b16 %v3459
      %v3513 = vunpack.c.h.b16 %v3459
      %v3514 = vpack.c.b16 %v3500, %v3498
      %v3515 = vpack.c.b16 %v3501, %v3499
      %v3516 = vpack.c.b16 %v3504, %v3502
      %v3517 = vpack.c.b16 %v3505, %v3503
      %v3518 = vpack.c.b16 %v3508, %v3506
      %v3519 = vpack.c.b16 %v3509, %v3507
      %v3520 = vpack.c.b16 %v3512, %v3510
      %v3521 = vpack.c.b16 %v3513, %v3511
      %3556 = vrot.lane.b32.xlu0 %v3460, 34
      %v3557 = vpop.permute.xlu0 %3556
      %3558 = vrot.lane.b32.xlu0 %v3461, 34
      %v3559 = vpop.permute.xlu0 %3558
      %3560 = vrot.lane.b32.xlu0 %v3462, 34
      %v3561 = vpop.permute.xlu0 %3560
      %3562 = vrot.lane.b32.xlu0 %v3463, 34
      %v3563 = vpop.permute.xlu0 %3562
      %3564 = vrot.lane.b32.xlu0 %v3464, 34
      %v3565 = vpop.permute.xlu0 %3564
      %3566 = vrot.lane.b32.xlu0 %v3465, 34
      %v3567 = vpop.permute.xlu0 %3566
      %3568 = vrot.lane.b32.xlu0 %v3466, 34
      %v3569 = vpop.permute.xlu0 %3568
      %3570 = vrot.lane.b32.xlu0 %v3467, 34
      %v3571 = vpop.permute.xlu0 %3570
      %3572 = vrot.lane.b32.xlu0 %v3468, 34
      %v3573 = vpop.permute.xlu0 %3572
      %3574 = vrot.lane.b32.xlu0 %v3469, 34
      %v3575 = vpop.permute.xlu0 %3574
      %3576 = vrot.lane.b32.xlu0 %v3470, 34
      %v3577 = vpop.permute.xlu0 %3576
      %3578 = vrot.lane.b32.xlu0 %v3471, 34
      %v3579 = vpop.permute.xlu0 %3578
      %3580 = vrot.lane.b32.xlu0 %v3472, 34
      %v3581 = vpop.permute.xlu0 %3580
      %3582 = vrot.lane.b32.xlu0 %v3473, 34
      %v3583 = vpop.permute.xlu0 %3582
      %3584 = vrot.lane.b32.xlu0 %v3474, 34
      %v3585 = vpop.permute.xlu0 %3584
      %3586 = vrot.lane.b32.xlu0 %v3475, 34
      %v3587 = vpop.permute.xlu0 %3586
      %3588 = vrot.lane.b32.xlu0 %v3476, 34
      %v3589 = vpop.permute.xlu0 %3588
      %3590 = vrot.lane.b32.xlu0 %v3477, 34
      %v3591 = vpop.permute.xlu0 %3590
      %3592 = vrot.lane.b32.xlu0 %v3478, 34
      %v3593 = vpop.permute.xlu0 %3592
      %3594 = vrot.lane.b32.xlu0 %v3479, 34
      %v3595 = vpop.permute.xlu0 %3594
      %3596 = vrot.lane.b32.xlu0 %v3480, 34
      %v3597 = vpop.permute.xlu0 %3596
      %3598 = vrot.lane.b32.xlu0 %v3481, 34
      %v3599 = vpop.permute.xlu0 %3598
      %3600 = vrot.lane.b32.xlu0 %v3482, 34
      %v3601 = vpop.permute.xlu0 %3600
      %3602 = vrot.lane.b32.xlu0 %v3483, 34
      %v3603 = vpop.permute.xlu0 %3602
      %3604 = vrot.lane.b32.xlu0 %v3484, 34
      %v3605 = vpop.permute.xlu0 %3604
      %3606 = vrot.lane.b32.xlu0 %v3485, 34
      %v3607 = vpop.permute.xlu0 %3606
      %3608 = vrot.lane.b32.xlu0 %v3486, 34
      %v3609 = vpop.permute.xlu0 %3608
      %3610 = vrot.lane.b32.xlu0 %v3487, 34
      %v3611 = vpop.permute.xlu0 %3610
      %3612 = vrot.lane.b32.xlu0 %v3488, 34
      %v3613 = vpop.permute.xlu0 %3612
      %3614 = vrot.lane.b32.xlu0 %v3489, 34
      %v3615 = vpop.permute.xlu0 %3614
      %v3616 = vsel %vm2149, %v3557, %v3559
      %v3617 = vsel %vm2149, %v3561, %v3563
      %v3618 = vsel %vm2149, %v3565, %v3567
      %v3619 = vsel %vm2149, %v3569, %v3571
      %v3620 = vsel %vm2149, %v3573, %v3575
      %v3621 = vsel %vm2149, %v3577, %v3579
      %v3622 = vsel %vm2149, %v3581, %v3583
      %v3623 = vsel %vm2149, %v3585, %v3587
      %v3624 = vsel %vm2149, %v3589, %v3591
      %v3625 = vsel %vm2149, %v3593, %v3595
      %v3626 = vsel %vm2149, %v3597, %v3599
      %v3627 = vsel %vm2149, %v3601, %v3603
      %v3628 = vsel %vm2149, %v3605, %v3607
      %v3629 = vsel %vm2149, %v3609, %v3611
      %v3630 = vsel %vm2149, %v3613, %v3615
      %v3647 = vsel %vm1189, %v3515, 0
      %v3650 = vsel %vm1189, %v3517, 0
      %v3653 = vsel %vm1189, %v3519, 0
      %v3656 = vsel %vm1189, %v3521, 0
      %3658 = vmatprep.subr.bf16.mxu0 0
      %3659 = vmatpush1.bf16.msra.mxu0 %v3616
      %3660 = vmatprep.subr.bf16.mxu0 0
      %3661 = vmatpush1.bf16.msra.mxu0 %v3617
      %3662 = vmatprep.subr.bf16.mxu0 0
      %3663 = vmatpush1.bf16.msra.mxu0 %v3618
      %3664 = vmatprep.subr.bf16.mxu0 0
      %3665 = vmatpush1.bf16.msra.mxu0 %v3619
      %3666 = vmatprep.subr.bf16.mxu0 0
      %3667 = vmatpush1.bf16.msra.mxu0 %v3620
      %3668 = vmatprep.subr.bf16.mxu0 0
      %3669 = vmatpush1.bf16.msra.mxu0 %v3621
      %3670 = vmatprep.subr.bf16.mxu0 0
      %3671 = vmatpush1.bf16.msra.mxu0 %v3622
      %3672 = vmatprep.subr.bf16.mxu0 0
      %3673 = vmatpush1.bf16.msra.mxu0 %v3623
      %3674 = vmatprep.subr.bf16.mxu0 0
      %3675 = vmatpush1.bf16.msra.mxu0 %v3624
      %3676 = vmatprep.subr.bf16.mxu0 0
      %3677 = vmatpush1.bf16.msra.mxu0 %v3625
      %3678 = vmatprep.subr.bf16.mxu0 0
      %3679 = vmatpush1.bf16.msra.mxu0 %v3626
      %3680 = vmatprep.subr.bf16.mxu0 0
      %3681 = vmatpush1.bf16.msra.mxu0 %v3627
      %3682 = vmatprep.subr.bf16.mxu0 0
      %3683 = vmatpush1.bf16.msra.mxu0 %v3628
      %3684 = vmatprep.subr.bf16.mxu0 0
      %3685 = vmatpush1.bf16.msra.mxu0 %v3629
      %3686 = vmatprep.subr.bf16.mxu0 0
      %3687 = vmatpush1.bf16.msra.mxu0 %v3630
      %3688 = vmatprep.subr.bf16.mxu0 0
      %3689 = vmatpush1.bf16.msra.mxu0 0
      %3690 = vmatprep.mubr.bf16.mxu0 %v3647
      %3691 = vmatmul.mubr.bf16.gmra.mrb[0].mxu0 %v3514
      %v3692 = vpop.f32.mrb[0].mxu0
      %v3693 = vadd.f32 0.0, %v3692
      %v3694 = vpop.f32.mrb[0].mxu0
      %v3695 = vpop.f32.mrb[0].mxu0
      %v3696 = vadd.f32 0.0, %v3695
      %v3697 = vpop.f32.mrb[0].mxu0
      %3698 = vmatprep.mubr.bf16.mxu0 %v3650
      %3699 = vmatmul.mubr.bf16.gmra.mrb[0].mxu0 %v3516
      %v3700 = vpop.f32.mrb[0].mxu0
      %v3701 = vadd.f32 0.0, %v3700
      %v3702 = vpop.f32.mrb[0].mxu0
      %v3703 = vpop.f32.mrb[0].mxu0
      %v3704 = vadd.f32 0.0, %v3703
      %v3705 = vpop.f32.mrb[0].mxu0
      %3706 = vmatprep.mubr.bf16.mxu0 %v3653
      %3707 = vmatmul.mubr.bf16.gmra.mrb[0].mxu0 %v3518
      %v3708 = vpop.f32.mrb[0].mxu0
      %v3709 = vadd.f32 0.0, %v3708
      %v3710 = vpop.f32.mrb[0].mxu0
      %v3711 = vpop.f32.mrb[0].mxu0
      %v3712 = vadd.f32 0.0, %v3711
      %v3713 = vpop.f32.mrb[0].mxu0
      %3714 = vmatprep.mubr.bf16.mxu0 %v3656
      %3715 = vmatmul.mubr.bf16.gmra.mrb[0].mxu0 %v3520
      %v3716 = vpop.f32.mrb[0].mxu0
      %v3717 = vadd.f32 0.0, %v3716
      %v3718 = vpop.f32.mrb[0].mxu0
      %v3719 = vpop.f32.mrb[0].mxu0
      %v3720 = vadd.f32 0.0, %v3719
      %v3721 = vpop.f32.mrb[0].mxu0
      %3722 = vdwg.mxu0
      %v3723 = vsel %vm3232, 1, 0
      %vm3724 = vcmp.eq.s32.totalorder %v3723, 1
      %v3725 = vsel %vm3724, %v3693, 0.0
      %v3726 = vsel %vm3724, %v3696, 0.0
      %v3727 = vsel %vm3724, %v3701, 0.0
      %v3728 = vsel %vm3724, %v3704, 0.0
      %v3729 = vsel %vm3724, %v3709, 0.0
      %v3730 = vsel %vm3724, %v3712, 0.0
      %v3731 = vsel %vm3724, %v3717, 0.0
      %v3732 = vsel %vm3724, %v3720, 0.0
      %v3733 = vadd.f32 %v3725, 0.0
      %v3734 = vadd.f32 %v3726, 0.0
      %v3735 = vadd.f32 %v3727, 0.0
      %v3736 = vadd.f32 %v3728, 0.0
      %v3737 = vadd.f32 %v3729, 0.0
      %v3738 = vadd.f32 %v3730, 0.0
      %v3739 = vadd.f32 %v3731, 0.0
      %v3740 = vadd.f32 %v3732, 0.0
      %v3741 = vld [vmem:[%s2275] sm:$0xff]
      %v3742 = vld [vmem:[%s2275 + $0x8] sm:$0xff]
      %v3743 = vld [vmem:[%s2275 + $0x10] sm:$0xff]
      %v3744 = vld [vmem:[%s2275 + $0x18] sm:$0xff]
      %v3745 = vld [vmem:[%s2275 + $0x20] sm:$0xff]
      %v3746 = vld [vmem:[%s2275 + $0x28] sm:$0xff]
      %v3747 = vld [vmem:[%s2275 + $0x30] sm:$0xff]
      %v3748 = vld [vmem:[%s2275 + $0x38] sm:$0xff]
      %v3757 = vunpack.c.l.b16 %v3741
      %v3758 = vunpack.c.h.b16 %v3741
      %v3759 = vunpack.c.l.b16 %v3742
      %v3760 = vunpack.c.h.b16 %v3742
      %v3761 = vunpack.c.l.b16 %v3743
      %v3762 = vunpack.c.h.b16 %v3743
      %v3763 = vunpack.c.l.b16 %v3744
      %v3764 = vunpack.c.h.b16 %v3744
      %v3765 = vunpack.c.l.b16 %v3745
      %v3766 = vunpack.c.h.b16 %v3745
      %v3767 = vunpack.c.l.b16 %v3746
      %v3768 = vunpack.c.h.b16 %v3746
      %v3769 = vunpack.c.l.b16 %v3747
      %v3770 = vunpack.c.h.b16 %v3747
      %v3771 = vunpack.c.l.b16 %v3748
      %v3772 = vunpack.c.h.b16 %v3748
      %v3773 = vpack.c.b16 %v3759, %v3757
      %v3774 = vpack.c.b16 %v3760, %v3758
      %v3775 = vpack.c.b16 %v3763, %v3761
      %v3776 = vpack.c.b16 %v3764, %v3762
      %v3777 = vpack.c.b16 %v3767, %v3765
      %v3778 = vpack.c.b16 %v3768, %v3766
      %v3779 = vpack.c.b16 %v3771, %v3769
      %v3780 = vpack.c.b16 %v3772, %v3770
      %3785 = vrot.lane.b32.xlu0 %v3460, 33
      %v3786 = vpop.permute.xlu0 %3785
      %3787 = vrot.lane.b32.xlu0 %v3461, 33
      %v3788 = vpop.permute.xlu0 %3787
      %3789 = vrot.lane.b32.xlu0 %v3462, 33
      %v3790 = vpop.permute.xlu0 %3789
      %3791 = vrot.lane.b32.xlu0 %v3463, 33
      %v3792 = vpop.permute.xlu0 %3791
      %3793 = vrot.lane.b32.xlu0 %v3464, 33
      %v3794 = vpop.permute.xlu0 %3793
      %3795 = vrot.lane.b32.xlu0 %v3465, 33
      %v3796 = vpop.permute.xlu0 %3795
      %3797 = vrot.lane.b32.xlu0 %v3466, 33
      %v3798 = vpop.permute.xlu0 %3797
      %3799 = vrot.lane.b32.xlu0 %v3467, 33
      %v3800 = vpop.permute.xlu0 %3799
      %3801 = vrot.lane.b32.xlu0 %v3468, 33
      %v3802 = vpop.permute.xlu0 %3801
      %3803 = vrot.lane.b32.xlu0 %v3469, 33
      %v3804 = vpop.permute.xlu0 %3803
      %3805 = vrot.lane.b32.xlu0 %v3470, 33
      %v3806 = vpop.permute.xlu0 %3805
      %3807 = vrot.lane.b32.xlu0 %v3471, 33
      %v3808 = vpop.permute.xlu0 %3807
      %3809 = vrot.lane.b32.xlu0 %v3472, 33
      %v3810 = vpop.permute.xlu0 %3809
      %3811 = vrot.lane.b32.xlu0 %v3473, 33
      %v3812 = vpop.permute.xlu0 %3811
      %3813 = vrot.lane.b32.xlu0 %v3474, 33
      %v3814 = vpop.permute.xlu0 %3813
      %3815 = vrot.lane.b32.xlu0 %v3475, 33
      %v3816 = vpop.permute.xlu0 %3815
      %3817 = vrot.lane.b32.xlu0 %v3476, 33
      %v3818 = vpop.permute.xlu0 %3817
      %3819 = vrot.lane.b32.xlu0 %v3477, 33
      %v3820 = vpop.permute.xlu0 %3819
      %3821 = vrot.lane.b32.xlu0 %v3478, 33
      %v3822 = vpop.permute.xlu0 %3821
      %3823 = vrot.lane.b32.xlu0 %v3479, 33
      %v3824 = vpop.permute.xlu0 %3823
      %3825 = vrot.lane.b32.xlu0 %v3480, 33
      %v3826 = vpop.permute.xlu0 %3825
      %3827 = vrot.lane.b32.xlu0 %v3481, 33
      %v3828 = vpop.permute.xlu0 %3827
      %3829 = vrot.lane.b32.xlu0 %v3482, 33
      %v3830 = vpop.permute.xlu0 %3829
      %3831 = vrot.lane.b32.xlu0 %v3483, 33
      %v3832 = vpop.permute.xlu0 %3831
      %3833 = vrot.lane.b32.xlu0 %v3484, 33
      %v3834 = vpop.permute.xlu0 %3833
      %3835 = vrot.lane.b32.xlu0 %v3485, 33
      %v3836 = vpop.permute.xlu0 %3835
      %3837 = vrot.lane.b32.xlu0 %v3486, 33
      %v3838 = vpop.permute.xlu0 %3837
      %3839 = vrot.lane.b32.xlu0 %v3487, 33
      %v3840 = vpop.permute.xlu0 %3839
      %3841 = vrot.lane.b32.xlu0 %v3488, 33
      %v3842 = vpop.permute.xlu0 %3841
      %3843 = vrot.lane.b32.xlu0 %v3489, 33
      %v3844 = vpop.permute.xlu0 %3843
      %v3845 = vsel %vm2380, %v3786, %v3788
      %v3846 = vsel %vm2380, %v3790, %v3792
      %v3847 = vsel %vm2380, %v3794, %v3796
      %v3848 = vsel %vm2380, %v3798, %v3800
      %v3849 = vsel %vm2380, %v3802, %v3804
      %v3850 = vsel %vm2380, %v3806, %v3808
      %v3851 = vsel %vm2380, %v3810, %v3812
      %v3852 = vsel %vm2380, %v3814, %v3816
      %v3853 = vsel %vm2380, %v3818, %v3820
      %v3854 = vsel %vm2380, %v3822, %v3824
      %v3855 = vsel %vm2380, %v3826, %v3828
      %v3856 = vsel %vm2380, %v3830, %v3832
      %v3857 = vsel %vm2380, %v3834, %v3836
      %v3858 = vsel %vm2380, %v3838, %v3840
      %v3859 = vsel %vm2380, %v3842, %v3844
      %v3876 = vsel %vm1189, %v3774, 0
      %v3879 = vsel %vm1189, %v3776, 0
      %v3882 = vsel %vm1189, %v3778, 0
      %v3885 = vsel %vm1189, %v3780, 0
      %3887 = vmatprep.subr.bf16.mxu0 0
      %3888 = vmatpush1.bf16.msra.mxu0 %v3845
      %3889 = vmatprep.subr.bf16.mxu0 0
      %3890 = vmatpush1.bf16.msra.mxu0 %v3846
      %3891 = vmatprep.subr.bf16.mxu0 0
      %3892 = vmatpush1.bf16.msra.mxu0 %v3847
      %3893 = vmatprep.subr.bf16.mxu0 0
      %3894 = vmatpush1.bf16.msra.mxu0 %v3848
      %3895 = vmatprep.subr.bf16.mxu0 0
      %3896 = vmatpush1.bf16.msra.mxu0 %v3849
      %3897 = vmatprep.subr.bf16.mxu0 0
      %3898 = vmatpush1.bf16.msra.mxu0 %v3850
      %3899 = vmatprep.subr.bf16.mxu0 0
      %3900 = vmatpush1.bf16.msra.mxu0 %v3851
      %3901 = vmatprep.subr.bf16.mxu0 0
      %3902 = vmatpush1.bf16.msra.mxu0 %v3852
      %3903 = vmatprep.subr.bf16.mxu0 0
      %3904 = vmatpush1.bf16.msra.mxu0 %v3853
      %3905 = vmatprep.subr.bf16.mxu0 0
      %3906 = vmatpush1.bf16.msra.mxu0 %v3854
      %3907 = vmatprep.subr.bf16.mxu0 0
      %3908 = vmatpush1.bf16.msra.mxu0 %v3855
      %3909 = vmatprep.subr.bf16.mxu0 0
      %3910 = vmatpush1.bf16.msra.mxu0 %v3856
      %3911 = vmatprep.subr.bf16.mxu0 0
      %3912 = vmatpush1.bf16.msra.mxu0 %v3857
      %3913 = vmatprep.subr.bf16.mxu0 0
      %3914 = vmatpush1.bf16.msra.mxu0 %v3858
      %3915 = vmatprep.subr.bf16.mxu0 0
      %3916 = vmatpush1.bf16.msra.mxu0 %v3859
      %3917 = vmatprep.subr.bf16.mxu0 0
      %3918 = vmatpush1.bf16.msra.mxu0 0
      %3919 = vmatprep.mubr.bf16.mxu0 %v3876
      %3920 = vmatmul.mubr.bf16.gmra.mrb[0].mxu0 %v3773
      %v3921 = vpop.f32.mrb[0].mxu0
      %v3922 = vadd.f32 0.0, %v3921
      %v3923 = vpop.f32.mrb[0].mxu0
      %v3924 = vpop.f32.mrb[0].mxu0
      %v3925 = vadd.f32 0.0, %v3924
      %v3926 = vpop.f32.mrb[0].mxu0
      %3927 = vmatprep.mubr.bf16.mxu0 %v3879
      %3928 = vmatmul.mubr.bf16.gmra.mrb[0].mxu0 %v3775
      %v3929 = vpop.f32.mrb[0].mxu0
      %v3930 = vadd.f32 0.0, %v3929
      %v3931 = vpop.f32.mrb[0].mxu0
      %v3932 = vpop.f32.mrb[0].mxu0
      %v3933 = vadd.f32 0.0, %v3932
      %v3934 = vpop.f32.mrb[0].mxu0
      %3935 = vmatprep.mubr.bf16.mxu0 %v3882
      %3936 = vmatmul.mubr.bf16.gmra.mrb[0].mxu0 %v3777
      %v3937 = vpop.f32.mrb[0].mxu0
      %v3938 = vadd.f32 0.0, %v3937
      %v3939 = vpop.f32.mrb[0].mxu0
      %v3940 = vpop.f32.mrb[0].mxu0
      %v3941 = vadd.f32 0.0, %v3940
      %v3942 = vpop.f32.mrb[0].mxu0
      %3943 = vmatprep.mubr.bf16.mxu0 %v3885
      %3944 = vmatmul.mubr.bf16.gmra.mrb[0].mxu0 %v3779
      %v3945 = vpop.f32.mrb[0].mxu0
      %v3946 = vadd.f32 0.0, %v3945
      %v3947 = vpop.f32.mrb[0].mxu0
      %v3948 = vpop.f32.mrb[0].mxu0
      %v3949 = vadd.f32 0.0, %v3948
      %v3950 = vpop.f32.mrb[0].mxu0
      %3951 = vdwg.mxu0
      %v3952 = vsel %vm1542, %v3922, 0.0
      %v3953 = vsel %vm1542, %v3925, 0.0
      %v3954 = vsel %vm1542, %v3930, 0.0
      %v3955 = vsel %vm1542, %v3933, 0.0
      %v3956 = vsel %vm1542, %v3938, 0.0
      %v3957 = vsel %vm1542, %v3941, 0.0
      %v3958 = vsel %vm1542, %v3946, 0.0
      %v3959 = vsel %vm1542, %v3949, 0.0
      %v3960 = vadd.f32 %v3733, %v3952
      %v3961 = vadd.f32 %v3734, %v3953
      %v3962 = vadd.f32 %v3735, %v3954
      %v3963 = vadd.f32 %v3736, %v3955
      %v3964 = vadd.f32 %v3737, %v3956
      %v3965 = vadd.f32 %v3738, %v3957
      %v3966 = vadd.f32 %v3739, %v3958
      %v3967 = vadd.f32 %v3740, %v3959
      %v3968 = vld [vmem:[%s2504] sm:$0xff]
      %v3969 = vld [vmem:[%s2504 + $0x8] sm:$0xff]
      %v3970 = vld [vmem:[%s2504 + $0x10] sm:$0xff]
      %v3971 = vld [vmem:[%s2504 + $0x18] sm:$0xff]
      %v3972 = vld [vmem:[%s2504 + $0x20] sm:$0xff]
      %v3973 = vld [vmem:[%s2504 + $0x28] sm:$0xff]
      %v3974 = vld [vmem:[%s2504 + $0x30] sm:$0xff]
      %v3975 = vld [vmem:[%s2504 + $0x38] sm:$0xff]
      %v3984 = vunpack.c.l.b16 %v3968
      %v3985 = vunpack.c.h.b16 %v3968
      %v3986 = vunpack.c.l.b16 %v3969
      %v3987 = vunpack.c.h.b16 %v3969
      %v3988 = vunpack.c.l.b16 %v3970
      %v3989 = vunpack.c.h.b16 %v3970
      %v3990 = vunpack.c.l.b16 %v3971
      %v3991 = vunpack.c.h.b16 %v3971
      %v3992 = vunpack.c.l.b16 %v3972
      %v3993 = vunpack.c.h.b16 %v3972
      %v3994 = vunpack.c.l.b16 %v3973
      %v3995 = vunpack.c.h.b16 %v3973
      %v3996 = vunpack.c.l.b16 %v3974
      %v3997 = vunpack.c.h.b16 %v3974
      %v3998 = vunpack.c.l.b16 %v3975
      %v3999 = vunpack.c.h.b16 %v3975
      %v4000 = vpack.c.b16 %v3986, %v3984
      %v4001 = vpack.c.b16 %v3987, %v3985
      %v4002 = vpack.c.b16 %v3990, %v3988
      %v4003 = vpack.c.b16 %v3991, %v3989
      %v4004 = vpack.c.b16 %v3994, %v3992
      %v4005 = vpack.c.b16 %v3995, %v3993
      %v4006 = vpack.c.b16 %v3998, %v3996
      %v4007 = vpack.c.b16 %v3999, %v3997
      %4012 = vrot.lane.b32.xlu0 %v3460, 32
      %v4013 = vpop.permute.xlu0 %4012
      %4014 = vrot.lane.b32.xlu0 %v3461, 32
      %v4015 = vpop.permute.xlu0 %4014
      %4016 = vrot.lane.b32.xlu0 %v3462, 32
      %v4017 = vpop.permute.xlu0 %4016
      %4018 = vrot.lane.b32.xlu0 %v3463, 32
      %v4019 = vpop.permute.xlu0 %4018
      %4020 = vrot.lane.b32.xlu0 %v3464, 32
      %v4021 = vpop.permute.xlu0 %4020
      %4022 = vrot.lane.b32.xlu0 %v3465, 32
      %v4023 = vpop.permute.xlu0 %4022
      %4024 = vrot.lane.b32.xlu0 %v3466, 32
      %v4025 = vpop.permute.xlu0 %4024
      %4026 = vrot.lane.b32.xlu0 %v3467, 32
      %v4027 = vpop.permute.xlu0 %4026
      %4028 = vrot.lane.b32.xlu0 %v3468, 32
      %v4029 = vpop.permute.xlu0 %4028
      %4030 = vrot.lane.b32.xlu0 %v3469, 32
      %v4031 = vpop.permute.xlu0 %4030
      %4032 = vrot.lane.b32.xlu0 %v3470, 32
      %v4033 = vpop.permute.xlu0 %4032
      %4034 = vrot.lane.b32.xlu0 %v3471, 32
      %v4035 = vpop.permute.xlu0 %4034
      %4036 = vrot.lane.b32.xlu0 %v3473, 32
      %v4037 = vpop.permute.xlu0 %4036
      %4038 = vrot.lane.b32.xlu0 %v3475, 32
      %v4039 = vpop.permute.xlu0 %4038
      %4040 = vrot.lane.b32.xlu0 %v3477, 32
      %v4041 = vpop.permute.xlu0 %4040
      %4042 = vrot.lane.b32.xlu0 %v3478, 32
      %v4043 = vpop.permute.xlu0 %4042
      %4044 = vrot.lane.b32.xlu0 %v3479, 32
      %v4045 = vpop.permute.xlu0 %4044
      %4046 = vrot.lane.b32.xlu0 %v3480, 32
      %v4047 = vpop.permute.xlu0 %4046
      %4048 = vrot.lane.b32.xlu0 %v3481, 32
      %v4049 = vpop.permute.xlu0 %4048
      %4050 = vrot.lane.b32.xlu0 %v3482, 32
      %v4051 = vpop.permute.xlu0 %4050
      %4052 = vrot.lane.b32.xlu0 %v3483, 32
      %v4053 = vpop.permute.xlu0 %4052
      %4054 = vrot.lane.b32.xlu0 %v3484, 32
      %v4055 = vpop.permute.xlu0 %4054
      %4056 = vrot.lane.b32.xlu0 %v3485, 32
      %v4057 = vpop.permute.xlu0 %4056
      %4058 = vrot.lane.b32.xlu0 %v3486, 32
      %v4059 = vpop.permute.xlu0 %4058
      %4060 = vrot.lane.b32.xlu0 %v3487, 32
      %v4061 = vpop.permute.xlu0 %4060
      %4062 = vrot.lane.b32.xlu0 %v3488, 32
      %v4063 = vpop.permute.xlu0 %4062
      %4064 = vrot.lane.b32.xlu0 %v3489, 32
      %v4065 = vpop.permute.xlu0 %4064
      %v4066 = vsel %vm2603, %v4013, %v4015
      %v4067 = vsel %vm2603, %v4017, %v4019
      %v4068 = vsel %vm2603, %v4021, %v4023
      %v4069 = vsel %vm2603, %v4025, %v4027
      %v4070 = vsel %vm2603, %v4029, %v4031
      %v4071 = vsel %vm2603, %v4033, %v4035
      %v4072 = vsel %vm2603, %v4043, %v4045
      %v4073 = vsel %vm2603, %v4047, %v4049
      %v4074 = vsel %vm2603, %v4051, %v4053
      %v4075 = vsel %vm2603, %v4055, %v4057
      %v4076 = vsel %vm2603, %v4059, %v4061
      %v4077 = vsel %vm2603, %v4063, %v4065
      %v4094 = vsel %vm1189, %v4001, 0
      %v4097 = vsel %vm1189, %v4003, 0
      %v4100 = vsel %vm1189, %v4005, 0
      %v4103 = vsel %vm1189, %v4007, 0
      %4105 = vmatprep.subr.bf16.mxu0 0
      %4106 = vmatpush1.bf16.msra.mxu0 %v4066
      %4107 = vmatprep.subr.bf16.mxu0 0
      %4108 = vmatpush1.bf16.msra.mxu0 %v4067
      %4109 = vmatprep.subr.bf16.mxu0 0
      %4110 = vmatpush1.bf16.msra.mxu0 %v4068
      %4111 = vmatprep.subr.bf16.mxu0 0
      %4112 = vmatpush1.bf16.msra.mxu0 %v4069
      %4113 = vmatprep.subr.bf16.mxu0 0
      %4114 = vmatpush1.bf16.msra.mxu0 %v4070
      %4115 = vmatprep.subr.bf16.mxu0 0
      %4116 = vmatpush1.bf16.msra.mxu0 %v4071
      %4117 = vmatprep.subr.bf16.mxu0 0
      %4118 = vmatpush1.bf16.msra.mxu0 %v4037
      %4119 = vmatprep.subr.bf16.mxu0 0
      %4120 = vmatpush1.bf16.msra.mxu0 %v4039
      %4121 = vmatprep.subr.bf16.mxu0 0
      %4122 = vmatpush1.bf16.msra.mxu0 %v4041
      %4123 = vmatprep.subr.bf16.mxu0 0
      %4124 = vmatpush1.bf16.msra.mxu0 %v4072
      %4125 = vmatprep.subr.bf16.mxu0 0
      %4126 = vmatpush1.bf16.msra.mxu0 %v4073
      %4127 = vmatprep.subr.bf16.mxu0 0
      %4128 = vmatpush1.bf16.msra.mxu0 %v4074
      %4129 = vmatprep.subr.bf16.mxu0 0
      %4130 = vmatpush1.bf16.msra.mxu0 %v4075
      %4131 = vmatprep.subr.bf16.mxu0 0
      %4132 = vmatpush1.bf16.msra.mxu0 %v4076
      %4133 = vmatprep.subr.bf16.mxu0 0
      %4134 = vmatpush1.bf16.msra.mxu0 %v4077
      %4135 = vmatprep.subr.bf16.mxu0 0
      %4136 = vmatpush1.bf16.msra.mxu0 0
      %4137 = vmatprep.mubr.bf16.mxu0 %v4094
      %4138 = vmatmul.mubr.bf16.gmra.mrb[0].mxu0 %v4000
      %v4139 = vpop.f32.mrb[0].mxu0
      %v4140 = vadd.f32 0.0, %v4139
      %v4141 = vpop.f32.mrb[0].mxu0
      %v4142 = vpop.f32.mrb[0].mxu0
      %v4143 = vadd.f32 0.0, %v4142
      %v4144 = vpop.f32.mrb[0].mxu0
      %4145 = vmatprep.mubr.bf16.mxu0 %v4097
      %4146 = vmatmul.mubr.bf16.gmra.mrb[0].mxu0 %v4002
      %v4147 = vpop.f32.mrb[0].mxu0
      %v4148 = vadd.f32 0.0, %v4147
      %v4149 = vpop.f32.mrb[0].mxu0
      %v4150 = vpop.f32.mrb[0].mxu0
      %v4151 = vadd.f32 0.0, %v4150
      %v4152 = vpop.f32.mrb[0].mxu0
      %4153 = vmatprep.mubr.bf16.mxu0 %v4100
      %4154 = vmatmul.mubr.bf16.gmra.mrb[0].mxu0 %v4004
      %v4155 = vpop.f32.mrb[0].mxu0
      %v4156 = vadd.f32 0.0, %v4155
      %v4157 = vpop.f32.mrb[0].mxu0
      %v4158 = vpop.f32.mrb[0].mxu0
      %v4159 = vadd.f32 0.0, %v4158
      %v4160 = vpop.f32.mrb[0].mxu0
      %4161 = vmatprep.mubr.bf16.mxu0 %v4103
      %4162 = vmatmul.mubr.bf16.gmra.mrb[0].mxu0 %v4006
      %v4163 = vpop.f32.mrb[0].mxu0
      %v4164 = vadd.f32 0.0, %v4163
      %v4165 = vpop.f32.mrb[0].mxu0
      %v4166 = vpop.f32.mrb[0].mxu0
      %v4167 = vadd.f32 0.0, %v4166
      %v4168 = vpop.f32.mrb[0].mxu0
      %4169 = vdwg.mxu0
      %v4170 = vadd.f32 %v3960, %v4140
      %v4171 = vadd.f32 %v3961, %v4143
      %v4172 = vadd.f32 %v3962, %v4148
      %v4173 = vadd.f32 %v3963, %v4151
      %v4174 = vadd.f32 %v3964, %v4156
      %v4175 = vadd.f32 %v3965, %v4159
      %v4176 = vadd.f32 %v3966, %v4164
      %v4177 = vadd.f32 %v3967, %v4167
      %4178 = vrot.lane.b32.xlu0 %v3248, 96
      %v4179 = vpop.permute.xlu0 %4178
      %4180 = vrot.lane.b32.xlu0 %v3249, 96
      %v4181 = vpop.permute.xlu0 %4180
      %4182 = vrot.lane.b32.xlu0 %v3250, 96
      %v4183 = vpop.permute.xlu0 %4182
      %4184 = vrot.lane.b32.xlu0 %v3251, 96
      %v4185 = vpop.permute.xlu0 %4184
      %4186 = vrot.lane.b32.xlu0 %v3252, 96
      %v4187 = vpop.permute.xlu0 %4186
      %4188 = vrot.lane.b32.xlu0 %v3253, 96
      %v4189 = vpop.permute.xlu0 %4188
      %4190 = vrot.lane.b32.xlu0 %v3254, 96
      %v4191 = vpop.permute.xlu0 %4190
      %4192 = vrot.lane.b32.xlu0 %v3255, 96
      %v4193 = vpop.permute.xlu0 %4192
      %4194 = vrot.lane.b32.xlu0 %v3256, 96
      %v4195 = vpop.permute.xlu0 %4194
      %4196 = vrot.lane.b32.xlu0 %v3257, 96
      %v4197 = vpop.permute.xlu0 %4196
      %4198 = vrot.lane.b32.xlu0 %v3258, 96
      %v4199 = vpop.permute.xlu0 %4198
      %4200 = vrot.lane.b32.xlu0 %v3259, 96
      %v4201 = vpop.permute.xlu0 %4200
      %v4202 = vsel %vm1234, %v4179, %v4181
      %v4203 = vsel %vm1234, %v4183, %v4185
      %v4204 = vsel %vm1234, %v4187, %v4189
      %v4205 = vsel %vm1234, %v4191, %v4193
      %v4206 = vsel %vm1234, %v4195, %v4197
      %v4207 = vsel %vm1234, %v4199, %v4201
      %v4220 = vld [vmem:[%s2740] sm:$0xff]
      %v4221 = vld [vmem:[%s2740 + $0x8] sm:$0xff]
      %v4222 = vld [vmem:[%s2740 + $0x10] sm:$0xff]
      %v4223 = vld [vmem:[%s2740 + $0x18] sm:$0xff]
      %v4224 = vld [vmem:[%s2740 + $0x20] sm:$0xff]
      %v4225 = vld [vmem:[%s2740 + $0x28] sm:$0xff]
      %v4226 = vld [vmem:[%s2740 + $0x30] sm:$0xff]
      %v4227 = vld [vmem:[%s2740 + $0x38] sm:$0xff]
      %v4228 = vpack.c.bf16 %v4183, %v4179
      %v4229 = vpack.c.bf16 %v4203, %v4202
      %v4230 = vpack.c.bf16 %v4191, %v4187
      %v4231 = vpack.c.bf16 %v4205, %v4204
      %v4232 = vpack.c.bf16 %v4199, %v4195
      %v4233 = vpack.c.bf16 %v4207, %v4206
      %v4242 = vunpack.c.l.b16 %v4220
      %v4243 = vunpack.c.h.b16 %v4220
      %v4244 = vunpack.c.l.b16 %v4221
      %v4245 = vunpack.c.h.b16 %v4221
      %v4246 = vunpack.c.l.b16 %v4222
      %v4247 = vunpack.c.h.b16 %v4222
      %v4248 = vunpack.c.l.b16 %v4223
      %v4249 = vunpack.c.h.b16 %v4223
      %v4250 = vunpack.c.l.b16 %v4224
      %v4251 = vunpack.c.h.b16 %v4224
      %v4252 = vunpack.c.l.b16 %v4225
      %v4253 = vunpack.c.h.b16 %v4225
      %v4254 = vunpack.c.l.b16 %v4226
      %v4255 = vunpack.c.h.b16 %v4226
      %v4256 = vunpack.c.l.b16 %v4227
      %v4257 = vunpack.c.h.b16 %v4227
      %v4258 = vpack.c.b16 %v4244, %v4242
      %v4259 = vpack.c.b16 %v4245, %v4243
      %v4260 = vpack.c.b16 %v4248, %v4246
      %v4261 = vpack.c.b16 %v4249, %v4247
      %v4262 = vpack.c.b16 %v4252, %v4250
      %v4263 = vpack.c.b16 %v4253, %v4251
      %v4264 = vpack.c.b16 %v4256, %v4254
      %v4265 = vpack.c.b16 %v4257, %v4255
      %4276 = vrot.lane.b32.xlu0 %v3460, 31
      %v4277 = vpop.permute.xlu0 %4276
      %4278 = vrot.lane.b32.xlu0 %v3461, 31
      %v4279 = vpop.permute.xlu0 %4278
      %4280 = vrot.lane.b32.xlu0 %v3462, 31
      %v4281 = vpop.permute.xlu0 %4280
      %4282 = vrot.lane.b32.xlu0 %v3463, 31
      %v4283 = vpop.permute.xlu0 %4282
      %4284 = vrot.lane.b32.xlu0 %v3464, 31
      %v4285 = vpop.permute.xlu0 %4284
      %4286 = vrot.lane.b32.xlu0 %v3465, 31
      %v4287 = vpop.permute.xlu0 %4286
      %4288 = vrot.lane.b32.xlu0 %v3466, 31
      %v4289 = vpop.permute.xlu0 %4288
      %4290 = vrot.lane.b32.xlu0 %v3467, 31
      %v4291 = vpop.permute.xlu0 %4290
      %4292 = vrot.lane.b32.xlu0 %v3468, 31
      %v4293 = vpop.permute.xlu0 %4292
      %4294 = vrot.lane.b32.xlu0 %v3469, 31
      %v4295 = vpop.permute.xlu0 %4294
      %4296 = vrot.lane.b32.xlu0 %v3470, 31
      %v4297 = vpop.permute.xlu0 %4296
      %4298 = vrot.lane.b32.xlu0 %v3471, 31
      %v4299 = vpop.permute.xlu0 %4298
      %4300 = vrot.lane.b32.xlu0 %v4228, 31
      %v4301 = vpop.permute.xlu0 %4300
      %4302 = vrot.lane.b32.xlu0 %v4229, 31
      %v4303 = vpop.permute.xlu0 %4302
      %4304 = vrot.lane.b32.xlu0 %v4230, 31
      %v4305 = vpop.permute.xlu0 %4304
      %4306 = vrot.lane.b32.xlu0 %v4231, 31
      %v4307 = vpop.permute.xlu0 %4306
      %4308 = vrot.lane.b32.xlu0 %v4232, 31
      %v4309 = vpop.permute.xlu0 %4308
      %4310 = vrot.lane.b32.xlu0 %v4233, 31
      %v4311 = vpop.permute.xlu0 %4310
      %4312 = vrot.lane.b32.xlu0 %v3478, 31
      %v4313 = vpop.permute.xlu0 %4312
      %4314 = vrot.lane.b32.xlu0 %v3479, 31
      %v4315 = vpop.permute.xlu0 %4314
      %4316 = vrot.lane.b32.xlu0 %v3480, 31
      %v4317 = vpop.permute.xlu0 %4316
      %4318 = vrot.lane.b32.xlu0 %v3481, 31
      %v4319 = vpop.permute.xlu0 %4318
      %4320 = vrot.lane.b32.xlu0 %v3482, 31
      %v4321 = vpop.permute.xlu0 %4320
      %4322 = vrot.lane.b32.xlu0 %v3483, 31
      %v4323 = vpop.permute.xlu0 %4322
      %4324 = vrot.lane.b32.xlu0 %v3484, 31
      %v4325 = vpop.permute.xlu0 %4324
      %4326 = vrot.lane.b32.xlu0 %v3485, 31
      %v4327 = vpop.permute.xlu0 %4326
      %4328 = vrot.lane.b32.xlu0 %v3486, 31
      %v4329 = vpop.permute.xlu0 %4328
      %4330 = vrot.lane.b32.xlu0 %v3487, 31
      %v4331 = vpop.permute.xlu0 %4330
      %4332 = vrot.lane.b32.xlu0 %v3488, 31
      %v4333 = vpop.permute.xlu0 %4332
      %4334 = vrot.lane.b32.xlu0 %v3489, 31
      %v4335 = vpop.permute.xlu0 %4334
      %v4336 = vsel %vm2851, %v4277, %v4279
      %v4337 = vsel %vm2851, %v4281, %v4283
      %v4338 = vsel %vm2851, %v4285, %v4287
      %v4339 = vsel %vm2851, %v4289, %v4291
      %v4340 = vsel %vm2851, %v4293, %v4295
      %v4341 = vsel %vm2851, %v4297, %v4299
      %v4342 = vsel %vm2851, %v4301, %v4303
      %v4343 = vsel %vm2851, %v4305, %v4307
      %v4344 = vsel %vm2851, %v4309, %v4311
      %v4345 = vsel %vm2851, %v4313, %v4315
      %v4346 = vsel %vm2851, %v4317, %v4319
      %v4347 = vsel %vm2851, %v4321, %v4323
      %v4348 = vsel %vm2851, %v4325, %v4327
      %v4349 = vsel %vm2851, %v4329, %v4331
      %v4350 = vsel %vm2851, %v4333, %v4335
      %v4367 = vsel %vm1189, %v4259, 0
      %v4370 = vsel %vm1189, %v4261, 0
      %v4373 = vsel %vm1189, %v4263, 0
      %v4376 = vsel %vm1189, %v4265, 0
      %4378 = vmatprep.subr.bf16.mxu0 0
      %4379 = vmatpush1.bf16.msra.mxu0 %v4336
      %4380 = vmatprep.subr.bf16.mxu0 0
      %4381 = vmatpush1.bf16.msra.mxu0 %v4337
      %4382 = vmatprep.subr.bf16.mxu0 0
      %4383 = vmatpush1.bf16.msra.mxu0 %v4338
      %4384 = vmatprep.subr.bf16.mxu0 0
      %4385 = vmatpush1.bf16.msra.mxu0 %v4339
      %4386 = vmatprep.subr.bf16.mxu0 0
      %4387 = vmatpush1.bf16.msra.mxu0 %v4340
      %4388 = vmatprep.subr.bf16.mxu0 0
      %4389 = vmatpush1.bf16.msra.mxu0 %v4341
      %4390 = vmatprep.subr.bf16.mxu0 0
      %4391 = vmatpush1.bf16.msra.mxu0 %v4342
      %4392 = vmatprep.subr.bf16.mxu0 0
      %4393 = vmatpush1.bf16.msra.mxu0 %v4343
      %4394 = vmatprep.subr.bf16.mxu0 0
      %4395 = vmatpush1.bf16.msra.mxu0 %v4344
      %4396 = vmatprep.subr.bf16.mxu0 0
      %4397 = vmatpush1.bf16.msra.mxu0 %v4345
      %4398 = vmatprep.subr.bf16.mxu0 0
      %4399 = vmatpush1.bf16.msra.mxu0 %v4346
      %4400 = vmatprep.subr.bf16.mxu0 0
      %4401 = vmatpush1.bf16.msra.mxu0 %v4347
      %4402 = vmatprep.subr.bf16.mxu0 0
      %4403 = vmatpush1.bf16.msra.mxu0 %v4348
      %4404 = vmatprep.subr.bf16.mxu0 0
      %4405 = vmatpush1.bf16.msra.mxu0 %v4349
      %4406 = vmatprep.subr.bf16.mxu0 0
      %4407 = vmatpush1.bf16.msra.mxu0 %v4350
      %4408 = vmatprep.subr.bf16.mxu0 0
      %4409 = vmatpush1.bf16.msra.mxu0 0
      %4410 = vmatprep.mubr.bf16.mxu0 %v4367
      %4411 = vmatmul.mubr.bf16.gmra.mrb[0].mxu0 %v4258
      %v4412 = vpop.f32.mrb[0].mxu0
      %v4413 = vadd.f32 0.0, %v4412
      %v4414 = vpop.f32.mrb[0].mxu0
      %v4415 = vpop.f32.mrb[0].mxu0
      %v4416 = vadd.f32 0.0, %v4415
      %v4417 = vpop.f32.mrb[0].mxu0
      %4418 = vmatprep.mubr.bf16.mxu0 %v4370
      %4419 = vmatmul.mubr.bf16.gmra.mrb[0].mxu0 %v4260
      %v4420 = vpop.f32.mrb[0].mxu0
      %v4421 = vadd.f32 0.0, %v4420
      %v4422 = vpop.f32.mrb[0].mxu0
      %v4423 = vpop.f32.mrb[0].mxu0
      %v4424 = vadd.f32 0.0, %v4423
      %v4425 = vpop.f32.mrb[0].mxu0
      %4426 = vmatprep.mubr.bf16.mxu0 %v4373
      %4427 = vmatmul.mubr.bf16.gmra.mrb[0].mxu0 %v4262
      %v4428 = vpop.f32.mrb[0].mxu0
      %v4429 = vadd.f32 0.0, %v4428
      %v4430 = vpop.f32.mrb[0].mxu0
      %v4431 = vpop.f32.mrb[0].mxu0
      %v4432 = vadd.f32 0.0, %v4431
      %v4433 = vpop.f32.mrb[0].mxu0
      %4434 = vmatprep.mubr.bf16.mxu0 %v4376
      %4435 = vmatmul.mubr.bf16.gmra.mrb[0].mxu0 %v4264
      %v4436 = vpop.f32.mrb[0].mxu0
      %v4437 = vadd.f32 0.0, %v4436
      %v4438 = vpop.f32.mrb[0].mxu0
      %v4439 = vpop.f32.mrb[0].mxu0
      %v4440 = vadd.f32 0.0, %v4439
      %v4441 = vpop.f32.mrb[0].mxu0
      %4442 = vdwg.mxu0
      %v4443 = vsel %vm1668, %v4413, 0.0
      %v4444 = vsel %vm1668, %v4416, 0.0
      %v4445 = vsel %vm1668, %v4421, 0.0
      %v4446 = vsel %vm1668, %v4424, 0.0
      %v4447 = vsel %vm1668, %v4429, 0.0
      %v4448 = vsel %vm1668, %v4432, 0.0
      %v4449 = vsel %vm1668, %v4437, 0.0
      %v4450 = vsel %vm1668, %v4440, 0.0
      %v4451 = vadd.f32 %v4170, %v4443
      %v4452 = vadd.f32 %v4171, %v4444
      %v4453 = vadd.f32 %v4172, %v4445
      %v4454 = vadd.f32 %v4173, %v4446
      %v4455 = vadd.f32 %v4174, %v4447
      %v4456 = vadd.f32 %v4175, %v4448
      %v4457 = vadd.f32 %v4176, %v4449
      %v4458 = vadd.f32 %v4177, %v4450
      %v4459 = vld [vmem:[%s2975] sm:$0xff]
      %v4460 = vld [vmem:[%s2975 + $0x8] sm:$0xff]
      %v4461 = vld [vmem:[%s2975 + $0x10] sm:$0xff]
      %v4462 = vld [vmem:[%s2975 + $0x18] sm:$0xff]
      %v4463 = vld [vmem:[%s2975 + $0x20] sm:$0xff]
      %v4464 = vld [vmem:[%s2975 + $0x28] sm:$0xff]
      %v4465 = vld [vmem:[%s2975 + $0x30] sm:$0xff]
      %v4466 = vld [vmem:[%s2975 + $0x38] sm:$0xff]
      %v4475 = vunpack.c.l.b16 %v4459
      %v4476 = vunpack.c.h.b16 %v4459
      %v4477 = vunpack.c.l.b16 %v4460
      %v4478 = vunpack.c.h.b16 %v4460
      %v4479 = vunpack.c.l.b16 %v4461
      %v4480 = vunpack.c.h.b16 %v4461
      %v4481 = vunpack.c.l.b16 %v4462
      %v4482 = vunpack.c.h.b16 %v4462
      %v4483 = vunpack.c.l.b16 %v4463
      %v4484 = vunpack.c.h.b16 %v4463
      %v4485 = vunpack.c.l.b16 %v4464
      %v4486 = vunpack.c.h.b16 %v4464
      %v4487 = vunpack.c.l.b16 %v4465
      %v4488 = vunpack.c.h.b16 %v4465
      %v4489 = vunpack.c.l.b16 %v4466
      %v4490 = vunpack.c.h.b16 %v4466
      %v4491 = vpack.c.b16 %v4477, %v4475
      %v4492 = vpack.c.b16 %v4478, %v4476
      %v4493 = vpack.c.b16 %v4481, %v4479
      %v4494 = vpack.c.b16 %v4482, %v4480
      %v4495 = vpack.c.b16 %v4485, %v4483
      %v4496 = vpack.c.b16 %v4486, %v4484
      %v4497 = vpack.c.b16 %v4489, %v4487
      %v4498 = vpack.c.b16 %v4490, %v4488
      %4503 = vrot.lane.b32.xlu0 %v3460, 30
      %v4504 = vpop.permute.xlu0 %4503
      %4505 = vrot.lane.b32.xlu0 %v3461, 30
      %v4506 = vpop.permute.xlu0 %4505
      %4507 = vrot.lane.b32.xlu0 %v3462, 30
      %v4508 = vpop.permute.xlu0 %4507
      %4509 = vrot.lane.b32.xlu0 %v3463, 30
      %v4510 = vpop.permute.xlu0 %4509
      %4511 = vrot.lane.b32.xlu0 %v3464, 30
      %v4512 = vpop.permute.xlu0 %4511
      %4513 = vrot.lane.b32.xlu0 %v3465, 30
      %v4514 = vpop.permute.xlu0 %4513
      %4515 = vrot.lane.b32.xlu0 %v3466, 30
      %v4516 = vpop.permute.xlu0 %4515
      %4517 = vrot.lane.b32.xlu0 %v3467, 30
      %v4518 = vpop.permute.xlu0 %4517
      %4519 = vrot.lane.b32.xlu0 %v3468, 30
      %v4520 = vpop.permute.xlu0 %4519
      %4521 = vrot.lane.b32.xlu0 %v3469, 30
      %v4522 = vpop.permute.xlu0 %4521
      %4523 = vrot.lane.b32.xlu0 %v3470, 30
      %v4524 = vpop.permute.xlu0 %4523
      %4525 = vrot.lane.b32.xlu0 %v3471, 30
      %v4526 = vpop.permute.xlu0 %4525
      %4527 = vrot.lane.b32.xlu0 %v4228, 30
      %v4528 = vpop.permute.xlu0 %4527
      %4529 = vrot.lane.b32.xlu0 %v4229, 30
      %v4530 = vpop.permute.xlu0 %4529
      %4531 = vrot.lane.b32.xlu0 %v4230, 30
      %v4532 = vpop.permute.xlu0 %4531
      %4533 = vrot.lane.b32.xlu0 %v4231, 30
      %v4534 = vpop.permute.xlu0 %4533
      %4535 = vrot.lane.b32.xlu0 %v4232, 30
      %v4536 = vpop.permute.xlu0 %4535
      %4537 = vrot.lane.b32.xlu0 %v4233, 30
      %v4538 = vpop.permute.xlu0 %4537
      %4539 = vrot.lane.b32.xlu0 %v3478, 30
      %v4540 = vpop.permute.xlu0 %4539
      %4541 = vrot.lane.b32.xlu0 %v3479, 30
      %v4542 = vpop.permute.xlu0 %4541
      %4543 = vrot.lane.b32.xlu0 %v3480, 30
      %v4544 = vpop.permute.xlu0 %4543
      %4545 = vrot.lane.b32.xlu0 %v3481, 30
      %v4546 = vpop.permute.xlu0 %4545
      %4547 = vrot.lane.b32.xlu0 %v3482, 30
      %v4548 = vpop.permute.xlu0 %4547
      %4549 = vrot.lane.b32.xlu0 %v3483, 30
      %v4550 = vpop.permute.xlu0 %4549
      %4551 = vrot.lane.b32.xlu0 %v3484, 30
      %v4552 = vpop.permute.xlu0 %4551
      %4553 = vrot.lane.b32.xlu0 %v3485, 30
      %v4554 = vpop.permute.xlu0 %4553
      %4555 = vrot.lane.b32.xlu0 %v3486, 30
      %v4556 = vpop.permute.xlu0 %4555
      %4557 = vrot.lane.b32.xlu0 %v3487, 30
      %v4558 = vpop.permute.xlu0 %4557
      %4559 = vrot.lane.b32.xlu0 %v3488, 30
      %v4560 = vpop.permute.xlu0 %4559
      %4561 = vrot.lane.b32.xlu0 %v3489, 30
      %v4562 = vpop.permute.xlu0 %4561
      %v4563 = vsel %vm3080, %v4504, %v4506
      %v4564 = vsel %vm3080, %v4508, %v4510
      %v4565 = vsel %vm3080, %v4512, %v4514
      %v4566 = vsel %vm3080, %v4516, %v4518
      %v4567 = vsel %vm3080, %v4520, %v4522
      %v4568 = vsel %vm3080, %v4524, %v4526
      %v4569 = vsel %vm3080, %v4528, %v4530
      %v4570 = vsel %vm3080, %v4532, %v4534
      %v4571 = vsel %vm3080, %v4536, %v4538
      %v4572 = vsel %vm3080, %v4540, %v4542
      %v4573 = vsel %vm3080, %v4544, %v4546
      %v4574 = vsel %vm3080, %v4548, %v4550
      %v4575 = vsel %vm3080, %v4552, %v4554
      %v4576 = vsel %vm3080, %v4556, %v4558
      %v4577 = vsel %vm3080, %v4560, %v4562
      %v4594 = vsel %vm1189, %v4492, 0
      %v4597 = vsel %vm1189, %v4494, 0
      %v4600 = vsel %vm1189, %v4496, 0
      %v4603 = vsel %vm1189, %v4498, 0
      %4605 = vmatprep.subr.bf16.mxu0 0
      %4606 = vmatpush1.bf16.msra.mxu0 %v4563
      %4607 = vmatprep.subr.bf16.mxu0 0
      %4608 = vmatpush1.bf16.msra.mxu0 %v4564
      %4609 = vmatprep.subr.bf16.mxu0 0
      %4610 = vmatpush1.bf16.msra.mxu0 %v4565
      %4611 = vmatprep.subr.bf16.mxu0 0
      %4612 = vmatpush1.bf16.msra.mxu0 %v4566
      %4613 = vmatprep.subr.bf16.mxu0 0
      %4614 = vmatpush1.bf16.msra.mxu0 %v4567
      %4615 = vmatprep.subr.bf16.mxu0 0
      %4616 = vmatpush1.bf16.msra.mxu0 %v4568
      %4617 = vmatprep.subr.bf16.mxu0 0
      %4618 = vmatpush1.bf16.msra.mxu0 %v4569
      %4619 = vmatprep.subr.bf16.mxu0 0
      %4620 = vmatpush1.bf16.msra.mxu0 %v4570
      %4621 = vmatprep.subr.bf16.mxu0 0
      %4622 = vmatpush1.bf16.msra.mxu0 %v4571
      %4623 = vmatprep.subr.bf16.mxu0 0
      %4624 = vmatpush1.bf16.msra.mxu0 %v4572
      %4625 = vmatprep.subr.bf16.mxu0 0
      %4626 = vmatpush1.bf16.msra.mxu0 %v4573
      %4627 = vmatprep.subr.bf16.mxu0 0
      %4628 = vmatpush1.bf16.msra.mxu0 %v4574
      %4629 = vmatprep.subr.bf16.mxu0 0
      %4630 = vmatpush1.bf16.msra.mxu0 %v4575
      %4631 = vmatprep.subr.bf16.mxu0 0
      %4632 = vmatpush1.bf16.msra.mxu0 %v4576
      %4633 = vmatprep.subr.bf16.mxu0 0
      %4634 = vmatpush1.bf16.msra.mxu0 %v4577
      %4635 = vmatprep.subr.bf16.mxu0 0
      %4636 = vmatpush1.bf16.msra.mxu0 0
      %4637 = vmatprep.mubr.bf16.mxu0 %v4594
      %4638 = vmatmul.mubr.bf16.gmra.mrb[0].mxu0 %v4491
      %v4639 = vpop.f32.mrb[0].mxu0
      %v4640 = vadd.f32 0.0, %v4639
      %v4641 = vpop.f32.mrb[0].mxu0
      %v4642 = vpop.f32.mrb[0].mxu0
      %v4643 = vadd.f32 0.0, %v4642
      %v4644 = vpop.f32.mrb[0].mxu0
      %4645 = vmatprep.mubr.bf16.mxu0 %v4597
      %4646 = vmatmul.mubr.bf16.gmra.mrb[0].mxu0 %v4493
      %v4647 = vpop.f32.mrb[0].mxu0
      %v4648 = vadd.f32 0.0, %v4647
      %v4649 = vpop.f32.mrb[0].mxu0
      %v4650 = vpop.f32.mrb[0].mxu0
      %v4651 = vadd.f32 0.0, %v4650
      %v4652 = vpop.f32.mrb[0].mxu0
      %4653 = vmatprep.mubr.bf16.mxu0 %v4600
      %4654 = vmatmul.mubr.bf16.gmra.mrb[0].mxu0 %v4495
      %v4655 = vpop.f32.mrb[0].mxu0
      %v4656 = vadd.f32 0.0, %v4655
      %v4657 = vpop.f32.mrb[0].mxu0
      %v4658 = vpop.f32.mrb[0].mxu0
      %v4659 = vadd.f32 0.0, %v4658
      %v4660 = vpop.f32.mrb[0].mxu0
      %4661 = vmatprep.mubr.bf16.mxu0 %v4603
      %4662 = vmatmul.mubr.bf16.gmra.mrb[0].mxu0 %v4497
      %v4663 = vpop.f32.mrb[0].mxu0
      %v4664 = vadd.f32 0.0, %v4663
      %v4665 = vpop.f32.mrb[0].mxu0
      %v4666 = vpop.f32.mrb[0].mxu0
      %v4667 = vadd.f32 0.0, %v4666
      %v4668 = vpop.f32.mrb[0].mxu0
      %4669 = vdwg.mxu0
      %v4670 = vsel %vm3235, 1, 0
      %vm4671 = vcmp.eq.s32.totalorder %v4670, 1
      %v4672 = vsel %vm4671, %v4640, 0.0
      %v4673 = vsel %vm4671, %v4643, 0.0
      %v4674 = vsel %vm4671, %v4648, 0.0
      %v4675 = vsel %vm4671, %v4651, 0.0
      %v4676 = vsel %vm4671, %v4656, 0.0
      %v4677 = vsel %vm4671, %v4659, 0.0
      %v4678 = vsel %vm4671, %v4664, 0.0
      %v4679 = vsel %vm4671, %v4667, 0.0
      %v4680 = vadd.f32 %v4451, %v4672
      %v4681 = vadd.f32 %v4452, %v4673
      %v4682 = vadd.f32 %v4453, %v4674
      %v4683 = vadd.f32 %v4454, %v4675
      %v4684 = vadd.f32 %v4455, %v4676
      %v4685 = vadd.f32 %v4456, %v4677
      %v4686 = vadd.f32 %v4457, %v4678
      %v4687 = vadd.f32 %v4458, %v4679
      %v4688 = vadd.f32 %v4680, %v1736
      %v4689 = vadd.f32 %v4681, %v1741
      %v4690 = vadd.f32 %v4682, %v1746
      %v4691 = vadd.f32 %v4683, %v1751
      %v4692 = vadd.f32 %v4684, %v1756
      %v4693 = vadd.f32 %v4685, %v1761
      %v4694 = vadd.f32 %v4686, %v1766
      %v4695 = vadd.f32 %v4687, %v1771
      %v4696 = vmax.f32 %v4688, 0.0
      %v4697 = vmax.f32 %v4689, 0.0
      %v4698 = vmax.f32 %v4690, 0.0
      %v4699 = vmax.f32 %v4691, 0.0
      %v4700 = vmax.f32 %v4692, 0.0
      %v4701 = vmax.f32 %v4693, 0.0
      %v4702 = vmax.f32 %v4694, 0.0
      %v4703 = vmax.f32 %v4695, 0.0
      %4704 = vst [vmem:[%s359 + $0x88] sm:$0xff] %v4696
      %4705 = vst [vmem:[%s359 + $0x98] sm:$0xff] %v4697
      %4706 = vst [vmem:[%s359 + $0xa8] sm:$0xff] %v4698
      %4707 = vst [vmem:[%s359 + $0xb8] sm:$0xff] %v4699
      %4708 = vst [vmem:[%s359 + $0xc8] sm:$0xff] %v4700
      %4709 = vst [vmem:[%s359 + $0xd8] sm:$0xff] %v4701
      %4710 = vst [vmem:[%s359 + $0xe8] sm:$0xff] %v4702
      %4711 = vst [vmem:[%s359 + $0xf8] sm:$0xff] %v4703
      %v4712 = vld [vmem:[%s6] sm:$0xff]
      %v4713 = vld [vmem:[%s6 + $0x8] sm:$0xff]
      %v4714 = vld [vmem:[%s6 + $0x10] sm:$0xff]
      %v4715 = vld [vmem:[%s6 + $0x18] sm:$0xff]
      %v4716 = vld [vmem:[%s6 + $0x20] sm:$0xff]
      %v4717 = vld [vmem:[%s6 + $0x28] sm:$0xff]
      %v4718 = vld [vmem:[%s6 + $0x30] sm:$0xff]
      %v4719 = vld [vmem:[%s6 + $0x38] sm:$0xff]
      %v4720 = vld [vmem:[%s6 + $0x40] sm:$0xff]
      %v4721 = vld [vmem:[%s6 + $0x48] sm:$0xff]
      %v4722 = vld [vmem:[%s6 + $0x50] sm:$0xff]
      %v4723 = vld [vmem:[%s6 + $0x58] sm:$0xff]
      %4725 = vset.pattern.permute.xlu0 0
      %4726 = vperm.xlu0 %4725, %v4712
      %v4727 = vpop.permute.xlu0 %4726
      %4730 = vset.pattern.permute.xlu0 0
      %4731 = vperm.xlu0 %4730, %v4713
      %v4732 = vpop.permute.xlu0 %4731
      %4735 = vset.pattern.permute.xlu0 0
      %4736 = vperm.xlu0 %4735, %v4714
      %v4737 = vpop.permute.xlu0 %4736
      %4740 = vset.pattern.permute.xlu0 0
      %4741 = vperm.xlu0 %4740, %v4715
      %v4742 = vpop.permute.xlu0 %4741
      %4745 = vset.pattern.permute.xlu0 0
      %4746 = vperm.xlu0 %4745, %v4716
      %v4747 = vpop.permute.xlu0 %4746
      %4750 = vset.pattern.permute.xlu0 0
      %4751 = vperm.xlu0 %4750, %v4717
      %v4752 = vpop.permute.xlu0 %4751
      %4755 = vset.pattern.permute.xlu0 0
      %4756 = vperm.xlu0 %4755, %v4718
      %v4757 = vpop.permute.xlu0 %4756
      %4760 = vset.pattern.permute.xlu0 0
      %4761 = vperm.xlu0 %4760, %v4719
      %v4762 = vpop.permute.xlu0 %4761
      %4765 = vset.pattern.permute.xlu0 0
      %4766 = vperm.xlu0 %4765, %v4720
      %v4767 = vpop.permute.xlu0 %4766
      %4770 = vset.pattern.permute.xlu0 0
      %4771 = vperm.xlu0 %4770, %v4721
      %v4772 = vpop.permute.xlu0 %4771
      %4775 = vset.pattern.permute.xlu0 0
      %4776 = vperm.xlu0 %4775, %v4722
      %v4777 = vpop.permute.xlu0 %4776
      %4780 = vset.pattern.permute.xlu0 0
      %4781 = vperm.xlu0 %4780, %v4723
      %v4782 = vpop.permute.xlu0 %4781
      %v4784 = vld [vmem:[#allocation3] sm:$0xff]
      %v4785 = vld [vmem:[#allocation3 + $0x8] sm:$0xff]
      %v4786 = vld [vmem:[#allocation3 + $0x20] sm:$0xff]
      %v4787 = vld [vmem:[#allocation3 + $0x28] sm:$0xff]
      %v4788 = vld [vmem:[#allocation3 + $0x40] sm:$0xff]
      %v4789 = vld [vmem:[#allocation3 + $0x48] sm:$0xff]
      %v4790 = vld [vmem:[#allocation3 + $0x60] sm:$0xff]
      %v4791 = vld [vmem:[#allocation3 + $0x68] sm:$0xff]
      %v4792 = vld [vmem:[#allocation3 + $0x80] sm:$0xff]
      %v4793 = vld [vmem:[#allocation3 + $0x88] sm:$0xff]
      %v4794 = vld [vmem:[#allocation3 + $0xa0] sm:$0xff]
      %v4795 = vld [vmem:[#allocation3 + $0xa8] sm:$0xff]
      %v4796 = vld [vmem:[#allocation3 + $0xc0] sm:$0xff]
      %v4797 = vld [vmem:[#allocation3 + $0xc8] sm:$0xff]
      %v4798 = vld [vmem:[#allocation3 + $0xe0] sm:$0xff]
      %v4799 = vld [vmem:[#allocation3 + $0xe8] sm:$0xff]
      %v4800 = vld [vmem:[#allocation3 + $0x10] sm:$0xff]
      %v4801 = vld [vmem:[#allocation3 + $0x30] sm:$0xff]
      %v4802 = vld [vmem:[#allocation3 + $0x50] sm:$0xff]
      %v4803 = vld [vmem:[#allocation3 + $0x70] sm:$0xff]
      %v4804 = vld [vmem:[#allocation3 + $0x90] sm:$0xff]
      %v4805 = vld [vmem:[#allocation3 + $0xb0] sm:$0xff]
      %v4806 = vld [vmem:[#allocation3 + $0xd0] sm:$0xff]
      %v4807 = vld [vmem:[#allocation3 + $0xf0] sm:$0xff]
      %4824 = vrot.lane.b32.xlu0 %v4784, 112
      %v4825 = vpop.permute.xlu0 %4824
      %4826 = vrot.lane.b32.xlu0 %v4785, 112
      %v4827 = vpop.permute.xlu0 %4826
      %4828 = vrot.lane.b32.xlu0 %v4786, 112
      %v4829 = vpop.permute.xlu0 %4828
      %4830 = vrot.lane.b32.xlu0 %v4787, 112
      %v4831 = vpop.permute.xlu0 %4830
      %4832 = vrot.lane.b32.xlu0 %v4788, 112
      %v4833 = vpop.permute.xlu0 %4832
      %4834 = vrot.lane.b32.xlu0 %v4789, 112
      %v4835 = vpop.permute.xlu0 %4834
      %4836 = vrot.lane.b32.xlu0 %v4790, 112
      %v4837 = vpop.permute.xlu0 %4836
      %4838 = vrot.lane.b32.xlu0 %v4791, 112
      %v4839 = vpop.permute.xlu0 %4838
      %4840 = vrot.lane.b32.xlu0 %v4792, 112
      %v4841 = vpop.permute.xlu0 %4840
      %4842 = vrot.lane.b32.xlu0 %v4793, 112
      %v4843 = vpop.permute.xlu0 %4842
      %4844 = vrot.lane.b32.xlu0 %v4794, 112
      %v4845 = vpop.permute.xlu0 %4844
      %4846 = vrot.lane.b32.xlu0 %v4795, 112
      %v4847 = vpop.permute.xlu0 %4846
      %4848 = vrot.lane.b32.xlu0 %v4796, 112
      %v4849 = vpop.permute.xlu0 %4848
      %4850 = vrot.lane.b32.xlu0 %v4797, 112
      %v4851 = vpop.permute.xlu0 %4850
      %4852 = vrot.lane.b32.xlu0 %v4798, 112
      %v4853 = vpop.permute.xlu0 %4852
      %4854 = vrot.lane.b32.xlu0 %v4799, 112
      %v4855 = vpop.permute.xlu0 %4854
      %v4856 = vsel %vm1189, %v4825, %v4827
      %v4857 = vsel %vm1189, %v4829, %v4831
      %v4858 = vsel %vm1189, %v4833, %v4835
      %v4859 = vsel %vm1189, %v4837, %v4839
      %v4860 = vsel %vm1189, %v4841, %v4843
      %v4861 = vsel %vm1189, %v4845, %v4847
      %v4862 = vsel %vm1189, %v4849, %v4851
      %v4863 = vsel %vm1189, %v4853, %v4855
      %4888 = vrot.lane.b32.xlu0 %v4785, 96
      %v4889 = vpop.permute.xlu0 %4888
      %4890 = vrot.lane.b32.xlu0 %v4800, 96
      %v4891 = vpop.permute.xlu0 %4890
      %4892 = vrot.lane.b32.xlu0 %v4787, 96
      %v4893 = vpop.permute.xlu0 %4892
      %4894 = vrot.lane.b32.xlu0 %v4801, 96
      %v4895 = vpop.permute.xlu0 %4894
      %4896 = vrot.lane.b32.xlu0 %v4789, 96
      %v4897 = vpop.permute.xlu0 %4896
      %4898 = vrot.lane.b32.xlu0 %v4802, 96
      %v4899 = vpop.permute.xlu0 %4898
      %4900 = vrot.lane.b32.xlu0 %v4791, 96
      %v4901 = vpop.permute.xlu0 %4900
      %4902 = vrot.lane.b32.xlu0 %v4803, 96
      %v4903 = vpop.permute.xlu0 %4902
      %4904 = vrot.lane.b32.xlu0 %v4793, 96
      %v4905 = vpop.permute.xlu0 %4904
      %4906 = vrot.lane.b32.xlu0 %v4804, 96
      %v4907 = vpop.permute.xlu0 %4906
      %4908 = vrot.lane.b32.xlu0 %v4795, 96
      %v4909 = vpop.permute.xlu0 %4908
      %4910 = vrot.lane.b32.xlu0 %v4805, 96
      %v4911 = vpop.permute.xlu0 %4910
      %4912 = vrot.lane.b32.xlu0 %v4797, 96
      %v4913 = vpop.permute.xlu0 %4912
      %4914 = vrot.lane.b32.xlu0 %v4806, 96
      %v4915 = vpop.permute.xlu0 %4914
      %4916 = vrot.lane.b32.xlu0 %v4799, 96
      %v4917 = vpop.permute.xlu0 %4916
      %4918 = vrot.lane.b32.xlu0 %v4807, 96
      %v4919 = vpop.permute.xlu0 %4918
      %v4920 = vsel %vm1234, %v4889, %v4891
      %v4921 = vsel %vm1234, %v4893, %v4895
      %v4922 = vsel %vm1234, %v4897, %v4899
      %v4923 = vsel %vm1234, %v4901, %v4903
      %v4924 = vsel %vm1234, %v4905, %v4907
      %v4925 = vsel %vm1234, %v4909, %v4911
      %v4926 = vsel %vm1234, %v4913, %v4915
      %v4927 = vsel %vm1234, %v4917, %v4919
      %v4944 = vld [vmem:[%s5] sm:$0xff]
      %v4945 = vld [vmem:[%s5 + $0x8] sm:$0xff]
      %v4946 = vld [vmem:[%s5 + $0x10] sm:$0xff]
      %v4947 = vld [vmem:[%s5 + $0x18] sm:$0xff]
      %v4948 = vld [vmem:[%s5 + $0x20] sm:$0xff]
      %v4949 = vld [vmem:[%s5 + $0x28] sm:$0xff]
      %v4950 = vld [vmem:[%s5 + $0x30] sm:$0xff]
      %v4951 = vld [vmem:[%s5 + $0x38] sm:$0xff]
      %v4952 = vld [vmem:[%s5 + $0x40] sm:$0xff]
      %v4953 = vld [vmem:[%s5 + $0x48] sm:$0xff]
      %v4954 = vld [vmem:[%s5 + $0x50] sm:$0xff]
      %v4955 = vld [vmem:[%s5 + $0x58] sm:$0xff]
      %v4956 = vpack.c.bf16 %v4786, %v4784
      %v4957 = vpack.c.bf16 %v4787, %v4785
      %v4958 = vpack.c.bf16 %v4790, %v4788
      %v4959 = vpack.c.bf16 %v4791, %v4789
      %v4960 = vpack.c.bf16 %v4794, %v4792
      %v4961 = vpack.c.bf16 %v4795, %v4793
      %v4962 = vpack.c.bf16 %v4798, %v4796
      %v4963 = vpack.c.bf16 %v4799, %v4797
      %v4964 = vpack.c.bf16 %v4857, %v4856
      %v4965 = vpack.c.bf16 %v4831, %v4827
      %v4966 = vpack.c.bf16 %v4859, %v4858
      %v4967 = vpack.c.bf16 %v4839, %v4835
      %v4968 = vpack.c.bf16 %v4861, %v4860
      %v4969 = vpack.c.bf16 %v4847, %v4843
      %v4970 = vpack.c.bf16 %v4863, %v4862
      %v4971 = vpack.c.bf16 %v4855, %v4851
      %v4972 = vpack.c.bf16 %v4893, %v4889
      %v4973 = vpack.c.bf16 %v4921, %v4920
      %v4974 = vpack.c.bf16 %v4901, %v4897
      %v4975 = vpack.c.bf16 %v4923, %v4922
      %v4976 = vpack.c.bf16 %v4909, %v4905
      %v4977 = vpack.c.bf16 %v4925, %v4924
      %v4978 = vpack.c.bf16 %v4917, %v4913
      %v4979 = vpack.c.bf16 %v4927, %v4926
      %v4992 = vunpack.c.l.b16 %v4944
      %v4993 = vunpack.c.h.b16 %v4944
      %v4994 = vunpack.c.l.b16 %v4945
      %v4995 = vunpack.c.h.b16 %v4945
      %v4996 = vunpack.c.l.b16 %v4946
      %v4997 = vunpack.c.h.b16 %v4946
      %v4998 = vunpack.c.l.b16 %v4947
      %v4999 = vunpack.c.h.b16 %v4947
      %v5000 = vunpack.c.l.b16 %v4948
      %v5001 = vunpack.c.h.b16 %v4948
      %v5002 = vunpack.c.l.b16 %v4949
      %v5003 = vunpack.c.h.b16 %v4949
      %v5004 = vunpack.c.l.b16 %v4950
      %v5005 = vunpack.c.h.b16 %v4950
      %v5006 = vunpack.c.l.b16 %v4951
      %v5007 = vunpack.c.h.b16 %v4951
      %v5008 = vunpack.c.l.b16 %v4952
      %v5009 = vunpack.c.h.b16 %v4952
      %v5010 = vunpack.c.l.b16 %v4953
      %v5011 = vunpack.c.h.b16 %v4953
      %v5012 = vunpack.c.l.b16 %v4954
      %v5013 = vunpack.c.h.b16 %v4954
      %v5014 = vunpack.c.l.b16 %v4955
      %v5015 = vunpack.c.h.b16 %v4955
      %v5016 = vpack.c.b16 %v4994, %v4992
      %v5017 = vpack.c.b16 %v4995, %v4993
      %v5018 = vpack.c.b16 %v4998, %v4996
      %v5019 = vpack.c.b16 %v4999, %v4997
      %v5020 = vpack.c.b16 %v5002, %v5000
      %v5021 = vpack.c.b16 %v5003, %v5001
      %v5022 = vpack.c.b16 %v5006, %v5004
      %v5023 = vpack.c.b16 %v5007, %v5005
      %v5024 = vpack.c.b16 %v5010, %v5008
      %v5025 = vpack.c.b16 %v5011, %v5009
      %v5026 = vpack.c.b16 %v5014, %v5012
      %v5027 = vpack.c.b16 %v5015, %v5013
      %5058 = vrot.lane.b32.xlu0 %v4956, 17
      %v5059 = vpop.permute.xlu0 %5058
      %5060 = vrot.lane.b32.xlu0 %v4957, 17
      %v5061 = vpop.permute.xlu0 %5060
      %5062 = vrot.lane.b32.xlu0 %v4958, 17
      %v5063 = vpop.permute.xlu0 %5062
      %5064 = vrot.lane.b32.xlu0 %v4959, 17
      %v5065 = vpop.permute.xlu0 %5064
      %5066 = vrot.lane.b32.xlu0 %v4960, 17
      %v5067 = vpop.permute.xlu0 %5066
      %5068 = vrot.lane.b32.xlu0 %v4961, 17
      %v5069 = vpop.permute.xlu0 %5068
      %5070 = vrot.lane.b32.xlu0 %v4962, 17
      %v5071 = vpop.permute.xlu0 %5070
      %5072 = vrot.lane.b32.xlu0 %v4963, 17
      %v5073 = vpop.permute.xlu0 %5072
      %5074 = vrot.lane.b32.xlu0 %v4964, 17
      %v5075 = vpop.permute.xlu0 %5074
      %5076 = vrot.lane.b32.xlu0 %v4965, 17
      %v5077 = vpop.permute.xlu0 %5076
      %5078 = vrot.lane.b32.xlu0 %v4966, 17
      %v5079 = vpop.permute.xlu0 %5078
      %5080 = vrot.lane.b32.xlu0 %v4967, 17
      %v5081 = vpop.permute.xlu0 %5080
      %5082 = vrot.lane.b32.xlu0 %v4968, 17
      %v5083 = vpop.permute.xlu0 %5082
      %5084 = vrot.lane.b32.xlu0 %v4969, 17
      %v5085 = vpop.permute.xlu0 %5084
      %5086 = vrot.lane.b32.xlu0 %v4970, 17
      %v5087 = vpop.permute.xlu0 %5086
      %5088 = vrot.lane.b32.xlu0 %v4971, 17
      %v5089 = vpop.permute.xlu0 %5088
      %5090 = vrot.lane.b32.xlu0 %v4972, 17
      %v5091 = vpop.permute.xlu0 %5090
      %5092 = vrot.lane.b32.xlu0 %v4973, 17
      %v5093 = vpop.permute.xlu0 %5092
      %5094 = vrot.lane.b32.xlu0 %v4974, 17
      %v5095 = vpop.permute.xlu0 %5094
      %5096 = vrot.lane.b32.xlu0 %v4975, 17
      %v5097 = vpop.permute.xlu0 %5096
      %5098 = vrot.lane.b32.xlu0 %v4976, 17
      %v5099 = vpop.permute.xlu0 %5098
      %5100 = vrot.lane.b32.xlu0 %v4977, 17
      %v5101 = vpop.permute.xlu0 %5100
      %5102 = vrot.lane.b32.xlu0 %v4978, 17
      %v5103 = vpop.permute.xlu0 %5102
      %5104 = vrot.lane.b32.xlu0 %v4979, 17
      %v5105 = vpop.permute.xlu0 %5104
      %vm5106 = vcmask 138240
      %v5107 = vsel %vm5106, %v5059, %v5061
      %v5108 = vsel %vm5106, %v5063, %v5065
      %v5109 = vsel %vm5106, %v5067, %v5069
      %v5110 = vsel %vm5106, %v5071, %v5073
      %v5111 = vsel %vm5106, %v5075, %v5077
      %v5112 = vsel %vm5106, %v5079, %v5081
      %v5113 = vsel %vm5106, %v5083, %v5085
      %v5114 = vsel %vm5106, %v5087, %v5089
      %v5115 = vsel %vm5106, %v5091, %v5093
      %v5116 = vsel %vm5106, %v5095, %v5097
      %v5117 = vsel %vm5106, %v5099, %v5101
      %v5118 = vsel %vm5106, %v5103, %v5105
      %v5132 = vsel %vm1966, %v5017, 0
      %v5135 = vsel %vm1966, %v5019, 0
      %v5138 = vsel %vm1966, %v5021, 0
      %v5141 = vsel %vm1966, %v5023, 0
      %v5144 = vsel %vm1966, %v5025, 0
      %v5147 = vsel %vm1966, %v5027, 0
      %5149 = vmatprep.subr.bf16.mxu0 0
      %5150 = vmatpush1.bf16.msra.mxu0 %v5107
      %5151 = vmatprep.subr.bf16.mxu0 0
      %5152 = vmatpush1.bf16.msra.mxu0 %v5108
      %5153 = vmatprep.subr.bf16.mxu0 0
      %5154 = vmatpush1.bf16.msra.mxu0 %v5109
      %5155 = vmatprep.subr.bf16.mxu0 0
      %5156 = vmatpush1.bf16.msra.mxu0 %v5110
      %5157 = vmatprep.subr.bf16.mxu0 0
      %5158 = vmatpush1.bf16.msra.mxu0 %v5111
      %5159 = vmatprep.subr.bf16.mxu0 0
      %5160 = vmatpush1.bf16.msra.mxu0 %v5112
      %5161 = vmatprep.subr.bf16.mxu0 0
      %5162 = vmatpush1.bf16.msra.mxu0 %v5113
      %5163 = vmatprep.subr.bf16.mxu0 0
      %5164 = vmatpush1.bf16.msra.mxu0 %v5114
      %5165 = vmatprep.subr.bf16.mxu0 0
      %5166 = vmatpush1.bf16.msra.mxu0 %v5115
      %5167 = vmatprep.subr.bf16.mxu0 0
      %5168 = vmatpush1.bf16.msra.mxu0 %v5116
      %5169 = vmatprep.subr.bf16.mxu0 0
      %5170 = vmatpush1.bf16.msra.mxu0 %v5117
      %5171 = vmatprep.subr.bf16.mxu0 0
      %5172 = vmatpush1.bf16.msra.mxu0 %v5118
      %5173 = vmatprep.subr.bf16.mxu0 0
      %5174 = vmatpush1.bf16.msra.mxu0 0
      %5175 = vmatprep.subr.bf16.mxu0 0
      %5176 = vmatpush1.bf16.msra.mxu0 0
      %5177 = vmatprep.subr.bf16.mxu0 0
      %5178 = vmatpush1.bf16.msra.mxu0 0
      %5179 = vmatprep.subr.bf16.mxu0 0
      %5180 = vmatpush1.bf16.msra.mxu0 0
      %5181 = vmatprep.mubr.bf16.mxu0 %v5132
      %5182 = vmatmul.mubr.bf16.gmra.mrb[0].mxu0 %v5016
      %v5183 = vpop.f32.mrb[0].mxu0
      %v5184 = vadd.f32 0.0, %v5183
      %v5185 = vpop.f32.mrb[0].mxu0
      %v5186 = vpop.f32.mrb[0].mxu0
      %v5187 = vadd.f32 0.0, %v5186
      %v5188 = vpop.f32.mrb[0].mxu0
      %5189 = vmatprep.mubr.bf16.mxu0 %v5135
      %5190 = vmatmul.mubr.bf16.gmra.mrb[0].mxu0 %v5018
      %v5191 = vpop.f32.mrb[0].mxu0
      %v5192 = vadd.f32 0.0, %v5191
      %v5193 = vpop.f32.mrb[0].mxu0
      %v5194 = vpop.f32.mrb[0].mxu0
      %v5195 = vadd.f32 0.0, %v5194
      %v5196 = vpop.f32.mrb[0].mxu0
      %5197 = vmatprep.mubr.bf16.mxu0 %v5138
      %5198 = vmatmul.mubr.bf16.gmra.mrb[0].mxu0 %v5020
      %v5199 = vpop.f32.mrb[0].mxu0
      %v5200 = vadd.f32 0.0, %v5199
      %v5201 = vpop.f32.mrb[0].mxu0
      %v5202 = vpop.f32.mrb[0].mxu0
      %v5203 = vadd.f32 0.0, %v5202
      %v5204 = vpop.f32.mrb[0].mxu0
      %5205 = vmatprep.mubr.bf16.mxu0 %v5141
      %5206 = vmatmul.mubr.bf16.gmra.mrb[0].mxu0 %v5022
      %v5207 = vpop.f32.mrb[0].mxu0
      %v5208 = vadd.f32 0.0, %v5207
      %v5209 = vpop.f32.mrb[0].mxu0
      %v5210 = vpop.f32.mrb[0].mxu0
      %v5211 = vadd.f32 0.0, %v5210
      %v5212 = vpop.f32.mrb[0].mxu0
      %5213 = vmatprep.mubr.bf16.mxu0 %v5144
      %5214 = vmatmul.mubr.bf16.gmra.mrb[0].mxu0 %v5024
      %v5215 = vpop.f32.mrb[0].mxu0
      %v5216 = vadd.f32 0.0, %v5215
      %v5217 = vpop.f32.mrb[0].mxu0
      %v5218 = vpop.f32.mrb[0].mxu0
      %v5219 = vadd.f32 0.0, %v5218
      %v5220 = vpop.f32.mrb[0].mxu0
      %5221 = vmatprep.mubr.bf16.mxu0 %v5147
      %5222 = vmatmul.mubr.bf16.gmra.mrb[0].mxu0 %v5026
      %v5223 = vpop.f32.mrb[0].mxu0
      %v5224 = vadd.f32 0.0, %v5223
      %v5225 = vpop.f32.mrb[0].mxu0
      %v5226 = vpop.f32.mrb[0].mxu0
      %v5227 = vadd.f32 0.0, %v5226
      %v5228 = vpop.f32.mrb[0].mxu0
      %5229 = vdwg.mxu0
      %v5230 = vsel %vm1256, %v5184, 0.0
      %v5231 = vsel %vm1256, %v5187, 0.0
      %v5232 = vsel %vm1256, %v5192, 0.0
      %v5233 = vsel %vm1256, %v5195, 0.0
      %v5234 = vsel %vm1256, %v5200, 0.0
      %v5235 = vsel %vm1256, %v5203, 0.0
      %v5236 = vsel %vm1256, %v5208, 0.0
      %v5237 = vsel %vm1256, %v5211, 0.0
      %v5238 = vsel %vm1256, %v5216, 0.0
      %v5239 = vsel %vm1256, %v5219, 0.0
      %v5240 = vsel %vm1256, %v5224, 0.0
      %v5241 = vsel %vm1256, %v5227, 0.0
      %v5242 = vadd.f32 %v5230, 0.0
      %v5243 = vadd.f32 %v5231, 0.0
      %v5244 = vadd.f32 %v5232, 0.0
      %v5245 = vadd.f32 %v5233, 0.0
      %v5246 = vadd.f32 %v5234, 0.0
      %v5247 = vadd.f32 %v5235, 0.0
      %v5248 = vadd.f32 %v5236, 0.0
      %v5249 = vadd.f32 %v5237, 0.0
      %v5250 = vadd.f32 %v5238, 0.0
      %v5251 = vadd.f32 %v5239, 0.0
      %v5252 = vadd.f32 %v5240, 0.0
      %v5253 = vadd.f32 %v5241, 0.0
      %s5254 = scalar_lea.vmem %s5, 96
      %v5255 = vld [vmem:[%s5254] sm:$0xff]
      %v5256 = vld [vmem:[%s5254 + $0x8] sm:$0xff]
      %v5257 = vld [vmem:[%s5254 + $0x10] sm:$0xff]
      %v5258 = vld [vmem:[%s5254 + $0x18] sm:$0xff]
      %v5259 = vld [vmem:[%s5254 + $0x20] sm:$0xff]
      %v5260 = vld [vmem:[%s5254 + $0x28] sm:$0xff]
      %v5261 = vld [vmem:[%s5254 + $0x30] sm:$0xff]
      %v5262 = vld [vmem:[%s5254 + $0x38] sm:$0xff]
      %v5263 = vld [vmem:[%s5254 + $0x40] sm:$0xff]
      %v5264 = vld [vmem:[%s5254 + $0x48] sm:$0xff]
      %v5265 = vld [vmem:[%s5254 + $0x50] sm:$0xff]
      %v5266 = vld [vmem:[%s5254 + $0x58] sm:$0xff]
      %v5279 = vunpack.c.l.b16 %v5255
      %v5280 = vunpack.c.h.b16 %v5255
      %v5281 = vunpack.c.l.b16 %v5256
      %v5282 = vunpack.c.h.b16 %v5256
      %v5283 = vunpack.c.l.b16 %v5257
      %v5284 = vunpack.c.h.b16 %v5257
      %v5285 = vunpack.c.l.b16 %v5258
      %v5286 = vunpack.c.h.b16 %v5258
      %v5287 = vunpack.c.l.b16 %v5259
      %v5288 = vunpack.c.h.b16 %v5259
      %v5289 = vunpack.c.l.b16 %v5260
      %v5290 = vunpack.c.h.b16 %v5260
      %v5291 = vunpack.c.l.b16 %v5261
      %v5292 = vunpack.c.h.b16 %v5261
      %v5293 = vunpack.c.l.b16 %v5262
      %v5294 = vunpack.c.h.b16 %v5262
      %v5295 = vunpack.c.l.b16 %v5263
      %v5296 = vunpack.c.h.b16 %v5263
      %v5297 = vunpack.c.l.b16 %v5264
      %v5298 = vunpack.c.h.b16 %v5264
      %v5299 = vunpack.c.l.b16 %v5265
      %v5300 = vunpack.c.h.b16 %v5265
      %v5301 = vunpack.c.l.b16 %v5266
      %v5302 = vunpack.c.h.b16 %v5266
      %v5303 = vpack.c.b16 %v5281, %v5279
      %v5304 = vpack.c.b16 %v5282, %v5280
      %v5305 = vpack.c.b16 %v5285, %v5283
      %v5306 = vpack.c.b16 %v5286, %v5284
      %v5307 = vpack.c.b16 %v5289, %v5287
      %v5308 = vpack.c.b16 %v5290, %v5288
      %v5309 = vpack.c.b16 %v5293, %v5291
      %v5310 = vpack.c.b16 %v5294, %v5292
      %v5311 = vpack.c.b16 %v5297, %v5295
      %v5312 = vpack.c.b16 %v5298, %v5296
      %v5313 = vpack.c.b16 %v5301, %v5299
      %v5314 = vpack.c.b16 %v5302, %v5300
      %5321 = vrot.lane.b32.xlu0 %v4956, 16
      %v5322 = vpop.permute.xlu0 %5321
      %5323 = vrot.lane.b32.xlu0 %v4957, 16
      %v5324 = vpop.permute.xlu0 %5323
      %5325 = vrot.lane.b32.xlu0 %v4958, 16
      %v5326 = vpop.permute.xlu0 %5325
      %5327 = vrot.lane.b32.xlu0 %v4959, 16
      %v5328 = vpop.permute.xlu0 %5327
      %5329 = vrot.lane.b32.xlu0 %v4960, 16
      %v5330 = vpop.permute.xlu0 %5329
      %5331 = vrot.lane.b32.xlu0 %v4961, 16
      %v5332 = vpop.permute.xlu0 %5331
      %5333 = vrot.lane.b32.xlu0 %v4962, 16
      %v5334 = vpop.permute.xlu0 %5333
      %5335 = vrot.lane.b32.xlu0 %v4963, 16
      %v5336 = vpop.permute.xlu0 %5335
      %5337 = vrot.lane.b32.xlu0 %v4965, 16
      %v5338 = vpop.permute.xlu0 %5337
      %5339 = vrot.lane.b32.xlu0 %v4967, 16
      %v5340 = vpop.permute.xlu0 %5339
      %5341 = vrot.lane.b32.xlu0 %v4969, 16
      %v5342 = vpop.permute.xlu0 %5341
      %5343 = vrot.lane.b32.xlu0 %v4971, 16
      %v5344 = vpop.permute.xlu0 %5343
      %5345 = vrot.lane.b32.xlu0 %v4972, 16
      %v5346 = vpop.permute.xlu0 %5345
      %5347 = vrot.lane.b32.xlu0 %v4973, 16
      %v5348 = vpop.permute.xlu0 %5347
      %5349 = vrot.lane.b32.xlu0 %v4974, 16
      %v5350 = vpop.permute.xlu0 %5349
      %5351 = vrot.lane.b32.xlu0 %v4975, 16
      %v5352 = vpop.permute.xlu0 %5351
      %5353 = vrot.lane.b32.xlu0 %v4976, 16
      %v5354 = vpop.permute.xlu0 %5353
      %5355 = vrot.lane.b32.xlu0 %v4977, 16
      %v5356 = vpop.permute.xlu0 %5355
      %5357 = vrot.lane.b32.xlu0 %v4978, 16
      %v5358 = vpop.permute.xlu0 %5357
      %5359 = vrot.lane.b32.xlu0 %v4979, 16
      %v5360 = vpop.permute.xlu0 %5359
      %vm5361 = vcmask 130048
      %v5362 = vsel %vm5361, %v5322, %v5324
      %v5363 = vsel %vm5361, %v5326, %v5328
      %v5364 = vsel %vm5361, %v5330, %v5332
      %v5365 = vsel %vm5361, %v5334, %v5336
      %v5366 = vsel %vm5361, %v5346, %v5348
      %v5367 = vsel %vm5361, %v5350, %v5352
      %v5368 = vsel %vm5361, %v5354, %v5356
      %v5369 = vsel %vm5361, %v5358, %v5360
      %v5383 = vsel %vm1966, %v5304, 0
      %v5386 = vsel %vm1966, %v5306, 0
      %v5389 = vsel %vm1966, %v5308, 0
      %v5392 = vsel %vm1966, %v5310, 0
      %v5395 = vsel %vm1966, %v5312, 0
      %v5398 = vsel %vm1966, %v5314, 0
      %5400 = vmatprep.subr.bf16.mxu0 0
      %5401 = vmatpush1.bf16.msra.mxu0 %v5362
      %5402 = vmatprep.subr.bf16.mxu0 0
      %5403 = vmatpush1.bf16.msra.mxu0 %v5363
      %5404 = vmatprep.subr.bf16.mxu0 0
      %5405 = vmatpush1.bf16.msra.mxu0 %v5364
      %5406 = vmatprep.subr.bf16.mxu0 0
      %5407 = vmatpush1.bf16.msra.mxu0 %v5365
      %5408 = vmatprep.subr.bf16.mxu0 0
      %5409 = vmatpush1.bf16.msra.mxu0 %v5338
      %5410 = vmatprep.subr.bf16.mxu0 0
      %5411 = vmatpush1.bf16.msra.mxu0 %v5340
      %5412 = vmatprep.subr.bf16.mxu0 0
      %5413 = vmatpush1.bf16.msra.mxu0 %v5342
      %5414 = vmatprep.subr.bf16.mxu0 0
      %5415 = vmatpush1.bf16.msra.mxu0 %v5344
      %5416 = vmatprep.subr.bf16.mxu0 0
      %5417 = vmatpush1.bf16.msra.mxu0 %v5366
      %5418 = vmatprep.subr.bf16.mxu0 0
      %5419 = vmatpush1.bf16.msra.mxu0 %v5367
      %5420 = vmatprep.subr.bf16.mxu0 0
      %5421 = vmatpush1.bf16.msra.mxu0 %v5368
      %5422 = vmatprep.subr.bf16.mxu0 0
      %5423 = vmatpush1.bf16.msra.mxu0 %v5369
      %5424 = vmatprep.subr.bf16.mxu0 0
      %5425 = vmatpush1.bf16.msra.mxu0 0
      %5426 = vmatprep.subr.bf16.mxu0 0
      %5427 = vmatpush1.bf16.msra.mxu0 0
      %5428 = vmatprep.subr.bf16.mxu0 0
      %5429 = vmatpush1.bf16.msra.mxu0 0
      %5430 = vmatprep.subr.bf16.mxu0 0
      %5431 = vmatpush1.bf16.msra.mxu0 0
      %5432 = vmatprep.mubr.bf16.mxu0 %v5383
      %5433 = vmatmul.mubr.bf16.gmra.mrb[0].mxu0 %v5303
      %v5434 = vpop.f32.mrb[0].mxu0
      %v5435 = vadd.f32 0.0, %v5434
      %v5436 = vpop.f32.mrb[0].mxu0
      %v5437 = vpop.f32.mrb[0].mxu0
      %v5438 = vadd.f32 0.0, %v5437
      %v5439 = vpop.f32.mrb[0].mxu0
      %5440 = vmatprep.mubr.bf16.mxu0 %v5386
      %5441 = vmatmul.mubr.bf16.gmra.mrb[0].mxu0 %v5305
      %v5442 = vpop.f32.mrb[0].mxu0
      %v5443 = vadd.f32 0.0, %v5442
      %v5444 = vpop.f32.mrb[0].mxu0
      %v5445 = vpop.f32.mrb[0].mxu0
      %v5446 = vadd.f32 0.0, %v5445
      %v5447 = vpop.f32.mrb[0].mxu0
      %5448 = vmatprep.mubr.bf16.mxu0 %v5389
      %5449 = vmatmul.mubr.bf16.gmra.mrb[0].mxu0 %v5307
      %v5450 = vpop.f32.mrb[0].mxu0
      %v5451 = vadd.f32 0.0, %v5450
      %v5452 = vpop.f32.mrb[0].mxu0
      %v5453 = vpop.f32.mrb[0].mxu0
      %v5454 = vadd.f32 0.0, %v5453
      %v5455 = vpop.f32.mrb[0].mxu0
      %5456 = vmatprep.mubr.bf16.mxu0 %v5392
      %5457 = vmatmul.mubr.bf16.gmra.mrb[0].mxu0 %v5309
      %v5458 = vpop.f32.mrb[0].mxu0
      %v5459 = vadd.f32 0.0, %v5458
      %v5460 = vpop.f32.mrb[0].mxu0
      %v5461 = vpop.f32.mrb[0].mxu0
      %v5462 = vadd.f32 0.0, %v5461
      %v5463 = vpop.f32.mrb[0].mxu0
      %5464 = vmatprep.mubr.bf16.mxu0 %v5395
      %5465 = vmatmul.mubr.bf16.gmra.mrb[0].mxu0 %v5311
      %v5466 = vpop.f32.mrb[0].mxu0
      %v5467 = vadd.f32 0.0, %v5466
      %v5468 = vpop.f32.mrb[0].mxu0
      %v5469 = vpop.f32.mrb[0].mxu0
      %v5470 = vadd.f32 0.0, %v5469
      %v5471 = vpop.f32.mrb[0].mxu0
      %5472 = vmatprep.mubr.bf16.mxu0 %v5398
      %5473 = vmatmul.mubr.bf16.gmra.mrb[0].mxu0 %v5313
      %v5474 = vpop.f32.mrb[0].mxu0
      %v5475 = vadd.f32 0.0, %v5474
      %v5476 = vpop.f32.mrb[0].mxu0
      %v5477 = vpop.f32.mrb[0].mxu0
      %v5478 = vadd.f32 0.0, %v5477
      %v5479 = vpop.f32.mrb[0].mxu0
      %5480 = vdwg.mxu0
      %v5481 = vadd.f32 %v5242, %v5435
      %v5482 = vadd.f32 %v5243, %v5438
      %v5483 = vadd.f32 %v5244, %v5443
      %v5484 = vadd.f32 %v5245, %v5446
      %v5485 = vadd.f32 %v5246, %v5451
      %v5486 = vadd.f32 %v5247, %v5454
      %v5487 = vadd.f32 %v5248, %v5459
      %v5488 = vadd.f32 %v5249, %v5462
      %v5489 = vadd.f32 %v5250, %v5467
      %v5490 = vadd.f32 %v5251, %v5470
      %v5491 = vadd.f32 %v5252, %v5475
      %v5492 = vadd.f32 %v5253, %v5478
      %5493 = vrot.lane.b32.xlu0 %v4800, 112
      %v5494 = vpop.permute.xlu0 %5493
      %5495 = vrot.lane.b32.xlu0 %v4801, 112
      %v5496 = vpop.permute.xlu0 %5495
      %5497 = vrot.lane.b32.xlu0 %v4802, 112
      %v5498 = vpop.permute.xlu0 %5497
      %5499 = vrot.lane.b32.xlu0 %v4803, 112
      %v5500 = vpop.permute.xlu0 %5499
      %5501 = vrot.lane.b32.xlu0 %v4804, 112
      %v5502 = vpop.permute.xlu0 %5501
      %5503 = vrot.lane.b32.xlu0 %v4805, 112
      %v5504 = vpop.permute.xlu0 %5503
      %5505 = vrot.lane.b32.xlu0 %v4806, 112
      %v5506 = vpop.permute.xlu0 %5505
      %5507 = vrot.lane.b32.xlu0 %v4807, 112
      %v5508 = vpop.permute.xlu0 %5507
      %v5509 = vsel %vm1189, %v4827, %v5494
      %v5510 = vsel %vm1189, %v4831, %v5496
      %v5511 = vsel %vm1189, %v4835, %v5498
      %v5512 = vsel %vm1189, %v4839, %v5500
      %v5513 = vsel %vm1189, %v4843, %v5502
      %v5514 = vsel %vm1189, %v4847, %v5504
      %v5515 = vsel %vm1189, %v4851, %v5506
      %v5516 = vsel %vm1189, %v4855, %v5508
      %s5525 = scalar_lea.vmem %s5, 192
      %v5526 = vld [vmem:[%s5525] sm:$0xff]
      %v5527 = vld [vmem:[%s5525 + $0x8] sm:$0xff]
      %v5528 = vld [vmem:[%s5525 + $0x10] sm:$0xff]
      %v5529 = vld [vmem:[%s5525 + $0x18] sm:$0xff]
      %v5530 = vld [vmem:[%s5525 + $0x20] sm:$0xff]
      %v5531 = vld [vmem:[%s5525 + $0x28] sm:$0xff]
      %v5532 = vld [vmem:[%s5525 + $0x30] sm:$0xff]
      %v5533 = vld [vmem:[%s5525 + $0x38] sm:$0xff]
      %v5534 = vld [vmem:[%s5525 + $0x40] sm:$0xff]
      %v5535 = vld [vmem:[%s5525 + $0x48] sm:$0xff]
      %v5536 = vld [vmem:[%s5525 + $0x50] sm:$0xff]
      %v5537 = vld [vmem:[%s5525 + $0x58] sm:$0xff]
      %v5538 = vpack.c.bf16 %v5510, %v5509
      %v5539 = vpack.c.bf16 %v5512, %v5511
      %v5540 = vpack.c.bf16 %v5514, %v5513
      %v5541 = vpack.c.bf16 %v5516, %v5515
      %v5554 = vunpack.c.l.b16 %v5526
      %v5555 = vunpack.c.h.b16 %v5526
      %v5556 = vunpack.c.l.b16 %v5527
      %v5557 = vunpack.c.h.b16 %v5527
      %v5558 = vunpack.c.l.b16 %v5528
      %v5559 = vunpack.c.h.b16 %v5528
      %v5560 = vunpack.c.l.b16 %v5529
      %v5561 = vunpack.c.h.b16 %v5529
      %v5562 = vunpack.c.l.b16 %v5530
      %v5563 = vunpack.c.h.b16 %v5530
      %v5564 = vunpack.c.l.b16 %v5531
      %v5565 = vunpack.c.h.b16 %v5531
      %v5566 = vunpack.c.l.b16 %v5532
      %v5567 = vunpack.c.h.b16 %v5532
      %v5568 = vunpack.c.l.b16 %v5533
      %v5569 = vunpack.c.h.b16 %v5533
      %v5570 = vunpack.c.l.b16 %v5534
      %v5571 = vunpack.c.h.b16 %v5534
      %v5572 = vunpack.c.l.b16 %v5535
      %v5573 = vunpack.c.h.b16 %v5535
      %v5574 = vunpack.c.l.b16 %v5536
      %v5575 = vunpack.c.h.b16 %v5536
      %v5576 = vunpack.c.l.b16 %v5537
      %v5577 = vunpack.c.h.b16 %v5537
      %v5578 = vpack.c.b16 %v5556, %v5554
      %v5579 = vpack.c.b16 %v5557, %v5555
      %v5580 = vpack.c.b16 %v5560, %v5558
      %v5581 = vpack.c.b16 %v5561, %v5559
      %v5582 = vpack.c.b16 %v5564, %v5562
      %v5583 = vpack.c.b16 %v5565, %v5563
      %v5584 = vpack.c.b16 %v5568, %v5566
      %v5585 = vpack.c.b16 %v5569, %v5567
      %v5586 = vpack.c.b16 %v5572, %v5570
      %v5587 = vpack.c.b16 %v5573, %v5571
      %v5588 = vpack.c.b16 %v5576, %v5574
      %v5589 = vpack.c.b16 %v5577, %v5575
      %5600 = vrot.lane.b32.xlu0 %v4956, 15
      %v5601 = vpop.permute.xlu0 %5600
      %5602 = vrot.lane.b32.xlu0 %v4957, 15
      %v5603 = vpop.permute.xlu0 %5602
      %5604 = vrot.lane.b32.xlu0 %v4958, 15
      %v5605 = vpop.permute.xlu0 %5604
      %5606 = vrot.lane.b32.xlu0 %v4959, 15
      %v5607 = vpop.permute.xlu0 %5606
      %5608 = vrot.lane.b32.xlu0 %v4960, 15
      %v5609 = vpop.permute.xlu0 %5608
      %5610 = vrot.lane.b32.xlu0 %v4961, 15
      %v5611 = vpop.permute.xlu0 %5610
      %5612 = vrot.lane.b32.xlu0 %v4962, 15
      %v5613 = vpop.permute.xlu0 %5612
      %5614 = vrot.lane.b32.xlu0 %v4963, 15
      %v5615 = vpop.permute.xlu0 %5614
      %5616 = vrot.lane.b32.xlu0 %v4965, 15
      %v5617 = vpop.permute.xlu0 %5616
      %5618 = vrot.lane.b32.xlu0 %v5538, 15
      %v5619 = vpop.permute.xlu0 %5618
      %5620 = vrot.lane.b32.xlu0 %v4967, 15
      %v5621 = vpop.permute.xlu0 %5620
      %5622 = vrot.lane.b32.xlu0 %v5539, 15
      %v5623 = vpop.permute.xlu0 %5622
      %5624 = vrot.lane.b32.xlu0 %v4969, 15
      %v5625 = vpop.permute.xlu0 %5624
      %5626 = vrot.lane.b32.xlu0 %v5540, 15
      %v5627 = vpop.permute.xlu0 %5626
      %5628 = vrot.lane.b32.xlu0 %v4971, 15
      %v5629 = vpop.permute.xlu0 %5628
      %5630 = vrot.lane.b32.xlu0 %v5541, 15
      %v5631 = vpop.permute.xlu0 %5630
      %5632 = vrot.lane.b32.xlu0 %v4972, 15
      %v5633 = vpop.permute.xlu0 %5632
      %5634 = vrot.lane.b32.xlu0 %v4973, 15
      %v5635 = vpop.permute.xlu0 %5634
      %5636 = vrot.lane.b32.xlu0 %v4974, 15
      %v5637 = vpop.permute.xlu0 %5636
      %5638 = vrot.lane.b32.xlu0 %v4975, 15
      %v5639 = vpop.permute.xlu0 %5638
      %5640 = vrot.lane.b32.xlu0 %v4976, 15
      %v5641 = vpop.permute.xlu0 %5640
      %5642 = vrot.lane.b32.xlu0 %v4977, 15
      %v5643 = vpop.permute.xlu0 %5642
      %5644 = vrot.lane.b32.xlu0 %v4978, 15
      %v5645 = vpop.permute.xlu0 %5644
      %5646 = vrot.lane.b32.xlu0 %v4979, 15
      %v5647 = vpop.permute.xlu0 %5646
      %vm5648 = vcmask 121856
      %v5649 = vsel %vm5648, %v5601, %v5603
      %v5650 = vsel %vm5648, %v5605, %v5607
      %v5651 = vsel %vm5648, %v5609, %v5611
      %v5652 = vsel %vm5648, %v5613, %v5615
      %v5653 = vsel %vm5648, %v5617, %v5619
      %v5654 = vsel %vm5648, %v5621, %v5623
      %v5655 = vsel %vm5648, %v5625, %v5627
      %v5656 = vsel %vm5648, %v5629, %v5631
      %v5657 = vsel %vm5648, %v5633, %v5635
      %v5658 = vsel %vm5648, %v5637, %v5639
      %v5659 = vsel %vm5648, %v5641, %v5643
      %v5660 = vsel %vm5648, %v5645, %v5647
      %v5674 = vsel %vm1966, %v5579, 0
      %v5677 = vsel %vm1966, %v5581, 0
      %v5680 = vsel %vm1966, %v5583, 0
      %v5683 = vsel %vm1966, %v5585, 0
      %v5686 = vsel %vm1966, %v5587, 0
      %v5689 = vsel %vm1966, %v5589, 0
      %5691 = vmatprep.subr.bf16.mxu0 0
      %5692 = vmatpush1.bf16.msra.mxu0 %v5649
      %5693 = vmatprep.subr.bf16.mxu0 0
      %5694 = vmatpush1.bf16.msra.mxu0 %v5650
      %5695 = vmatprep.subr.bf16.mxu0 0
      %5696 = vmatpush1.bf16.msra.mxu0 %v5651
      %5697 = vmatprep.subr.bf16.mxu0 0
      %5698 = vmatpush1.bf16.msra.mxu0 %v5652
      %5699 = vmatprep.subr.bf16.mxu0 0
      %5700 = vmatpush1.bf16.msra.mxu0 %v5653
      %5701 = vmatprep.subr.bf16.mxu0 0
      %5702 = vmatpush1.bf16.msra.mxu0 %v5654
      %5703 = vmatprep.subr.bf16.mxu0 0
      %5704 = vmatpush1.bf16.msra.mxu0 %v5655
      %5705 = vmatprep.subr.bf16.mxu0 0
      %5706 = vmatpush1.bf16.msra.mxu0 %v5656
      %5707 = vmatprep.subr.bf16.mxu0 0
      %5708 = vmatpush1.bf16.msra.mxu0 %v5657
      %5709 = vmatprep.subr.bf16.mxu0 0
      %5710 = vmatpush1.bf16.msra.mxu0 %v5658
      %5711 = vmatprep.subr.bf16.mxu0 0
      %5712 = vmatpush1.bf16.msra.mxu0 %v5659
      %5713 = vmatprep.subr.bf16.mxu0 0
      %5714 = vmatpush1.bf16.msra.mxu0 %v5660
      %5715 = vmatprep.subr.bf16.mxu0 0
      %5716 = vmatpush1.bf16.msra.mxu0 0
      %5717 = vmatprep.subr.bf16.mxu0 0
      %5718 = vmatpush1.bf16.msra.mxu0 0
      %5719 = vmatprep.subr.bf16.mxu0 0
      %5720 = vmatpush1.bf16.msra.mxu0 0
      %5721 = vmatprep.subr.bf16.mxu0 0
      %5722 = vmatpush1.bf16.msra.mxu0 0
      %5723 = vmatprep.mubr.bf16.mxu0 %v5674
      %5724 = vmatmul.mubr.bf16.gmra.mrb[0].mxu0 %v5578
      %v5725 = vpop.f32.mrb[0].mxu0
      %v5726 = vadd.f32 0.0, %v5725
      %v5727 = vpop.f32.mrb[0].mxu0
      %v5728 = vpop.f32.mrb[0].mxu0
      %v5729 = vadd.f32 0.0, %v5728
      %v5730 = vpop.f32.mrb[0].mxu0
      %5731 = vmatprep.mubr.bf16.mxu0 %v5677
      %5732 = vmatmul.mubr.bf16.gmra.mrb[0].mxu0 %v5580
      %v5733 = vpop.f32.mrb[0].mxu0
      %v5734 = vadd.f32 0.0, %v5733
      %v5735 = vpop.f32.mrb[0].mxu0
      %v5736 = vpop.f32.mrb[0].mxu0
      %v5737 = vadd.f32 0.0, %v5736
      %v5738 = vpop.f32.mrb[0].mxu0
      %5739 = vmatprep.mubr.bf16.mxu0 %v5680
      %5740 = vmatmul.mubr.bf16.gmra.mrb[0].mxu0 %v5582
      %v5741 = vpop.f32.mrb[0].mxu0
      %v5742 = vadd.f32 0.0, %v5741
      %v5743 = vpop.f32.mrb[0].mxu0
      %v5744 = vpop.f32.mrb[0].mxu0
      %v5745 = vadd.f32 0.0, %v5744
      %v5746 = vpop.f32.mrb[0].mxu0
      %5747 = vmatprep.mubr.bf16.mxu0 %v5683
      %5748 = vmatmul.mubr.bf16.gmra.mrb[0].mxu0 %v5584
      %v5749 = vpop.f32.mrb[0].mxu0
      %v5750 = vadd.f32 0.0, %v5749
      %v5751 = vpop.f32.mrb[0].mxu0
      %v5752 = vpop.f32.mrb[0].mxu0
      %v5753 = vadd.f32 0.0, %v5752
      %v5754 = vpop.f32.mrb[0].mxu0
      %5755 = vmatprep.mubr.bf16.mxu0 %v5686
      %5756 = vmatmul.mubr.bf16.gmra.mrb[0].mxu0 %v5586
      %v5757 = vpop.f32.mrb[0].mxu0
      %v5758 = vadd.f32 0.0, %v5757
      %v5759 = vpop.f32.mrb[0].mxu0
      %v5760 = vpop.f32.mrb[0].mxu0
      %v5761 = vadd.f32 0.0, %v5760
      %v5762 = vpop.f32.mrb[0].mxu0
      %5763 = vmatprep.mubr.bf16.mxu0 %v5689
      %5764 = vmatmul.mubr.bf16.gmra.mrb[0].mxu0 %v5588
      %v5765 = vpop.f32.mrb[0].mxu0
      %v5766 = vadd.f32 0.0, %v5765
      %v5767 = vpop.f32.mrb[0].mxu0
      %v5768 = vpop.f32.mrb[0].mxu0
      %v5769 = vadd.f32 0.0, %v5768
      %v5770 = vpop.f32.mrb[0].mxu0
      %5771 = vdwg.mxu0
      %v5772 = vsel %vm1364, %v5726, 0.0
      %v5773 = vsel %vm1364, %v5729, 0.0
      %v5774 = vsel %vm1364, %v5734, 0.0
      %v5775 = vsel %vm1364, %v5737, 0.0
      %v5776 = vsel %vm1364, %v5742, 0.0
      %v5777 = vsel %vm1364, %v5745, 0.0
      %v5778 = vsel %vm1364, %v5750, 0.0
      %v5779 = vsel %vm1364, %v5753, 0.0
      %v5780 = vsel %vm1364, %v5758, 0.0
      %v5781 = vsel %vm1364, %v5761, 0.0
      %v5782 = vsel %vm1364, %v5766, 0.0
      %v5783 = vsel %vm1364, %v5769, 0.0
      %v5784 = vadd.f32 %v5481, %v5772
      %v5785 = vadd.f32 %v5482, %v5773
      %v5786 = vadd.f32 %v5483, %v5774
      %v5787 = vadd.f32 %v5484, %v5775
      %v5788 = vadd.f32 %v5485, %v5776
      %v5789 = vadd.f32 %v5486, %v5777
      %v5790 = vadd.f32 %v5487, %v5778
      %v5791 = vadd.f32 %v5488, %v5779
      %v5792 = vadd.f32 %v5489, %v5780
      %v5793 = vadd.f32 %v5490, %v5781
      %v5794 = vadd.f32 %v5491, %v5782
      %v5795 = vadd.f32 %v5492, %v5783
      %v5796 = vadd.f32 %v5784, %v4727
      %v5797 = vadd.f32 %v5785, %v4732
      %v5798 = vadd.f32 %v5786, %v4737
      %v5799 = vadd.f32 %v5787, %v4742
      %v5800 = vadd.f32 %v5788, %v4747
      %v5801 = vadd.f32 %v5789, %v4752
      %v5802 = vadd.f32 %v5790, %v4757
      %v5803 = vadd.f32 %v5791, %v4762
      %v5804 = vadd.f32 %v5792, %v4767
      %v5805 = vadd.f32 %v5793, %v4772
      %v5806 = vadd.f32 %v5794, %v4777
      %v5807 = vadd.f32 %v5795, %v4782
      %v5808 = vmax.f32 %v5796, 0.0
      %v5809 = vmax.f32 %v5797, 0.0
      %v5810 = vmax.f32 %v5798, 0.0
      %v5811 = vmax.f32 %v5799, 0.0
      %v5812 = vmax.f32 %v5800, 0.0
      %v5813 = vmax.f32 %v5801, 0.0
      %v5814 = vmax.f32 %v5802, 0.0
      %v5815 = vmax.f32 %v5803, 0.0
      %v5816 = vmax.f32 %v5804, 0.0
      %v5817 = vmax.f32 %v5805, 0.0
      %v5818 = vmax.f32 %v5806, 0.0
      %v5819 = vmax.f32 %v5807, 0.0
      %5820 = vst [vmem:[#allocation4 + $0x8] sm:$0xff] %v5808
      %5821 = vst [vmem:[#allocation4 + $0x28] sm:$0xff] %v5809
      %5822 = vst [vmem:[#allocation4 + $0x48] sm:$0xff] %v5810
      %5823 = vst [vmem:[#allocation4 + $0x68] sm:$0xff] %v5811
      %5824 = vst [vmem:[#allocation4 + $0x88] sm:$0xff] %v5812
      %5825 = vst [vmem:[#allocation4 + $0xa8] sm:$0xff] %v5813
      %5826 = vst [vmem:[#allocation4 + $0xc8] sm:$0xff] %v5814
      %5827 = vst [vmem:[#allocation4 + $0xe8] sm:$0xff] %v5815
      %5828 = vst [vmem:[#allocation4 + $0x108] sm:$0xff] %v5816
      %5829 = vst [vmem:[#allocation4 + $0x128] sm:$0xff] %v5817
      %5830 = vst [vmem:[#allocation4 + $0x148] sm:$0xff] %v5818
      %5831 = vst [vmem:[#allocation4 + $0x168] sm:$0xff] %v5819
      %v5832 = vld [vmem:[#allocation3 + $0x8] sm:$0xff]
      %v5833 = vld [vmem:[#allocation3 + $0x10] sm:$0xff]
      %v5834 = vld [vmem:[#allocation3 + $0x28] sm:$0xff]
      %v5835 = vld [vmem:[#allocation3 + $0x30] sm:$0xff]
      %v5836 = vld [vmem:[#allocation3 + $0x48] sm:$0xff]
      %v5837 = vld [vmem:[#allocation3 + $0x50] sm:$0xff]
      %v5838 = vld [vmem:[#allocation3 + $0x68] sm:$0xff]
      %v5839 = vld [vmem:[#allocation3 + $0x70] sm:$0xff]
      %v5840 = vld [vmem:[#allocation3 + $0x88] sm:$0xff]
      %v5841 = vld [vmem:[#allocation3 + $0x90] sm:$0xff]
      %v5842 = vld [vmem:[#allocation3 + $0xa8] sm:$0xff]
      %v5843 = vld [vmem:[#allocation3 + $0xb0] sm:$0xff]
      %v5844 = vld [vmem:[#allocation3 + $0xc8] sm:$0xff]
      %v5845 = vld [vmem:[#allocation3 + $0xd0] sm:$0xff]
      %v5846 = vld [vmem:[#allocation3 + $0xe8] sm:$0xff]
      %v5847 = vld [vmem:[#allocation3 + $0xf0] sm:$0xff]
      %v5848 = vld [vmem:[#allocation3 + $0x10] sm:$0xff]
      %v5849 = vld [vmem:[#allocation3 + $0x18] sm:$0xff]
      %v5850 = vld [vmem:[#allocation3 + $0x30] sm:$0xff]
      %v5851 = vld [vmem:[#allocation3 + $0x38] sm:$0xff]
      %v5852 = vld [vmem:[#allocation3 + $0x50] sm:$0xff]
      %v5853 = vld [vmem:[#allocation3 + $0x58] sm:$0xff]
      %v5854 = vld [vmem:[#allocation3 + $0x70] sm:$0xff]
      %v5855 = vld [vmem:[#allocation3 + $0x78] sm:$0xff]
      %v5856 = vld [vmem:[#allocation3 + $0x90] sm:$0xff]
      %v5857 = vld [vmem:[#allocation3 + $0x98] sm:$0xff]
      %v5858 = vld [vmem:[#allocation3 + $0xb0] sm:$0xff]
      %v5859 = vld [vmem:[#allocation3 + $0xb8] sm:$0xff]
      %v5860 = vld [vmem:[#allocation3 + $0xd0] sm:$0xff]
      %v5861 = vld [vmem:[#allocation3 + $0xd8] sm:$0xff]
      %v5862 = vld [vmem:[#allocation3 + $0xf0] sm:$0xff]
      %v5863 = vld [vmem:[#allocation3 + $0xf8] sm:$0xff]
      %5880 = vrot.lane.b32.xlu0 %v5832, 112
      %v5881 = vpop.permute.xlu0 %5880
      %5882 = vrot.lane.b32.xlu0 %v5833, 112
      %v5883 = vpop.permute.xlu0 %5882
      %5884 = vrot.lane.b32.xlu0 %v5834, 112
      %v5885 = vpop.permute.xlu0 %5884
      %5886 = vrot.lane.b32.xlu0 %v5835, 112
      %v5887 = vpop.permute.xlu0 %5886
      %5888 = vrot.lane.b32.xlu0 %v5836, 112
      %v5889 = vpop.permute.xlu0 %5888
      %5890 = vrot.lane.b32.xlu0 %v5837, 112
      %v5891 = vpop.permute.xlu0 %5890
      %5892 = vrot.lane.b32.xlu0 %v5838, 112
      %v5893 = vpop.permute.xlu0 %5892
      %5894 = vrot.lane.b32.xlu0 %v5839, 112
      %v5895 = vpop.permute.xlu0 %5894
      %5896 = vrot.lane.b32.xlu0 %v5840, 112
      %v5897 = vpop.permute.xlu0 %5896
      %5898 = vrot.lane.b32.xlu0 %v5841, 112
      %v5899 = vpop.permute.xlu0 %5898
      %5900 = vrot.lane.b32.xlu0 %v5842, 112
      %v5901 = vpop.permute.xlu0 %5900
      %5902 = vrot.lane.b32.xlu0 %v5843, 112
      %v5903 = vpop.permute.xlu0 %5902
      %5904 = vrot.lane.b32.xlu0 %v5844, 112
      %v5905 = vpop.permute.xlu0 %5904
      %5906 = vrot.lane.b32.xlu0 %v5845, 112
      %v5907 = vpop.permute.xlu0 %5906
      %5908 = vrot.lane.b32.xlu0 %v5846, 112
      %v5909 = vpop.permute.xlu0 %5908
      %5910 = vrot.lane.b32.xlu0 %v5847, 112
      %v5911 = vpop.permute.xlu0 %5910
      %v5912 = vsel %vm1189, %v5881, %v5883
      %v5913 = vsel %vm1189, %v5885, %v5887
      %v5914 = vsel %vm1189, %v5889, %v5891
      %v5915 = vsel %vm1189, %v5893, %v5895
      %v5916 = vsel %vm1189, %v5897, %v5899
      %v5917 = vsel %vm1189, %v5901, %v5903
      %v5918 = vsel %vm1189, %v5905, %v5907
      %v5919 = vsel %vm1189, %v5909, %v5911
      %5952 = vrot.lane.b32.xlu0 %v5848, 96
      %v5953 = vpop.permute.xlu0 %5952
      %5954 = vrot.lane.b32.xlu0 %v5849, 96
      %v5955 = vpop.permute.xlu0 %5954
      %5956 = vrot.lane.b32.xlu0 %v5850, 96
      %v5957 = vpop.permute.xlu0 %5956
      %5958 = vrot.lane.b32.xlu0 %v5851, 96
      %v5959 = vpop.permute.xlu0 %5958
      %5960 = vrot.lane.b32.xlu0 %v5852, 96
      %v5961 = vpop.permute.xlu0 %5960
      %5962 = vrot.lane.b32.xlu0 %v5853, 96
      %v5963 = vpop.permute.xlu0 %5962
      %5964 = vrot.lane.b32.xlu0 %v5854, 96
      %v5965 = vpop.permute.xlu0 %5964
      %5966 = vrot.lane.b32.xlu0 %v5855, 96
      %v5967 = vpop.permute.xlu0 %5966
      %5968 = vrot.lane.b32.xlu0 %v5856, 96
      %v5969 = vpop.permute.xlu0 %5968
      %5970 = vrot.lane.b32.xlu0 %v5857, 96
      %v5971 = vpop.permute.xlu0 %5970
      %5972 = vrot.lane.b32.xlu0 %v5858, 96
      %v5973 = vpop.permute.xlu0 %5972
      %5974 = vrot.lane.b32.xlu0 %v5859, 96
      %v5975 = vpop.permute.xlu0 %5974
      %5976 = vrot.lane.b32.xlu0 %v5860, 96
      %v5977 = vpop.permute.xlu0 %5976
      %5978 = vrot.lane.b32.xlu0 %v5861, 96
      %v5979 = vpop.permute.xlu0 %5978
      %5980 = vrot.lane.b32.xlu0 %v5862, 96
      %v5981 = vpop.permute.xlu0 %5980
      %5982 = vrot.lane.b32.xlu0 %v5863, 96
      %v5983 = vpop.permute.xlu0 %5982
      %v5984 = vsel %vm1234, %v5953, %v5955
      %v5985 = vsel %vm1234, %v5957, %v5959
      %v5986 = vsel %vm1234, %v5961, %v5963
      %v5987 = vsel %vm1234, %v5965, %v5967
      %v5988 = vsel %vm1234, %v5969, %v5971
      %v5989 = vsel %vm1234, %v5973, %v5975
      %v5990 = vsel %vm1234, %v5977, %v5979
      %v5991 = vsel %vm1234, %v5981, %v5983
      %v6008 = vld [vmem:[%s5] sm:$0xff]
      %v6009 = vld [vmem:[%s5 + $0x8] sm:$0xff]
      %v6010 = vld [vmem:[%s5 + $0x10] sm:$0xff]
      %v6011 = vld [vmem:[%s5 + $0x18] sm:$0xff]
      %v6012 = vld [vmem:[%s5 + $0x20] sm:$0xff]
      %v6013 = vld [vmem:[%s5 + $0x28] sm:$0xff]
      %v6014 = vld [vmem:[%s5 + $0x30] sm:$0xff]
      %v6015 = vld [vmem:[%s5 + $0x38] sm:$0xff]
      %v6016 = vld [vmem:[%s5 + $0x40] sm:$0xff]
      %v6017 = vld [vmem:[%s5 + $0x48] sm:$0xff]
      %v6018 = vld [vmem:[%s5 + $0x50] sm:$0xff]
      %v6019 = vld [vmem:[%s5 + $0x58] sm:$0xff]
      %v6020 = vpack.c.bf16 %v5834, %v5832
      %v6021 = vpack.c.bf16 %v5835, %v5833
      %v6022 = vpack.c.bf16 %v5838, %v5836
      %v6023 = vpack.c.bf16 %v5839, %v5837
      %v6024 = vpack.c.bf16 %v5842, %v5840
      %v6025 = vpack.c.bf16 %v5843, %v5841
      %v6026 = vpack.c.bf16 %v5846, %v5844
      %v6027 = vpack.c.bf16 %v5847, %v5845
      %v6028 = vpack.c.bf16 %v5913, %v5912
      %v6029 = vpack.c.bf16 %v5887, %v5883
      %v6030 = vpack.c.bf16 %v5915, %v5914
      %v6031 = vpack.c.bf16 %v5895, %v5891
      %v6032 = vpack.c.bf16 %v5917, %v5916
      %v6033 = vpack.c.bf16 %v5903, %v5899
      %v6034 = vpack.c.bf16 %v5919, %v5918
      %v6035 = vpack.c.bf16 %v5911, %v5907
      %v6036 = vpack.c.bf16 %v5957, %v5953
      %v6037 = vpack.c.bf16 %v5985, %v5984
      %v6038 = vpack.c.bf16 %v5965, %v5961
      %v6039 = vpack.c.bf16 %v5987, %v5986
      %v6040 = vpack.c.bf16 %v5973, %v5969
      %v6041 = vpack.c.bf16 %v5989, %v5988
      %v6042 = vpack.c.bf16 %v5981, %v5977
      %v6043 = vpack.c.bf16 %v5991, %v5990
      %v6056 = vunpack.c.l.b16 %v6008
      %v6057 = vunpack.c.h.b16 %v6008
      %v6058 = vunpack.c.l.b16 %v6009
      %v6059 = vunpack.c.h.b16 %v6009
      %v6060 = vunpack.c.l.b16 %v6010
      %v6061 = vunpack.c.h.b16 %v6010
      %v6062 = vunpack.c.l.b16 %v6011
      %v6063 = vunpack.c.h.b16 %v6011
      %v6064 = vunpack.c.l.b16 %v6012
      %v6065 = vunpack.c.h.b16 %v6012
      %v6066 = vunpack.c.l.b16 %v6013
      %v6067 = vunpack.c.h.b16 %v6013
      %v6068 = vunpack.c.l.b16 %v6014
      %v6069 = vunpack.c.h.b16 %v6014
      %v6070 = vunpack.c.l.b16 %v6015
      %v6071 = vunpack.c.h.b16 %v6015
      %v6072 = vunpack.c.l.b16 %v6016
      %v6073 = vunpack.c.h.b16 %v6016
      %v6074 = vunpack.c.l.b16 %v6017
      %v6075 = vunpack.c.h.b16 %v6017
      %v6076 = vunpack.c.l.b16 %v6018
      %v6077 = vunpack.c.h.b16 %v6018
      %v6078 = vunpack.c.l.b16 %v6019
      %v6079 = vunpack.c.h.b16 %v6019
      %v6080 = vpack.c.b16 %v6058, %v6056
      %v6081 = vpack.c.b16 %v6059, %v6057
      %v6082 = vpack.c.b16 %v6062, %v6060
      %v6083 = vpack.c.b16 %v6063, %v6061
      %v6084 = vpack.c.b16 %v6066, %v6064
      %v6085 = vpack.c.b16 %v6067, %v6065
      %v6086 = vpack.c.b16 %v6070, %v6068
      %v6087 = vpack.c.b16 %v6071, %v6069
      %v6088 = vpack.c.b16 %v6074, %v6072
      %v6089 = vpack.c.b16 %v6075, %v6073
      %v6090 = vpack.c.b16 %v6078, %v6076
      %v6091 = vpack.c.b16 %v6079, %v6077
      %6122 = vrot.lane.b32.xlu0 %v6020, 17
      %v6123 = vpop.permute.xlu0 %6122
      %6124 = vrot.lane.b32.xlu0 %v6021, 17
      %v6125 = vpop.permute.xlu0 %6124
      %6126 = vrot.lane.b32.xlu0 %v6022, 17
      %v6127 = vpop.permute.xlu0 %6126
      %6128 = vrot.lane.b32.xlu0 %v6023, 17
      %v6129 = vpop.permute.xlu0 %6128
      %6130 = vrot.lane.b32.xlu0 %v6024, 17
      %v6131 = vpop.permute.xlu0 %6130
      %6132 = vrot.lane.b32.xlu0 %v6025, 17
      %v6133 = vpop.permute.xlu0 %6132
      %6134 = vrot.lane.b32.xlu0 %v6026, 17
      %v6135 = vpop.permute.xlu0 %6134
      %6136 = vrot.lane.b32.xlu0 %v6027, 17
      %v6137 = vpop.permute.xlu0 %6136
      %6138 = vrot.lane.b32.xlu0 %v6028, 17
      %v6139 = vpop.permute.xlu0 %6138
      %6140 = vrot.lane.b32.xlu0 %v6029, 17
      %v6141 = vpop.permute.xlu0 %6140
      %6142 = vrot.lane.b32.xlu0 %v6030, 17
      %v6143 = vpop.permute.xlu0 %6142
      %6144 = vrot.lane.b32.xlu0 %v6031, 17
      %v6145 = vpop.permute.xlu0 %6144
      %6146 = vrot.lane.b32.xlu0 %v6032, 17
      %v6147 = vpop.permute.xlu0 %6146
      %6148 = vrot.lane.b32.xlu0 %v6033, 17
      %v6149 = vpop.permute.xlu0 %6148
      %6150 = vrot.lane.b32.xlu0 %v6034, 17
      %v6151 = vpop.permute.xlu0 %6150
      %6152 = vrot.lane.b32.xlu0 %v6035, 17
      %v6153 = vpop.permute.xlu0 %6152
      %6154 = vrot.lane.b32.xlu0 %v6036, 17
      %v6155 = vpop.permute.xlu0 %6154
      %6156 = vrot.lane.b32.xlu0 %v6037, 17
      %v6157 = vpop.permute.xlu0 %6156
      %6158 = vrot.lane.b32.xlu0 %v6038, 17
      %v6159 = vpop.permute.xlu0 %6158
      %6160 = vrot.lane.b32.xlu0 %v6039, 17
      %v6161 = vpop.permute.xlu0 %6160
      %6162 = vrot.lane.b32.xlu0 %v6040, 17
      %v6163 = vpop.permute.xlu0 %6162
      %6164 = vrot.lane.b32.xlu0 %v6041, 17
      %v6165 = vpop.permute.xlu0 %6164
      %6166 = vrot.lane.b32.xlu0 %v6042, 17
      %v6167 = vpop.permute.xlu0 %6166
      %6168 = vrot.lane.b32.xlu0 %v6043, 17
      %v6169 = vpop.permute.xlu0 %6168
      %v6170 = vsel %vm5106, %v6123, %v6125
      %v6171 = vsel %vm5106, %v6127, %v6129
      %v6172 = vsel %vm5106, %v6131, %v6133
      %v6173 = vsel %vm5106, %v6135, %v6137
      %v6174 = vsel %vm5106, %v6139, %v6141
      %v6175 = vsel %vm5106, %v6143, %v6145
      %v6176 = vsel %vm5106, %v6147, %v6149
      %v6177 = vsel %vm5106, %v6151, %v6153
      %v6178 = vsel %vm5106, %v6155, %v6157
      %v6179 = vsel %vm5106, %v6159, %v6161
      %v6180 = vsel %vm5106, %v6163, %v6165
      %v6181 = vsel %vm5106, %v6167, %v6169
      %v6195 = vsel %vm1966, %v6081, 0
      %v6198 = vsel %vm1966, %v6083, 0
      %v6201 = vsel %vm1966, %v6085, 0
      %v6204 = vsel %vm1966, %v6087, 0
      %v6207 = vsel %vm1966, %v6089, 0
      %v6210 = vsel %vm1966, %v6091, 0
      %6212 = vmatprep.subr.bf16.mxu0 0
      %6213 = vmatpush1.bf16.msra.mxu0 %v6170
      %6214 = vmatprep.subr.bf16.mxu0 0
      %6215 = vmatpush1.bf16.msra.mxu0 %v6171
      %6216 = vmatprep.subr.bf16.mxu0 0
      %6217 = vmatpush1.bf16.msra.mxu0 %v6172
      %6218 = vmatprep.subr.bf16.mxu0 0
      %6219 = vmatpush1.bf16.msra.mxu0 %v6173
      %6220 = vmatprep.subr.bf16.mxu0 0
      %6221 = vmatpush1.bf16.msra.mxu0 %v6174
      %6222 = vmatprep.subr.bf16.mxu0 0
      %6223 = vmatpush1.bf16.msra.mxu0 %v6175
      %6224 = vmatprep.subr.bf16.mxu0 0
      %6225 = vmatpush1.bf16.msra.mxu0 %v6176
      %6226 = vmatprep.subr.bf16.mxu0 0
      %6227 = vmatpush1.bf16.msra.mxu0 %v6177
      %6228 = vmatprep.subr.bf16.mxu0 0
      %6229 = vmatpush1.bf16.msra.mxu0 %v6178
      %6230 = vmatprep.subr.bf16.mxu0 0
      %6231 = vmatpush1.bf16.msra.mxu0 %v6179
      %6232 = vmatprep.subr.bf16.mxu0 0
      %6233 = vmatpush1.bf16.msra.mxu0 %v6180
      %6234 = vmatprep.subr.bf16.mxu0 0
      %6235 = vmatpush1.bf16.msra.mxu0 %v6181
      %6236 = vmatprep.subr.bf16.mxu0 0
      %6237 = vmatpush1.bf16.msra.mxu0 0
      %6238 = vmatprep.subr.bf16.mxu0 0
      %6239 = vmatpush1.bf16.msra.mxu0 0
      %6240 = vmatprep.subr.bf16.mxu0 0
      %6241 = vmatpush1.bf16.msra.mxu0 0
      %6242 = vmatprep.subr.bf16.mxu0 0
      %6243 = vmatpush1.bf16.msra.mxu0 0
      %6244 = vmatprep.mubr.bf16.mxu0 %v6195
      %6245 = vmatmul.mubr.bf16.gmra.mrb[0].mxu0 %v6080
      %v6246 = vpop.f32.mrb[0].mxu0
      %v6247 = vadd.f32 0.0, %v6246
      %v6248 = vpop.f32.mrb[0].mxu0
      %v6249 = vpop.f32.mrb[0].mxu0
      %v6250 = vadd.f32 0.0, %v6249
      %v6251 = vpop.f32.mrb[0].mxu0
      %6252 = vmatprep.mubr.bf16.mxu0 %v6198
      %6253 = vmatmul.mubr.bf16.gmra.mrb[0].mxu0 %v6082
      %v6254 = vpop.f32.mrb[0].mxu0
      %v6255 = vadd.f32 0.0, %v6254
      %v6256 = vpop.f32.mrb[0].mxu0
      %v6257 = vpop.f32.mrb[0].mxu0
      %v6258 = vadd.f32 0.0, %v6257
      %v6259 = vpop.f32.mrb[0].mxu0
      %6260 = vmatprep.mubr.bf16.mxu0 %v6201
      %6261 = vmatmul.mubr.bf16.gmra.mrb[0].mxu0 %v6084
      %v6262 = vpop.f32.mrb[0].mxu0
      %v6263 = vadd.f32 0.0, %v6262
      %v6264 = vpop.f32.mrb[0].mxu0
      %v6265 = vpop.f32.mrb[0].mxu0
      %v6266 = vadd.f32 0.0, %v6265
      %v6267 = vpop.f32.mrb[0].mxu0
      %6268 = vmatprep.mubr.bf16.mxu0 %v6204
      %6269 = vmatmul.mubr.bf16.gmra.mrb[0].mxu0 %v6086
      %v6270 = vpop.f32.mrb[0].mxu0
      %v6271 = vadd.f32 0.0, %v6270
      %v6272 = vpop.f32.mrb[0].mxu0
      %v6273 = vpop.f32.mrb[0].mxu0
      %v6274 = vadd.f32 0.0, %v6273
      %v6275 = vpop.f32.mrb[0].mxu0
      %6276 = vmatprep.mubr.bf16.mxu0 %v6207
      %6277 = vmatmul.mubr.bf16.gmra.mrb[0].mxu0 %v6088
      %v6278 = vpop.f32.mrb[0].mxu0
      %v6279 = vadd.f32 0.0, %v6278
      %v6280 = vpop.f32.mrb[0].mxu0
      %v6281 = vpop.f32.mrb[0].mxu0
      %v6282 = vadd.f32 0.0, %v6281
      %v6283 = vpop.f32.mrb[0].mxu0
      %6284 = vmatprep.mubr.bf16.mxu0 %v6210
      %6285 = vmatmul.mubr.bf16.gmra.mrb[0].mxu0 %v6090
      %v6286 = vpop.f32.mrb[0].mxu0
      %v6287 = vadd.f32 0.0, %v6286
      %v6288 = vpop.f32.mrb[0].mxu0
      %v6289 = vpop.f32.mrb[0].mxu0
      %v6290 = vadd.f32 0.0, %v6289
      %v6291 = vpop.f32.mrb[0].mxu0
      %6292 = vdwg.mxu0
      %v6293 = vsel %vm1542, %v6247, 0.0
      %v6294 = vsel %vm1542, %v6250, 0.0
      %v6295 = vsel %vm1542, %v6255, 0.0
      %v6296 = vsel %vm1542, %v6258, 0.0
      %v6297 = vsel %vm1542, %v6263, 0.0
      %v6298 = vsel %vm1542, %v6266, 0.0
      %v6299 = vsel %vm1542, %v6271, 0.0
      %v6300 = vsel %vm1542, %v6274, 0.0
      %v6301 = vsel %vm1542, %v6279, 0.0
      %v6302 = vsel %vm1542, %v6282, 0.0
      %v6303 = vsel %vm1542, %v6287, 0.0
      %v6304 = vsel %vm1542, %v6290, 0.0
      %v6305 = vadd.f32 %v6293, 0.0
      %v6306 = vadd.f32 %v6294, 0.0
      %v6307 = vadd.f32 %v6295, 0.0
      %v6308 = vadd.f32 %v6296, 0.0
      %v6309 = vadd.f32 %v6297, 0.0
      %v6310 = vadd.f32 %v6298, 0.0
      %v6311 = vadd.f32 %v6299, 0.0
      %v6312 = vadd.f32 %v6300, 0.0
      %v6313 = vadd.f32 %v6301, 0.0
      %v6314 = vadd.f32 %v6302, 0.0
      %v6315 = vadd.f32 %v6303, 0.0
      %v6316 = vadd.f32 %v6304, 0.0
      %v6317 = vld [vmem:[%s5254] sm:$0xff]
      %v6318 = vld [vmem:[%s5254 + $0x8] sm:$0xff]
      %v6319 = vld [vmem:[%s5254 + $0x10] sm:$0xff]
      %v6320 = vld [vmem:[%s5254 + $0x18] sm:$0xff]
      %v6321 = vld [vmem:[%s5254 + $0x20] sm:$0xff]
      %v6322 = vld [vmem:[%s5254 + $0x28] sm:$0xff]
      %v6323 = vld [vmem:[%s5254 + $0x30] sm:$0xff]
      %v6324 = vld [vmem:[%s5254 + $0x38] sm:$0xff]
      %v6325 = vld [vmem:[%s5254 + $0x40] sm:$0xff]
      %v6326 = vld [vmem:[%s5254 + $0x48] sm:$0xff]
      %v6327 = vld [vmem:[%s5254 + $0x50] sm:$0xff]
      %v6328 = vld [vmem:[%s5254 + $0x58] sm:$0xff]
      %v6341 = vunpack.c.l.b16 %v6317
      %v6342 = vunpack.c.h.b16 %v6317
      %v6343 = vunpack.c.l.b16 %v6318
      %v6344 = vunpack.c.h.b16 %v6318
      %v6345 = vunpack.c.l.b16 %v6319
      %v6346 = vunpack.c.h.b16 %v6319
      %v6347 = vunpack.c.l.b16 %v6320
      %v6348 = vunpack.c.h.b16 %v6320
      %v6349 = vunpack.c.l.b16 %v6321
      %v6350 = vunpack.c.h.b16 %v6321
      %v6351 = vunpack.c.l.b16 %v6322
      %v6352 = vunpack.c.h.b16 %v6322
      %v6353 = vunpack.c.l.b16 %v6323
      %v6354 = vunpack.c.h.b16 %v6323
      %v6355 = vunpack.c.l.b16 %v6324
      %v6356 = vunpack.c.h.b16 %v6324
      %v6357 = vunpack.c.l.b16 %v6325
      %v6358 = vunpack.c.h.b16 %v6325
      %v6359 = vunpack.c.l.b16 %v6326
      %v6360 = vunpack.c.h.b16 %v6326
      %v6361 = vunpack.c.l.b16 %v6327
      %v6362 = vunpack.c.h.b16 %v6327
      %v6363 = vunpack.c.l.b16 %v6328
      %v6364 = vunpack.c.h.b16 %v6328
      %v6365 = vpack.c.b16 %v6343, %v6341
      %v6366 = vpack.c.b16 %v6344, %v6342
      %v6367 = vpack.c.b16 %v6347, %v6345
      %v6368 = vpack.c.b16 %v6348, %v6346
      %v6369 = vpack.c.b16 %v6351, %v6349
      %v6370 = vpack.c.b16 %v6352, %v6350
      %v6371 = vpack.c.b16 %v6355, %v6353
      %v6372 = vpack.c.b16 %v6356, %v6354
      %v6373 = vpack.c.b16 %v6359, %v6357
      %v6374 = vpack.c.b16 %v6360, %v6358
      %v6375 = vpack.c.b16 %v6363, %v6361
      %v6376 = vpack.c.b16 %v6364, %v6362
      %6383 = vrot.lane.b32.xlu0 %v6020, 16
      %v6384 = vpop.permute.xlu0 %6383
      %6385 = vrot.lane.b32.xlu0 %v6021, 16
      %v6386 = vpop.permute.xlu0 %6385
      %6387 = vrot.lane.b32.xlu0 %v6022, 16
      %v6388 = vpop.permute.xlu0 %6387
      %6389 = vrot.lane.b32.xlu0 %v6023, 16
      %v6390 = vpop.permute.xlu0 %6389
      %6391 = vrot.lane.b32.xlu0 %v6024, 16
      %v6392 = vpop.permute.xlu0 %6391
      %6393 = vrot.lane.b32.xlu0 %v6025, 16
      %v6394 = vpop.permute.xlu0 %6393
      %6395 = vrot.lane.b32.xlu0 %v6026, 16
      %v6396 = vpop.permute.xlu0 %6395
      %6397 = vrot.lane.b32.xlu0 %v6027, 16
      %v6398 = vpop.permute.xlu0 %6397
      %6399 = vrot.lane.b32.xlu0 %v6029, 16
      %v6400 = vpop.permute.xlu0 %6399
      %6401 = vrot.lane.b32.xlu0 %v6031, 16
      %v6402 = vpop.permute.xlu0 %6401
      %6403 = vrot.lane.b32.xlu0 %v6033, 16
      %v6404 = vpop.permute.xlu0 %6403
      %6405 = vrot.lane.b32.xlu0 %v6035, 16
      %v6406 = vpop.permute.xlu0 %6405
      %6407 = vrot.lane.b32.xlu0 %v6036, 16
      %v6408 = vpop.permute.xlu0 %6407
      %6409 = vrot.lane.b32.xlu0 %v6037, 16
      %v6410 = vpop.permute.xlu0 %6409
      %6411 = vrot.lane.b32.xlu0 %v6038, 16
      %v6412 = vpop.permute.xlu0 %6411
      %6413 = vrot.lane.b32.xlu0 %v6039, 16
      %v6414 = vpop.permute.xlu0 %6413
      %6415 = vrot.lane.b32.xlu0 %v6040, 16
      %v6416 = vpop.permute.xlu0 %6415
      %6417 = vrot.lane.b32.xlu0 %v6041, 16
      %v6418 = vpop.permute.xlu0 %6417
      %6419 = vrot.lane.b32.xlu0 %v6042, 16
      %v6420 = vpop.permute.xlu0 %6419
      %6421 = vrot.lane.b32.xlu0 %v6043, 16
      %v6422 = vpop.permute.xlu0 %6421
      %v6423 = vsel %vm5361, %v6384, %v6386
      %v6424 = vsel %vm5361, %v6388, %v6390
      %v6425 = vsel %vm5361, %v6392, %v6394
      %v6426 = vsel %vm5361, %v6396, %v6398
      %v6427 = vsel %vm5361, %v6408, %v6410
      %v6428 = vsel %vm5361, %v6412, %v6414
      %v6429 = vsel %vm5361, %v6416, %v6418
      %v6430 = vsel %vm5361, %v6420, %v6422
      %v6444 = vsel %vm1966, %v6366, 0
      %v6447 = vsel %vm1966, %v6368, 0
      %v6450 = vsel %vm1966, %v6370, 0
      %v6453 = vsel %vm1966, %v6372, 0
      %v6456 = vsel %vm1966, %v6374, 0
      %v6459 = vsel %vm1966, %v6376, 0
      %6461 = vmatprep.subr.bf16.mxu0 0
      %6462 = vmatpush1.bf16.msra.mxu0 %v6423
      %6463 = vmatprep.subr.bf16.mxu0 0
      %6464 = vmatpush1.bf16.msra.mxu0 %v6424
      %6465 = vmatprep.subr.bf16.mxu0 0
      %6466 = vmatpush1.bf16.msra.mxu0 %v6425
      %6467 = vmatprep.subr.bf16.mxu0 0
      %6468 = vmatpush1.bf16.msra.mxu0 %v6426
      %6469 = vmatprep.subr.bf16.mxu0 0
      %6470 = vmatpush1.bf16.msra.mxu0 %v6400
      %6471 = vmatprep.subr.bf16.mxu0 0
      %6472 = vmatpush1.bf16.msra.mxu0 %v6402
      %6473 = vmatprep.subr.bf16.mxu0 0
      %6474 = vmatpush1.bf16.msra.mxu0 %v6404
      %6475 = vmatprep.subr.bf16.mxu0 0
      %6476 = vmatpush1.bf16.msra.mxu0 %v6406
      %6477 = vmatprep.subr.bf16.mxu0 0
      %6478 = vmatpush1.bf16.msra.mxu0 %v6427
      %6479 = vmatprep.subr.bf16.mxu0 0
      %6480 = vmatpush1.bf16.msra.mxu0 %v6428
      %6481 = vmatprep.subr.bf16.mxu0 0
      %6482 = vmatpush1.bf16.msra.mxu0 %v6429
      %6483 = vmatprep.subr.bf16.mxu0 0
      %6484 = vmatpush1.bf16.msra.mxu0 %v6430
      %6485 = vmatprep.subr.bf16.mxu0 0
      %6486 = vmatpush1.bf16.msra.mxu0 0
      %6487 = vmatprep.subr.bf16.mxu0 0
      %6488 = vmatpush1.bf16.msra.mxu0 0
      %6489 = vmatprep.subr.bf16.mxu0 0
      %6490 = vmatpush1.bf16.msra.mxu0 0
      %6491 = vmatprep.subr.bf16.mxu0 0
      %6492 = vmatpush1.bf16.msra.mxu0 0
      %6493 = vmatprep.mubr.bf16.mxu0 %v6444
      %6494 = vmatmul.mubr.bf16.gmra.mrb[0].mxu0 %v6365
      %v6495 = vpop.f32.mrb[0].mxu0
      %v6496 = vadd.f32 0.0, %v6495
      %v6497 = vpop.f32.mrb[0].mxu0
      %v6498 = vpop.f32.mrb[0].mxu0
      %v6499 = vadd.f32 0.0, %v6498
      %v6500 = vpop.f32.mrb[0].mxu0
      %6501 = vmatprep.mubr.bf16.mxu0 %v6447
      %6502 = vmatmul.mubr.bf16.gmra.mrb[0].mxu0 %v6367
      %v6503 = vpop.f32.mrb[0].mxu0
      %v6504 = vadd.f32 0.0, %v6503
      %v6505 = vpop.f32.mrb[0].mxu0
      %v6506 = vpop.f32.mrb[0].mxu0
      %v6507 = vadd.f32 0.0, %v6506
      %v6508 = vpop.f32.mrb[0].mxu0
      %6509 = vmatprep.mubr.bf16.mxu0 %v6450
      %6510 = vmatmul.mubr.bf16.gmra.mrb[0].mxu0 %v6369
      %v6511 = vpop.f32.mrb[0].mxu0
      %v6512 = vadd.f32 0.0, %v6511
      %v6513 = vpop.f32.mrb[0].mxu0
      %v6514 = vpop.f32.mrb[0].mxu0
      %v6515 = vadd.f32 0.0, %v6514
      %v6516 = vpop.f32.mrb[0].mxu0
      %6517 = vmatprep.mubr.bf16.mxu0 %v6453
      %6518 = vmatmul.mubr.bf16.gmra.mrb[0].mxu0 %v6371
      %v6519 = vpop.f32.mrb[0].mxu0
      %v6520 = vadd.f32 0.0, %v6519
      %v6521 = vpop.f32.mrb[0].mxu0
      %v6522 = vpop.f32.mrb[0].mxu0
      %v6523 = vadd.f32 0.0, %v6522
      %v6524 = vpop.f32.mrb[0].mxu0
      %6525 = vmatprep.mubr.bf16.mxu0 %v6456
      %6526 = vmatmul.mubr.bf16.gmra.mrb[0].mxu0 %v6373
      %v6527 = vpop.f32.mrb[0].mxu0
      %v6528 = vadd.f32 0.0, %v6527
      %v6529 = vpop.f32.mrb[0].mxu0
      %v6530 = vpop.f32.mrb[0].mxu0
      %v6531 = vadd.f32 0.0, %v6530
      %v6532 = vpop.f32.mrb[0].mxu0
      %6533 = vmatprep.mubr.bf16.mxu0 %v6459
      %6534 = vmatmul.mubr.bf16.gmra.mrb[0].mxu0 %v6375
      %v6535 = vpop.f32.mrb[0].mxu0
      %v6536 = vadd.f32 0.0, %v6535
      %v6537 = vpop.f32.mrb[0].mxu0
      %v6538 = vpop.f32.mrb[0].mxu0
      %v6539 = vadd.f32 0.0, %v6538
      %v6540 = vpop.f32.mrb[0].mxu0
      %6541 = vdwg.mxu0
      %v6542 = vadd.f32 %v6305, %v6496
      %v6543 = vadd.f32 %v6306, %v6499
      %v6544 = vadd.f32 %v6307, %v6504
      %v6545 = vadd.f32 %v6308, %v6507
      %v6546 = vadd.f32 %v6309, %v6512
      %v6547 = vadd.f32 %v6310, %v6515
      %v6548 = vadd.f32 %v6311, %v6520
      %v6549 = vadd.f32 %v6312, %v6523
      %v6550 = vadd.f32 %v6313, %v6528
      %v6551 = vadd.f32 %v6314, %v6531
      %v6552 = vadd.f32 %v6315, %v6536
      %v6553 = vadd.f32 %v6316, %v6539
      %6554 = vrot.lane.b32.xlu0 %v5848, 112
      %v6555 = vpop.permute.xlu0 %6554
      %6556 = vrot.lane.b32.xlu0 %v5849, 112
      %v6557 = vpop.permute.xlu0 %6556
      %6558 = vrot.lane.b32.xlu0 %v5850, 112
      %v6559 = vpop.permute.xlu0 %6558
      %6560 = vrot.lane.b32.xlu0 %v5851, 112
      %v6561 = vpop.permute.xlu0 %6560
      %6562 = vrot.lane.b32.xlu0 %v5852, 112
      %v6563 = vpop.permute.xlu0 %6562
      %6564 = vrot.lane.b32.xlu0 %v5853, 112
      %v6565 = vpop.permute.xlu0 %6564
      %6566 = vrot.lane.b32.xlu0 %v5854, 112
      %v6567 = vpop.permute.xlu0 %6566
      %6568 = vrot.lane.b32.xlu0 %v5855, 112
      %v6569 = vpop.permute.xlu0 %6568
      %6570 = vrot.lane.b32.xlu0 %v5856, 112
      %v6571 = vpop.permute.xlu0 %6570
      %6572 = vrot.lane.b32.xlu0 %v5857, 112
      %v6573 = vpop.permute.xlu0 %6572
      %6574 = vrot.lane.b32.xlu0 %v5858, 112
      %v6575 = vpop.permute.xlu0 %6574
      %6576 = vrot.lane.b32.xlu0 %v5859, 112
      %v6577 = vpop.permute.xlu0 %6576
      %6578 = vrot.lane.b32.xlu0 %v5860, 112
      %v6579 = vpop.permute.xlu0 %6578
      %6580 = vrot.lane.b32.xlu0 %v5861, 112
      %v6581 = vpop.permute.xlu0 %6580
      %6582 = vrot.lane.b32.xlu0 %v5862, 112
      %v6583 = vpop.permute.xlu0 %6582
      %6584 = vrot.lane.b32.xlu0 %v5863, 112
      %v6585 = vpop.permute.xlu0 %6584
      %v6586 = vsel %vm1189, %v6555, %v6557
      %v6587 = vsel %vm1189, %v6559, %v6561
      %v6588 = vsel %vm1189, %v6563, %v6565
      %v6589 = vsel %vm1189, %v6567, %v6569
      %v6590 = vsel %vm1189, %v6571, %v6573
      %v6591 = vsel %vm1189, %v6575, %v6577
      %v6592 = vsel %vm1189, %v6579, %v6581
      %v6593 = vsel %vm1189, %v6583, %v6585
      %v6610 = vld [vmem:[%s5525] sm:$0xff]
      %v6611 = vld [vmem:[%s5525 + $0x8] sm:$0xff]
      %v6612 = vld [vmem:[%s5525 + $0x10] sm:$0xff]
      %v6613 = vld [vmem:[%s5525 + $0x18] sm:$0xff]
      %v6614 = vld [vmem:[%s5525 + $0x20] sm:$0xff]
      %v6615 = vld [vmem:[%s5525 + $0x28] sm:$0xff]
      %v6616 = vld [vmem:[%s5525 + $0x30] sm:$0xff]
      %v6617 = vld [vmem:[%s5525 + $0x38] sm:$0xff]
      %v6618 = vld [vmem:[%s5525 + $0x40] sm:$0xff]
      %v6619 = vld [vmem:[%s5525 + $0x48] sm:$0xff]
      %v6620 = vld [vmem:[%s5525 + $0x50] sm:$0xff]
      %v6621 = vld [vmem:[%s5525 + $0x58] sm:$0xff]
      %v6622 = vpack.c.bf16 %v6559, %v6555
      %v6623 = vpack.c.bf16 %v6587, %v6586
      %v6624 = vpack.c.bf16 %v6567, %v6563
      %v6625 = vpack.c.bf16 %v6589, %v6588
      %v6626 = vpack.c.bf16 %v6575, %v6571
      %v6627 = vpack.c.bf16 %v6591, %v6590
      %v6628 = vpack.c.bf16 %v6583, %v6579
      %v6629 = vpack.c.bf16 %v6593, %v6592
      %v6642 = vunpack.c.l.b16 %v6610
      %v6643 = vunpack.c.h.b16 %v6610
      %v6644 = vunpack.c.l.b16 %v6611
      %v6645 = vunpack.c.h.b16 %v6611
      %v6646 = vunpack.c.l.b16 %v6612
      %v6647 = vunpack.c.h.b16 %v6612
      %v6648 = vunpack.c.l.b16 %v6613
      %v6649 = vunpack.c.h.b16 %v6613
      %v6650 = vunpack.c.l.b16 %v6614
      %v6651 = vunpack.c.h.b16 %v6614
      %v6652 = vunpack.c.l.b16 %v6615
      %v6653 = vunpack.c.h.b16 %v6615
      %v6654 = vunpack.c.l.b16 %v6616
      %v6655 = vunpack.c.h.b16 %v6616
      %v6656 = vunpack.c.l.b16 %v6617
      %v6657 = vunpack.c.h.b16 %v6617
      %v6658 = vunpack.c.l.b16 %v6618
      %v6659 = vunpack.c.h.b16 %v6618
      %v6660 = vunpack.c.l.b16 %v6619
      %v6661 = vunpack.c.h.b16 %v6619
      %v6662 = vunpack.c.l.b16 %v6620
      %v6663 = vunpack.c.h.b16 %v6620
      %v6664 = vunpack.c.l.b16 %v6621
      %v6665 = vunpack.c.h.b16 %v6621
      %v6666 = vpack.c.b16 %v6644, %v6642
      %v6667 = vpack.c.b16 %v6645, %v6643
      %v6668 = vpack.c.b16 %v6648, %v6646
      %v6669 = vpack.c.b16 %v6649, %v6647
      %v6670 = vpack.c.b16 %v6652, %v6650
      %v6671 = vpack.c.b16 %v6653, %v6651
      %v6672 = vpack.c.b16 %v6656, %v6654
      %v6673 = vpack.c.b16 %v6657, %v6655
      %v6674 = vpack.c.b16 %v6660, %v6658
      %v6675 = vpack.c.b16 %v6661, %v6659
      %v6676 = vpack.c.b16 %v6664, %v6662
      %v6677 = vpack.c.b16 %v6665, %v6663
      %6692 = vrot.lane.b32.xlu0 %v6020, 15
      %v6693 = vpop.permute.xlu0 %6692
      %6694 = vrot.lane.b32.xlu0 %v6021, 15
      %v6695 = vpop.permute.xlu0 %6694
      %6696 = vrot.lane.b32.xlu0 %v6022, 15
      %v6697 = vpop.permute.xlu0 %6696
      %6698 = vrot.lane.b32.xlu0 %v6023, 15
      %v6699 = vpop.permute.xlu0 %6698
      %6700 = vrot.lane.b32.xlu0 %v6024, 15
      %v6701 = vpop.permute.xlu0 %6700
      %6702 = vrot.lane.b32.xlu0 %v6025, 15
      %v6703 = vpop.permute.xlu0 %6702
      %6704 = vrot.lane.b32.xlu0 %v6026, 15
      %v6705 = vpop.permute.xlu0 %6704
      %6706 = vrot.lane.b32.xlu0 %v6027, 15
      %v6707 = vpop.permute.xlu0 %6706
      %6708 = vrot.lane.b32.xlu0 %v6622, 15
      %v6709 = vpop.permute.xlu0 %6708
      %6710 = vrot.lane.b32.xlu0 %v6623, 15
      %v6711 = vpop.permute.xlu0 %6710
      %6712 = vrot.lane.b32.xlu0 %v6624, 15
      %v6713 = vpop.permute.xlu0 %6712
      %6714 = vrot.lane.b32.xlu0 %v6625, 15
      %v6715 = vpop.permute.xlu0 %6714
      %6716 = vrot.lane.b32.xlu0 %v6626, 15
      %v6717 = vpop.permute.xlu0 %6716
      %6718 = vrot.lane.b32.xlu0 %v6627, 15
      %v6719 = vpop.permute.xlu0 %6718
      %6720 = vrot.lane.b32.xlu0 %v6628, 15
      %v6721 = vpop.permute.xlu0 %6720
      %6722 = vrot.lane.b32.xlu0 %v6629, 15
      %v6723 = vpop.permute.xlu0 %6722
      %6724 = vrot.lane.b32.xlu0 %v6036, 15
      %v6725 = vpop.permute.xlu0 %6724
      %6726 = vrot.lane.b32.xlu0 %v6037, 15
      %v6727 = vpop.permute.xlu0 %6726
      %6728 = vrot.lane.b32.xlu0 %v6038, 15
      %v6729 = vpop.permute.xlu0 %6728
      %6730 = vrot.lane.b32.xlu0 %v6039, 15
      %v6731 = vpop.permute.xlu0 %6730
      %6732 = vrot.lane.b32.xlu0 %v6040, 15
      %v6733 = vpop.permute.xlu0 %6732
      %6734 = vrot.lane.b32.xlu0 %v6041, 15
      %v6735 = vpop.permute.xlu0 %6734
      %6736 = vrot.lane.b32.xlu0 %v6042, 15
      %v6737 = vpop.permute.xlu0 %6736
      %6738 = vrot.lane.b32.xlu0 %v6043, 15
      %v6739 = vpop.permute.xlu0 %6738
      %v6740 = vsel %vm5648, %v6693, %v6695
      %v6741 = vsel %vm5648, %v6697, %v6699
      %v6742 = vsel %vm5648, %v6701, %v6703
      %v6743 = vsel %vm5648, %v6705, %v6707
      %v6744 = vsel %vm5648, %v6709, %v6711
      %v6745 = vsel %vm5648, %v6713, %v6715
      %v6746 = vsel %vm5648, %v6717, %v6719
      %v6747 = vsel %vm5648, %v6721, %v6723
      %v6748 = vsel %vm5648, %v6725, %v6727
      %v6749 = vsel %vm5648, %v6729, %v6731
      %v6750 = vsel %vm5648, %v6733, %v6735
      %v6751 = vsel %vm5648, %v6737, %v6739
      %v6765 = vsel %vm1966, %v6667, 0
      %v6768 = vsel %vm1966, %v6669, 0
      %v6771 = vsel %vm1966, %v6671, 0
      %v6774 = vsel %vm1966, %v6673, 0
      %v6777 = vsel %vm1966, %v6675, 0
      %v6780 = vsel %vm1966, %v6677, 0
      %6782 = vmatprep.subr.bf16.mxu0 0
      %6783 = vmatpush1.bf16.msra.mxu0 %v6740
      %6784 = vmatprep.subr.bf16.mxu0 0
      %6785 = vmatpush1.bf16.msra.mxu0 %v6741
      %6786 = vmatprep.subr.bf16.mxu0 0
      %6787 = vmatpush1.bf16.msra.mxu0 %v6742
      %6788 = vmatprep.subr.bf16.mxu0 0
      %6789 = vmatpush1.bf16.msra.mxu0 %v6743
      %6790 = vmatprep.subr.bf16.mxu0 0
      %6791 = vmatpush1.bf16.msra.mxu0 %v6744
      %6792 = vmatprep.subr.bf16.mxu0 0
      %6793 = vmatpush1.bf16.msra.mxu0 %v6745
      %6794 = vmatprep.subr.bf16.mxu0 0
      %6795 = vmatpush1.bf16.msra.mxu0 %v6746
      %6796 = vmatprep.subr.bf16.mxu0 0
      %6797 = vmatpush1.bf16.msra.mxu0 %v6747
      %6798 = vmatprep.subr.bf16.mxu0 0
      %6799 = vmatpush1.bf16.msra.mxu0 %v6748
      %6800 = vmatprep.subr.bf16.mxu0 0
      %6801 = vmatpush1.bf16.msra.mxu0 %v6749
      %6802 = vmatprep.subr.bf16.mxu0 0
      %6803 = vmatpush1.bf16.msra.mxu0 %v6750
      %6804 = vmatprep.subr.bf16.mxu0 0
      %6805 = vmatpush1.bf16.msra.mxu0 %v6751
      %6806 = vmatprep.subr.bf16.mxu0 0
      %6807 = vmatpush1.bf16.msra.mxu0 0
      %6808 = vmatprep.subr.bf16.mxu0 0
      %6809 = vmatpush1.bf16.msra.mxu0 0
      %6810 = vmatprep.subr.bf16.mxu0 0
      %6811 = vmatpush1.bf16.msra.mxu0 0
      %6812 = vmatprep.subr.bf16.mxu0 0
      %6813 = vmatpush1.bf16.msra.mxu0 0
      %6814 = vmatprep.mubr.bf16.mxu0 %v6765
      %6815 = vmatmul.mubr.bf16.gmra.mrb[0].mxu0 %v6666
      %v6816 = vpop.f32.mrb[0].mxu0
      %v6817 = vadd.f32 0.0, %v6816
      %v6818 = vpop.f32.mrb[0].mxu0
      %v6819 = vpop.f32.mrb[0].mxu0
      %v6820 = vadd.f32 0.0, %v6819
      %v6821 = vpop.f32.mrb[0].mxu0
      %6822 = vmatprep.mubr.bf16.mxu0 %v6768
      %6823 = vmatmul.mubr.bf16.gmra.mrb[0].mxu0 %v6668
      %v6824 = vpop.f32.mrb[0].mxu0
      %v6825 = vadd.f32 0.0, %v6824
      %v6826 = vpop.f32.mrb[0].mxu0
      %v6827 = vpop.f32.mrb[0].mxu0
      %v6828 = vadd.f32 0.0, %v6827
      %v6829 = vpop.f32.mrb[0].mxu0
      %6830 = vmatprep.mubr.bf16.mxu0 %v6771
      %6831 = vmatmul.mubr.bf16.gmra.mrb[0].mxu0 %v6670
      %v6832 = vpop.f32.mrb[0].mxu0
      %v6833 = vadd.f32 0.0, %v6832
      %v6834 = vpop.f32.mrb[0].mxu0
      %v6835 = vpop.f32.mrb[0].mxu0
      %v6836 = vadd.f32 0.0, %v6835
      %v6837 = vpop.f32.mrb[0].mxu0
      %6838 = vmatprep.mubr.bf16.mxu0 %v6774
      %6839 = vmatmul.mubr.bf16.gmra.mrb[0].mxu0 %v6672
      %v6840 = vpop.f32.mrb[0].mxu0
      %v6841 = vadd.f32 0.0, %v6840
      %v6842 = vpop.f32.mrb[0].mxu0
      %v6843 = vpop.f32.mrb[0].mxu0
      %v6844 = vadd.f32 0.0, %v6843
      %v6845 = vpop.f32.mrb[0].mxu0
      %6846 = vmatprep.mubr.bf16.mxu0 %v6777
      %6847 = vmatmul.mubr.bf16.gmra.mrb[0].mxu0 %v6674
      %v6848 = vpop.f32.mrb[0].mxu0
      %v6849 = vadd.f32 0.0, %v6848
      %v6850 = vpop.f32.mrb[0].mxu0
      %v6851 = vpop.f32.mrb[0].mxu0
      %v6852 = vadd.f32 0.0, %v6851
      %v6853 = vpop.f32.mrb[0].mxu0
      %6854 = vmatprep.mubr.bf16.mxu0 %v6780
      %6855 = vmatmul.mubr.bf16.gmra.mrb[0].mxu0 %v6676
      %v6856 = vpop.f32.mrb[0].mxu0
      %v6857 = vadd.f32 0.0, %v6856
      %v6858 = vpop.f32.mrb[0].mxu0
      %v6859 = vpop.f32.mrb[0].mxu0
      %v6860 = vadd.f32 0.0, %v6859
      %v6861 = vpop.f32.mrb[0].mxu0
      %6862 = vdwg.mxu0
      %v6863 = vsel %vm1668, %v6817, 0.0
      %v6864 = vsel %vm1668, %v6820, 0.0
      %v6865 = vsel %vm1668, %v6825, 0.0
      %v6866 = vsel %vm1668, %v6828, 0.0
      %v6867 = vsel %vm1668, %v6833, 0.0
      %v6868 = vsel %vm1668, %v6836, 0.0
      %v6869 = vsel %vm1668, %v6841, 0.0
      %v6870 = vsel %vm1668, %v6844, 0.0
      %v6871 = vsel %vm1668, %v6849, 0.0
      %v6872 = vsel %vm1668, %v6852, 0.0
      %v6873 = vsel %vm1668, %v6857, 0.0
      %v6874 = vsel %vm1668, %v6860, 0.0
      %v6875 = vadd.f32 %v6542, %v6863
      %v6876 = vadd.f32 %v6543, %v6864
      %v6877 = vadd.f32 %v6544, %v6865
      %v6878 = vadd.f32 %v6545, %v6866
      %v6879 = vadd.f32 %v6546, %v6867
      %v6880 = vadd.f32 %v6547, %v6868
      %v6881 = vadd.f32 %v6548, %v6869
      %v6882 = vadd.f32 %v6549, %v6870
      %v6883 = vadd.f32 %v6550, %v6871
      %v6884 = vadd.f32 %v6551, %v6872
      %v6885 = vadd.f32 %v6552, %v6873
      %v6886 = vadd.f32 %v6553, %v6874
      %v6887 = vadd.f32 %v6875, %v4727
      %v6888 = vadd.f32 %v6876, %v4732
      %v6889 = vadd.f32 %v6877, %v4737
      %v6890 = vadd.f32 %v6878, %v4742
      %v6891 = vadd.f32 %v6879, %v4747
      %v6892 = vadd.f32 %v6880, %v4752
      %v6893 = vadd.f32 %v6881, %v4757
      %v6894 = vadd.f32 %v6882, %v4762
      %v6895 = vadd.f32 %v6883, %v4767
      %v6896 = vadd.f32 %v6884, %v4772
      %v6897 = vadd.f32 %v6885, %v4777
      %v6898 = vadd.f32 %v6886, %v4782
      %v6899 = vmax.f32 %v6887, 0.0
      %v6900 = vmax.f32 %v6888, 0.0
      %v6901 = vmax.f32 %v6889, 0.0
      %v6902 = vmax.f32 %v6890, 0.0
      %v6903 = vmax.f32 %v6891, 0.0
      %v6904 = vmax.f32 %v6892, 0.0
      %v6905 = vmax.f32 %v6893, 0.0
      %v6906 = vmax.f32 %v6894, 0.0
      %v6907 = vmax.f32 %v6895, 0.0
      %v6908 = vmax.f32 %v6896, 0.0
      %v6909 = vmax.f32 %v6897, 0.0
      %v6910 = vmax.f32 %v6898, 0.0
      %6911 = vst [vmem:[#allocation4 + $0x10] sm:$0xff] %v6899
      %6912 = vst [vmem:[#allocation4 + $0x30] sm:$0xff] %v6900
      %6913 = vst [vmem:[#allocation4 + $0x50] sm:$0xff] %v6901
      %6914 = vst [vmem:[#allocation4 + $0x70] sm:$0xff] %v6902
      %6915 = vst [vmem:[#allocation4 + $0x90] sm:$0xff] %v6903
      %6916 = vst [vmem:[#allocation4 + $0xb0] sm:$0xff] %v6904
      %6917 = vst [vmem:[#allocation4 + $0xd0] sm:$0xff] %v6905
      %6918 = vst [vmem:[#allocation4 + $0xf0] sm:$0xff] %v6906
      %6919 = vst [vmem:[#allocation4 + $0x110] sm:$0xff] %v6907
      %6920 = vst [vmem:[#allocation4 + $0x130] sm:$0xff] %v6908
      %6921 = vst [vmem:[#allocation4 + $0x150] sm:$0xff] %v6909
      %6922 = vst [vmem:[#allocation4 + $0x170] sm:$0xff] %v6910
      %v6923 = vld [vmem:[%s8] sm:$0xff]
      %v6924 = vld [vmem:[%s8 + $0x8] sm:$0xff]
      %v6925 = vld [vmem:[%s8 + $0x10] sm:$0xff]
      %v6926 = vld [vmem:[%s8 + $0x18] sm:$0xff]
      %v6927 = vld [vmem:[%s8 + $0x20] sm:$0xff]
      %v6928 = vld [vmem:[%s8 + $0x28] sm:$0xff]
      %v6929 = vld [vmem:[%s8 + $0x30] sm:$0xff]
      %v6930 = vld [vmem:[%s8 + $0x38] sm:$0xff]
      %v6931 = vld [vmem:[%s8 + $0x40] sm:$0xff]
      %v6932 = vld [vmem:[%s8 + $0x48] sm:$0xff]
      %v6933 = vld [vmem:[%s8 + $0x50] sm:$0xff]
      %v6934 = vld [vmem:[%s8 + $0x58] sm:$0xff]
      %6936 = vset.pattern.permute.xlu0 0
      %6937 = vperm.xlu0 %6936, %v6923
      %v6938 = vpop.permute.xlu0 %6937
      %6941 = vset.pattern.permute.xlu0 0
      %6942 = vperm.xlu0 %6941, %v6924
      %v6943 = vpop.permute.xlu0 %6942
      %6946 = vset.pattern.permute.xlu0 0
      %6947 = vperm.xlu0 %6946, %v6925
      %v6948 = vpop.permute.xlu0 %6947
      %6951 = vset.pattern.permute.xlu0 0
      %6952 = vperm.xlu0 %6951, %v6926
      %v6953 = vpop.permute.xlu0 %6952
      %6956 = vset.pattern.permute.xlu0 0
      %6957 = vperm.xlu0 %6956, %v6927
      %v6958 = vpop.permute.xlu0 %6957
      %6961 = vset.pattern.permute.xlu0 0
      %6962 = vperm.xlu0 %6961, %v6928
      %v6963 = vpop.permute.xlu0 %6962
      %6966 = vset.pattern.permute.xlu0 0
      %6967 = vperm.xlu0 %6966, %v6929
      %v6968 = vpop.permute.xlu0 %6967
      %6971 = vset.pattern.permute.xlu0 0
      %6972 = vperm.xlu0 %6971, %v6930
      %v6973 = vpop.permute.xlu0 %6972
      %6976 = vset.pattern.permute.xlu0 0
      %6977 = vperm.xlu0 %6976, %v6931
      %v6978 = vpop.permute.xlu0 %6977
      %6981 = vset.pattern.permute.xlu0 0
      %6982 = vperm.xlu0 %6981, %v6932
      %v6983 = vpop.permute.xlu0 %6982
      %6986 = vset.pattern.permute.xlu0 0
      %6987 = vperm.xlu0 %6986, %v6933
      %v6988 = vpop.permute.xlu0 %6987
      %6991 = vset.pattern.permute.xlu0 0
      %6992 = vperm.xlu0 %6991, %v6934
      %v6993 = vpop.permute.xlu0 %6992
      %v6995 = vld [vmem:[#allocation4] sm:$0xff]
      %v6996 = vld [vmem:[#allocation4 + $0x8] sm:$0xff]
      %v6997 = vld [vmem:[#allocation4 + $0x20] sm:$0xff]
      %v6998 = vld [vmem:[#allocation4 + $0x28] sm:$0xff]
      %v6999 = vld [vmem:[#allocation4 + $0x40] sm:$0xff]
      %v7000 = vld [vmem:[#allocation4 + $0x48] sm:$0xff]
      %v7001 = vld [vmem:[#allocation4 + $0x60] sm:$0xff]
      %v7002 = vld [vmem:[#allocation4 + $0x68] sm:$0xff]
      %v7003 = vld [vmem:[#allocation4 + $0x80] sm:$0xff]
      %v7004 = vld [vmem:[#allocation4 + $0x88] sm:$0xff]
      %v7005 = vld [vmem:[#allocation4 + $0xa0] sm:$0xff]
      %v7006 = vld [vmem:[#allocation4 + $0xa8] sm:$0xff]
      %v7007 = vld [vmem:[#allocation4 + $0xc0] sm:$0xff]
      %v7008 = vld [vmem:[#allocation4 + $0xc8] sm:$0xff]
      %v7009 = vld [vmem:[#allocation4 + $0xe0] sm:$0xff]
      %v7010 = vld [vmem:[#allocation4 + $0xe8] sm:$0xff]
      %v7011 = vld [vmem:[#allocation4 + $0x100] sm:$0xff]
      %v7012 = vld [vmem:[#allocation4 + $0x108] sm:$0xff]
      %v7013 = vld [vmem:[#allocation4 + $0x120] sm:$0xff]
      %v7014 = vld [vmem:[#allocation4 + $0x128] sm:$0xff]
      %v7015 = vld [vmem:[#allocation4 + $0x140] sm:$0xff]
      %v7016 = vld [vmem:[#allocation4 + $0x148] sm:$0xff]
      %v7017 = vld [vmem:[#allocation4 + $0x160] sm:$0xff]
      %v7018 = vld [vmem:[#allocation4 + $0x168] sm:$0xff]
      %v7019 = vld [vmem:[#allocation4 + $0x10] sm:$0xff]
      %v7020 = vld [vmem:[#allocation4 + $0x30] sm:$0xff]
      %v7021 = vld [vmem:[#allocation4 + $0x50] sm:$0xff]
      %v7022 = vld [vmem:[#allocation4 + $0x70] sm:$0xff]
      %v7023 = vld [vmem:[#allocation4 + $0x90] sm:$0xff]
      %v7024 = vld [vmem:[#allocation4 + $0xb0] sm:$0xff]
      %v7025 = vld [vmem:[#allocation4 + $0xd0] sm:$0xff]
      %v7026 = vld [vmem:[#allocation4 + $0xf0] sm:$0xff]
      %v7027 = vld [vmem:[#allocation4 + $0x110] sm:$0xff]
      %v7028 = vld [vmem:[#allocation4 + $0x130] sm:$0xff]
      %v7029 = vld [vmem:[#allocation4 + $0x150] sm:$0xff]
      %v7030 = vld [vmem:[#allocation4 + $0x170] sm:$0xff]
      %7055 = vrot.lane.b32.xlu0 %v6995, 112
      %v7056 = vpop.permute.xlu0 %7055
      %7057 = vrot.lane.b32.xlu0 %v6996, 112
      %v7058 = vpop.permute.xlu0 %7057
      %7059 = vrot.lane.b32.xlu0 %v6997, 112
      %v7060 = vpop.permute.xlu0 %7059
      %7061 = vrot.lane.b32.xlu0 %v6998, 112
      %v7062 = vpop.permute.xlu0 %7061
      %7063 = vrot.lane.b32.xlu0 %v6999, 112
      %v7064 = vpop.permute.xlu0 %7063
      %7065 = vrot.lane.b32.xlu0 %v7000, 112
      %v7066 = vpop.permute.xlu0 %7065
      %7067 = vrot.lane.b32.xlu0 %v7001, 112
      %v7068 = vpop.permute.xlu0 %7067
      %7069 = vrot.lane.b32.xlu0 %v7002, 112
      %v7070 = vpop.permute.xlu0 %7069
      %7071 = vrot.lane.b32.xlu0 %v7003, 112
      %v7072 = vpop.permute.xlu0 %7071
      %7073 = vrot.lane.b32.xlu0 %v7004, 112
      %v7074 = vpop.permute.xlu0 %7073
      %7075 = vrot.lane.b32.xlu0 %v7005, 112
      %v7076 = vpop.permute.xlu0 %7075
      %7077 = vrot.lane.b32.xlu0 %v7006, 112
      %v7078 = vpop.permute.xlu0 %7077
      %7079 = vrot.lane.b32.xlu0 %v7007, 112
      %v7080 = vpop.permute.xlu0 %7079
      %7081 = vrot.lane.b32.xlu0 %v7008, 112
      %v7082 = vpop.permute.xlu0 %7081
      %7083 = vrot.lane.b32.xlu0 %v7009, 112
      %v7084 = vpop.permute.xlu0 %7083
      %7085 = vrot.lane.b32.xlu0 %v7010, 112
      %v7086 = vpop.permute.xlu0 %7085
      %7087 = vrot.lane.b32.xlu0 %v7011, 112
      %v7088 = vpop.permute.xlu0 %7087
      %7089 = vrot.lane.b32.xlu0 %v7012, 112
      %v7090 = vpop.permute.xlu0 %7089
      %7091 = vrot.lane.b32.xlu0 %v7013, 112
      %v7092 = vpop.permute.xlu0 %7091
      %7093 = vrot.lane.b32.xlu0 %v7014, 112
      %v7094 = vpop.permute.xlu0 %7093
      %7095 = vrot.lane.b32.xlu0 %v7015, 112
      %v7096 = vpop.permute.xlu0 %7095
      %7097 = vrot.lane.b32.xlu0 %v7016, 112
      %v7098 = vpop.permute.xlu0 %7097
      %7099 = vrot.lane.b32.xlu0 %v7017, 112
      %v7100 = vpop.permute.xlu0 %7099
      %7101 = vrot.lane.b32.xlu0 %v7018, 112
      %v7102 = vpop.permute.xlu0 %7101
      %v7103 = vsel %vm1189, %v7056, %v7058
      %v7104 = vsel %vm1189, %v7060, %v7062
      %v7105 = vsel %vm1189, %v7064, %v7066
      %v7106 = vsel %vm1189, %v7068, %v7070
      %v7107 = vsel %vm1189, %v7072, %v7074
      %v7108 = vsel %vm1189, %v7076, %v7078
      %v7109 = vsel %vm1189, %v7080, %v7082
      %v7110 = vsel %vm1189, %v7084, %v7086
      %v7111 = vsel %vm1189, %v7088, %v7090
      %v7112 = vsel %vm1189, %v7092, %v7094
      %v7113 = vsel %vm1189, %v7096, %v7098
      %v7114 = vsel %vm1189, %v7100, %v7102
      %7151 = vrot.lane.b32.xlu0 %v6996, 96
      %v7152 = vpop.permute.xlu0 %7151
      %7153 = vrot.lane.b32.xlu0 %v7019, 96
      %v7154 = vpop.permute.xlu0 %7153
      %7155 = vrot.lane.b32.xlu0 %v6998, 96
      %v7156 = vpop.permute.xlu0 %7155
      %7157 = vrot.lane.b32.xlu0 %v7020, 96
      %v7158 = vpop.permute.xlu0 %7157
      %7159 = vrot.lane.b32.xlu0 %v7000, 96
      %v7160 = vpop.permute.xlu0 %7159
      %7161 = vrot.lane.b32.xlu0 %v7021, 96
      %v7162 = vpop.permute.xlu0 %7161
      %7163 = vrot.lane.b32.xlu0 %v7002, 96
      %v7164 = vpop.permute.xlu0 %7163
      %7165 = vrot.lane.b32.xlu0 %v7022, 96
      %v7166 = vpop.permute.xlu0 %7165
      %7167 = vrot.lane.b32.xlu0 %v7004, 96
      %v7168 = vpop.permute.xlu0 %7167
      %7169 = vrot.lane.b32.xlu0 %v7023, 96
      %v7170 = vpop.permute.xlu0 %7169
      %7171 = vrot.lane.b32.xlu0 %v7006, 96
      %v7172 = vpop.permute.xlu0 %7171
      %7173 = vrot.lane.b32.xlu0 %v7024, 96
      %v7174 = vpop.permute.xlu0 %7173
      %7175 = vrot.lane.b32.xlu0 %v7008, 96
      %v7176 = vpop.permute.xlu0 %7175
      %7177 = vrot.lane.b32.xlu0 %v7025, 96
      %v7178 = vpop.permute.xlu0 %7177
      %7179 = vrot.lane.b32.xlu0 %v7010, 96
      %v7180 = vpop.permute.xlu0 %7179
      %7181 = vrot.lane.b32.xlu0 %v7026, 96
      %v7182 = vpop.permute.xlu0 %7181
      %7183 = vrot.lane.b32.xlu0 %v7012, 96
      %v7184 = vpop.permute.xlu0 %7183
      %7185 = vrot.lane.b32.xlu0 %v7027, 96
      %v7186 = vpop.permute.xlu0 %7185
      %7187 = vrot.lane.b32.xlu0 %v7014, 96
      %v7188 = vpop.permute.xlu0 %7187
      %7189 = vrot.lane.b32.xlu0 %v7028, 96
      %v7190 = vpop.permute.xlu0 %7189
      %7191 = vrot.lane.b32.xlu0 %v7016, 96
      %v7192 = vpop.permute.xlu0 %7191
      %7193 = vrot.lane.b32.xlu0 %v7029, 96
      %v7194 = vpop.permute.xlu0 %7193
      %7195 = vrot.lane.b32.xlu0 %v7018, 96
      %v7196 = vpop.permute.xlu0 %7195
      %7197 = vrot.lane.b32.xlu0 %v7030, 96
      %v7198 = vpop.permute.xlu0 %7197
      %v7199 = vsel %vm1234, %v7152, %v7154
      %v7200 = vsel %vm1234, %v7156, %v7158
      %v7201 = vsel %vm1234, %v7160, %v7162
      %v7202 = vsel %vm1234, %v7164, %v7166
      %v7203 = vsel %vm1234, %v7168, %v7170
      %v7204 = vsel %vm1234, %v7172, %v7174
      %v7205 = vsel %vm1234, %v7176, %v7178
      %v7206 = vsel %vm1234, %v7180, %v7182
      %v7207 = vsel %vm1234, %v7184, %v7186
      %v7208 = vsel %vm1234, %v7188, %v7190
      %v7209 = vsel %vm1234, %v7192, %v7194
      %v7210 = vsel %vm1234, %v7196, %v7198
      %v7235 = vld [vmem:[%s7] sm:$0xff]
      %v7236 = vld [vmem:[%s7 + $0x8] sm:$0xf]
      %v7237 = vld [vmem:[%s7 + $0xc] sm:$0xff]
      %v7238 = vld [vmem:[%s7 + $0x14] sm:$0xf]
      %v7239 = vld [vmem:[%s7 + $0x18] sm:$0xff]
      %v7240 = vld [vmem:[%s7 + $0x20] sm:$0xf]
      %v7241 = vld [vmem:[%s7 + $0x24] sm:$0xff]
      %v7242 = vld [vmem:[%s7 + $0x2c] sm:$0xf]
      %v7243 = vld [vmem:[%s7 + $0x30] sm:$0xff]
      %v7244 = vld [vmem:[%s7 + $0x38] sm:$0xf]
      %v7245 = vld [vmem:[%s7 + $0x3c] sm:$0xff]
      %v7246 = vld [vmem:[%s7 + $0x44] sm:$0xf]
      %v7247 = vld [vmem:[%s7 + $0x48] sm:$0xff]
      %v7248 = vld [vmem:[%s7 + $0x50] sm:$0xf]
      %v7249 = vld [vmem:[%s7 + $0x54] sm:$0xff]
      %v7250 = vld [vmem:[%s7 + $0x5c] sm:$0xf]
      %v7251 = vld [vmem:[%s7 + $0x60] sm:$0xff]
      %v7252 = vld [vmem:[%s7 + $0x68] sm:$0xf]
      %v7253 = vld [vmem:[%s7 + $0x6c] sm:$0xff]
      %v7254 = vld [vmem:[%s7 + $0x74] sm:$0xf]
      %v7255 = vld [vmem:[%s7 + $0x78] sm:$0xff]
      %v7256 = vld [vmem:[%s7 + $0x80] sm:$0xf]
      %v7257 = vld [vmem:[%s7 + $0x84] sm:$0xff]
      %v7258 = vld [vmem:[%s7 + $0x8c] sm:$0xf]
      %v7259 = vpack.c.bf16 %v6997, %v6995
      %v7260 = vpack.c.bf16 %v6998, %v6996
      %v7261 = vpack.c.bf16 %v7001, %v6999
      %v7262 = vpack.c.bf16 %v7002, %v7000
      %v7263 = vpack.c.bf16 %v7005, %v7003
      %v7264 = vpack.c.bf16 %v7006, %v7004
      %v7265 = vpack.c.bf16 %v7009, %v7007
      %v7266 = vpack.c.bf16 %v7010, %v7008
      %v7267 = vpack.c.bf16 %v7013, %v7011
      %v7268 = vpack.c.bf16 %v7014, %v7012
      %v7269 = vpack.c.bf16 %v7017, %v7015
      %v7270 = vpack.c.bf16 %v7018, %v7016
      %v7271 = vpack.c.bf16 %v7104, %v7103
      %v7272 = vpack.c.bf16 %v7062, %v7058
      %v7273 = vpack.c.bf16 %v7106, %v7105
      %v7274 = vpack.c.bf16 %v7070, %v7066
      %v7275 = vpack.c.bf16 %v7108, %v7107
      %v7276 = vpack.c.bf16 %v7078, %v7074
      %v7277 = vpack.c.bf16 %v7110, %v7109
      %v7278 = vpack.c.bf16 %v7086, %v7082
      %v7279 = vpack.c.bf16 %v7112, %v7111
      %v7280 = vpack.c.bf16 %v7094, %v7090
      %v7281 = vpack.c.bf16 %v7114, %v7113
      %v7282 = vpack.c.bf16 %v7102, %v7098
      %v7283 = vpack.c.bf16 %v7156, %v7152
      %v7284 = vpack.c.bf16 %v7200, %v7199
      %v7285 = vpack.c.bf16 %v7164, %v7160
      %v7286 = vpack.c.bf16 %v7202, %v7201
      %v7287 = vpack.c.bf16 %v7172, %v7168
      %v7288 = vpack.c.bf16 %v7204, %v7203
      %v7289 = vpack.c.bf16 %v7180, %v7176
      %v7290 = vpack.c.bf16 %v7206, %v7205
      %v7291 = vpack.c.bf16 %v7188, %v7184
      %v7292 = vpack.c.bf16 %v7208, %v7207
      %v7293 = vpack.c.bf16 %v7196, %v7192
      %v7294 = vpack.c.bf16 %v7210, %v7209
      %v7319 = vunpack.c.l.b16 %v7235
      %v7320 = vunpack.c.h.b16 %v7235
      %v7321 = vunpack.c.l.b16 %v7236
      %v7322 = vunpack.c.l.b16 %v7237
      %v7323 = vunpack.c.h.b16 %v7237
      %v7324 = vunpack.c.l.b16 %v7238
      %v7325 = vunpack.c.l.b16 %v7239
      %v7326 = vunpack.c.h.b16 %v7239
      %v7327 = vunpack.c.l.b16 %v7240
      %v7328 = vunpack.c.l.b16 %v7241
      %v7329 = vunpack.c.h.b16 %v7241
      %v7330 = vunpack.c.l.b16 %v7242
      %v7331 = vunpack.c.l.b16 %v7243
      %v7332 = vunpack.c.h.b16 %v7243
      %v7333 = vunpack.c.l.b16 %v7244
      %v7334 = vunpack.c.l.b16 %v7245
      %v7335 = vunpack.c.h.b16 %v7245
      %v7336 = vunpack.c.l.b16 %v7246
      %v7337 = vunpack.c.l.b16 %v7247
      %v7338 = vunpack.c.h.b16 %v7247
      %v7339 = vunpack.c.l.b16 %v7248
      %v7340 = vunpack.c.l.b16 %v7249
      %v7341 = vunpack.c.h.b16 %v7249
      %v7342 = vunpack.c.l.b16 %v7250
      %v7343 = vunpack.c.l.b16 %v7251
      %v7344 = vunpack.c.h.b16 %v7251
      %v7345 = vunpack.c.l.b16 %v7252
      %v7346 = vunpack.c.l.b16 %v7253
      %v7347 = vunpack.c.h.b16 %v7253
      %v7348 = vunpack.c.l.b16 %v7254
      %v7349 = vunpack.c.l.b16 %v7255
      %v7350 = vunpack.c.h.b16 %v7255
      %v7351 = vunpack.c.l.b16 %v7256
      %v7352 = vunpack.c.l.b16 %v7257
      %v7353 = vunpack.c.h.b16 %v7257
      %v7354 = vunpack.c.l.b16 %v7258
      %v7355 = vpack.c.b16 %v7322, %v7319
      %v7356 = vpack.c.b16 %v7323, %v7320
      %v7357 = vpack.c.b16 %v7324, %v7321
      %v7358 = vpack.c.b16 %v7328, %v7325
      %v7359 = vpack.c.b16 %v7329, %v7326
      %v7360 = vpack.c.b16 %v7330, %v7327
      %v7361 = vpack.c.b16 %v7334, %v7331
      %v7362 = vpack.c.b16 %v7335, %v7332
      %v7363 = vpack.c.b16 %v7336, %v7333
      %v7364 = vpack.c.b16 %v7340, %v7337
      %v7365 = vpack.c.b16 %v7341, %v7338
      %v7366 = vpack.c.b16 %v7342, %v7339
      %v7367 = vpack.c.b16 %v7346, %v7343
      %v7368 = vpack.c.b16 %v7347, %v7344
      %v7369 = vpack.c.b16 %v7348, %v7345
      %v7370 = vpack.c.b16 %v7352, %v7349
      %v7371 = vpack.c.b16 %v7353, %v7350
      %v7372 = vpack.c.b16 %v7354, %v7351
      %7421 = vrot.lane.b32.xlu0 %v7259, 17
      %v7422 = vpop.permute.xlu0 %7421
      %7423 = vrot.lane.b32.xlu0 %v7260, 17
      %v7424 = vpop.permute.xlu0 %7423
      %7425 = vrot.lane.b32.xlu0 %v7261, 17
      %v7426 = vpop.permute.xlu0 %7425
      %7427 = vrot.lane.b32.xlu0 %v7262, 17
      %v7428 = vpop.permute.xlu0 %7427
      %7429 = vrot.lane.b32.xlu0 %v7263, 17
      %v7430 = vpop.permute.xlu0 %7429
      %7431 = vrot.lane.b32.xlu0 %v7264, 17
      %v7432 = vpop.permute.xlu0 %7431
      %7433 = vrot.lane.b32.xlu0 %v7265, 17
      %v7434 = vpop.permute.xlu0 %7433
      %7435 = vrot.lane.b32.xlu0 %v7266, 17
      %v7436 = vpop.permute.xlu0 %7435
      %7437 = vrot.lane.b32.xlu0 %v7267, 17
      %v7438 = vpop.permute.xlu0 %7437
      %7439 = vrot.lane.b32.xlu0 %v7268, 17
      %v7440 = vpop.permute.xlu0 %7439
      %7441 = vrot.lane.b32.xlu0 %v7269, 17
      %v7442 = vpop.permute.xlu0 %7441
      %7443 = vrot.lane.b32.xlu0 %v7270, 17
      %v7444 = vpop.permute.xlu0 %7443
      %7445 = vrot.lane.b32.xlu0 %v7271, 17
      %v7446 = vpop.permute.xlu0 %7445
      %7447 = vrot.lane.b32.xlu0 %v7272, 17
      %v7448 = vpop.permute.xlu0 %7447
      %7449 = vrot.lane.b32.xlu0 %v7273, 17
      %v7450 = vpop.permute.xlu0 %7449
      %7451 = vrot.lane.b32.xlu0 %v7274, 17
      %v7452 = vpop.permute.xlu0 %7451
      %7453 = vrot.lane.b32.xlu0 %v7275, 17
      %v7454 = vpop.permute.xlu0 %7453
      %7455 = vrot.lane.b32.xlu0 %v7276, 17
      %v7456 = vpop.permute.xlu0 %7455
      %7457 = vrot.lane.b32.xlu0 %v7277, 17
      %v7458 = vpop.permute.xlu0 %7457
      %7459 = vrot.lane.b32.xlu0 %v7278, 17
      %v7460 = vpop.permute.xlu0 %7459
      %7461 = vrot.lane.b32.xlu0 %v7279, 17
      %v7462 = vpop.permute.xlu0 %7461
      %7463 = vrot.lane.b32.xlu0 %v7280, 17
      %v7464 = vpop.permute.xlu0 %7463
      %7465 = vrot.lane.b32.xlu0 %v7281, 17
      %v7466 = vpop.permute.xlu0 %7465
      %7467 = vrot.lane.b32.xlu0 %v7282, 17
      %v7468 = vpop.permute.xlu0 %7467
      %7469 = vrot.lane.b32.xlu0 %v7283, 17
      %v7470 = vpop.permute.xlu0 %7469
      %7471 = vrot.lane.b32.xlu0 %v7284, 17
      %v7472 = vpop.permute.xlu0 %7471
      %7473 = vrot.lane.b32.xlu0 %v7285, 17
      %v7474 = vpop.permute.xlu0 %7473
      %7475 = vrot.lane.b32.xlu0 %v7286, 17
      %v7476 = vpop.permute.xlu0 %7475
      %7477 = vrot.lane.b32.xlu0 %v7287, 17
      %v7478 = vpop.permute.xlu0 %7477
      %7479 = vrot.lane.b32.xlu0 %v7288, 17
      %v7480 = vpop.permute.xlu0 %7479
      %7481 = vrot.lane.b32.xlu0 %v7289, 17
      %v7482 = vpop.permute.xlu0 %7481
      %7483 = vrot.lane.b32.xlu0 %v7290, 17
      %v7484 = vpop.permute.xlu0 %7483
      %7485 = vrot.lane.b32.xlu0 %v7291, 17
      %v7486 = vpop.permute.xlu0 %7485
      %7487 = vrot.lane.b32.xlu0 %v7292, 17
      %v7488 = vpop.permute.xlu0 %7487
      %7489 = vrot.lane.b32.xlu0 %v7293, 17
      %v7490 = vpop.permute.xlu0 %7489
      %7491 = vrot.lane.b32.xlu0 %v7294, 17
      %v7492 = vpop.permute.xlu0 %7491
      %v7493 = vsel %vm5106, %v7422, %v7424
      %v7494 = vsel %vm5106, %v7426, %v7428
      %v7495 = vsel %vm5106, %v7430, %v7432
      %v7496 = vsel %vm5106, %v7434, %v7436
      %v7497 = vsel %vm5106, %v7438, %v7440
      %v7498 = vsel %vm5106, %v7442, %v7444
      %v7499 = vsel %vm5106, %v7446, %v7448
      %v7500 = vsel %vm5106, %v7450, %v7452
      %v7501 = vsel %vm5106, %v7454, %v7456
      %v7502 = vsel %vm5106, %v7458, %v7460
      %v7503 = vsel %vm5106, %v7462, %v7464
      %v7504 = vsel %vm5106, %v7466, %v7468
      %v7505 = vsel %vm5106, %v7470, %v7472
      %v7506 = vsel %vm5106, %v7474, %v7476
      %v7507 = vsel %vm5106, %v7478, %v7480
      %v7508 = vsel %vm5106, %v7482, %v7484
      %v7509 = vsel %vm5106, %v7486, %v7488
      %v7510 = vsel %vm5106, %v7490, %v7492
      %vm7529 = vcmask 261120
      %v7531 = vsel %vm7529, %v7357, 0
      %v7534 = vsel %vm7529, %v7360, 0
      %v7537 = vsel %vm7529, %v7363, 0
      %v7540 = vsel %vm7529, %v7366, 0
      %v7543 = vsel %vm7529, %v7369, 0
      %v7546 = vsel %vm7529, %v7372, 0
      %7548 = vmatprep.subr.bf16.mxu0 0
      %7549 = vmatpush1.bf16.msra.mxu0 %v7493
      %7550 = vmatprep.subr.bf16.mxu0 0
      %7551 = vmatpush1.bf16.msra.mxu0 %v7494
      %7552 = vmatprep.subr.bf16.mxu0 0
      %7553 = vmatpush1.bf16.msra.mxu0 %v7495
      %7554 = vmatprep.subr.bf16.mxu0 0
      %7555 = vmatpush1.bf16.msra.mxu0 %v7496
      %7556 = vmatprep.subr.bf16.mxu0 0
      %7557 = vmatpush1.bf16.msra.mxu0 %v7497
      %7558 = vmatprep.subr.bf16.mxu0 0
      %7559 = vmatpush1.bf16.msra.mxu0 %v7498
      %7560 = vmatprep.subr.bf16.mxu0 0
      %7561 = vmatpush1.bf16.msra.mxu0 %v7499
      %7562 = vmatprep.subr.bf16.mxu0 0
      %7563 = vmatpush1.bf16.msra.mxu0 %v7500
      %7564 = vmatprep.subr.bf16.mxu0 0
      %7565 = vmatpush1.bf16.msra.mxu0 %v7501
      %7566 = vmatprep.subr.bf16.mxu0 0
      %7567 = vmatpush1.bf16.msra.mxu0 %v7502
      %7568 = vmatprep.subr.bf16.mxu0 0
      %7569 = vmatpush1.bf16.msra.mxu0 %v7503
      %7570 = vmatprep.subr.bf16.mxu0 0
      %7571 = vmatpush1.bf16.msra.mxu0 %v7504
      %7572 = vmatprep.subr.bf16.mxu0 0
      %7573 = vmatpush1.bf16.msra.mxu0 %v7505
      %7574 = vmatprep.subr.bf16.mxu0 0
      %7575 = vmatpush1.bf16.msra.mxu0 %v7506
      %7576 = vmatprep.subr.bf16.mxu0 0
      %7577 = vmatpush1.bf16.msra.mxu0 %v7507
      %7578 = vmatprep.subr.bf16.mxu0 0
      %7579 = vmatpush1.bf16.msra.mxu0 %v7508
      %7580 = vmatprep.mubr.bf16.mxu0 %v7356
      %7581 = vmatmul.mubr.bf16.gmra.mrb[0].mxu0 %v7355
      %v7582 = vpop.f32.mrb[0].mxu0
      %v7583 = vadd.f32 0.0, %v7582
      %v7584 = vpop.f32.mrb[0].mxu0
      %v7585 = vpop.f32.mrb[0].mxu0
      %v7586 = vadd.f32 0.0, %v7585
      %v7587 = vpop.f32.mrb[0].mxu0
      %7588 = vmatprep.mubr.bf16.mxu0 %v7359
      %7589 = vmatmul.mubr.bf16.gmra.mrb[0].mxu0 %v7358
      %v7590 = vpop.f32.mrb[0].mxu0
      %v7591 = vadd.f32 0.0, %v7590
      %v7592 = vpop.f32.mrb[0].mxu0
      %v7593 = vpop.f32.mrb[0].mxu0
      %v7594 = vadd.f32 0.0, %v7593
      %v7595 = vpop.f32.mrb[0].mxu0
      %7596 = vmatprep.mubr.bf16.mxu0 %v7362
      %7597 = vmatmul.mubr.bf16.gmra.mrb[0].mxu0 %v7361
      %v7598 = vpop.f32.mrb[0].mxu0
      %v7599 = vadd.f32 0.0, %v7598
      %v7600 = vpop.f32.mrb[0].mxu0
      %v7601 = vpop.f32.mrb[0].mxu0
      %v7602 = vadd.f32 0.0, %v7601
      %v7603 = vpop.f32.mrb[0].mxu0
      %7604 = vmatprep.mubr.bf16.mxu0 %v7365
      %7605 = vmatmul.mubr.bf16.gmra.mrb[0].mxu0 %v7364
      %v7606 = vpop.f32.mrb[0].mxu0
      %v7607 = vadd.f32 0.0, %v7606
      %v7608 = vpop.f32.mrb[0].mxu0
      %v7609 = vpop.f32.mrb[0].mxu0
      %v7610 = vadd.f32 0.0, %v7609
      %v7611 = vpop.f32.mrb[0].mxu0
      %7612 = vmatprep.mubr.bf16.mxu0 %v7368
      %7613 = vmatmul.mubr.bf16.gmra.mrb[0].mxu0 %v7367
      %v7614 = vpop.f32.mrb[0].mxu0
      %v7615 = vadd.f32 0.0, %v7614
      %v7616 = vpop.f32.mrb[0].mxu0
      %v7617 = vpop.f32.mrb[0].mxu0
      %v7618 = vadd.f32 0.0, %v7617
      %v7619 = vpop.f32.mrb[0].mxu0
      %7620 = vmatprep.mubr.bf16.mxu0 %v7371
      %7621 = vmatmul.mubr.bf16.gmra.mrb[0].mxu0 %v7370
      %v7622 = vpop.f32.mrb[0].mxu0
      %v7623 = vadd.f32 0.0, %v7622
      %v7624 = vpop.f32.mrb[0].mxu0
      %v7625 = vpop.f32.mrb[0].mxu0
      %v7626 = vadd.f32 0.0, %v7625
      %v7627 = vpop.f32.mrb[0].mxu0
      %7628 = vdwg.mxu0
      %7629 = vmatprep.subr.bf16.mxu0 0
      %7630 = vmatpush1.bf16.msra.mxu0 %v7509
      %7631 = vmatprep.subr.bf16.mxu0 0
      %7632 = vmatpush1.bf16.msra.mxu0 %v7510
      %7633 = vmatprep.subr.bf16.mxu0 0
      %7634 = vmatpush1.bf16.msra.mxu0 0
      %7635 = vmatprep.subr.bf16.mxu0 0
      %7636 = vmatpush1.bf16.msra.mxu0 0
      %7637 = vmatprep.subr.bf16.mxu0 0
      %7638 = vmatpush1.bf16.msra.mxu0 0
      %7639 = vmatprep.subr.bf16.mxu0 0
      %7640 = vmatpush1.bf16.msra.mxu0 0
      %7641 = vmatprep.subr.bf16.mxu0 0
      %7642 = vmatpush1.bf16.msra.mxu0 0
      %7643 = vmatprep.subr.bf16.mxu0 0
      %7644 = vmatpush1.bf16.msra.mxu0 0
      %7645 = vmatprep.subr.bf16.mxu0 0
      %7646 = vmatpush1.bf16.msra.mxu0 0
      %7647 = vmatprep.subr.bf16.mxu0 0
      %7648 = vmatpush1.bf16.msra.mxu0 0
      %7649 = vmatprep.subr.bf16.mxu0 0
      %7650 = vmatpush1.bf16.msra.mxu0 0
      %7651 = vmatprep.subr.bf16.mxu0 0
      %7652 = vmatpush1.bf16.msra.mxu0 0
      %7653 = vmatprep.subr.bf16.mxu0 0
      %7654 = vmatpush1.bf16.msra.mxu0 0
      %7655 = vmatprep.subr.bf16.mxu0 0
      %7656 = vmatpush1.bf16.msra.mxu0 0
      %7657 = vmatprep.subr.bf16.mxu0 0
      %7658 = vmatpush1.bf16.msra.mxu0 0
      %7659 = vmatprep.subr.bf16.mxu0 0
      %7660 = vmatpush1.bf16.msra.mxu0 0
      %7661 = vmatprep.mubr.bf16.mxu0 0
      %7662 = vmatmul.mubr.bf16.gmra.mrb[0].mxu0 %v7531
      %v7663 = vpop.f32.mrb[0].mxu0
      %v7664 = vadd.f32 %v7583, %v7663
      %v7665 = vpop.f32.mrb[0].mxu0
      %v7666 = vpop.f32.mrb[0].mxu0
      %v7667 = vadd.f32 %v7586, %v7666
      %v7668 = vpop.f32.mrb[0].mxu0
      %7669 = vmatprep.mubr.bf16.mxu0 0
      %7670 = vmatmul.mubr.bf16.gmra.mrb[0].mxu0 %v7534
      %v7671 = vpop.f32.mrb[0].mxu0
      %v7672 = vadd.f32 %v7591, %v7671
      %v7673 = vpop.f32.mrb[0].mxu0
      %v7674 = vpop.f32.mrb[0].mxu0
      %v7675 = vadd.f32 %v7594, %v7674
      %v7676 = vpop.f32.mrb[0].mxu0
      %7677 = vmatprep.mubr.bf16.mxu0 0
      %7678 = vmatmul.mubr.bf16.gmra.mrb[0].mxu0 %v7537
      %v7679 = vpop.f32.mrb[0].mxu0
      %v7680 = vadd.f32 %v7599, %v7679
      %v7681 = vpop.f32.mrb[0].mxu0
      %v7682 = vpop.f32.mrb[0].mxu0
      %v7683 = vadd.f32 %v7602, %v7682
      %v7684 = vpop.f32.mrb[0].mxu0
      %7685 = vmatprep.mubr.bf16.mxu0 0
      %7686 = vmatmul.mubr.bf16.gmra.mrb[0].mxu0 %v7540
      %v7687 = vpop.f32.mrb[0].mxu0
      %v7688 = vadd.f32 %v7607, %v7687
      %v7689 = vpop.f32.mrb[0].mxu0
      %v7690 = vpop.f32.mrb[0].mxu0
      %v7691 = vadd.f32 %v7610, %v7690
      %v7692 = vpop.f32.mrb[0].mxu0
      %7693 = vmatprep.mubr.bf16.mxu0 0
      %7694 = vmatmul.mubr.bf16.gmra.mrb[0].mxu0 %v7543
      %v7695 = vpop.f32.mrb[0].mxu0
      %v7696 = vadd.f32 %v7615, %v7695
      %v7697 = vpop.f32.mrb[0].mxu0
      %v7698 = vpop.f32.mrb[0].mxu0
      %v7699 = vadd.f32 %v7618, %v7698
      %v7700 = vpop.f32.mrb[0].mxu0
      %7701 = vmatprep.mubr.bf16.mxu0 0
      %7702 = vmatmul.mubr.bf16.gmra.mrb[0].mxu0 %v7546
      %v7703 = vpop.f32.mrb[0].mxu0
      %v7704 = vadd.f32 %v7623, %v7703
      %v7705 = vpop.f32.mrb[0].mxu0
      %v7706 = vpop.f32.mrb[0].mxu0
      %v7707 = vadd.f32 %v7626, %v7706
      %v7708 = vpop.f32.mrb[0].mxu0
      %7709 = vdwg.mxu0
      %v7710 = vsel %vm1256, %v7664, 0.0
      %v7711 = vsel %vm1256, %v7667, 0.0
      %v7712 = vsel %vm1256, %v7672, 0.0
      %v7713 = vsel %vm1256, %v7675, 0.0
      %v7714 = vsel %vm1256, %v7680, 0.0
      %v7715 = vsel %vm1256, %v7683, 0.0
      %v7716 = vsel %vm1256, %v7688, 0.0
      %v7717 = vsel %vm1256, %v7691, 0.0
      %v7718 = vsel %vm1256, %v7696, 0.0
      %v7719 = vsel %vm1256, %v7699, 0.0
      %v7720 = vsel %vm1256, %v7704, 0.0
      %v7721 = vsel %vm1256, %v7707, 0.0
      %v7722 = vadd.f32 %v7710, 0.0
      %v7723 = vadd.f32 %v7711, 0.0
      %v7724 = vadd.f32 %v7712, 0.0
      %v7725 = vadd.f32 %v7713, 0.0
      %v7726 = vadd.f32 %v7714, 0.0
      %v7727 = vadd.f32 %v7715, 0.0
      %v7728 = vadd.f32 %v7716, 0.0
      %v7729 = vadd.f32 %v7717, 0.0
      %v7730 = vadd.f32 %v7718, 0.0
      %v7731 = vadd.f32 %v7719, 0.0
      %v7732 = vadd.f32 %v7720, 0.0
      %v7733 = vadd.f32 %v7721, 0.0
      %s7734 = scalar_lea.vmem %s7, 144
      %v7735 = vld [vmem:[%s7734] sm:$0xff]
      %v7736 = vld [vmem:[%s7734 + $0x8] sm:$0xf]
      %v7737 = vld [vmem:[%s7734 + $0xc] sm:$0xff]
      %v7738 = vld [vmem:[%s7734 + $0x14] sm:$0xf]
      %v7739 = vld [vmem:[%s7734 + $0x18] sm:$0xff]
      %v7740 = vld [vmem:[%s7734 + $0x20] sm:$0xf]
      %v7741 = vld [vmem:[%s7734 + $0x24] sm:$0xff]
      %v7742 = vld [vmem:[%s7734 + $0x2c] sm:$0xf]
      %v7743 = vld [vmem:[%s7734 + $0x30] sm:$0xff]
      %v7744 = vld [vmem:[%s7734 + $0x38] sm:$0xf]
      %v7745 = vld [vmem:[%s7734 + $0x3c] sm:$0xff]
      %v7746 = vld [vmem:[%s7734 + $0x44] sm:$0xf]
      %v7747 = vld [vmem:[%s7734 + $0x48] sm:$0xff]
      %v7748 = vld [vmem:[%s7734 + $0x50] sm:$0xf]
      %v7749 = vld [vmem:[%s7734 + $0x54] sm:$0xff]
      %v7750 = vld [vmem:[%s7734 + $0x5c] sm:$0xf]
      %v7751 = vld [vmem:[%s7734 + $0x60] sm:$0xff]
      %v7752 = vld [vmem:[%s7734 + $0x68] sm:$0xf]
      %v7753 = vld [vmem:[%s7734 + $0x6c] sm:$0xff]
      %v7754 = vld [vmem:[%s7734 + $0x74] sm:$0xf]
      %v7755 = vld [vmem:[%s7734 + $0x78] sm:$0xff]
      %v7756 = vld [vmem:[%s7734 + $0x80] sm:$0xf]
      %v7757 = vld [vmem:[%s7734 + $0x84] sm:$0xff]
      %v7758 = vld [vmem:[%s7734 + $0x8c] sm:$0xf]
      %v7783 = vunpack.c.l.b16 %v7735
      %v7784 = vunpack.c.h.b16 %v7735
      %v7785 = vunpack.c.l.b16 %v7736
      %v7786 = vunpack.c.l.b16 %v7737
      %v7787 = vunpack.c.h.b16 %v7737
      %v7788 = vunpack.c.l.b16 %v7738
      %v7789 = vunpack.c.l.b16 %v7739
      %v7790 = vunpack.c.h.b16 %v7739
      %v7791 = vunpack.c.l.b16 %v7740
      %v7792 = vunpack.c.l.b16 %v7741
      %v7793 = vunpack.c.h.b16 %v7741
      %v7794 = vunpack.c.l.b16 %v7742
      %v7795 = vunpack.c.l.b16 %v7743
      %v7796 = vunpack.c.h.b16 %v7743
      %v7797 = vunpack.c.l.b16 %v7744
      %v7798 = vunpack.c.l.b16 %v7745
      %v7799 = vunpack.c.h.b16 %v7745
      %v7800 = vunpack.c.l.b16 %v7746
      %v7801 = vunpack.c.l.b16 %v7747
      %v7802 = vunpack.c.h.b16 %v7747
      %v7803 = vunpack.c.l.b16 %v7748
      %v7804 = vunpack.c.l.b16 %v7749
      %v7805 = vunpack.c.h.b16 %v7749
      %v7806 = vunpack.c.l.b16 %v7750
      %v7807 = vunpack.c.l.b16 %v7751
      %v7808 = vunpack.c.h.b16 %v7751
      %v7809 = vunpack.c.l.b16 %v7752
      %v7810 = vunpack.c.l.b16 %v7753
      %v7811 = vunpack.c.h.b16 %v7753
      %v7812 = vunpack.c.l.b16 %v7754
      %v7813 = vunpack.c.l.b16 %v7755
      %v7814 = vunpack.c.h.b16 %v7755
      %v7815 = vunpack.c.l.b16 %v7756
      %v7816 = vunpack.c.l.b16 %v7757
      %v7817 = vunpack.c.h.b16 %v7757
      %v7818 = vunpack.c.l.b16 %v7758
      %v7819 = vpack.c.b16 %v7786, %v7783
      %v7820 = vpack.c.b16 %v7787, %v7784
      %v7821 = vpack.c.b16 %v7788, %v7785
      %v7822 = vpack.c.b16 %v7792, %v7789
      %v7823 = vpack.c.b16 %v7793, %v7790
      %v7824 = vpack.c.b16 %v7794, %v7791
      %v7825 = vpack.c.b16 %v7798, %v7795
      %v7826 = vpack.c.b16 %v7799, %v7796
      %v7827 = vpack.c.b16 %v7800, %v7797
      %v7828 = vpack.c.b16 %v7804, %v7801
      %v7829 = vpack.c.b16 %v7805, %v7802
      %v7830 = vpack.c.b16 %v7806, %v7803
      %v7831 = vpack.c.b16 %v7810, %v7807
      %v7832 = vpack.c.b16 %v7811, %v7808
      %v7833 = vpack.c.b16 %v7812, %v7809
      %v7834 = vpack.c.b16 %v7816, %v7813
      %v7835 = vpack.c.b16 %v7817, %v7814
      %v7836 = vpack.c.b16 %v7818, %v7815
      %7849 = vrot.lane.b32.xlu0 %v7259, 16
      %v7850 = vpop.permute.xlu0 %7849
      %7851 = vrot.lane.b32.xlu0 %v7260, 16
      %v7852 = vpop.permute.xlu0 %7851
      %7853 = vrot.lane.b32.xlu0 %v7261, 16
      %v7854 = vpop.permute.xlu0 %7853
      %7855 = vrot.lane.b32.xlu0 %v7262, 16
      %v7856 = vpop.permute.xlu0 %7855
      %7857 = vrot.lane.b32.xlu0 %v7263, 16
      %v7858 = vpop.permute.xlu0 %7857
      %7859 = vrot.lane.b32.xlu0 %v7264, 16
      %v7860 = vpop.permute.xlu0 %7859
      %7861 = vrot.lane.b32.xlu0 %v7265, 16
      %v7862 = vpop.permute.xlu0 %7861
      %7863 = vrot.lane.b32.xlu0 %v7266, 16
      %v7864 = vpop.permute.xlu0 %7863
      %7865 = vrot.lane.b32.xlu0 %v7267, 16
      %v7866 = vpop.permute.xlu0 %7865
      %7867 = vrot.lane.b32.xlu0 %v7268, 16
      %v7868 = vpop.permute.xlu0 %7867
      %7869 = vrot.lane.b32.xlu0 %v7269, 16
      %v7870 = vpop.permute.xlu0 %7869
      %7871 = vrot.lane.b32.xlu0 %v7270, 16
      %v7872 = vpop.permute.xlu0 %7871
      %7873 = vrot.lane.b32.xlu0 %v7272, 16
      %v7874 = vpop.permute.xlu0 %7873
      %7875 = vrot.lane.b32.xlu0 %v7274, 16
      %v7876 = vpop.permute.xlu0 %7875
      %7877 = vrot.lane.b32.xlu0 %v7276, 16
      %v7878 = vpop.permute.xlu0 %7877
      %7879 = vrot.lane.b32.xlu0 %v7278, 16
      %v7880 = vpop.permute.xlu0 %7879
      %7881 = vrot.lane.b32.xlu0 %v7280, 16
      %v7882 = vpop.permute.xlu0 %7881
      %7883 = vrot.lane.b32.xlu0 %v7282, 16
      %v7884 = vpop.permute.xlu0 %7883
      %7885 = vrot.lane.b32.xlu0 %v7283, 16
      %v7886 = vpop.permute.xlu0 %7885
      %7887 = vrot.lane.b32.xlu0 %v7284, 16
      %v7888 = vpop.permute.xlu0 %7887
      %7889 = vrot.lane.b32.xlu0 %v7285, 16
      %v7890 = vpop.permute.xlu0 %7889
      %7891 = vrot.lane.b32.xlu0 %v7286, 16
      %v7892 = vpop.permute.xlu0 %7891
      %7893 = vrot.lane.b32.xlu0 %v7287, 16
      %v7894 = vpop.permute.xlu0 %7893
      %7895 = vrot.lane.b32.xlu0 %v7288, 16
      %v7896 = vpop.permute.xlu0 %7895
      %7897 = vrot.lane.b32.xlu0 %v7289, 16
      %v7898 = vpop.permute.xlu0 %7897
      %7899 = vrot.lane.b32.xlu0 %v7290, 16
      %v7900 = vpop.permute.xlu0 %7899
      %7901 = vrot.lane.b32.xlu0 %v7291, 16
      %v7902 = vpop.permute.xlu0 %7901
      %7903 = vrot.lane.b32.xlu0 %v7292, 16
      %v7904 = vpop.permute.xlu0 %7903
      %7905 = vrot.lane.b32.xlu0 %v7293, 16
      %v7906 = vpop.permute.xlu0 %7905
      %7907 = vrot.lane.b32.xlu0 %v7294, 16
      %v7908 = vpop.permute.xlu0 %7907
      %v7909 = vsel %vm5361, %v7850, %v7852
      %v7910 = vsel %vm5361, %v7854, %v7856
      %v7911 = vsel %vm5361, %v7858, %v7860
      %v7912 = vsel %vm5361, %v7862, %v7864
      %v7913 = vsel %vm5361, %v7866, %v7868
      %v7914 = vsel %vm5361, %v7870, %v7872
      %v7915 = vsel %vm5361, %v7886, %v7888
      %v7916 = vsel %vm5361, %v7890, %v7892
      %v7917 = vsel %vm5361, %v7894, %v7896
      %v7918 = vsel %vm5361, %v7898, %v7900
      %v7919 = vsel %vm5361, %v7902, %v7904
      %v7920 = vsel %vm5361, %v7906, %v7908
      %v7940 = vsel %vm7529, %v7821, 0
      %v7943 = vsel %vm7529, %v7824, 0
      %v7946 = vsel %vm7529, %v7827, 0
      %v7949 = vsel %vm7529, %v7830, 0
      %v7952 = vsel %vm7529, %v7833, 0
      %v7955 = vsel %vm7529, %v7836, 0
      %7957 = vmatprep.subr.bf16.mxu0 0
      %7958 = vmatpush1.bf16.msra.mxu0 %v7909
      %7959 = vmatprep.subr.bf16.mxu0 0
      %7960 = vmatpush1.bf16.msra.mxu0 %v7910
      %7961 = vmatprep.subr.bf16.mxu0 0
      %7962 = vmatpush1.bf16.msra.mxu0 %v7911
      %7963 = vmatprep.subr.bf16.mxu0 0
      %7964 = vmatpush1.bf16.msra.mxu0 %v7912
      %7965 = vmatprep.subr.bf16.mxu0 0
      %7966 = vmatpush1.bf16.msra.mxu0 %v7913
      %7967 = vmatprep.subr.bf16.mxu0 0
      %7968 = vmatpush1.bf16.msra.mxu0 %v7914
      %7969 = vmatprep.subr.bf16.mxu0 0
      %7970 = vmatpush1.bf16.msra.mxu0 %v7874
      %7971 = vmatprep.subr.bf16.mxu0 0
      %7972 = vmatpush1.bf16.msra.mxu0 %v7876
      %7973 = vmatprep.subr.bf16.mxu0 0
      %7974 = vmatpush1.bf16.msra.mxu0 %v7878
      %7975 = vmatprep.subr.bf16.mxu0 0
      %7976 = vmatpush1.bf16.msra.mxu0 %v7880
      %7977 = vmatprep.subr.bf16.mxu0 0
      %7978 = vmatpush1.bf16.msra.mxu0 %v7882
      %7979 = vmatprep.subr.bf16.mxu0 0
      %7980 = vmatpush1.bf16.msra.mxu0 %v7884
      %7981 = vmatprep.subr.bf16.mxu0 0
      %7982 = vmatpush1.bf16.msra.mxu0 %v7915
      %7983 = vmatprep.subr.bf16.mxu0 0
      %7984 = vmatpush1.bf16.msra.mxu0 %v7916
      %7985 = vmatprep.subr.bf16.mxu0 0
      %7986 = vmatpush1.bf16.msra.mxu0 %v7917
      %7987 = vmatprep.subr.bf16.mxu0 0
      %7988 = vmatpush1.bf16.msra.mxu0 %v7918
      %7989 = vmatprep.mubr.bf16.mxu0 %v7820
      %7990 = vmatmul.mubr.bf16.gmra.mrb[0].mxu0 %v7819
      %v7991 = vpop.f32.mrb[0].mxu0
      %v7992 = vadd.f32 0.0, %v7991
      %v7993 = vpop.f32.mrb[0].mxu0
      %v7994 = vpop.f32.mrb[0].mxu0
      %v7995 = vadd.f32 0.0, %v7994
      %v7996 = vpop.f32.mrb[0].mxu0
      %7997 = vmatprep.mubr.bf16.mxu0 %v7823
      %7998 = vmatmul.mubr.bf16.gmra.mrb[0].mxu0 %v7822
      %v7999 = vpop.f32.mrb[0].mxu0
      %v8000 = vadd.f32 0.0, %v7999
      %v8001 = vpop.f32.mrb[0].mxu0
      %v8002 = vpop.f32.mrb[0].mxu0
      %v8003 = vadd.f32 0.0, %v8002
      %v8004 = vpop.f32.mrb[0].mxu0
      %8005 = vmatprep.mubr.bf16.mxu0 %v7826
      %8006 = vmatmul.mubr.bf16.gmra.mrb[0].mxu0 %v7825
      %v8007 = vpop.f32.mrb[0].mxu0
      %v8008 = vadd.f32 0.0, %v8007
      %v8009 = vpop.f32.mrb[0].mxu0
      %v8010 = vpop.f32.mrb[0].mxu0
      %v8011 = vadd.f32 0.0, %v8010
      %v8012 = vpop.f32.mrb[0].mxu0
      %8013 = vmatprep.mubr.bf16.mxu0 %v7829
      %8014 = vmatmul.mubr.bf16.gmra.mrb[0].mxu0 %v7828
      %v8015 = vpop.f32.mrb[0].mxu0
      %v8016 = vadd.f32 0.0, %v8015
      %v8017 = vpop.f32.mrb[0].mxu0
      %v8018 = vpop.f32.mrb[0].mxu0
      %v8019 = vadd.f32 0.0, %v8018
      %v8020 = vpop.f32.mrb[0].mxu0
      %8021 = vmatprep.mubr.bf16.mxu0 %v7832
      %8022 = vmatmul.mubr.bf16.gmra.mrb[0].mxu0 %v7831
      %v8023 = vpop.f32.mrb[0].mxu0
      %v8024 = vadd.f32 0.0, %v8023
      %v8025 = vpop.f32.mrb[0].mxu0
      %v8026 = vpop.f32.mrb[0].mxu0
      %v8027 = vadd.f32 0.0, %v8026
      %v8028 = vpop.f32.mrb[0].mxu0
      %8029 = vmatprep.mubr.bf16.mxu0 %v7835
      %8030 = vmatmul.mubr.bf16.gmra.mrb[0].mxu0 %v7834
      %v8031 = vpop.f32.mrb[0].mxu0
      %v8032 = vadd.f32 0.0, %v8031
      %v8033 = vpop.f32.mrb[0].mxu0
      %v8034 = vpop.f32.mrb[0].mxu0
      %v8035 = vadd.f32 0.0, %v8034
      %v8036 = vpop.f32.mrb[0].mxu0
      %8037 = vdwg.mxu0
      %8038 = vmatprep.subr.bf16.mxu0 0
      %8039 = vmatpush1.bf16.msra.mxu0 %v7919
      %8040 = vmatprep.subr.bf16.mxu0 0
      %8041 = vmatpush1.bf16.msra.mxu0 %v7920
      %8042 = vmatprep.subr.bf16.mxu0 0
      %8043 = vmatpush1.bf16.msra.mxu0 0
      %8044 = vmatprep.subr.bf16.mxu0 0
      %8045 = vmatpush1.bf16.msra.mxu0 0
      %8046 = vmatprep.subr.bf16.mxu0 0
      %8047 = vmatpush1.bf16.msra.mxu0 0
      %8048 = vmatprep.subr.bf16.mxu0 0
      %8049 = vmatpush1.bf16.msra.mxu0 0
      %8050 = vmatprep.subr.bf16.mxu0 0
      %8051 = vmatpush1.bf16.msra.mxu0 0
      %8052 = vmatprep.subr.bf16.mxu0 0
      %8053 = vmatpush1.bf16.msra.mxu0 0
      %8054 = vmatprep.subr.bf16.mxu0 0
      %8055 = vmatpush1.bf16.msra.mxu0 0
      %8056 = vmatprep.subr.bf16.mxu0 0
      %8057 = vmatpush1.bf16.msra.mxu0 0
      %8058 = vmatprep.subr.bf16.mxu0 0
      %8059 = vmatpush1.bf16.msra.mxu0 0
      %8060 = vmatprep.subr.bf16.mxu0 0
      %8061 = vmatpush1.bf16.msra.mxu0 0
      %8062 = vmatprep.subr.bf16.mxu0 0
      %8063 = vmatpush1.bf16.msra.mxu0 0
      %8064 = vmatprep.subr.bf16.mxu0 0
      %8065 = vmatpush1.bf16.msra.mxu0 0
      %8066 = vmatprep.subr.bf16.mxu0 0
      %8067 = vmatpush1.bf16.msra.mxu0 0
      %8068 = vmatprep.subr.bf16.mxu0 0
      %8069 = vmatpush1.bf16.msra.mxu0 0
      %8070 = vmatprep.mubr.bf16.mxu0 0
      %8071 = vmatmul.mubr.bf16.gmra.mrb[0].mxu0 %v7940
      %v8072 = vpop.f32.mrb[0].mxu0
      %v8073 = vadd.f32 %v7992, %v8072
      %v8074 = vpop.f32.mrb[0].mxu0
      %v8075 = vpop.f32.mrb[0].mxu0
      %v8076 = vadd.f32 %v7995, %v8075
      %v8077 = vpop.f32.mrb[0].mxu0
      %8078 = vmatprep.mubr.bf16.mxu0 0
      %8079 = vmatmul.mubr.bf16.gmra.mrb[0].mxu0 %v7943
      %v8080 = vpop.f32.mrb[0].mxu0
      %v8081 = vadd.f32 %v8000, %v8080
      %v8082 = vpop.f32.mrb[0].mxu0
      %v8083 = vpop.f32.mrb[0].mxu0
      %v8084 = vadd.f32 %v8003, %v8083
      %v8085 = vpop.f32.mrb[0].mxu0
      %8086 = vmatprep.mubr.bf16.mxu0 0
      %8087 = vmatmul.mubr.bf16.gmra.mrb[0].mxu0 %v7946
      %v8088 = vpop.f32.mrb[0].mxu0
      %v8089 = vadd.f32 %v8008, %v8088
      %v8090 = vpop.f32.mrb[0].mxu0
      %v8091 = vpop.f32.mrb[0].mxu0
      %v8092 = vadd.f32 %v8011, %v8091
      %v8093 = vpop.f32.mrb[0].mxu0
      %8094 = vmatprep.mubr.bf16.mxu0 0
      %8095 = vmatmul.mubr.bf16.gmra.mrb[0].mxu0 %v7949
      %v8096 = vpop.f32.mrb[0].mxu0
      %v8097 = vadd.f32 %v8016, %v8096
      %v8098 = vpop.f32.mrb[0].mxu0
      %v8099 = vpop.f32.mrb[0].mxu0
      %v8100 = vadd.f32 %v8019, %v8099
      %v8101 = vpop.f32.mrb[0].mxu0
      %8102 = vmatprep.mubr.bf16.mxu0 0
      %8103 = vmatmul.mubr.bf16.gmra.mrb[0].mxu0 %v7952
      %v8104 = vpop.f32.mrb[0].mxu0
      %v8105 = vadd.f32 %v8024, %v8104
      %v8106 = vpop.f32.mrb[0].mxu0
      %v8107 = vpop.f32.mrb[0].mxu0
      %v8108 = vadd.f32 %v8027, %v8107
      %v8109 = vpop.f32.mrb[0].mxu0
      %8110 = vmatprep.mubr.bf16.mxu0 0
      %8111 = vmatmul.mubr.bf16.gmra.mrb[0].mxu0 %v7955
      %v8112 = vpop.f32.mrb[0].mxu0
      %v8113 = vadd.f32 %v8032, %v8112
      %v8114 = vpop.f32.mrb[0].mxu0
      %v8115 = vpop.f32.mrb[0].mxu0
      %v8116 = vadd.f32 %v8035, %v8115
      %v8117 = vpop.f32.mrb[0].mxu0
      %8118 = vdwg.mxu0
      %v8119 = vadd.f32 %v7722, %v8073
      %v8120 = vadd.f32 %v7723, %v8076
      %v8121 = vadd.f32 %v7724, %v8081
      %v8122 = vadd.f32 %v7725, %v8084
      %v8123 = vadd.f32 %v7726, %v8089
      %v8124 = vadd.f32 %v7727, %v8092
      %v8125 = vadd.f32 %v7728, %v8097
      %v8126 = vadd.f32 %v7729, %v8100
      %v8127 = vadd.f32 %v7730, %v8105
      %v8128 = vadd.f32 %v7731, %v8108
      %v8129 = vadd.f32 %v7732, %v8113
      %v8130 = vadd.f32 %v7733, %v8116
      %8131 = vrot.lane.b32.xlu0 %v7019, 112
      %v8132 = vpop.permute.xlu0 %8131
      %8133 = vrot.lane.b32.xlu0 %v7020, 112
      %v8134 = vpop.permute.xlu0 %8133
      %8135 = vrot.lane.b32.xlu0 %v7021, 112
      %v8136 = vpop.permute.xlu0 %8135
      %8137 = vrot.lane.b32.xlu0 %v7022, 112
      %v8138 = vpop.permute.xlu0 %8137
      %8139 = vrot.lane.b32.xlu0 %v7023, 112
      %v8140 = vpop.permute.xlu0 %8139
      %8141 = vrot.lane.b32.xlu0 %v7024, 112
      %v8142 = vpop.permute.xlu0 %8141
      %8143 = vrot.lane.b32.xlu0 %v7025, 112
      %v8144 = vpop.permute.xlu0 %8143
      %8145 = vrot.lane.b32.xlu0 %v7026, 112
      %v8146 = vpop.permute.xlu0 %8145
      %8147 = vrot.lane.b32.xlu0 %v7027, 112
      %v8148 = vpop.permute.xlu0 %8147
      %8149 = vrot.lane.b32.xlu0 %v7028, 112
      %v8150 = vpop.permute.xlu0 %8149
      %8151 = vrot.lane.b32.xlu0 %v7029, 112
      %v8152 = vpop.permute.xlu0 %8151
      %8153 = vrot.lane.b32.xlu0 %v7030, 112
      %v8154 = vpop.permute.xlu0 %8153
      %v8155 = vsel %vm1189, %v7058, %v8132
      %v8156 = vsel %vm1189, %v7062, %v8134
      %v8157 = vsel %vm1189, %v7066, %v8136
      %v8158 = vsel %vm1189, %v7070, %v8138
      %v8159 = vsel %vm1189, %v7074, %v8140
      %v8160 = vsel %vm1189, %v7078, %v8142
      %v8161 = vsel %vm1189, %v7082, %v8144
      %v8162 = vsel %vm1189, %v7086, %v8146
      %v8163 = vsel %vm1189, %v7090, %v8148
      %v8164 = vsel %vm1189, %v7094, %v8150
      %v8165 = vsel %vm1189, %v7098, %v8152
      %v8166 = vsel %vm1189, %v7102, %v8154
      %s8179 = scalar_lea.vmem %s7, 288
      %v8180 = vld [vmem:[%s8179] sm:$0xff]
      %v8181 = vld [vmem:[%s8179 + $0x8] sm:$0xf]
      %v8182 = vld [vmem:[%s8179 + $0xc] sm:$0xff]
      %v8183 = vld [vmem:[%s8179 + $0x14] sm:$0xf]
      %v8184 = vld [vmem:[%s8179 + $0x18] sm:$0xff]
      %v8185 = vld [vmem:[%s8179 + $0x20] sm:$0xf]
      %v8186 = vld [vmem:[%s8179 + $0x24] sm:$0xff]
      %v8187 = vld [vmem:[%s8179 + $0x2c] sm:$0xf]
      %v8188 = vld [vmem:[%s8179 + $0x30] sm:$0xff]
      %v8189 = vld [vmem:[%s8179 + $0x38] sm:$0xf]
      %v8190 = vld [vmem:[%s8179 + $0x3c] sm:$0xff]
      %v8191 = vld [vmem:[%s8179 + $0x44] sm:$0xf]
      %v8192 = vld [vmem:[%s8179 + $0x48] sm:$0xff]
      %v8193 = vld [vmem:[%s8179 + $0x50] sm:$0xf]
      %v8194 = vld [vmem:[%s8179 + $0x54] sm:$0xff]
      %v8195 = vld [vmem:[%s8179 + $0x5c] sm:$0xf]
      %v8196 = vld [vmem:[%s8179 + $0x60] sm:$0xff]
      %v8197 = vld [vmem:[%s8179 + $0x68] sm:$0xf]
      %v8198 = vld [vmem:[%s8179 + $0x6c] sm:$0xff]
      %v8199 = vld [vmem:[%s8179 + $0x74] sm:$0xf]
      %v8200 = vld [vmem:[%s8179 + $0x78] sm:$0xff]
      %v8201 = vld [vmem:[%s8179 + $0x80] sm:$0xf]
      %v8202 = vld [vmem:[%s8179 + $0x84] sm:$0xff]
      %v8203 = vld [vmem:[%s8179 + $0x8c] sm:$0xf]
      %v8204 = vpack.c.bf16 %v8156, %v8155
      %v8205 = vpack.c.bf16 %v8158, %v8157
      %v8206 = vpack.c.bf16 %v8160, %v8159
      %v8207 = vpack.c.bf16 %v8162, %v8161
      %v8208 = vpack.c.bf16 %v8164, %v8163
      %v8209 = vpack.c.bf16 %v8166, %v8165
      %v8234 = vunpack.c.l.b16 %v8180
      %v8235 = vunpack.c.h.b16 %v8180
      %v8236 = vunpack.c.l.b16 %v8181
      %v8237 = vunpack.c.l.b16 %v8182
      %v8238 = vunpack.c.h.b16 %v8182
      %v8239 = vunpack.c.l.b16 %v8183
      %v8240 = vunpack.c.l.b16 %v8184
      %v8241 = vunpack.c.h.b16 %v8184
      %v8242 = vunpack.c.l.b16 %v8185
      %v8243 = vunpack.c.l.b16 %v8186
      %v8244 = vunpack.c.h.b16 %v8186
      %v8245 = vunpack.c.l.b16 %v8187
      %v8246 = vunpack.c.l.b16 %v8188
      %v8247 = vunpack.c.h.b16 %v8188
      %v8248 = vunpack.c.l.b16 %v8189
      %v8249 = vunpack.c.l.b16 %v8190
      %v8250 = vunpack.c.h.b16 %v8190
      %v8251 = vunpack.c.l.b16 %v8191
      %v8252 = vunpack.c.l.b16 %v8192
      %v8253 = vunpack.c.h.b16 %v8192
      %v8254 = vunpack.c.l.b16 %v8193
      %v8255 = vunpack.c.l.b16 %v8194
      %v8256 = vunpack.c.h.b16 %v8194
      %v8257 = vunpack.c.l.b16 %v8195
      %v8258 = vunpack.c.l.b16 %v8196
      %v8259 = vunpack.c.h.b16 %v8196
      %v8260 = vunpack.c.l.b16 %v8197
      %v8261 = vunpack.c.l.b16 %v8198
      %v8262 = vunpack.c.h.b16 %v8198
      %v8263 = vunpack.c.l.b16 %v8199
      %v8264 = vunpack.c.l.b16 %v8200
      %v8265 = vunpack.c.h.b16 %v8200
      %v8266 = vunpack.c.l.b16 %v8201
      %v8267 = vunpack.c.l.b16 %v8202
      %v8268 = vunpack.c.h.b16 %v8202
      %v8269 = vunpack.c.l.b16 %v8203
      %v8270 = vpack.c.b16 %v8237, %v8234
      %v8271 = vpack.c.b16 %v8238, %v8235
      %v8272 = vpack.c.b16 %v8239, %v8236
      %v8273 = vpack.c.b16 %v8243, %v8240
      %v8274 = vpack.c.b16 %v8244, %v8241
      %v8275 = vpack.c.b16 %v8245, %v8242
      %v8276 = vpack.c.b16 %v8249, %v8246
      %v8277 = vpack.c.b16 %v8250, %v8247
      %v8278 = vpack.c.b16 %v8251, %v8248
      %v8279 = vpack.c.b16 %v8255, %v8252
      %v8280 = vpack.c.b16 %v8256, %v8253
      %v8281 = vpack.c.b16 %v8257, %v8254
      %v8282 = vpack.c.b16 %v8261, %v8258
      %v8283 = vpack.c.b16 %v8262, %v8259
      %v8284 = vpack.c.b16 %v8263, %v8260
      %v8285 = vpack.c.b16 %v8267, %v8264
      %v8286 = vpack.c.b16 %v8268, %v8265
      %v8287 = vpack.c.b16 %v8269, %v8266
      %8306 = vrot.lane.b32.xlu0 %v7259, 15
      %v8307 = vpop.permute.xlu0 %8306
      %8308 = vrot.lane.b32.xlu0 %v7260, 15
      %v8309 = vpop.permute.xlu0 %8308
      %8310 = vrot.lane.b32.xlu0 %v7261, 15
      %v8311 = vpop.permute.xlu0 %8310
      %8312 = vrot.lane.b32.xlu0 %v7262, 15
      %v8313 = vpop.permute.xlu0 %8312
      %8314 = vrot.lane.b32.xlu0 %v7263, 15
      %v8315 = vpop.permute.xlu0 %8314
      %8316 = vrot.lane.b32.xlu0 %v7264, 15
      %v8317 = vpop.permute.xlu0 %8316
      %8318 = vrot.lane.b32.xlu0 %v7265, 15
      %v8319 = vpop.permute.xlu0 %8318
      %8320 = vrot.lane.b32.xlu0 %v7266, 15
      %v8321 = vpop.permute.xlu0 %8320
      %8322 = vrot.lane.b32.xlu0 %v7267, 15
      %v8323 = vpop.permute.xlu0 %8322
      %8324 = vrot.lane.b32.xlu0 %v7268, 15
      %v8325 = vpop.permute.xlu0 %8324
      %8326 = vrot.lane.b32.xlu0 %v7269, 15
      %v8327 = vpop.permute.xlu0 %8326
      %8328 = vrot.lane.b32.xlu0 %v7270, 15
      %v8329 = vpop.permute.xlu0 %8328
      %8330 = vrot.lane.b32.xlu0 %v7272, 15
      %v8331 = vpop.permute.xlu0 %8330
      %8332 = vrot.lane.b32.xlu0 %v8204, 15
      %v8333 = vpop.permute.xlu0 %8332
      %8334 = vrot.lane.b32.xlu0 %v7274, 15
      %v8335 = vpop.permute.xlu0 %8334
      %8336 = vrot.lane.b32.xlu0 %v8205, 15
      %v8337 = vpop.permute.xlu0 %8336
      %8338 = vrot.lane.b32.xlu0 %v7276, 15
      %v8339 = vpop.permute.xlu0 %8338
      %8340 = vrot.lane.b32.xlu0 %v8206, 15
      %v8341 = vpop.permute.xlu0 %8340
      %8342 = vrot.lane.b32.xlu0 %v7278, 15
      %v8343 = vpop.permute.xlu0 %8342
      %8344 = vrot.lane.b32.xlu0 %v8207, 15
      %v8345 = vpop.permute.xlu0 %8344
      %8346 = vrot.lane.b32.xlu0 %v7280, 15
      %v8347 = vpop.permute.xlu0 %8346
      %8348 = vrot.lane.b32.xlu0 %v8208, 15
      %v8349 = vpop.permute.xlu0 %8348
      %8350 = vrot.lane.b32.xlu0 %v7282, 15
      %v8351 = vpop.permute.xlu0 %8350
      %8352 = vrot.lane.b32.xlu0 %v8209, 15
      %v8353 = vpop.permute.xlu0 %8352
      %8354 = vrot.lane.b32.xlu0 %v7283, 15
      %v8355 = vpop.permute.xlu0 %8354
      %8356 = vrot.lane.b32.xlu0 %v7284, 15
      %v8357 = vpop.permute.xlu0 %8356
      %8358 = vrot.lane.b32.xlu0 %v7285, 15
      %v8359 = vpop.permute.xlu0 %8358
      %8360 = vrot.lane.b32.xlu0 %v7286, 15
      %v8361 = vpop.permute.xlu0 %8360
      %8362 = vrot.lane.b32.xlu0 %v7287, 15
      %v8363 = vpop.permute.xlu0 %8362
      %8364 = vrot.lane.b32.xlu0 %v7288, 15
      %v8365 = vpop.permute.xlu0 %8364
      %8366 = vrot.lane.b32.xlu0 %v7289, 15
      %v8367 = vpop.permute.xlu0 %8366
      %8368 = vrot.lane.b32.xlu0 %v7290, 15
      %v8369 = vpop.permute.xlu0 %8368
      %8370 = vrot.lane.b32.xlu0 %v7291, 15
      %v8371 = vpop.permute.xlu0 %8370
      %8372 = vrot.lane.b32.xlu0 %v7292, 15
      %v8373 = vpop.permute.xlu0 %8372
      %8374 = vrot.lane.b32.xlu0 %v7293, 15
      %v8375 = vpop.permute.xlu0 %8374
      %8376 = vrot.lane.b32.xlu0 %v7294, 15
      %v8377 = vpop.permute.xlu0 %8376
      %v8378 = vsel %vm5648, %v8307, %v8309
      %v8379 = vsel %vm5648, %v8311, %v8313
      %v8380 = vsel %vm5648, %v8315, %v8317
      %v8381 = vsel %vm5648, %v8319, %v8321
      %v8382 = vsel %vm5648, %v8323, %v8325
      %v8383 = vsel %vm5648, %v8327, %v8329
      %v8384 = vsel %vm5648, %v8331, %v8333
      %v8385 = vsel %vm5648, %v8335, %v8337
      %v8386 = vsel %vm5648, %v8339, %v8341
      %v8387 = vsel %vm5648, %v8343, %v8345
      %v8388 = vsel %vm5648, %v8347, %v8349
      %v8389 = vsel %vm5648, %v8351, %v8353
      %v8390 = vsel %vm5648, %v8355, %v8357
      %v8391 = vsel %vm5648, %v8359, %v8361
      %v8392 = vsel %vm5648, %v8363, %v8365
      %v8393 = vsel %vm5648, %v8367, %v8369
      %v8394 = vsel %vm5648, %v8371, %v8373
      %v8395 = vsel %vm5648, %v8375, %v8377
      %v8415 = vsel %vm7529, %v8272, 0
      %v8418 = vsel %vm7529, %v8275, 0
      %v8421 = vsel %vm7529, %v8278, 0
      %v8424 = vsel %vm7529, %v8281, 0
      %v8427 = vsel %vm7529, %v8284, 0
      %v8430 = vsel %vm7529, %v8287, 0
      %8432 = vmatprep.subr.bf16.mxu0 0
      %8433 = vmatpush1.bf16.msra.mxu0 %v8378
      %8434 = vmatprep.subr.bf16.mxu0 0
      %8435 = vmatpush1.bf16.msra.mxu0 %v8379
      %8436 = vmatprep.subr.bf16.mxu0 0
      %8437 = vmatpush1.bf16.msra.mxu0 %v8380
      %8438 = vmatprep.subr.bf16.mxu0 0
      %8439 = vmatpush1.bf16.msra.mxu0 %v8381
      %8440 = vmatprep.subr.bf16.mxu0 0
      %8441 = vmatpush1.bf16.msra.mxu0 %v8382
      %8442 = vmatprep.subr.bf16.mxu0 0
      %8443 = vmatpush1.bf16.msra.mxu0 %v8383
      %8444 = vmatprep.subr.bf16.mxu0 0
      %8445 = vmatpush1.bf16.msra.mxu0 %v8384
      %8446 = vmatprep.subr.bf16.mxu0 0
      %8447 = vmatpush1.bf16.msra.mxu0 %v8385
      %8448 = vmatprep.subr.bf16.mxu0 0
      %8449 = vmatpush1.bf16.msra.mxu0 %v8386
      %8450 = vmatprep.subr.bf16.mxu0 0
      %8451 = vmatpush1.bf16.msra.mxu0 %v8387
      %8452 = vmatprep.subr.bf16.mxu0 0
      %8453 = vmatpush1.bf16.msra.mxu0 %v8388
      %8454 = vmatprep.subr.bf16.mxu0 0
      %8455 = vmatpush1.bf16.msra.mxu0 %v8389
      %8456 = vmatprep.subr.bf16.mxu0 0
      %8457 = vmatpush1.bf16.msra.mxu0 %v8390
      %8458 = vmatprep.subr.bf16.mxu0 0
      %8459 = vmatpush1.bf16.msra.mxu0 %v8391
      %8460 = vmatprep.subr.bf16.mxu0 0
      %8461 = vmatpush1.bf16.msra.mxu0 %v8392
      %8462 = vmatprep.subr.bf16.mxu0 0
      %8463 = vmatpush1.bf16.msra.mxu0 %v8393
      %8464 = vmatprep.mubr.bf16.mxu0 %v8271
      %8465 = vmatmul.mubr.bf16.gmra.mrb[0].mxu0 %v8270
      %v8466 = vpop.f32.mrb[0].mxu0
      %v8467 = vadd.f32 0.0, %v8466
      %v8468 = vpop.f32.mrb[0].mxu0
      %v8469 = vpop.f32.mrb[0].mxu0
      %v8470 = vadd.f32 0.0, %v8469
      %v8471 = vpop.f32.mrb[0].mxu0
      %8472 = vmatprep.mubr.bf16.mxu0 %v8274
      %8473 = vmatmul.mubr.bf16.gmra.mrb[0].mxu0 %v8273
      %v8474 = vpop.f32.mrb[0].mxu0
      %v8475 = vadd.f32 0.0, %v8474
      %v8476 = vpop.f32.mrb[0].mxu0
      %v8477 = vpop.f32.mrb[0].mxu0
      %v8478 = vadd.f32 0.0, %v8477
      %v8479 = vpop.f32.mrb[0].mxu0
      %8480 = vmatprep.mubr.bf16.mxu0 %v8277
      %8481 = vmatmul.mubr.bf16.gmra.mrb[0].mxu0 %v8276
      %v8482 = vpop.f32.mrb[0].mxu0
      %v8483 = vadd.f32 0.0, %v8482
      %v8484 = vpop.f32.mrb[0].mxu0
      %v8485 = vpop.f32.mrb[0].mxu0
      %v8486 = vadd.f32 0.0, %v8485
      %v8487 = vpop.f32.mrb[0].mxu0
      %8488 = vmatprep.mubr.bf16.mxu0 %v8280
      %8489 = vmatmul.mubr.bf16.gmra.mrb[0].mxu0 %v8279
      %v8490 = vpop.f32.mrb[0].mxu0
      %v8491 = vadd.f32 0.0, %v8490
      %v8492 = vpop.f32.mrb[0].mxu0
      %v8493 = vpop.f32.mrb[0].mxu0
      %v8494 = vadd.f32 0.0, %v8493
      %v8495 = vpop.f32.mrb[0].mxu0
      %8496 = vmatprep.mubr.bf16.mxu0 %v8283
      %8497 = vmatmul.mubr.bf16.gmra.mrb[0].mxu0 %v8282
      %v8498 = vpop.f32.mrb[0].mxu0
      %v8499 = vadd.f32 0.0, %v8498
      %v8500 = vpop.f32.mrb[0].mxu0
      %v8501 = vpop.f32.mrb[0].mxu0
      %v8502 = vadd.f32 0.0, %v8501
      %v8503 = vpop.f32.mrb[0].mxu0
      %8504 = vmatprep.mubr.bf16.mxu0 %v8286
      %8505 = vmatmul.mubr.bf16.gmra.mrb[0].mxu0 %v8285
      %v8506 = vpop.f32.mrb[0].mxu0
      %v8507 = vadd.f32 0.0, %v8506
      %v8508 = vpop.f32.mrb[0].mxu0
      %v8509 = vpop.f32.mrb[0].mxu0
      %v8510 = vadd.f32 0.0, %v8509
      %v8511 = vpop.f32.mrb[0].mxu0
      %8512 = vdwg.mxu0
      %8513 = vmatprep.subr.bf16.mxu0 0
      %8514 = vmatpush1.bf16.msra.mxu0 %v8394
      %8515 = vmatprep.subr.bf16.mxu0 0
      %8516 = vmatpush1.bf16.msra.mxu0 %v8395
      %8517 = vmatprep.subr.bf16.mxu0 0
      %8518 = vmatpush1.bf16.msra.mxu0 0
      %8519 = vmatprep.subr.bf16.mxu0 0
      %8520 = vmatpush1.bf16.msra.mxu0 0
      %8521 = vmatprep.subr.bf16.mxu0 0
      %8522 = vmatpush1.bf16.msra.mxu0 0
      %8523 = vmatprep.subr.bf16.mxu0 0
      %8524 = vmatpush1.bf16.msra.mxu0 0
      %8525 = vmatprep.subr.bf16.mxu0 0
      %8526 = vmatpush1.bf16.msra.mxu0 0
      %8527 = vmatprep.subr.bf16.mxu0 0
      %8528 = vmatpush1.bf16.msra.mxu0 0
      %8529 = vmatprep.subr.bf16.mxu0 0
      %8530 = vmatpush1.bf16.msra.mxu0 0
      %8531 = vmatprep.subr.bf16.mxu0 0
      %8532 = vmatpush1.bf16.msra.mxu0 0
      %8533 = vmatprep.subr.bf16.mxu0 0
      %8534 = vmatpush1.bf16.msra.mxu0 0
      %8535 = vmatprep.subr.bf16.mxu0 0
      %8536 = vmatpush1.bf16.msra.mxu0 0
      %8537 = vmatprep.subr.bf16.mxu0 0
      %8538 = vmatpush1.bf16.msra.mxu0 0
      %8539 = vmatprep.subr.bf16.mxu0 0
      %8540 = vmatpush1.bf16.msra.mxu0 0
      %8541 = vmatprep.subr.bf16.mxu0 0
      %8542 = vmatpush1.bf16.msra.mxu0 0
      %8543 = vmatprep.subr.bf16.mxu0 0
      %8544 = vmatpush1.bf16.msra.mxu0 0
      %8545 = vmatprep.mubr.bf16.mxu0 0
      %8546 = vmatmul.mubr.bf16.gmra.mrb[0].mxu0 %v8415
      %v8547 = vpop.f32.mrb[0].mxu0
      %v8548 = vadd.f32 %v8467, %v8547
      %v8549 = vpop.f32.mrb[0].mxu0
      %v8550 = vpop.f32.mrb[0].mxu0
      %v8551 = vadd.f32 %v8470, %v8550
      %v8552 = vpop.f32.mrb[0].mxu0
      %8553 = vmatprep.mubr.bf16.mxu0 0
      %8554 = vmatmul.mubr.bf16.gmra.mrb[0].mxu0 %v8418
      %v8555 = vpop.f32.mrb[0].mxu0
      %v8556 = vadd.f32 %v8475, %v8555
      %v8557 = vpop.f32.mrb[0].mxu0
      %v8558 = vpop.f32.mrb[0].mxu0
      %v8559 = vadd.f32 %v8478, %v8558
      %v8560 = vpop.f32.mrb[0].mxu0
      %8561 = vmatprep.mubr.bf16.mxu0 0
      %8562 = vmatmul.mubr.bf16.gmra.mrb[0].mxu0 %v8421
      %v8563 = vpop.f32.mrb[0].mxu0
      %v8564 = vadd.f32 %v8483, %v8563
      %v8565 = vpop.f32.mrb[0].mxu0
      %v8566 = vpop.f32.mrb[0].mxu0
      %v8567 = vadd.f32 %v8486, %v8566
      %v8568 = vpop.f32.mrb[0].mxu0
      %8569 = vmatprep.mubr.bf16.mxu0 0
      %8570 = vmatmul.mubr.bf16.gmra.mrb[0].mxu0 %v8424
      %v8571 = vpop.f32.mrb[0].mxu0
      %v8572 = vadd.f32 %v8491, %v8571
      %v8573 = vpop.f32.mrb[0].mxu0
      %v8574 = vpop.f32.mrb[0].mxu0
      %v8575 = vadd.f32 %v8494, %v8574
      %v8576 = vpop.f32.mrb[0].mxu0
      %8577 = vmatprep.mubr.bf16.mxu0 0
      %8578 = vmatmul.mubr.bf16.gmra.mrb[0].mxu0 %v8427
      %v8579 = vpop.f32.mrb[0].mxu0
      %v8580 = vadd.f32 %v8499, %v8579
      %v8581 = vpop.f32.mrb[0].mxu0
      %v8582 = vpop.f32.mrb[0].mxu0
      %v8583 = vadd.f32 %v8502, %v8582
      %v8584 = vpop.f32.mrb[0].mxu0
      %8585 = vmatprep.mubr.bf16.mxu0 0
      %8586 = vmatmul.mubr.bf16.gmra.mrb[0].mxu0 %v8430
      %v8587 = vpop.f32.mrb[0].mxu0
      %v8588 = vadd.f32 %v8507, %v8587
      %v8589 = vpop.f32.mrb[0].mxu0
      %v8590 = vpop.f32.mrb[0].mxu0
      %v8591 = vadd.f32 %v8510, %v8590
      %v8592 = vpop.f32.mrb[0].mxu0
      %8593 = vdwg.mxu0
      %v8594 = vsel %vm1364, %v8548, 0.0
      %v8595 = vsel %vm1364, %v8551, 0.0
      %v8596 = vsel %vm1364, %v8556, 0.0
      %v8597 = vsel %vm1364, %v8559, 0.0
      %v8598 = vsel %vm1364, %v8564, 0.0
      %v8599 = vsel %vm1364, %v8567, 0.0
      %v8600 = vsel %vm1364, %v8572, 0.0
      %v8601 = vsel %vm1364, %v8575, 0.0
      %v8602 = vsel %vm1364, %v8580, 0.0
      %v8603 = vsel %vm1364, %v8583, 0.0
      %v8604 = vsel %vm1364, %v8588, 0.0
      %v8605 = vsel %vm1364, %v8591, 0.0
      %v8606 = vadd.f32 %v8119, %v8594
      %v8607 = vadd.f32 %v8120, %v8595
      %v8608 = vadd.f32 %v8121, %v8596
      %v8609 = vadd.f32 %v8122, %v8597
      %v8610 = vadd.f32 %v8123, %v8598
      %v8611 = vadd.f32 %v8124, %v8599
      %v8612 = vadd.f32 %v8125, %v8600
      %v8613 = vadd.f32 %v8126, %v8601
      %v8614 = vadd.f32 %v8127, %v8602
      %v8615 = vadd.f32 %v8128, %v8603
      %v8616 = vadd.f32 %v8129, %v8604
      %v8617 = vadd.f32 %v8130, %v8605
      %v8618 = vadd.f32 %v8606, %v6938
      %v8619 = vadd.f32 %v8607, %v6943
      %v8620 = vadd.f32 %v8608, %v6948
      %v8621 = vadd.f32 %v8609, %v6953
      %v8622 = vadd.f32 %v8610, %v6958
      %v8623 = vadd.f32 %v8611, %v6963
      %v8624 = vadd.f32 %v8612, %v6968
      %v8625 = vadd.f32 %v8613, %v6973
      %v8626 = vadd.f32 %v8614, %v6978
      %v8627 = vadd.f32 %v8615, %v6983
      %v8628 = vadd.f32 %v8616, %v6988
      %v8629 = vadd.f32 %v8617, %v6993
      %v8630 = vmax.f32 %v8618, 0.0
      %v8631 = vmax.f32 %v8619, 0.0
      %v8632 = vmax.f32 %v8620, 0.0
      %v8633 = vmax.f32 %v8621, 0.0
      %v8634 = vmax.f32 %v8622, 0.0
      %v8635 = vmax.f32 %v8623, 0.0
      %v8636 = vmax.f32 %v8624, 0.0
      %v8637 = vmax.f32 %v8625, 0.0
      %v8638 = vmax.f32 %v8626, 0.0
      %v8639 = vmax.f32 %v8627, 0.0
      %v8640 = vmax.f32 %v8628, 0.0
      %v8641 = vmax.f32 %v8629, 0.0
      %8642 = vst [vmem:[%s359 + $0x100] sm:$0xff] %v8630
      %8643 = vst [vmem:[%s359 + $0x110] sm:$0xff] %v8631
      %8644 = vst [vmem:[%s359 + $0x120] sm:$0xff] %v8632
      %8645 = vst [vmem:[%s359 + $0x130] sm:$0xff] %v8633
      %8646 = vst [vmem:[%s359 + $0x140] sm:$0xff] %v8634
      %8647 = vst [vmem:[%s359 + $0x150] sm:$0xff] %v8635
      %8648 = vst [vmem:[%s359 + $0x160] sm:$0xff] %v8636
      %8649 = vst [vmem:[%s359 + $0x170] sm:$0xff] %v8637
      %8650 = vst [vmem:[%s359 + $0x180] sm:$0xff] %v8638
      %8651 = vst [vmem:[%s359 + $0x190] sm:$0xff] %v8639
      %8652 = vst [vmem:[%s359 + $0x1a0] sm:$0xff] %v8640
      %8653 = vst [vmem:[%s359 + $0x1b0] sm:$0xff] %v8641
      %v8654 = vld [vmem:[#allocation4 + $0x8] sm:$0xff]
      %v8655 = vld [vmem:[#allocation4 + $0x10] sm:$0xff]
      %v8656 = vld [vmem:[#allocation4 + $0x28] sm:$0xff]
      %v8657 = vld [vmem:[#allocation4 + $0x30] sm:$0xff]
      %v8658 = vld [vmem:[#allocation4 + $0x48] sm:$0xff]
      %v8659 = vld [vmem:[#allocation4 + $0x50] sm:$0xff]
      %v8660 = vld [vmem:[#allocation4 + $0x68] sm:$0xff]
      %v8661 = vld [vmem:[#allocation4 + $0x70] sm:$0xff]
      %v8662 = vld [vmem:[#allocation4 + $0x88] sm:$0xff]
      %v8663 = vld [vmem:[#allocation4 + $0x90] sm:$0xff]
      %v8664 = vld [vmem:[#allocation4 + $0xa8] sm:$0xff]
      %v8665 = vld [vmem:[#allocation4 + $0xb0] sm:$0xff]
      %v8666 = vld [vmem:[#allocation4 + $0xc8] sm:$0xff]
      %v8667 = vld [vmem:[#allocation4 + $0xd0] sm:$0xff]
      %v8668 = vld [vmem:[#allocation4 + $0xe8] sm:$0xff]
      %v8669 = vld [vmem:[#allocation4 + $0xf0] sm:$0xff]
      %v8670 = vld [vmem:[#allocation4 + $0x108] sm:$0xff]
      %v8671 = vld [vmem:[#allocation4 + $0x110] sm:$0xff]
      %v8672 = vld [vmem:[#allocation4 + $0x128] sm:$0xff]
      %v8673 = vld [vmem:[#allocation4 + $0x130] sm:$0xff]
      %v8674 = vld [vmem:[#allocation4 + $0x148] sm:$0xff]
      %v8675 = vld [vmem:[#allocation4 + $0x150] sm:$0xff]
      %v8676 = vld [vmem:[#allocation4 + $0x168] sm:$0xff]
      %v8677 = vld [vmem:[#allocation4 + $0x170] sm:$0xff]
      %v8678 = vld [vmem:[#allocation4 + $0x10] sm:$0xff]
      %v8679 = vld [vmem:[#allocation4 + $0x18] sm:$0xff]
      %v8680 = vld [vmem:[#allocation4 + $0x30] sm:$0xff]
      %v8681 = vld [vmem:[#allocation4 + $0x38] sm:$0xff]
      %v8682 = vld [vmem:[#allocation4 + $0x50] sm:$0xff]
      %v8683 = vld [vmem:[#allocation4 + $0x58] sm:$0xff]
      %v8684 = vld [vmem:[#allocation4 + $0x70] sm:$0xff]
      %v8685 = vld [vmem:[#allocation4 + $0x78] sm:$0xff]
      %v8686 = vld [vmem:[#allocation4 + $0x90] sm:$0xff]
      %v8687 = vld [vmem:[#allocation4 + $0x98] sm:$0xff]
      %v8688 = vld [vmem:[#allocation4 + $0xb0] sm:$0xff]
      %v8689 = vld [vmem:[#allocation4 + $0xb8] sm:$0xff]
      %v8690 = vld [vmem:[#allocation4 + $0xd0] sm:$0xff]
      %v8691 = vld [vmem:[#allocation4 + $0xd8] sm:$0xff]
      %v8692 = vld [vmem:[#allocation4 + $0xf0] sm:$0xff]
      %v8693 = vld [vmem:[#allocation4 + $0xf8] sm:$0xff]
      %v8694 = vld [vmem:[#allocation4 + $0x110] sm:$0xff]
      %v8695 = vld [vmem:[#allocation4 + $0x118] sm:$0xff]
      %v8696 = vld [vmem:[#allocation4 + $0x130] sm:$0xff]
      %v8697 = vld [vmem:[#allocation4 + $0x138] sm:$0xff]
      %v8698 = vld [vmem:[#allocation4 + $0x150] sm:$0xff]
      %v8699 = vld [vmem:[#allocation4 + $0x158] sm:$0xff]
      %v8700 = vld [vmem:[#allocation4 + $0x170] sm:$0xff]
      %v8701 = vld [vmem:[#allocation4 + $0x178] sm:$0xff]
      %8726 = vrot.lane.b32.xlu0 %v8654, 112
      %v8727 = vpop.permute.xlu0 %8726
      %8728 = vrot.lane.b32.xlu0 %v8655, 112
      %v8729 = vpop.permute.xlu0 %8728
      %8730 = vrot.lane.b32.xlu0 %v8656, 112
      %v8731 = vpop.permute.xlu0 %8730
      %8732 = vrot.lane.b32.xlu0 %v8657, 112
      %v8733 = vpop.permute.xlu0 %8732
      %8734 = vrot.lane.b32.xlu0 %v8658, 112
      %v8735 = vpop.permute.xlu0 %8734
      %8736 = vrot.lane.b32.xlu0 %v8659, 112
      %v8737 = vpop.permute.xlu0 %8736
      %8738 = vrot.lane.b32.xlu0 %v8660, 112
      %v8739 = vpop.permute.xlu0 %8738
      %8740 = vrot.lane.b32.xlu0 %v8661, 112
      %v8741 = vpop.permute.xlu0 %8740
      %8742 = vrot.lane.b32.xlu0 %v8662, 112
      %v8743 = vpop.permute.xlu0 %8742
      %8744 = vrot.lane.b32.xlu0 %v8663, 112
      %v8745 = vpop.permute.xlu0 %8744
      %8746 = vrot.lane.b32.xlu0 %v8664, 112
      %v8747 = vpop.permute.xlu0 %8746
      %8748 = vrot.lane.b32.xlu0 %v8665, 112
      %v8749 = vpop.permute.xlu0 %8748
      %8750 = vrot.lane.b32.xlu0 %v8666, 112
      %v8751 = vpop.permute.xlu0 %8750
      %8752 = vrot.lane.b32.xlu0 %v8667, 112
      %v8753 = vpop.permute.xlu0 %8752
      %8754 = vrot.lane.b32.xlu0 %v8668, 112
      %v8755 = vpop.permute.xlu0 %8754
      %8756 = vrot.lane.b32.xlu0 %v8669, 112
      %v8757 = vpop.permute.xlu0 %8756
      %8758 = vrot.lane.b32.xlu0 %v8670, 112
      %v8759 = vpop.permute.xlu0 %8758
      %8760 = vrot.lane.b32.xlu0 %v8671, 112
      %v8761 = vpop.permute.xlu0 %8760
      %8762 = vrot.lane.b32.xlu0 %v8672, 112
      %v8763 = vpop.permute.xlu0 %8762
      %8764 = vrot.lane.b32.xlu0 %v8673, 112
      %v8765 = vpop.permute.xlu0 %8764
      %8766 = vrot.lane.b32.xlu0 %v8674, 112
      %v8767 = vpop.permute.xlu0 %8766
      %8768 = vrot.lane.b32.xlu0 %v8675, 112
      %v8769 = vpop.permute.xlu0 %8768
      %8770 = vrot.lane.b32.xlu0 %v8676, 112
      %v8771 = vpop.permute.xlu0 %8770
      %8772 = vrot.lane.b32.xlu0 %v8677, 112
      %v8773 = vpop.permute.xlu0 %8772
      %v8774 = vsel %vm1189, %v8727, %v8729
      %v8775 = vsel %vm1189, %v8731, %v8733
      %v8776 = vsel %vm1189, %v8735, %v8737
      %v8777 = vsel %vm1189, %v8739, %v8741
      %v8778 = vsel %vm1189, %v8743, %v8745
      %v8779 = vsel %vm1189, %v8747, %v8749
      %v8780 = vsel %vm1189, %v8751, %v8753
      %v8781 = vsel %vm1189, %v8755, %v8757
      %v8782 = vsel %vm1189, %v8759, %v8761
      %v8783 = vsel %vm1189, %v8763, %v8765
      %v8784 = vsel %vm1189, %v8767, %v8769
      %v8785 = vsel %vm1189, %v8771, %v8773
      %8834 = vrot.lane.b32.xlu0 %v8678, 96
      %v8835 = vpop.permute.xlu0 %8834
      %8836 = vrot.lane.b32.xlu0 %v8679, 96
      %v8837 = vpop.permute.xlu0 %8836
      %8838 = vrot.lane.b32.xlu0 %v8680, 96
      %v8839 = vpop.permute.xlu0 %8838
      %8840 = vrot.lane.b32.xlu0 %v8681, 96
      %v8841 = vpop.permute.xlu0 %8840
      %8842 = vrot.lane.b32.xlu0 %v8682, 96
      %v8843 = vpop.permute.xlu0 %8842
      %8844 = vrot.lane.b32.xlu0 %v8683, 96
      %v8845 = vpop.permute.xlu0 %8844
      %8846 = vrot.lane.b32.xlu0 %v8684, 96
      %v8847 = vpop.permute.xlu0 %8846
      %8848 = vrot.lane.b32.xlu0 %v8685, 96
      %v8849 = vpop.permute.xlu0 %8848
      %8850 = vrot.lane.b32.xlu0 %v8686, 96
      %v8851 = vpop.permute.xlu0 %8850
      %8852 = vrot.lane.b32.xlu0 %v8687, 96
      %v8853 = vpop.permute.xlu0 %8852
      %8854 = vrot.lane.b32.xlu0 %v8688, 96
      %v8855 = vpop.permute.xlu0 %8854
      %8856 = vrot.lane.b32.xlu0 %v8689, 96
      %v8857 = vpop.permute.xlu0 %8856
      %8858 = vrot.lane.b32.xlu0 %v8690, 96
      %v8859 = vpop.permute.xlu0 %8858
      %8860 = vrot.lane.b32.xlu0 %v8691, 96
      %v8861 = vpop.permute.xlu0 %8860
      %8862 = vrot.lane.b32.xlu0 %v8692, 96
      %v8863 = vpop.permute.xlu0 %8862
      %8864 = vrot.lane.b32.xlu0 %v8693, 96
      %v8865 = vpop.permute.xlu0 %8864
      %8866 = vrot.lane.b32.xlu0 %v8694, 96
      %v8867 = vpop.permute.xlu0 %8866
      %8868 = vrot.lane.b32.xlu0 %v8695, 96
      %v8869 = vpop.permute.xlu0 %8868
      %8870 = vrot.lane.b32.xlu0 %v8696, 96
      %v8871 = vpop.permute.xlu0 %8870
      %8872 = vrot.lane.b32.xlu0 %v8697, 96
      %v8873 = vpop.permute.xlu0 %8872
      %8874 = vrot.lane.b32.xlu0 %v8698, 96
      %v8875 = vpop.permute.xlu0 %8874
      %8876 = vrot.lane.b32.xlu0 %v8699, 96
      %v8877 = vpop.permute.xlu0 %8876
      %8878 = vrot.lane.b32.xlu0 %v8700, 96
      %v8879 = vpop.permute.xlu0 %8878
      %8880 = vrot.lane.b32.xlu0 %v8701, 96
      %v8881 = vpop.permute.xlu0 %8880
      %v8882 = vsel %vm1234, %v8835, %v8837
      %v8883 = vsel %vm1234, %v8839, %v8841
      %v8884 = vsel %vm1234, %v8843, %v8845
      %v8885 = vsel %vm1234, %v8847, %v8849
      %v8886 = vsel %vm1234, %v8851, %v8853
      %v8887 = vsel %vm1234, %v8855, %v8857
      %v8888 = vsel %vm1234, %v8859, %v8861
      %v8889 = vsel %vm1234, %v8863, %v8865
      %v8890 = vsel %vm1234, %v8867, %v8869
      %v8891 = vsel %vm1234, %v8871, %v8873
      %v8892 = vsel %vm1234, %v8875, %v8877
      %v8893 = vsel %vm1234, %v8879, %v8881
      %v8918 = vld [vmem:[%s7] sm:$0xff]
      %v8919 = vld [vmem:[%s7 + $0x8] sm:$0xf]
      %v8920 = vld [vmem:[%s7 + $0xc] sm:$0xff]
      %v8921 = vld [vmem:[%s7 + $0x14] sm:$0xf]
      %v8922 = vld [vmem:[%s7 + $0x18] sm:$0xff]
      %v8923 = vld [vmem:[%s7 + $0x20] sm:$0xf]
      %v8924 = vld [vmem:[%s7 + $0x24] sm:$0xff]
      %v8925 = vld [vmem:[%s7 + $0x2c] sm:$0xf]
      %v8926 = vld [vmem:[%s7 + $0x30] sm:$0xff]
      %v8927 = vld [vmem:[%s7 + $0x38] sm:$0xf]
      %v8928 = vld [vmem:[%s7 + $0x3c] sm:$0xff]
      %v8929 = vld [vmem:[%s7 + $0x44] sm:$0xf]
      %v8930 = vld [vmem:[%s7 + $0x48] sm:$0xff]
      %v8931 = vld [vmem:[%s7 + $0x50] sm:$0xf]
      %v8932 = vld [vmem:[%s7 + $0x54] sm:$0xff]
      %v8933 = vld [vmem:[%s7 + $0x5c] sm:$0xf]
      %v8934 = vld [vmem:[%s7 + $0x60] sm:$0xff]
      %v8935 = vld [vmem:[%s7 + $0x68] sm:$0xf]
      %v8936 = vld [vmem:[%s7 + $0x6c] sm:$0xff]
      %v8937 = vld [vmem:[%s7 + $0x74] sm:$0xf]
      %v8938 = vld [vmem:[%s7 + $0x78] sm:$0xff]
      %v8939 = vld [vmem:[%s7 + $0x80] sm:$0xf]
      %v8940 = vld [vmem:[%s7 + $0x84] sm:$0xff]
      %v8941 = vld [vmem:[%s7 + $0x8c] sm:$0xf]
      %v8942 = vpack.c.bf16 %v8656, %v8654
      %v8943 = vpack.c.bf16 %v8657, %v8655
      %v8944 = vpack.c.bf16 %v8660, %v8658
      %v8945 = vpack.c.bf16 %v8661, %v8659
      %v8946 = vpack.c.bf16 %v8664, %v8662
      %v8947 = vpack.c.bf16 %v8665, %v8663
      %v8948 = vpack.c.bf16 %v8668, %v8666
      %v8949 = vpack.c.bf16 %v8669, %v8667
      %v8950 = vpack.c.bf16 %v8672, %v8670
      %v8951 = vpack.c.bf16 %v8673, %v8671
      %v8952 = vpack.c.bf16 %v8676, %v8674
      %v8953 = vpack.c.bf16 %v8677, %v8675
      %v8954 = vpack.c.bf16 %v8775, %v8774
      %v8955 = vpack.c.bf16 %v8733, %v8729
      %v8956 = vpack.c.bf16 %v8777, %v8776
      %v8957 = vpack.c.bf16 %v8741, %v8737
      %v8958 = vpack.c.bf16 %v8779, %v8778
      %v8959 = vpack.c.bf16 %v8749, %v8745
      %v8960 = vpack.c.bf16 %v8781, %v8780
      %v8961 = vpack.c.bf16 %v8757, %v8753
      %v8962 = vpack.c.bf16 %v8783, %v8782
      %v8963 = vpack.c.bf16 %v8765, %v8761
      %v8964 = vpack.c.bf16 %v8785, %v8784
      %v8965 = vpack.c.bf16 %v8773, %v8769
      %v8966 = vpack.c.bf16 %v8839, %v8835
      %v8967 = vpack.c.bf16 %v8883, %v8882
      %v8968 = vpack.c.bf16 %v8847, %v8843
      %v8969 = vpack.c.bf16 %v8885, %v8884
      %v8970 = vpack.c.bf16 %v8855, %v8851
      %v8971 = vpack.c.bf16 %v8887, %v8886
      %v8972 = vpack.c.bf16 %v8863, %v8859
      %v8973 = vpack.c.bf16 %v8889, %v8888
      %v8974 = vpack.c.bf16 %v8871, %v8867
      %v8975 = vpack.c.bf16 %v8891, %v8890
      %v8976 = vpack.c.bf16 %v8879, %v8875
      %v8977 = vpack.c.bf16 %v8893, %v8892
      %v9002 = vunpack.c.l.b16 %v8918
      %v9003 = vunpack.c.h.b16 %v8918
      %v9004 = vunpack.c.l.b16 %v8919
      %v9005 = vunpack.c.l.b16 %v8920
      %v9006 = vunpack.c.h.b16 %v8920
      %v9007 = vunpack.c.l.b16 %v8921
      %v9008 = vunpack.c.l.b16 %v8922
      %v9009 = vunpack.c.h.b16 %v8922
      %v9010 = vunpack.c.l.b16 %v8923
      %v9011 = vunpack.c.l.b16 %v8924
      %v9012 = vunpack.c.h.b16 %v8924
      %v9013 = vunpack.c.l.b16 %v8925
      %v9014 = vunpack.c.l.b16 %v8926
      %v9015 = vunpack.c.h.b16 %v8926
      %v9016 = vunpack.c.l.b16 %v8927
      %v9017 = vunpack.c.l.b16 %v8928
      %v9018 = vunpack.c.h.b16 %v8928
      %v9019 = vunpack.c.l.b16 %v8929
      %v9020 = vunpack.c.l.b16 %v8930
      %v9021 = vunpack.c.h.b16 %v8930
      %v9022 = vunpack.c.l.b16 %v8931
      %v9023 = vunpack.c.l.b16 %v8932
      %v9024 = vunpack.c.h.b16 %v8932
      %v9025 = vunpack.c.l.b16 %v8933
      %v9026 = vunpack.c.l.b16 %v8934
      %v9027 = vunpack.c.h.b16 %v8934
      %v9028 = vunpack.c.l.b16 %v8935
      %v9029 = vunpack.c.l.b16 %v8936
      %v9030 = vunpack.c.h.b16 %v8936
      %v9031 = vunpack.c.l.b16 %v8937
      %v9032 = vunpack.c.l.b16 %v8938
      %v9033 = vunpack.c.h.b16 %v8938
      %v9034 = vunpack.c.l.b16 %v8939
      %v9035 = vunpack.c.l.b16 %v8940
      %v9036 = vunpack.c.h.b16 %v8940
      %v9037 = vunpack.c.l.b16 %v8941
      %v9038 = vpack.c.b16 %v9005, %v9002
      %v9039 = vpack.c.b16 %v9006, %v9003
      %v9040 = vpack.c.b16 %v9007, %v9004
      %v9041 = vpack.c.b16 %v9011, %v9008
      %v9042 = vpack.c.b16 %v9012, %v9009
      %v9043 = vpack.c.b16 %v9013, %v9010
      %v9044 = vpack.c.b16 %v9017, %v9014
      %v9045 = vpack.c.b16 %v9018, %v9015
      %v9046 = vpack.c.b16 %v9019, %v9016
      %v9047 = vpack.c.b16 %v9023, %v9020
      %v9048 = vpack.c.b16 %v9024, %v9021
      %v9049 = vpack.c.b16 %v9025, %v9022
      %v9050 = vpack.c.b16 %v9029, %v9026
      %v9051 = vpack.c.b16 %v9030, %v9027
      %v9052 = vpack.c.b16 %v9031, %v9028
      %v9053 = vpack.c.b16 %v9035, %v9032
      %v9054 = vpack.c.b16 %v9036, %v9033
      %v9055 = vpack.c.b16 %v9037, %v9034
      %9104 = vrot.lane.b32.xlu0 %v8942, 17
      %v9105 = vpop.permute.xlu0 %9104
      %9106 = vrot.lane.b32.xlu0 %v8943, 17
      %v9107 = vpop.permute.xlu0 %9106
      %9108 = vrot.lane.b32.xlu0 %v8944, 17
      %v9109 = vpop.permute.xlu0 %9108
      %9110 = vrot.lane.b32.xlu0 %v8945, 17
      %v9111 = vpop.permute.xlu0 %9110
      %9112 = vrot.lane.b32.xlu0 %v8946, 17
      %v9113 = vpop.permute.xlu0 %9112
      %9114 = vrot.lane.b32.xlu0 %v8947, 17
      %v9115 = vpop.permute.xlu0 %9114
      %9116 = vrot.lane.b32.xlu0 %v8948, 17
      %v9117 = vpop.permute.xlu0 %9116
      %9118 = vrot.lane.b32.xlu0 %v8949, 17
      %v9119 = vpop.permute.xlu0 %9118
      %9120 = vrot.lane.b32.xlu0 %v8950, 17
      %v9121 = vpop.permute.xlu0 %9120
      %9122 = vrot.lane.b32.xlu0 %v8951, 17
      %v9123 = vpop.permute.xlu0 %9122
      %9124 = vrot.lane.b32.xlu0 %v8952, 17
      %v9125 = vpop.permute.xlu0 %9124
      %9126 = vrot.lane.b32.xlu0 %v8953, 17
      %v9127 = vpop.permute.xlu0 %9126
      %9128 = vrot.lane.b32.xlu0 %v8954, 17
      %v9129 = vpop.permute.xlu0 %9128
      %9130 = vrot.lane.b32.xlu0 %v8955, 17
      %v9131 = vpop.permute.xlu0 %9130
      %9132 = vrot.lane.b32.xlu0 %v8956, 17
      %v9133 = vpop.permute.xlu0 %9132
      %9134 = vrot.lane.b32.xlu0 %v8957, 17
      %v9135 = vpop.permute.xlu0 %9134
      %9136 = vrot.lane.b32.xlu0 %v8958, 17
      %v9137 = vpop.permute.xlu0 %9136
      %9138 = vrot.lane.b32.xlu0 %v8959, 17
      %v9139 = vpop.permute.xlu0 %9138
      %9140 = vrot.lane.b32.xlu0 %v8960, 17
      %v9141 = vpop.permute.xlu0 %9140
      %9142 = vrot.lane.b32.xlu0 %v8961, 17
      %v9143 = vpop.permute.xlu0 %9142
      %9144 = vrot.lane.b32.xlu0 %v8962, 17
      %v9145 = vpop.permute.xlu0 %9144
      %9146 = vrot.lane.b32.xlu0 %v8963, 17
      %v9147 = vpop.permute.xlu0 %9146
      %9148 = vrot.lane.b32.xlu0 %v8964, 17
      %v9149 = vpop.permute.xlu0 %9148
      %9150 = vrot.lane.b32.xlu0 %v8965, 17
      %v9151 = vpop.permute.xlu0 %9150
      %9152 = vrot.lane.b32.xlu0 %v8966, 17
      %v9153 = vpop.permute.xlu0 %9152
      %9154 = vrot.lane.b32.xlu0 %v8967, 17
      %v9155 = vpop.permute.xlu0 %9154
      %9156 = vrot.lane.b32.xlu0 %v8968, 17
      %v9157 = vpop.permute.xlu0 %9156
      %9158 = vrot.lane.b32.xlu0 %v8969, 17
      %v9159 = vpop.permute.xlu0 %9158
      %9160 = vrot.lane.b32.xlu0 %v8970, 17
      %v9161 = vpop.permute.xlu0 %9160
      %9162 = vrot.lane.b32.xlu0 %v8971, 17
      %v9163 = vpop.permute.xlu0 %9162
      %9164 = vrot.lane.b32.xlu0 %v8972, 17
      %v9165 = vpop.permute.xlu0 %9164
      %9166 = vrot.lane.b32.xlu0 %v8973, 17
      %v9167 = vpop.permute.xlu0 %9166
      %9168 = vrot.lane.b32.xlu0 %v8974, 17
      %v9169 = vpop.permute.xlu0 %9168
      %9170 = vrot.lane.b32.xlu0 %v8975, 17
      %v9171 = vpop.permute.xlu0 %9170
      %9172 = vrot.lane.b32.xlu0 %v8976, 17
      %v9173 = vpop.permute.xlu0 %9172
      %9174 = vrot.lane.b32.xlu0 %v8977, 17
      %v9175 = vpop.permute.xlu0 %9174
      %v9176 = vsel %vm5106, %v9105, %v9107
      %v9177 = vsel %vm5106, %v9109, %v9111
      %v9178 = vsel %vm5106, %v9113, %v9115
      %v9179 = vsel %vm5106, %v9117, %v9119
      %v9180 = vsel %vm5106, %v9121, %v9123
      %v9181 = vsel %vm5106, %v9125, %v9127
      %v9182 = vsel %vm5106, %v9129, %v9131
      %v9183 = vsel %vm5106, %v9133, %v9135
      %v9184 = vsel %vm5106, %v9137, %v9139
      %v9185 = vsel %vm5106, %v9141, %v9143
      %v9186 = vsel %vm5106, %v9145, %v9147
      %v9187 = vsel %vm5106, %v9149, %v9151
      %v9188 = vsel %vm5106, %v9153, %v9155
      %v9189 = vsel %vm5106, %v9157, %v9159
      %v9190 = vsel %vm5106, %v9161, %v9163
      %v9191 = vsel %vm5106, %v9165, %v9167
      %v9192 = vsel %vm5106, %v9169, %v9171
      %v9193 = vsel %vm5106, %v9173, %v9175
      %v9213 = vsel %vm7529, %v9040, 0
      %v9216 = vsel %vm7529, %v9043, 0
      %v9219 = vsel %vm7529, %v9046, 0
      %v9222 = vsel %vm7529, %v9049, 0
      %v9225 = vsel %vm7529, %v9052, 0
      %v9228 = vsel %vm7529, %v9055, 0
      %9230 = vmatprep.subr.bf16.mxu0 0
      %9231 = vmatpush1.bf16.msra.mxu0 %v9176
      %9232 = vmatprep.subr.bf16.mxu0 0
      %9233 = vmatpush1.bf16.msra.mxu0 %v9177
      %9234 = vmatprep.subr.bf16.mxu0 0
      %9235 = vmatpush1.bf16.msra.mxu0 %v9178
      %9236 = vmatprep.subr.bf16.mxu0 0
      %9237 = vmatpush1.bf16.msra.mxu0 %v9179
      %9238 = vmatprep.subr.bf16.mxu0 0
      %9239 = vmatpush1.bf16.msra.mxu0 %v9180
      %9240 = vmatprep.subr.bf16.mxu0 0
      %9241 = vmatpush1.bf16.msra.mxu0 %v9181
      %9242 = vmatprep.subr.bf16.mxu0 0
      %9243 = vmatpush1.bf16.msra.mxu0 %v9182
      %9244 = vmatprep.subr.bf16.mxu0 0
      %9245 = vmatpush1.bf16.msra.mxu0 %v9183
      %9246 = vmatprep.subr.bf16.mxu0 0
      %9247 = vmatpush1.bf16.msra.mxu0 %v9184
      %9248 = vmatprep.subr.bf16.mxu0 0
      %9249 = vmatpush1.bf16.msra.mxu0 %v9185
      %9250 = vmatprep.subr.bf16.mxu0 0
      %9251 = vmatpush1.bf16.msra.mxu0 %v9186
      %9252 = vmatprep.subr.bf16.mxu0 0
      %9253 = vmatpush1.bf16.msra.mxu0 %v9187
      %9254 = vmatprep.subr.bf16.mxu0 0
      %9255 = vmatpush1.bf16.msra.mxu0 %v9188
      %9256 = vmatprep.subr.bf16.mxu0 0
      %9257 = vmatpush1.bf16.msra.mxu0 %v9189
      %9258 = vmatprep.subr.bf16.mxu0 0
      %9259 = vmatpush1.bf16.msra.mxu0 %v9190
      %9260 = vmatprep.subr.bf16.mxu0 0
      %9261 = vmatpush1.bf16.msra.mxu0 %v9191
      %9262 = vmatprep.mubr.bf16.mxu0 %v9039
      %9263 = vmatmul.mubr.bf16.gmra.mrb[0].mxu0 %v9038
      %v9264 = vpop.f32.mrb[0].mxu0
      %v9265 = vadd.f32 0.0, %v9264
      %v9266 = vpop.f32.mrb[0].mxu0
      %v9267 = vpop.f32.mrb[0].mxu0
      %v9268 = vadd.f32 0.0, %v9267
      %v9269 = vpop.f32.mrb[0].mxu0
      %9270 = vmatprep.mubr.bf16.mxu0 %v9042
      %9271 = vmatmul.mubr.bf16.gmra.mrb[0].mxu0 %v9041
      %v9272 = vpop.f32.mrb[0].mxu0
      %v9273 = vadd.f32 0.0, %v9272
      %v9274 = vpop.f32.mrb[0].mxu0
      %v9275 = vpop.f32.mrb[0].mxu0
      %v9276 = vadd.f32 0.0, %v9275
      %v9277 = vpop.f32.mrb[0].mxu0
      %9278 = vmatprep.mubr.bf16.mxu0 %v9045
      %9279 = vmatmul.mubr.bf16.gmra.mrb[0].mxu0 %v9044
      %v9280 = vpop.f32.mrb[0].mxu0
      %v9281 = vadd.f32 0.0, %v9280
      %v9282 = vpop.f32.mrb[0].mxu0
      %v9283 = vpop.f32.mrb[0].mxu0
      %v9284 = vadd.f32 0.0, %v9283
      %v9285 = vpop.f32.mrb[0].mxu0
      %9286 = vmatprep.mubr.bf16.mxu0 %v9048
      %9287 = vmatmul.mubr.bf16.gmra.mrb[0].mxu0 %v9047
      %v9288 = vpop.f32.mrb[0].mxu0
      %v9289 = vadd.f32 0.0, %v9288
      %v9290 = vpop.f32.mrb[0].mxu0
      %v9291 = vpop.f32.mrb[0].mxu0
      %v9292 = vadd.f32 0.0, %v9291
      %v9293 = vpop.f32.mrb[0].mxu0
      %9294 = vmatprep.mubr.bf16.mxu0 %v9051
      %9295 = vmatmul.mubr.bf16.gmra.mrb[0].mxu0 %v9050
      %v9296 = vpop.f32.mrb[0].mxu0
      %v9297 = vadd.f32 0.0, %v9296
      %v9298 = vpop.f32.mrb[0].mxu0
      %v9299 = vpop.f32.mrb[0].mxu0
      %v9300 = vadd.f32 0.0, %v9299
      %v9301 = vpop.f32.mrb[0].mxu0
      %9302 = vmatprep.mubr.bf16.mxu0 %v9054
      %9303 = vmatmul.mubr.bf16.gmra.mrb[0].mxu0 %v9053
      %v9304 = vpop.f32.mrb[0].mxu0
      %v9305 = vadd.f32 0.0, %v9304
      %v9306 = vpop.f32.mrb[0].mxu0
      %v9307 = vpop.f32.mrb[0].mxu0
      %v9308 = vadd.f32 0.0, %v9307
      %v9309 = vpop.f32.mrb[0].mxu0
      %9310 = vdwg.mxu0
      %9311 = vmatprep.subr.bf16.mxu0 0
      %9312 = vmatpush1.bf16.msra.mxu0 %v9192
      %9313 = vmatprep.subr.bf16.mxu0 0
      %9314 = vmatpush1.bf16.msra.mxu0 %v9193
      %9315 = vmatprep.subr.bf16.mxu0 0
      %9316 = vmatpush1.bf16.msra.mxu0 0
      %9317 = vmatprep.subr.bf16.mxu0 0
      %9318 = vmatpush1.bf16.msra.mxu0 0
      %9319 = vmatprep.subr.bf16.mxu0 0
      %9320 = vmatpush1.bf16.msra.mxu0 0
      %9321 = vmatprep.subr.bf16.mxu0 0
      %9322 = vmatpush1.bf16.msra.mxu0 0
      %9323 = vmatprep.subr.bf16.mxu0 0
      %9324 = vmatpush1.bf16.msra.mxu0 0
      %9325 = vmatprep.subr.bf16.mxu0 0
      %9326 = vmatpush1.bf16.msra.mxu0 0
      %9327 = vmatprep.subr.bf16.mxu0 0
      %9328 = vmatpush1.bf16.msra.mxu0 0
      %9329 = vmatprep.subr.bf16.mxu0 0
      %9330 = vmatpush1.bf16.msra.mxu0 0
      %9331 = vmatprep.subr.bf16.mxu0 0
      %9332 = vmatpush1.bf16.msra.mxu0 0
      %9333 = vmatprep.subr.bf16.mxu0 0
      %9334 = vmatpush1.bf16.msra.mxu0 0
      %9335 = vmatprep.subr.bf16.mxu0 0
      %9336 = vmatpush1.bf16.msra.mxu0 0
      %9337 = vmatprep.subr.bf16.mxu0 0
      %9338 = vmatpush1.bf16.msra.mxu0 0
      %9339 = vmatprep.subr.bf16.mxu0 0
      %9340 = vmatpush1.bf16.msra.mxu0 0
      %9341 = vmatprep.subr.bf16.mxu0 0
      %9342 = vmatpush1.bf16.msra.mxu0 0
      %9343 = vmatprep.mubr.bf16.mxu0 0
      %9344 = vmatmul.mubr.bf16.gmra.mrb[0].mxu0 %v9213
      %v9345 = vpop.f32.mrb[0].mxu0
      %v9346 = vadd.f32 %v9265, %v9345
      %v9347 = vpop.f32.mrb[0].mxu0
      %v9348 = vpop.f32.mrb[0].mxu0
      %v9349 = vadd.f32 %v9268, %v9348
      %v9350 = vpop.f32.mrb[0].mxu0
      %9351 = vmatprep.mubr.bf16.mxu0 0
      %9352 = vmatmul.mubr.bf16.gmra.mrb[0].mxu0 %v9216
      %v9353 = vpop.f32.mrb[0].mxu0
      %v9354 = vadd.f32 %v9273, %v9353
      %v9355 = vpop.f32.mrb[0].mxu0
      %v9356 = vpop.f32.mrb[0].mxu0
      %v9357 = vadd.f32 %v9276, %v9356
      %v9358 = vpop.f32.mrb[0].mxu0
      %9359 = vmatprep.mubr.bf16.mxu0 0
      %9360 = vmatmul.mubr.bf16.gmra.mrb[0].mxu0 %v9219
      %v9361 = vpop.f32.mrb[0].mxu0
      %v9362 = vadd.f32 %v9281, %v9361
      %v9363 = vpop.f32.mrb[0].mxu0
      %v9364 = vpop.f32.mrb[0].mxu0
      %v9365 = vadd.f32 %v9284, %v9364
      %v9366 = vpop.f32.mrb[0].mxu0
      %9367 = vmatprep.mubr.bf16.mxu0 0
      %9368 = vmatmul.mubr.bf16.gmra.mrb[0].mxu0 %v9222
      %v9369 = vpop.f32.mrb[0].mxu0
      %v9370 = vadd.f32 %v9289, %v9369
      %v9371 = vpop.f32.mrb[0].mxu0
      %v9372 = vpop.f32.mrb[0].mxu0
      %v9373 = vadd.f32 %v9292, %v9372
      %v9374 = vpop.f32.mrb[0].mxu0
      %9375 = vmatprep.mubr.bf16.mxu0 0
      %9376 = vmatmul.mubr.bf16.gmra.mrb[0].mxu0 %v9225
      %v9377 = vpop.f32.mrb[0].mxu0
      %v9378 = vadd.f32 %v9297, %v9377
      %v9379 = vpop.f32.mrb[0].mxu0
      %v9380 = vpop.f32.mrb[0].mxu0
      %v9381 = vadd.f32 %v9300, %v9380
      %v9382 = vpop.f32.mrb[0].mxu0
      %9383 = vmatprep.mubr.bf16.mxu0 0
      %9384 = vmatmul.mubr.bf16.gmra.mrb[0].mxu0 %v9228
      %v9385 = vpop.f32.mrb[0].mxu0
      %v9386 = vadd.f32 %v9305, %v9385
      %v9387 = vpop.f32.mrb[0].mxu0
      %v9388 = vpop.f32.mrb[0].mxu0
      %v9389 = vadd.f32 %v9308, %v9388
      %v9390 = vpop.f32.mrb[0].mxu0
      %9391 = vdwg.mxu0
      %v9392 = vsel %vm1542, %v9346, 0.0
      %v9393 = vsel %vm1542, %v9349, 0.0
      %v9394 = vsel %vm1542, %v9354, 0.0
      %v9395 = vsel %vm1542, %v9357, 0.0
      %v9396 = vsel %vm1542, %v9362, 0.0
      %v9397 = vsel %vm1542, %v9365, 0.0
      %v9398 = vsel %vm1542, %v9370, 0.0
      %v9399 = vsel %vm1542, %v9373, 0.0
      %v9400 = vsel %vm1542, %v9378, 0.0
      %v9401 = vsel %vm1542, %v9381, 0.0
      %v9402 = vsel %vm1542, %v9386, 0.0
      %v9403 = vsel %vm1542, %v9389, 0.0
      %v9404 = vadd.f32 %v9392, 0.0
      %v9405 = vadd.f32 %v9393, 0.0
      %v9406 = vadd.f32 %v9394, 0.0
      %v9407 = vadd.f32 %v9395, 0.0
      %v9408 = vadd.f32 %v9396, 0.0
      %v9409 = vadd.f32 %v9397, 0.0
      %v9410 = vadd.f32 %v9398, 0.0
      %v9411 = vadd.f32 %v9399, 0.0
      %v9412 = vadd.f32 %v9400, 0.0
      %v9413 = vadd.f32 %v9401, 0.0
      %v9414 = vadd.f32 %v9402, 0.0
      %v9415 = vadd.f32 %v9403, 0.0
      %v9416 = vld [vmem:[%s7734] sm:$0xff]
      %v9417 = vld [vmem:[%s7734 + $0x8] sm:$0xf]
      %v9418 = vld [vmem:[%s7734 + $0xc] sm:$0xff]
      %v9419 = vld [vmem:[%s7734 + $0x14] sm:$0xf]
      %v9420 = vld [vmem:[%s7734 + $0x18] sm:$0xff]
      %v9421 = vld [vmem:[%s7734 + $0x20] sm:$0xf]
      %v9422 = vld [vmem:[%s7734 + $0x24] sm:$0xff]
      %v9423 = vld [vmem:[%s7734 + $0x2c] sm:$0xf]
      %v9424 = vld [vmem:[%s7734 + $0x30] sm:$0xff]
      %v9425 = vld [vmem:[%s7734 + $0x38] sm:$0xf]
      %v9426 = vld [vmem:[%s7734 + $0x3c] sm:$0xff]
      %v9427 = vld [vmem:[%s7734 + $0x44] sm:$0xf]
      %v9428 = vld [vmem:[%s7734 + $0x48] sm:$0xff]
      %v9429 = vld [vmem:[%s7734 + $0x50] sm:$0xf]
      %v9430 = vld [vmem:[%s7734 + $0x54] sm:$0xff]
      %v9431 = vld [vmem:[%s7734 + $0x5c] sm:$0xf]
      %v9432 = vld [vmem:[%s7734 + $0x60] sm:$0xff]
      %v9433 = vld [vmem:[%s7734 + $0x68] sm:$0xf]
      %v9434 = vld [vmem:[%s7734 + $0x6c] sm:$0xff]
      %v9435 = vld [vmem:[%s7734 + $0x74] sm:$0xf]
      %v9436 = vld [vmem:[%s7734 + $0x78] sm:$0xff]
      %v9437 = vld [vmem:[%s7734 + $0x80] sm:$0xf]
      %v9438 = vld [vmem:[%s7734 + $0x84] sm:$0xff]
      %v9439 = vld [vmem:[%s7734 + $0x8c] sm:$0xf]
      %v9464 = vunpack.c.l.b16 %v9416
      %v9465 = vunpack.c.h.b16 %v9416
      %v9466 = vunpack.c.l.b16 %v9417
      %v9467 = vunpack.c.l.b16 %v9418
      %v9468 = vunpack.c.h.b16 %v9418
      %v9469 = vunpack.c.l.b16 %v9419
      %v9470 = vunpack.c.l.b16 %v9420
      %v9471 = vunpack.c.h.b16 %v9420
      %v9472 = vunpack.c.l.b16 %v9421
      %v9473 = vunpack.c.l.b16 %v9422
      %v9474 = vunpack.c.h.b16 %v9422
      %v9475 = vunpack.c.l.b16 %v9423
      %v9476 = vunpack.c.l.b16 %v9424
      %v9477 = vunpack.c.h.b16 %v9424
      %v9478 = vunpack.c.l.b16 %v9425
      %v9479 = vunpack.c.l.b16 %v9426
      %v9480 = vunpack.c.h.b16 %v9426
      %v9481 = vunpack.c.l.b16 %v9427
      %v9482 = vunpack.c.l.b16 %v9428
      %v9483 = vunpack.c.h.b16 %v9428
      %v9484 = vunpack.c.l.b16 %v9429
      %v9485 = vunpack.c.l.b16 %v9430
      %v9486 = vunpack.c.h.b16 %v9430
      %v9487 = vunpack.c.l.b16 %v9431
      %v9488 = vunpack.c.l.b16 %v9432
      %v9489 = vunpack.c.h.b16 %v9432
      %v9490 = vunpack.c.l.b16 %v9433
      %v9491 = vunpack.c.l.b16 %v9434
      %v9492 = vunpack.c.h.b16 %v9434
      %v9493 = vunpack.c.l.b16 %v9435
      %v9494 = vunpack.c.l.b16 %v9436
      %v9495 = vunpack.c.h.b16 %v9436
      %v9496 = vunpack.c.l.b16 %v9437
      %v9497 = vunpack.c.l.b16 %v9438
      %v9498 = vunpack.c.h.b16 %v9438
      %v9499 = vunpack.c.l.b16 %v9439
      %v9500 = vpack.c.b16 %v9467, %v9464
      %v9501 = vpack.c.b16 %v9468, %v9465
      %v9502 = vpack.c.b16 %v9469, %v9466
      %v9503 = vpack.c.b16 %v9473, %v9470
      %v9504 = vpack.c.b16 %v9474, %v9471
      %v9505 = vpack.c.b16 %v9475, %v9472
      %v9506 = vpack.c.b16 %v9479, %v9476
      %v9507 = vpack.c.b16 %v9480, %v9477
      %v9508 = vpack.c.b16 %v9481, %v9478
      %v9509 = vpack.c.b16 %v9485, %v9482
      %v9510 = vpack.c.b16 %v9486, %v9483
      %v9511 = vpack.c.b16 %v9487, %v9484
      %v9512 = vpack.c.b16 %v9491, %v9488
      %v9513 = vpack.c.b16 %v9492, %v9489
      %v9514 = vpack.c.b16 %v9493, %v9490
      %v9515 = vpack.c.b16 %v9497, %v9494
      %v9516 = vpack.c.b16 %v9498, %v9495
      %v9517 = vpack.c.b16 %v9499, %v9496
      %9530 = vrot.lane.b32.xlu0 %v8942, 16
      %v9531 = vpop.permute.xlu0 %9530
      %9532 = vrot.lane.b32.xlu0 %v8943, 16
      %v9533 = vpop.permute.xlu0 %9532
      %9534 = vrot.lane.b32.xlu0 %v8944, 16
      %v9535 = vpop.permute.xlu0 %9534
      %9536 = vrot.lane.b32.xlu0 %v8945, 16
      %v9537 = vpop.permute.xlu0 %9536
      %9538 = vrot.lane.b32.xlu0 %v8946, 16
      %v9539 = vpop.permute.xlu0 %9538
      %9540 = vrot.lane.b32.xlu0 %v8947, 16
      %v9541 = vpop.permute.xlu0 %9540
      %9542 = vrot.lane.b32.xlu0 %v8948, 16
      %v9543 = vpop.permute.xlu0 %9542
      %9544 = vrot.lane.b32.xlu0 %v8949, 16
      %v9545 = vpop.permute.xlu0 %9544
      %9546 = vrot.lane.b32.xlu0 %v8950, 16
      %v9547 = vpop.permute.xlu0 %9546
      %9548 = vrot.lane.b32.xlu0 %v8951, 16
      %v9549 = vpop.permute.xlu0 %9548
      %9550 = vrot.lane.b32.xlu0 %v8952, 16
      %v9551 = vpop.permute.xlu0 %9550
      %9552 = vrot.lane.b32.xlu0 %v8953, 16
      %v9553 = vpop.permute.xlu0 %9552
      %9554 = vrot.lane.b32.xlu0 %v8955, 16
      %v9555 = vpop.permute.xlu0 %9554
      %9556 = vrot.lane.b32.xlu0 %v8957, 16
      %v9557 = vpop.permute.xlu0 %9556
      %9558 = vrot.lane.b32.xlu0 %v8959, 16
      %v9559 = vpop.permute.xlu0 %9558
      %9560 = vrot.lane.b32.xlu0 %v8961, 16
      %v9561 = vpop.permute.xlu0 %9560
      %9562 = vrot.lane.b32.xlu0 %v8963, 16
      %v9563 = vpop.permute.xlu0 %9562
      %9564 = vrot.lane.b32.xlu0 %v8965, 16
      %v9565 = vpop.permute.xlu0 %9564
      %9566 = vrot.lane.b32.xlu0 %v8966, 16
      %v9567 = vpop.permute.xlu0 %9566
      %9568 = vrot.lane.b32.xlu0 %v8967, 16
      %v9569 = vpop.permute.xlu0 %9568
      %9570 = vrot.lane.b32.xlu0 %v8968, 16
      %v9571 = vpop.permute.xlu0 %9570
      %9572 = vrot.lane.b32.xlu0 %v8969, 16
      %v9573 = vpop.permute.xlu0 %9572
      %9574 = vrot.lane.b32.xlu0 %v8970, 16
      %v9575 = vpop.permute.xlu0 %9574
      %9576 = vrot.lane.b32.xlu0 %v8971, 16
      %v9577 = vpop.permute.xlu0 %9576
      %9578 = vrot.lane.b32.xlu0 %v8972, 16
      %v9579 = vpop.permute.xlu0 %9578
      %9580 = vrot.lane.b32.xlu0 %v8973, 16
      %v9581 = vpop.permute.xlu0 %9580
      %9582 = vrot.lane.b32.xlu0 %v8974, 16
      %v9583 = vpop.permute.xlu0 %9582
      %9584 = vrot.lane.b32.xlu0 %v8975, 16
      %v9585 = vpop.permute.xlu0 %9584
      %9586 = vrot.lane.b32.xlu0 %v8976, 16
      %v9587 = vpop.permute.xlu0 %9586
      %9588 = vrot.lane.b32.xlu0 %v8977, 16
      %v9589 = vpop.permute.xlu0 %9588
      %v9590 = vsel %vm5361, %v9531, %v9533
      %v9591 = vsel %vm5361, %v9535, %v9537
      %v9592 = vsel %vm5361, %v9539, %v9541
      %v9593 = vsel %vm5361, %v9543, %v9545
      %v9594 = vsel %vm5361, %v9547, %v9549
      %v9595 = vsel %vm5361, %v9551, %v9553
      %v9596 = vsel %vm5361, %v9567, %v9569
      %v9597 = vsel %vm5361, %v9571, %v9573
      %v9598 = vsel %vm5361, %v9575, %v9577
      %v9599 = vsel %vm5361, %v9579, %v9581
      %v9600 = vsel %vm5361, %v9583, %v9585
      %v9601 = vsel %vm5361, %v9587, %v9589
      %v9621 = vsel %vm7529, %v9502, 0
      %v9624 = vsel %vm7529, %v9505, 0
      %v9627 = vsel %vm7529, %v9508, 0
      %v9630 = vsel %vm7529, %v9511, 0
      %v9633 = vsel %vm7529, %v9514, 0
      %v9636 = vsel %vm7529, %v9517, 0
      %9638 = vmatprep.subr.bf16.mxu0 0
      %9639 = vmatpush1.bf16.msra.mxu0 %v9590
      %9640 = vmatprep.subr.bf16.mxu0 0
      %9641 = vmatpush1.bf16.msra.mxu0 %v9591
      %9642 = vmatprep.subr.bf16.mxu0 0
      %9643 = vmatpush1.bf16.msra.mxu0 %v9592
      %9644 = vmatprep.subr.bf16.mxu0 0
      %9645 = vmatpush1.bf16.msra.mxu0 %v9593
      %9646 = vmatprep.subr.bf16.mxu0 0
      %9647 = vmatpush1.bf16.msra.mxu0 %v9594
      %9648 = vmatprep.subr.bf16.mxu0 0
      %9649 = vmatpush1.bf16.msra.mxu0 %v9595
      %9650 = vmatprep.subr.bf16.mxu0 0
      %9651 = vmatpush1.bf16.msra.mxu0 %v9555
      %9652 = vmatprep.subr.bf16.mxu0 0
      %9653 = vmatpush1.bf16.msra.mxu0 %v9557
      %9654 = vmatprep.subr.bf16.mxu0 0
      %9655 = vmatpush1.bf16.msra.mxu0 %v9559
      %9656 = vmatprep.subr.bf16.mxu0 0
      %9657 = vmatpush1.bf16.msra.mxu0 %v9561
      %9658 = vmatprep.subr.bf16.mxu0 0
      %9659 = vmatpush1.bf16.msra.mxu0 %v9563
      %9660 = vmatprep.subr.bf16.mxu0 0
      %9661 = vmatpush1.bf16.msra.mxu0 %v9565
      %9662 = vmatprep.subr.bf16.mxu0 0
      %9663 = vmatpush1.bf16.msra.mxu0 %v9596
      %9664 = vmatprep.subr.bf16.mxu0 0
      %9665 = vmatpush1.bf16.msra.mxu0 %v9597
      %9666 = vmatprep.subr.bf16.mxu0 0
      %9667 = vmatpush1.bf16.msra.mxu0 %v9598
      %9668 = vmatprep.subr.bf16.mxu0 0
      %9669 = vmatpush1.bf16.msra.mxu0 %v9599
      %9670 = vmatprep.mubr.bf16.mxu0 %v9501
      %9671 = vmatmul.mubr.bf16.gmra.mrb[0].mxu0 %v9500
      %v9672 = vpop.f32.mrb[0].mxu0
      %v9673 = vadd.f32 0.0, %v9672
      %v9674 = vpop.f32.mrb[0].mxu0
      %v9675 = vpop.f32.mrb[0].mxu0
      %v9676 = vadd.f32 0.0, %v9675
      %v9677 = vpop.f32.mrb[0].mxu0
      %9678 = vmatprep.mubr.bf16.mxu0 %v9504
      %9679 = vmatmul.mubr.bf16.gmra.mrb[0].mxu0 %v9503
      %v9680 = vpop.f32.mrb[0].mxu0
      %v9681 = vadd.f32 0.0, %v9680
      %v9682 = vpop.f32.mrb[0].mxu0
      %v9683 = vpop.f32.mrb[0].mxu0
      %v9684 = vadd.f32 0.0, %v9683
      %v9685 = vpop.f32.mrb[0].mxu0
      %9686 = vmatprep.mubr.bf16.mxu0 %v9507
      %9687 = vmatmul.mubr.bf16.gmra.mrb[0].mxu0 %v9506
      %v9688 = vpop.f32.mrb[0].mxu0
      %v9689 = vadd.f32 0.0, %v9688
      %v9690 = vpop.f32.mrb[0].mxu0
      %v9691 = vpop.f32.mrb[0].mxu0
      %v9692 = vadd.f32 0.0, %v9691
      %v9693 = vpop.f32.mrb[0].mxu0
      %9694 = vmatprep.mubr.bf16.mxu0 %v9510
      %9695 = vmatmul.mubr.bf16.gmra.mrb[0].mxu0 %v9509
      %v9696 = vpop.f32.mrb[0].mxu0
      %v9697 = vadd.f32 0.0, %v9696
      %v9698 = vpop.f32.mrb[0].mxu0
      %v9699 = vpop.f32.mrb[0].mxu0
      %v9700 = vadd.f32 0.0, %v9699
      %v9701 = vpop.f32.mrb[0].mxu0
      %9702 = vmatprep.mubr.bf16.mxu0 %v9513
      %9703 = vmatmul.mubr.bf16.gmra.mrb[0].mxu0 %v9512
      %v9704 = vpop.f32.mrb[0].mxu0
      %v9705 = vadd.f32 0.0, %v9704
      %v9706 = vpop.f32.mrb[0].mxu0
      %v9707 = vpop.f32.mrb[0].mxu0
      %v9708 = vadd.f32 0.0, %v9707
      %v9709 = vpop.f32.mrb[0].mxu0
      %9710 = vmatprep.mubr.bf16.mxu0 %v9516
      %9711 = vmatmul.mubr.bf16.gmra.mrb[0].mxu0 %v9515
      %v9712 = vpop.f32.mrb[0].mxu0
      %v9713 = vadd.f32 0.0, %v9712
      %v9714 = vpop.f32.mrb[0].mxu0
      %v9715 = vpop.f32.mrb[0].mxu0
      %v9716 = vadd.f32 0.0, %v9715
      %v9717 = vpop.f32.mrb[0].mxu0
      %9718 = vdwg.mxu0
      %9719 = vmatprep.subr.bf16.mxu0 0
      %9720 = vmatpush1.bf16.msra.mxu0 %v9600
      %9721 = vmatprep.subr.bf16.mxu0 0
      %9722 = vmatpush1.bf16.msra.mxu0 %v9601
      %9723 = vmatprep.subr.bf16.mxu0 0
      %9724 = vmatpush1.bf16.msra.mxu0 0
      %9725 = vmatprep.subr.bf16.mxu0 0
      %9726 = vmatpush1.bf16.msra.mxu0 0
      %9727 = vmatprep.subr.bf16.mxu0 0
      %9728 = vmatpush1.bf16.msra.mxu0 0
      %9729 = vmatprep.subr.bf16.mxu0 0
      %9730 = vmatpush1.bf16.msra.mxu0 0
      %9731 = vmatprep.subr.bf16.mxu0 0
      %9732 = vmatpush1.bf16.msra.mxu0 0
      %9733 = vmatprep.subr.bf16.mxu0 0
      %9734 = vmatpush1.bf16.msra.mxu0 0
      %9735 = vmatprep.subr.bf16.mxu0 0
      %9736 = vmatpush1.bf16.msra.mxu0 0
      %9737 = vmatprep.subr.bf16.mxu0 0
      %9738 = vmatpush1.bf16.msra.mxu0 0
      %9739 = vmatprep.subr.bf16.mxu0 0
      %9740 = vmatpush1.bf16.msra.mxu0 0
      %9741 = vmatprep.subr.bf16.mxu0 0
      %9742 = vmatpush1.bf16.msra.mxu0 0
      %9743 = vmatprep.subr.bf16.mxu0 0
      %9744 = vmatpush1.bf16.msra.mxu0 0
      %9745 = vmatprep.subr.bf16.mxu0 0
      %9746 = vmatpush1.bf16.msra.mxu0 0
      %9747 = vmatprep.subr.bf16.mxu0 0
      %9748 = vmatpush1.bf16.msra.mxu0 0
      %9749 = vmatprep.subr.bf16.mxu0 0
      %9750 = vmatpush1.bf16.msra.mxu0 0
      %9751 = vmatprep.mubr.bf16.mxu0 0
      %9752 = vmatmul.mubr.bf16.gmra.mrb[0].mxu0 %v9621
      %v9753 = vpop.f32.mrb[0].mxu0
      %v9754 = vadd.f32 %v9673, %v9753
      %v9755 = vpop.f32.mrb[0].mxu0
      %v9756 = vpop.f32.mrb[0].mxu0
      %v9757 = vadd.f32 %v9676, %v9756
      %v9758 = vpop.f32.mrb[0].mxu0
      %9759 = vmatprep.mubr.bf16.mxu0 0
      %9760 = vmatmul.mubr.bf16.gmra.mrb[0].mxu0 %v9624
      %v9761 = vpop.f32.mrb[0].mxu0
      %v9762 = vadd.f32 %v9681, %v9761
      %v9763 = vpop.f32.mrb[0].mxu0
      %v9764 = vpop.f32.mrb[0].mxu0
      %v9765 = vadd.f32 %v9684, %v9764
      %v9766 = vpop.f32.mrb[0].mxu0
      %9767 = vmatprep.mubr.bf16.mxu0 0
      %9768 = vmatmul.mubr.bf16.gmra.mrb[0].mxu0 %v9627
      %v9769 = vpop.f32.mrb[0].mxu0
      %v9770 = vadd.f32 %v9689, %v9769
      %v9771 = vpop.f32.mrb[0].mxu0
      %v9772 = vpop.f32.mrb[0].mxu0
      %v9773 = vadd.f32 %v9692, %v9772
      %v9774 = vpop.f32.mrb[0].mxu0
      %9775 = vmatprep.mubr.bf16.mxu0 0
      %9776 = vmatmul.mubr.bf16.gmra.mrb[0].mxu0 %v9630
      %v9777 = vpop.f32.mrb[0].mxu0
      %v9778 = vadd.f32 %v9697, %v9777
      %v9779 = vpop.f32.mrb[0].mxu0
      %v9780 = vpop.f32.mrb[0].mxu0
      %v9781 = vadd.f32 %v9700, %v9780
      %v9782 = vpop.f32.mrb[0].mxu0
      %9783 = vmatprep.mubr.bf16.mxu0 0
      %9784 = vmatmul.mubr.bf16.gmra.mrb[0].mxu0 %v9633
      %v9785 = vpop.f32.mrb[0].mxu0
      %v9786 = vadd.f32 %v9705, %v9785
      %v9787 = vpop.f32.mrb[0].mxu0
      %v9788 = vpop.f32.mrb[0].mxu0
      %v9789 = vadd.f32 %v9708, %v9788
      %v9790 = vpop.f32.mrb[0].mxu0
      %9791 = vmatprep.mubr.bf16.mxu0 0
      %9792 = vmatmul.mubr.bf16.gmra.mrb[0].mxu0 %v9636
      %v9793 = vpop.f32.mrb[0].mxu0
      %v9794 = vadd.f32 %v9713, %v9793
      %v9795 = vpop.f32.mrb[0].mxu0
      %v9796 = vpop.f32.mrb[0].mxu0
      %v9797 = vadd.f32 %v9716, %v9796
      %v9798 = vpop.f32.mrb[0].mxu0
      %9799 = vdwg.mxu0
      %v9800 = vadd.f32 %v9404, %v9754
      %v9801 = vadd.f32 %v9405, %v9757
      %v9802 = vadd.f32 %v9406, %v9762
      %v9803 = vadd.f32 %v9407, %v9765
      %v9804 = vadd.f32 %v9408, %v9770
      %v9805 = vadd.f32 %v9409, %v9773
      %v9806 = vadd.f32 %v9410, %v9778
      %v9807 = vadd.f32 %v9411, %v9781
      %v9808 = vadd.f32 %v9412, %v9786
      %v9809 = vadd.f32 %v9413, %v9789
      %v9810 = vadd.f32 %v9414, %v9794
      %v9811 = vadd.f32 %v9415, %v9797
      %9812 = vrot.lane.b32.xlu0 %v8678, 112
      %v9813 = vpop.permute.xlu0 %9812
      %9814 = vrot.lane.b32.xlu0 %v8679, 112
      %v9815 = vpop.permute.xlu0 %9814
      %9816 = vrot.lane.b32.xlu0 %v8680, 112
      %v9817 = vpop.permute.xlu0 %9816
      %9818 = vrot.lane.b32.xlu0 %v8681, 112
      %v9819 = vpop.permute.xlu0 %9818
      %9820 = vrot.lane.b32.xlu0 %v8682, 112
      %v9821 = vpop.permute.xlu0 %9820
      %9822 = vrot.lane.b32.xlu0 %v8683, 112
      %v9823 = vpop.permute.xlu0 %9822
      %9824 = vrot.lane.b32.xlu0 %v8684, 112
      %v9825 = vpop.permute.xlu0 %9824
      %9826 = vrot.lane.b32.xlu0 %v8685, 112
      %v9827 = vpop.permute.xlu0 %9826
      %9828 = vrot.lane.b32.xlu0 %v8686, 112
      %v9829 = vpop.permute.xlu0 %9828
      %9830 = vrot.lane.b32.xlu0 %v8687, 112
      %v9831 = vpop.permute.xlu0 %9830
      %9832 = vrot.lane.b32.xlu0 %v8688, 112
      %v9833 = vpop.permute.xlu0 %9832
      %9834 = vrot.lane.b32.xlu0 %v8689, 112
      %v9835 = vpop.permute.xlu0 %9834
      %9836 = vrot.lane.b32.xlu0 %v8690, 112
      %v9837 = vpop.permute.xlu0 %9836
      %9838 = vrot.lane.b32.xlu0 %v8691, 112
      %v9839 = vpop.permute.xlu0 %9838
      %9840 = vrot.lane.b32.xlu0 %v8692, 112
      %v9841 = vpop.permute.xlu0 %9840
      %9842 = vrot.lane.b32.xlu0 %v8693, 112
      %v9843 = vpop.permute.xlu0 %9842
      %9844 = vrot.lane.b32.xlu0 %v8694, 112
      %v9845 = vpop.permute.xlu0 %9844
      %9846 = vrot.lane.b32.xlu0 %v8695, 112
      %v9847 = vpop.permute.xlu0 %9846
      %9848 = vrot.lane.b32.xlu0 %v8696, 112
      %v9849 = vpop.permute.xlu0 %9848
      %9850 = vrot.lane.b32.xlu0 %v8697, 112
      %v9851 = vpop.permute.xlu0 %9850
      %9852 = vrot.lane.b32.xlu0 %v8698, 112
      %v9853 = vpop.permute.xlu0 %9852
      %9854 = vrot.lane.b32.xlu0 %v8699, 112
      %v9855 = vpop.permute.xlu0 %9854
      %9856 = vrot.lane.b32.xlu0 %v8700, 112
      %v9857 = vpop.permute.xlu0 %9856
      %9858 = vrot.lane.b32.xlu0 %v8701, 112
      %v9859 = vpop.permute.xlu0 %9858
      %v9860 = vsel %vm1189, %v9813, %v9815
      %v9861 = vsel %vm1189, %v9817, %v9819
      %v9862 = vsel %vm1189, %v9821, %v9823
      %v9863 = vsel %vm1189, %v9825, %v9827
      %v9864 = vsel %vm1189, %v9829, %v9831
      %v9865 = vsel %vm1189, %v9833, %v9835
      %v9866 = vsel %vm1189, %v9837, %v9839
      %v9867 = vsel %vm1189, %v9841, %v9843
      %v9868 = vsel %vm1189, %v9845, %v9847
      %v9869 = vsel %vm1189, %v9849, %v9851
      %v9870 = vsel %vm1189, %v9853, %v9855
      %v9871 = vsel %vm1189, %v9857, %v9859
      %v9896 = vld [vmem:[%s8179] sm:$0xff]
      %v9897 = vld [vmem:[%s8179 + $0x8] sm:$0xf]
      %v9898 = vld [vmem:[%s8179 + $0xc] sm:$0xff]
      %v9899 = vld [vmem:[%s8179 + $0x14] sm:$0xf]
      %v9900 = vld [vmem:[%s8179 + $0x18] sm:$0xff]
      %v9901 = vld [vmem:[%s8179 + $0x20] sm:$0xf]
      %v9902 = vld [vmem:[%s8179 + $0x24] sm:$0xff]
      %v9903 = vld [vmem:[%s8179 + $0x2c] sm:$0xf]
      %v9904 = vld [vmem:[%s8179 + $0x30] sm:$0xff]
      %v9905 = vld [vmem:[%s8179 + $0x38] sm:$0xf]
      %v9906 = vld [vmem:[%s8179 + $0x3c] sm:$0xff]
      %v9907 = vld [vmem:[%s8179 + $0x44] sm:$0xf]
      %v9908 = vld [vmem:[%s8179 + $0x48] sm:$0xff]
      %v9909 = vld [vmem:[%s8179 + $0x50] sm:$0xf]
      %v9910 = vld [vmem:[%s8179 + $0x54] sm:$0xff]
      %v9911 = vld [vmem:[%s8179 + $0x5c] sm:$0xf]
      %v9912 = vld [vmem:[%s8179 + $0x60] sm:$0xff]
      %v9913 = vld [vmem:[%s8179 + $0x68] sm:$0xf]
      %v9914 = vld [vmem:[%s8179 + $0x6c] sm:$0xff]
      %v9915 = vld [vmem:[%s8179 + $0x74] sm:$0xf]
      %v9916 = vld [vmem:[%s8179 + $0x78] sm:$0xff]
      %v9917 = vld [vmem:[%s8179 + $0x80] sm:$0xf]
      %v9918 = vld [vmem:[%s8179 + $0x84] sm:$0xff]
      %v9919 = vld [vmem:[%s8179 + $0x8c] sm:$0xf]
      %v9920 = vpack.c.bf16 %v9817, %v9813
      %v9921 = vpack.c.bf16 %v9861, %v9860
      %v9922 = vpack.c.bf16 %v9825, %v9821
      %v9923 = vpack.c.bf16 %v9863, %v9862
      %v9924 = vpack.c.bf16 %v9833, %v9829
      %v9925 = vpack.c.bf16 %v9865, %v9864
      %v9926 = vpack.c.bf16 %v9841, %v9837
      %v9927 = vpack.c.bf16 %v9867, %v9866
      %v9928 = vpack.c.bf16 %v9849, %v9845
      %v9929 = vpack.c.bf16 %v9869, %v9868
      %v9930 = vpack.c.bf16 %v9857, %v9853
      %v9931 = vpack.c.bf16 %v9871, %v9870
      %v9956 = vunpack.c.l.b16 %v9896
      %v9957 = vunpack.c.h.b16 %v9896
      %v9958 = vunpack.c.l.b16 %v9897
      %v9959 = vunpack.c.l.b16 %v9898
      %v9960 = vunpack.c.h.b16 %v9898
      %v9961 = vunpack.c.l.b16 %v9899
      %v9962 = vunpack.c.l.b16 %v9900
      %v9963 = vunpack.c.h.b16 %v9900
      %v9964 = vunpack.c.l.b16 %v9901
      %v9965 = vunpack.c.l.b16 %v9902
      %v9966 = vunpack.c.h.b16 %v9902
      %v9967 = vunpack.c.l.b16 %v9903
      %v9968 = vunpack.c.l.b16 %v9904
      %v9969 = vunpack.c.h.b16 %v9904
      %v9970 = vunpack.c.l.b16 %v9905
      %v9971 = vunpack.c.l.b16 %v9906
      %v9972 = vunpack.c.h.b16 %v9906
      %v9973 = vunpack.c.l.b16 %v9907
      %v9974 = vunpack.c.l.b16 %v9908
      %v9975 = vunpack.c.h.b16 %v9908
      %v9976 = vunpack.c.l.b16 %v9909
      %v9977 = vunpack.c.l.b16 %v9910
      %v9978 = vunpack.c.h.b16 %v9910
      %v9979 = vunpack.c.l.b16 %v9911
      %v9980 = vunpack.c.l.b16 %v9912
      %v9981 = vunpack.c.h.b16 %v9912
      %v9982 = vunpack.c.l.b16 %v9913
      %v9983 = vunpack.c.l.b16 %v9914
      %v9984 = vunpack.c.h.b16 %v9914
      %v9985 = vunpack.c.l.b16 %v9915
      %v9986 = vunpack.c.l.b16 %v9916
      %v9987 = vunpack.c.h.b16 %v9916
      %v9988 = vunpack.c.l.b16 %v9917
      %v9989 = vunpack.c.l.b16 %v9918
      %v9990 = vunpack.c.h.b16 %v9918
      %v9991 = vunpack.c.l.b16 %v9919
      %v9992 = vpack.c.b16 %v9959, %v9956
      %v9993 = vpack.c.b16 %v9960, %v9957
      %v9994 = vpack.c.b16 %v9961, %v9958
      %v9995 = vpack.c.b16 %v9965, %v9962
      %v9996 = vpack.c.b16 %v9966, %v9963
      %v9997 = vpack.c.b16 %v9967, %v9964
      %v9998 = vpack.c.b16 %v9971, %v9968
      %v9999 = vpack.c.b16 %v9972, %v9969
      %v10000 = vpack.c.b16 %v9973, %v9970
      %v10001 = vpack.c.b16 %v9977, %v9974
      %v10002 = vpack.c.b16 %v9978, %v9975
      %v10003 = vpack.c.b16 %v9979, %v9976
      %v10004 = vpack.c.b16 %v9983, %v9980
      %v10005 = vpack.c.b16 %v9984, %v9981
      %v10006 = vpack.c.b16 %v9985, %v9982
      %v10007 = vpack.c.b16 %v9989, %v9986
      %v10008 = vpack.c.b16 %v9990, %v9987
      %v10009 = vpack.c.b16 %v9991, %v9988
      %10034 = vrot.lane.b32.xlu0 %v8942, 15
      %v10035 = vpop.permute.xlu0 %10034
      %10036 = vrot.lane.b32.xlu0 %v8943, 15
      %v10037 = vpop.permute.xlu0 %10036
      %10038 = vrot.lane.b32.xlu0 %v8944, 15
      %v10039 = vpop.permute.xlu0 %10038
      %10040 = vrot.lane.b32.xlu0 %v8945, 15
      %v10041 = vpop.permute.xlu0 %10040
      %10042 = vrot.lane.b32.xlu0 %v8946, 15
      %v10043 = vpop.permute.xlu0 %10042
      %10044 = vrot.lane.b32.xlu0 %v8947, 15
      %v10045 = vpop.permute.xlu0 %10044
      %10046 = vrot.lane.b32.xlu0 %v8948, 15
      %v10047 = vpop.permute.xlu0 %10046
      %10048 = vrot.lane.b32.xlu0 %v8949, 15
      %v10049 = vpop.permute.xlu0 %10048
      %10050 = vrot.lane.b32.xlu0 %v8950, 15
      %v10051 = vpop.permute.xlu0 %10050
      %10052 = vrot.lane.b32.xlu0 %v8951, 15
      %v10053 = vpop.permute.xlu0 %10052
      %10054 = vrot.lane.b32.xlu0 %v8952, 15
      %v10055 = vpop.permute.xlu0 %10054
      %10056 = vrot.lane.b32.xlu0 %v8953, 15
      %v10057 = vpop.permute.xlu0 %10056
      %10058 = vrot.lane.b32.xlu0 %v9920, 15
      %v10059 = vpop.permute.xlu0 %10058
      %10060 = vrot.lane.b32.xlu0 %v9921, 15
      %v10061 = vpop.permute.xlu0 %10060
      %10062 = vrot.lane.b32.xlu0 %v9922, 15
      %v10063 = vpop.permute.xlu0 %10062
      %10064 = vrot.lane.b32.xlu0 %v9923, 15
      %v10065 = vpop.permute.xlu0 %10064
      %10066 = vrot.lane.b32.xlu0 %v9924, 15
      %v10067 = vpop.permute.xlu0 %10066
      %10068 = vrot.lane.b32.xlu0 %v9925, 15
      %v10069 = vpop.permute.xlu0 %10068
      %10070 = vrot.lane.b32.xlu0 %v9926, 15
      %v10071 = vpop.permute.xlu0 %10070
      %10072 = vrot.lane.b32.xlu0 %v9927, 15
      %v10073 = vpop.permute.xlu0 %10072
      %10074 = vrot.lane.b32.xlu0 %v9928, 15
      %v10075 = vpop.permute.xlu0 %10074
      %10076 = vrot.lane.b32.xlu0 %v9929, 15
      %v10077 = vpop.permute.xlu0 %10076
      %10078 = vrot.lane.b32.xlu0 %v9930, 15
      %v10079 = vpop.permute.xlu0 %10078
      %10080 = vrot.lane.b32.xlu0 %v9931, 15
      %v10081 = vpop.permute.xlu0 %10080
      %10082 = vrot.lane.b32.xlu0 %v8966, 15
      %v10083 = vpop.permute.xlu0 %10082
      %10084 = vrot.lane.b32.xlu0 %v8967, 15
      %v10085 = vpop.permute.xlu0 %10084
      %10086 = vrot.lane.b32.xlu0 %v8968, 15
      %v10087 = vpop.permute.xlu0 %10086
      %10088 = vrot.lane.b32.xlu0 %v8969, 15
      %v10089 = vpop.permute.xlu0 %10088
      %10090 = vrot.lane.b32.xlu0 %v8970, 15
      %v10091 = vpop.permute.xlu0 %10090
      %10092 = vrot.lane.b32.xlu0 %v8971, 15
      %v10093 = vpop.permute.xlu0 %10092
      %10094 = vrot.lane.b32.xlu0 %v8972, 15
      %v10095 = vpop.permute.xlu0 %10094
      %10096 = vrot.lane.b32.xlu0 %v8973, 15
      %v10097 = vpop.permute.xlu0 %10096
      %10098 = vrot.lane.b32.xlu0 %v8974, 15
      %v10099 = vpop.permute.xlu0 %10098
      %10100 = vrot.lane.b32.xlu0 %v8975, 15
      %v10101 = vpop.permute.xlu0 %10100
      %10102 = vrot.lane.b32.xlu0 %v8976, 15
      %v10103 = vpop.permute.xlu0 %10102
      %10104 = vrot.lane.b32.xlu0 %v8977, 15
      %v10105 = vpop.permute.xlu0 %10104
      %v10106 = vsel %vm5648, %v10035, %v10037
      %v10107 = vsel %vm5648, %v10039, %v10041
      %v10108 = vsel %vm5648, %v10043, %v10045
      %v10109 = vsel %vm5648, %v10047, %v10049
      %v10110 = vsel %vm5648, %v10051, %v10053
      %v10111 = vsel %vm5648, %v10055, %v10057
      %v10112 = vsel %vm5648, %v10059, %v10061
      %v10113 = vsel %vm5648, %v10063, %v10065
      %v10114 = vsel %vm5648, %v10067, %v10069
      %v10115 = vsel %vm5648, %v10071, %v10073
      %v10116 = vsel %vm5648, %v10075, %v10077
      %v10117 = vsel %vm5648, %v10079, %v10081
      %v10118 = vsel %vm5648, %v10083, %v10085
      %v10119 = vsel %vm5648, %v10087, %v10089
      %v10120 = vsel %vm5648, %v10091, %v10093
      %v10121 = vsel %vm5648, %v10095, %v10097
      %v10122 = vsel %vm5648, %v10099, %v10101
      %v10123 = vsel %vm5648, %v10103, %v10105
      %v10143 = vsel %vm7529, %v9994, 0
      %v10146 = vsel %vm7529, %v9997, 0
      %v10149 = vsel %vm7529, %v10000, 0
      %v10152 = vsel %vm7529, %v10003, 0
      %v10155 = vsel %vm7529, %v10006, 0
      %v10158 = vsel %vm7529, %v10009, 0
      %10160 = vmatprep.subr.bf16.mxu0 0
      %10161 = vmatpush1.bf16.msra.mxu0 %v10106
      %10162 = vmatprep.subr.bf16.mxu0 0
      %10163 = vmatpush1.bf16.msra.mxu0 %v10107
      %10164 = vmatprep.subr.bf16.mxu0 0
      %10165 = vmatpush1.bf16.msra.mxu0 %v10108
      %10166 = vmatprep.subr.bf16.mxu0 0
      %10167 = vmatpush1.bf16.msra.mxu0 %v10109
      %10168 = vmatprep.subr.bf16.mxu0 0
      %10169 = vmatpush1.bf16.msra.mxu0 %v10110
      %10170 = vmatprep.subr.bf16.mxu0 0
      %10171 = vmatpush1.bf16.msra.mxu0 %v10111
      %10172 = vmatprep.subr.bf16.mxu0 0
      %10173 = vmatpush1.bf16.msra.mxu0 %v10112
      %10174 = vmatprep.subr.bf16.mxu0 0
      %10175 = vmatpush1.bf16.msra.mxu0 %v10113
      %10176 = vmatprep.subr.bf16.mxu0 0
      %10177 = vmatpush1.bf16.msra.mxu0 %v10114
      %10178 = vmatprep.subr.bf16.mxu0 0
      %10179 = vmatpush1.bf16.msra.mxu0 %v10115
      %10180 = vmatprep.subr.bf16.mxu0 0
      %10181 = vmatpush1.bf16.msra.mxu0 %v10116
      %10182 = vmatprep.subr.bf16.mxu0 0
      %10183 = vmatpush1.bf16.msra.mxu0 %v10117
      %10184 = vmatprep.subr.bf16.mxu0 0
      %10185 = vmatpush1.bf16.msra.mxu0 %v10118
      %10186 = vmatprep.subr.bf16.mxu0 0
      %10187 = vmatpush1.bf16.msra.mxu0 %v10119
      %10188 = vmatprep.subr.bf16.mxu0 0
      %10189 = vmatpush1.bf16.msra.mxu0 %v10120
      %10190 = vmatprep.subr.bf16.mxu0 0
      %10191 = vmatpush1.bf16.msra.mxu0 %v10121
      %10192 = vmatprep.mubr.bf16.mxu0 %v9993
      %10193 = vmatmul.mubr.bf16.gmra.mrb[0].mxu0 %v9992
      %v10194 = vpop.f32.mrb[0].mxu0
      %v10195 = vadd.f32 0.0, %v10194
      %v10196 = vpop.f32.mrb[0].mxu0
      %v10197 = vpop.f32.mrb[0].mxu0
      %v10198 = vadd.f32 0.0, %v10197
      %v10199 = vpop.f32.mrb[0].mxu0
      %10200 = vmatprep.mubr.bf16.mxu0 %v9996
      %10201 = vmatmul.mubr.bf16.gmra.mrb[0].mxu0 %v9995
      %v10202 = vpop.f32.mrb[0].mxu0
      %v10203 = vadd.f32 0.0, %v10202
      %v10204 = vpop.f32.mrb[0].mxu0
      %v10205 = vpop.f32.mrb[0].mxu0
      %v10206 = vadd.f32 0.0, %v10205
      %v10207 = vpop.f32.mrb[0].mxu0
      %10208 = vmatprep.mubr.bf16.mxu0 %v9999
      %10209 = vmatmul.mubr.bf16.gmra.mrb[0].mxu0 %v9998
      %v10210 = vpop.f32.mrb[0].mxu0
      %v10211 = vadd.f32 0.0, %v10210
      %v10212 = vpop.f32.mrb[0].mxu0
      %v10213 = vpop.f32.mrb[0].mxu0
      %v10214 = vadd.f32 0.0, %v10213
      %v10215 = vpop.f32.mrb[0].mxu0
      %10216 = vmatprep.mubr.bf16.mxu0 %v10002
      %10217 = vmatmul.mubr.bf16.gmra.mrb[0].mxu0 %v10001
      %v10218 = vpop.f32.mrb[0].mxu0
      %v10219 = vadd.f32 0.0, %v10218
      %v10220 = vpop.f32.mrb[0].mxu0
      %v10221 = vpop.f32.mrb[0].mxu0
      %v10222 = vadd.f32 0.0, %v10221
      %v10223 = vpop.f32.mrb[0].mxu0
      %10224 = vmatprep.mubr.bf16.mxu0 %v10005
      %10225 = vmatmul.mubr.bf16.gmra.mrb[0].mxu0 %v10004
      %v10226 = vpop.f32.mrb[0].mxu0
      %v10227 = vadd.f32 0.0, %v10226
      %v10228 = vpop.f32.mrb[0].mxu0
      %v10229 = vpop.f32.mrb[0].mxu0
      %v10230 = vadd.f32 0.0, %v10229
      %v10231 = vpop.f32.mrb[0].mxu0
      %10232 = vmatprep.mubr.bf16.mxu0 %v10008
      %10233 = vmatmul.mubr.bf16.gmra.mrb[0].mxu0 %v10007
      %v10234 = vpop.f32.mrb[0].mxu0
      %v10235 = vadd.f32 0.0, %v10234
      %v10236 = vpop.f32.mrb[0].mxu0
      %v10237 = vpop.f32.mrb[0].mxu0
      %v10238 = vadd.f32 0.0, %v10237
      %v10239 = vpop.f32.mrb[0].mxu0
      %10240 = vdwg.mxu0
      %10241 = vmatprep.subr.bf16.mxu0 0
      %10242 = vmatpush1.bf16.msra.mxu0 %v10122
      %10243 = vmatprep.subr.bf16.mxu0 0
      %10244 = vmatpush1.bf16.msra.mxu0 %v10123
      %10245 = vmatprep.subr.bf16.mxu0 0
      %10246 = vmatpush1.bf16.msra.mxu0 0
      %10247 = vmatprep.subr.bf16.mxu0 0
      %10248 = vmatpush1.bf16.msra.mxu0 0
      %10249 = vmatprep.subr.bf16.mxu0 0
      %10250 = vmatpush1.bf16.msra.mxu0 0
      %10251 = vmatprep.subr.bf16.mxu0 0
      %10252 = vmatpush1.bf16.msra.mxu0 0
      %10253 = vmatprep.subr.bf16.mxu0 0
      %10254 = vmatpush1.bf16.msra.mxu0 0
      %10255 = vmatprep.subr.bf16.mxu0 0
      %10256 = vmatpush1.bf16.msra.mxu0 0
      %10257 = vmatprep.subr.bf16.mxu0 0
      %10258 = vmatpush1.bf16.msra.mxu0 0
      %10259 = vmatprep.subr.bf16.mxu0 0
      %10260 = vmatpush1.bf16.msra.mxu0 0
      %10261 = vmatprep.subr.bf16.mxu0 0
      %10262 = vmatpush1.bf16.msra.mxu0 0
      %10263 = vmatprep.subr.bf16.mxu0 0
      %10264 = vmatpush1.bf16.msra.mxu0 0
      %10265 = vmatprep.subr.bf16.mxu0 0
      %10266 = vmatpush1.bf16.msra.mxu0 0
      %10267 = vmatprep.subr.bf16.mxu0 0
      %10268 = vmatpush1.bf16.msra.mxu0 0
      %10269 = vmatprep.subr.bf16.mxu0 0
      %10270 = vmatpush1.bf16.msra.mxu0 0
      %10271 = vmatprep.subr.bf16.mxu0 0
      %10272 = vmatpush1.bf16.msra.mxu0 0
      %10273 = vmatprep.mubr.bf16.mxu0 0
      %10274 = vmatmul.mubr.bf16.gmra.mrb[0].mxu0 %v10143
      %v10275 = vpop.f32.mrb[0].mxu0
      %v10276 = vadd.f32 %v10195, %v10275
      %v10277 = vpop.f32.mrb[0].mxu0
      %v10278 = vpop.f32.mrb[0].mxu0
      %v10279 = vadd.f32 %v10198, %v10278
      %v10280 = vpop.f32.mrb[0].mxu0
      %10281 = vmatprep.mubr.bf16.mxu0 0
      %10282 = vmatmul.mubr.bf16.gmra.mrb[0].mxu0 %v10146
      %v10283 = vpop.f32.mrb[0].mxu0
      %v10284 = vadd.f32 %v10203, %v10283
      %v10285 = vpop.f32.mrb[0].mxu0
      %v10286 = vpop.f32.mrb[0].mxu0
      %v10287 = vadd.f32 %v10206, %v10286
      %v10288 = vpop.f32.mrb[0].mxu0
      %10289 = vmatprep.mubr.bf16.mxu0 0
      %10290 = vmatmul.mubr.bf16.gmra.mrb[0].mxu0 %v10149
      %v10291 = vpop.f32.mrb[0].mxu0
      %v10292 = vadd.f32 %v10211, %v10291
      %v10293 = vpop.f32.mrb[0].mxu0
      %v10294 = vpop.f32.mrb[0].mxu0
      %v10295 = vadd.f32 %v10214, %v10294
      %v10296 = vpop.f32.mrb[0].mxu0
      %10297 = vmatprep.mubr.bf16.mxu0 0
      %10298 = vmatmul.mubr.bf16.gmra.mrb[0].mxu0 %v10152
      %v10299 = vpop.f32.mrb[0].mxu0
      %v10300 = vadd.f32 %v10219, %v10299
      %v10301 = vpop.f32.mrb[0].mxu0
      %v10302 = vpop.f32.mrb[0].mxu0
      %v10303 = vadd.f32 %v10222, %v10302
      %v10304 = vpop.f32.mrb[0].mxu0
      %10305 = vmatprep.mubr.bf16.mxu0 0
      %10306 = vmatmul.mubr.bf16.gmra.mrb[0].mxu0 %v10155
      %v10307 = vpop.f32.mrb[0].mxu0
      %v10308 = vadd.f32 %v10227, %v10307
      %v10309 = vpop.f32.mrb[0].mxu0
      %v10310 = vpop.f32.mrb[0].mxu0
      %v10311 = vadd.f32 %v10230, %v10310
      %v10312 = vpop.f32.mrb[0].mxu0
      %10313 = vmatprep.mubr.bf16.mxu0 0
      %10314 = vmatmul.mubr.bf16.gmra.mrb[0].mxu0 %v10158
      %v10315 = vpop.f32.mrb[0].mxu0
      %v10316 = vadd.f32 %v10235, %v10315
      %v10317 = vpop.f32.mrb[0].mxu0
      %v10318 = vpop.f32.mrb[0].mxu0
      %v10319 = vadd.f32 %v10238, %v10318
      %v10320 = vpop.f32.mrb[0].mxu0
      %10321 = vdwg.mxu0
      %v10322 = vsel %vm1668, %v10276, 0.0
      %v10323 = vsel %vm1668, %v10279, 0.0
      %v10324 = vsel %vm1668, %v10284, 0.0
      %v10325 = vsel %vm1668, %v10287, 0.0
      %v10326 = vsel %vm1668, %v10292, 0.0
      %v10327 = vsel %vm1668, %v10295, 0.0
      %v10328 = vsel %vm1668, %v10300, 0.0
      %v10329 = vsel %vm1668, %v10303, 0.0
      %v10330 = vsel %vm1668, %v10308, 0.0
      %v10331 = vsel %vm1668, %v10311, 0.0
      %v10332 = vsel %vm1668, %v10316, 0.0
      %v10333 = vsel %vm1668, %v10319, 0.0
      %v10334 = vadd.f32 %v9800, %v10322
      %v10335 = vadd.f32 %v9801, %v10323
      %v10336 = vadd.f32 %v9802, %v10324
      %v10337 = vadd.f32 %v9803, %v10325
      %v10338 = vadd.f32 %v9804, %v10326
      %v10339 = vadd.f32 %v9805, %v10327
      %v10340 = vadd.f32 %v9806, %v10328
      %v10341 = vadd.f32 %v9807, %v10329
      %v10342 = vadd.f32 %v9808, %v10330
      %v10343 = vadd.f32 %v9809, %v10331
      %v10344 = vadd.f32 %v9810, %v10332
      %v10345 = vadd.f32 %v9811, %v10333
      %v10346 = vadd.f32 %v10334, %v6938
      %v10347 = vadd.f32 %v10335, %v6943
      %v10348 = vadd.f32 %v10336, %v6948
      %v10349 = vadd.f32 %v10337, %v6953
      %v10350 = vadd.f32 %v10338, %v6958
      %v10351 = vadd.f32 %v10339, %v6963
      %v10352 = vadd.f32 %v10340, %v6968
      %v10353 = vadd.f32 %v10341, %v6973
      %v10354 = vadd.f32 %v10342, %v6978
      %v10355 = vadd.f32 %v10343, %v6983
      %v10356 = vadd.f32 %v10344, %v6988
      %v10357 = vadd.f32 %v10345, %v6993
      %v10358 = vmax.f32 %v10346, 0.0
      %v10359 = vmax.f32 %v10347, 0.0
      %v10360 = vmax.f32 %v10348, 0.0
      %v10361 = vmax.f32 %v10349, 0.0
      %v10362 = vmax.f32 %v10350, 0.0
      %v10363 = vmax.f32 %v10351, 0.0
      %v10364 = vmax.f32 %v10352, 0.0
      %v10365 = vmax.f32 %v10353, 0.0
      %v10366 = vmax.f32 %v10354, 0.0
      %v10367 = vmax.f32 %v10355, 0.0
      %v10368 = vmax.f32 %v10356, 0.0
      %v10369 = vmax.f32 %v10357, 0.0
      %10370 = vst [vmem:[%s359 + $0x108] sm:$0xff] %v10358
      %10371 = vst [vmem:[%s359 + $0x118] sm:$0xff] %v10359
      %10372 = vst [vmem:[%s359 + $0x128] sm:$0xff] %v10360
      %10373 = vst [vmem:[%s359 + $0x138] sm:$0xff] %v10361
      %10374 = vst [vmem:[%s359 + $0x148] sm:$0xff] %v10362
      %10375 = vst [vmem:[%s359 + $0x158] sm:$0xff] %v10363
      %10376 = vst [vmem:[%s359 + $0x168] sm:$0xff] %v10364
      %10377 = vst [vmem:[%s359 + $0x178] sm:$0xff] %v10365
      %10378 = vst [vmem:[%s359 + $0x188] sm:$0xff] %v10366
      %10379 = vst [vmem:[%s359 + $0x198] sm:$0xff] %v10367
      %10380 = vst [vmem:[%s359 + $0x1a8] sm:$0xff] %v10368
      %10381 = vst [vmem:[%s359 + $0x1b8] sm:$0xff] %v10369
      %p10382 = scmp.lt.s32.totalorder %s21, 1
      %s10383 = scalar_select %p10382, %s21, 1
      %s10384 = smul.addr %s10383, 64
      %s10385 = smul.addr %s10384, 8
      %s10386 = scalar_lea.vmem %s10, %s10385
      // Predicated region
      $region65: #{inception_a_forward.1} parent=59 // pred_check
        %p10387 = pneg %p254
      $region66: #{inception_a_forward.1} parent=59 // pred_check_branch
        %10389 = sbr.rel (%p10387) target = $region68
      $region67: #{inception_a_forward.1} parent=59 // pred_region
        _
      $region68: #{inception_a_forward.1} parent=59 // pred_fallthru
        _
    $region60: #{inception_a_forward.1} parent=5 // pred_fallthru
      _
    %p10390 = scmp.le.s32.totalorder 2, %s16
    // Predicated region
    $region69: #{inception_a_forward.1} parent=5 // pred_check
      %p10391 = pneg %p10390
    $region70: #{inception_a_forward.1} parent=5 // pred_check_branch
      %10393 = sbr.rel (%p10391) target = $region72
    $region71: #{inception_a_forward.1} parent=5 // pred_region
      %s10394 = ssub.s32 %s16, 2
      // Predicated region
      $region73: #{inception_a_forward.1} parent=71 // pred_check
        %p10395 = pneg %p260
      $region74: #{inception_a_forward.1} parent=71 // pred_check_branch
        %10397 = sbr.rel (%p10395) target = $region76
      $region75: #{inception_a_forward.1} parent=71 // pred_region
        %p10398 = scmp.lt.s32.totalorder %s22, 1
        %s10399 = scalar_select %p10398, %s22, 1
        %s10400 = smul.addr %s10399, 64
        %s10401 = smul.addr %s10400, 8
        %s10402 = scalar_lea.vmem %s10, %s10401
      $region76: #{inception_a_forward.1} parent=71 // pred_fallthru
        _
    $region72: #{inception_a_forward.1} parent=5 // pred_fallthru
      _
  $region6: #{inception_a_forward.1} parent=0 // loop_footer
    %s20 = sadd.s32 1, %s16
  $region7: #{inception_a_forward.1} parent=0 // loop_footer_branch
    %15 = sbr.rel target = $region3
  $region8: #{inception_a_forward.1} parent=0 // loop_exit
    _

</llo_original>
